<compile_context>
chip_gen: v6e
topology: v6e:2x2x1
jax: 0.10.0
libtpu: 0.0.40
codegen_flags: <defaults>
</compile_context>

<pallas_src>
import jax
import jax.numpy as jnp
from jax import lax
from jax.experimental import pallas as pl
from jax.experimental.pallas import tpu as pltpu


_VMEM_LIMIT = 32 * 1024 * 1024  # safe on v5e/v6e (128 MiB) and v7x (64 MiB)


# ----------------------------- Pallas kernels ------------------------------

def _conv_pool_relu_kernel(p_ref, w_ref, b_ref, o_ref):
    """Fused conv(3x3, pad1) -> maxpool(2) -> relu for one batch tile.

    p_ref : (TB, 4, K, S)  im2col patches per image & pool-window quadrant,
                           K = Cin*9, S = Hpool*Wpool (lane-dense spatial)
    w_ref : (Cout, K)      PyTorch OIHW weight flattened as (Cout, Cin*3*3)
    b_ref : (Cout, 1)
    o_ref : (TB, Cout, S)
    """
    tb = o_ref.shape[0]
    w = w_ref[...]
    bias = b_ref[...]
    for b in range(tb):                      # static unroll over the tile
        ys = [jnp.dot(w, p_ref[b, q], preferred_element_type=jnp.float32)
              for q in range(4)]
        pooled = jnp.maximum(jnp.maximum(ys[0], ys[1]),
                             jnp.maximum(ys[2], ys[3])) + bias
        o_ref[b] = jnp.maximum(pooled, 0.0)


def _mlp_head_kernel(x_ref, w1_ref, b1_ref, w2_ref, b2_ref, o_ref):
    """fc1 -> relu -> fc2 -> log_softmax(dim=1) for one batch tile."""
    h = jnp.dot(x_ref[...], w1_ref[...],
                preferred_element_type=jnp.float32) + b1_ref[...]
    h = jnp.maximum(h, 0.0)
    logits = jnp.dot(h, w2_ref[...],
                     preferred_element_type=jnp.float32) + b2_ref[...]
    z = logits - jnp.max(logits, axis=-1, keepdims=True)
    lse = jnp.log(jnp.sum(jnp.exp(z), axis=-1, keepdims=True))
    o_ref[...] = z - lse


# --------------------------- pallas_call wrappers ---------------------------

def conv_pool_relu(patches, w_mat, bias_col, *, tile_b):
    """patches: (Bp, 4, K, S) -> (Bp, Cout, S)."""
    bp, q, k, s = patches.shape
    cout = w_mat.shape[0]
    grid = (bp // tile_b,)
    flops = 2 * bp * q * cout * k * s
    bytes_accessed = 4 * (patches.size + w_mat.size + bias_col.size
                          + bp * cout * s)
    return pl.pallas_call(
        _conv_pool_relu_kernel,
        out_shape=jax.ShapeDtypeStruct((bp, cout, s), jnp.float32),
        grid_spec=pltpu.PrefetchScalarGridSpec(
            num_scalar_prefetch=0,
            grid=grid,
            in_specs=[
                pl.BlockSpec((tile_b, q, k, s), lambda i: (i, 0, 0, 0)),
                pl.BlockSpec((cout, k), lambda i: (0, 0)),
                pl.BlockSpec((cout, 1), lambda i: (0, 0)),
            ],
            out_specs=pl.BlockSpec((tile_b, cout, s), lambda i: (i, 0, 0)),
        ),
        compiler_params=pltpu.CompilerParams(
            dimension_semantics=("parallel",),
            vmem_limit_bytes=_VMEM_LIMIT),
        cost_estimate=pl.CostEstimate(flops=int(flops), transcendentals=0,
                                      bytes_accessed=int(bytes_accessed)),
    )(patches, w_mat, bias_col)


def mlp_head(x, w1t, b1, w2t, b2, *, tile_b):
    """x: (Bp, D) -> (Bp, n_classes).  Weights stay VMEM-resident."""
    bp, d = x.shape
    h = w1t.shape[1]
    c = w2t.shape[1]
    grid = (bp // tile_b,)
    flops = 2 * bp * (d * h + h * c)
    bytes_accessed = 4 * (x.size + w1t.size + b1.size + w2t.size + b2.size
                          + bp * c)
    return pl.pallas_call(
        _mlp_head_kernel,
        out_shape=jax.ShapeDtypeStruct((bp, c), jnp.float32),
        grid_spec=pltpu.PrefetchScalarGridSpec(
            num_scalar_prefetch=0,
            grid=grid,
            in_specs=[
                pl.BlockSpec((tile_b, d), lambda i: (i, 0)),
                pl.BlockSpec((d, h), lambda i: (0, 0)),
                pl.BlockSpec((1, h), lambda i: (0, 0)),
                pl.BlockSpec((h, c), lambda i: (0, 0)),
                pl.BlockSpec((1, c), lambda i: (0, 0)),
            ],
            out_specs=pl.BlockSpec((tile_b, c), lambda i: (i, 0)),
        ),
        compiler_params=pltpu.CompilerParams(
            dimension_semantics=("parallel",),
            vmem_limit_bytes=_VMEM_LIMIT),
        cost_estimate=pl.CostEstimate(flops=int(flops),
                                      transcendentals=int(bp * (c + 1)),
                                      bytes_accessed=int(bytes_accessed)),
    )(x, w1t, b1, w2t, b2)


# ------------------------------ host/XLA glue --------------------------------

def _pool_quadrant_patches(a):
    """a: (Bp, Cin, H, W) channel-major activations.

    Returns (Bp, 4, Cin*9, (H//2)*(W//2)) im2col patches, one K x S matrix per
    image and 2x2 pool-window quadrant.  K ordering is (ci, ky, kx), matching
    PyTorch OIHW weights flattened as (Cout, Cin*3*3); S ordering is (yo, xo).
    No transposes — only pad, strided slices, stacks and contiguous reshapes.
    """
    bp, cin, hh, ww = a.shape
    hp, wp = hh // 2, ww // 2
    ap = jnp.pad(a, ((0, 0), (0, 0), (1, 1), (1, 1)))
    quads = []
    for r in range(2):
        for c in range(2):
            taps = [ap[:, :, r + ky: r + ky + 2 * hp - 1: 2,
                       c + kx: c + kx + 2 * wp - 1: 2]
                    for ky in range(3) for kx in range(3)]   # (Bp,Cin,hp,wp)
            quads.append(jnp.stack(taps, axis=2))            # (Bp,Cin,9,hp,wp)
    p = jnp.stack(quads, axis=1)                             # (Bp,4,Cin,9,hp,wp)
    return p.reshape(bp, 4, cin * 9, hp * wp)


def net_forward(x, params, *, tile_b=8):
    """Pallas implementation of Net.forward.  x: (B, 1, 28, 28) float32."""
    (cw1, cb1), (cw2, cb2), (fw1, fb1), (fw2, fb2) = params
    bsz = x.shape[0]
    bp = ((bsz + tile_b - 1) // tile_b) * tile_b
    xi = x
    if bp != bsz:
        xi = jnp.pad(xi, ((0, bp - bsz), (0, 0), (0, 0), (0, 0)))

    # conv1 + maxpool2 + relu  (channel-major, spatial on lanes)
    p1 = _pool_quadrant_patches(xi)                          # (Bp,4,9,196)
    h1 = conv_pool_relu(p1, cw1.reshape(16, 9),
                        cb1[:, None], tile_b=tile_b)         # (Bp,16,196)

    # conv2 + maxpool2 + relu
    p2 = _pool_quadrant_patches(h1.reshape(bp, 16, 14, 14))  # (Bp,4,144,49)
    h2 = conv_pool_relu(p2, cw2.reshape(32, 16 * 9),
                        cb2[:, None], tile_b=tile_b)         # (Bp,32,49)

    # .view(-1, 32*7*7): channel-major (c, h, w) flatten == contiguous reshape
    flat = h2.reshape(bp, 32 * 49)

    # fc1 -> relu -> fc2 -> log_softmax
    out = mlp_head(flat, fw1.T, fb1[None, :], fw2.T, fb2[None, :],
                   tile_b=tile_b)
    return out[:bsz]


# ----------------------- pure-JAX reference (for check) ---------------------

def net_forward_ref(x, params):
    (cw1, cb1), (cw2, cb2), (fw1, fb1), (fw2, fb2) = params

    def conv(y, w, b):
        out = lax.conv_general_dilated(
            y, w, window_strides=(1, 1), padding=((1, 1), (1, 1)),
            dimension_numbers=("NCHW", "OIHW", "NCHW"))
        return out + b[None, :, None, None]

    def maxpool2(y):
        return lax.reduce_window(y, -jnp.inf, lax.max,
                                 (1, 1, 2, 2), (1, 1, 2, 2), "VALID")

    h = jax.nn.relu(maxpool2(conv(x, cw1, cb1)))
    h = jax.nn.relu(maxpool2(conv(h, cw2, cb2)))
    h = h.reshape(h.shape[0], -1)
    h = jax.nn.relu(h @ fw1.T + fb1)
    logits = h @ fw2.T + fb2
    return jax.nn.log_softmax(logits, axis=1)


# --------------------------------- main --------------------------------------

if __name__ == "__main__":
    key = jax.random.PRNGKey(0)
    ks = jax.random.split(key, 9)
    # Deterministic synthetic parameters (shapes from Net.__init__)
    params = (
        (0.2 * jax.random.normal(ks[0], (16, 1, 3, 3), jnp.float32),      # conv1.weight
         0.1 * jax.random.normal(ks[1], (16,), jnp.float32)),             # conv1.bias
        (0.1 * jax.random.normal(ks[2], (32, 16, 3, 3), jnp.float32),     # conv2.weight
         0.1 * jax.random.normal(ks[3], (32,), jnp.float32)),             # conv2.bias
        (0.05 * jax.random.normal(ks[4], (128, 32 * 7 * 7), jnp.float32), # fc1.weight
         0.1 * jax.random.normal(ks[5], (128,), jnp.float32)),            # fc1.bias
        (0.05 * jax.random.normal(ks[6], (10, 128), jnp.float32),         # fc2.weight
         0.1 * jax.random.normal(ks[7], (10,), jnp.float32)),             # fc2.bias
    )
    x = jax.random.normal(ks[8], (2, 1, 28, 28), jnp.float32)  # MNIST-shaped NCHW

    out = jax.block_until_ready(jax.jit(net_forward)(x, params))
    ref = jax.block_until_ready(jax.jit(net_forward_ref)(x, params))

    assert out.shape == (2, 10), out.shape
    assert jnp.allclose(out, ref, rtol=1e-2, atol=1e-2), \
        float(jnp.max(jnp.abs(out - ref)))
    print("KERNEL_OK")
</pallas_src>

<mosaic_0001>
module attributes {stable_mosaic.version = 11 : i64} {
  func.func @_conv_pool_relu_kernel(%arg0: i32, %arg1: memref<8x4x9x196xf32, #tpu.memory_space<vmem>>, %arg2: memref<16x9xf32, #tpu.memory_space<vmem>>, %arg3: memref<16x1xf32, #tpu.memory_space<vmem>>, %arg4: memref<8x16x196xf32, #tpu.memory_space<vmem>>) attributes {dimension_semantics = [#tpu.dimension_semantics<parallel>], iteration_bounds = array<i64: 1>, scalar_prefetch = 0 : i64, scratch_operands = 0 : i64, tpu.core_type = #tpu.core_type<tc>, window_params = [{transform_indices = @transform_0, window_bounds = array<i64: 8, 4, 9, 196>}, {pipeline_mode = #tpu.pipeline_mode<synchronous>, transform_indices = @transform_1, window_bounds = array<i64: 16, 9>}, {pipeline_mode = #tpu.pipeline_mode<synchronous>, transform_indices = @transform_2, window_bounds = array<i64: 16, 1>}, {transform_indices = @transform_3, window_bounds = array<i64: 8, 16, 196>}]} {
    %c0 = arith.constant 0 : index
    %c0_0 = arith.constant 0 : index
    %0 = vector.load %arg2[%c0, %c0_0] : memref<16x9xf32, #tpu.memory_space<vmem>>, vector<16x9xf32>
    %c0_1 = arith.constant 0 : index
    %c0_2 = arith.constant 0 : index
    %1 = vector.load %arg3[%c0_1, %c0_2] : memref<16x1xf32, #tpu.memory_space<vmem>>, vector<16x1xf32>
    %c0_3 = arith.constant 0 : index
    %c0_4 = arith.constant 0 : index
    %c0_5 = arith.constant 0 : index
    %c0_6 = arith.constant 0 : index
    %2 = vector.load %arg1[%c0_3, %c0_4, %c0_5, %c0_6] : memref<8x4x9x196xf32, #tpu.memory_space<vmem>>, vector<1x1x9x196xf32>
    %3 = vector.shape_cast %2 : vector<1x1x9x196xf32> to vector<9x196xf32>
    %cst = arith.constant dense<0.000000e+00> : vector<16x196xf32>
    %4 = tpu.matmul %0, %3, %cst {dimension_numbers = #tpu.dot_dimension_numbers<[1], [0], [0], [1], [0, 0, 1, 1], [], []>} : vector<16x9xf32>, vector<9x196xf32>, vector<16x196xf32> -> vector<16x196xf32>
    %c0_7 = arith.constant 0 : index
    %c1 = arith.constant 1 : index
    %c0_8 = arith.constant 0 : index
    %c0_9 = arith.constant 0 : index
    %5 = vector.load %arg1[%c0_7, %c1, %c0_8, %c0_9] : memref<8x4x9x196xf32, #tpu.memory_space<vmem>>, vector<1x1x9x196xf32>
    %6 = vector.shape_cast %5 : vector<1x1x9x196xf32> to vector<9x196xf32>
    %cst_10 = arith.constant dense<0.000000e+00> : vector<16x196xf32>
    %7 = tpu.matmul %0, %6, %cst_10 {dimension_numbers = #tpu.dot_dimension_numbers<[1], [0], [0], [1], [0, 0, 1, 1], [], []>} : vector<16x9xf32>, vector<9x196xf32>, vector<16x196xf32> -> vector<16x196xf32>
    %c0_11 = arith.constant 0 : index
    %c2 = arith.constant 2 : index
    %c0_12 = arith.constant 0 : index
    %c0_13 = arith.constant 0 : index
    %8 = vector.load %arg1[%c0_11, %c2, %c0_12, %c0_13] : memref<8x4x9x196xf32, #tpu.memory_space<vmem>>, vector<1x1x9x196xf32>
    %9 = vector.shape_cast %8 : vector<1x1x9x196xf32> to vector<9x196xf32>
    %cst_14 = arith.constant dense<0.000000e+00> : vector<16x196xf32>
    %10 = tpu.matmul %0, %9, %cst_14 {dimension_numbers = #tpu.dot_dimension_numbers<[1], [0], [0], [1], [0, 0, 1, 1], [], []>} : vector<16x9xf32>, vector<9x196xf32>, vector<16x196xf32> -> vector<16x196xf32>
    %c0_15 = arith.constant 0 : index
    %c3 = arith.constant 3 : index
    %c0_16 = arith.constant 0 : index
    %c0_17 = arith.constant 0 : index
    %11 = vector.load %arg1[%c0_15, %c3, %c0_16, %c0_17] : memref<8x4x9x196xf32, #tpu.memory_space<vmem>>, vector<1x1x9x196xf32>
    %12 = vector.shape_cast %11 : vector<1x1x9x196xf32> to vector<9x196xf32>
    %cst_18 = arith.constant dense<0.000000e+00> : vector<16x196xf32>
    %13 = tpu.matmul %0, %12, %cst_18 {dimension_numbers = #tpu.dot_dimension_numbers<[1], [0], [0], [1], [0, 0, 1, 1], [], []>} : vector<16x9xf32>, vector<9x196xf32>, vector<16x196xf32> -> vector<16x196xf32>
    %14 = arith.maximumf %4, %7 : vector<16x196xf32>
    %15 = arith.maximumf %10, %13 : vector<16x196xf32>
    %16 = arith.maximumf %14, %15 : vector<16x196xf32>
    %17 = vector.broadcast %1 : vector<16x1xf32> to vector<16x196xf32>
    %18 = arith.addf %16, %17 : vector<16x196xf32>
    %cst_19 = arith.constant 0.000000e+00 : f32
    %19 = vector.broadcast %cst_19 : f32 to vector<16x196xf32>
    %20 = arith.maximumf %18, %19 : vector<16x196xf32>
    %c0_20 = arith.constant 0 : index
    %c0_21 = arith.constant 0 : index
    %c0_22 = arith.constant 0 : index
    %21 = vector.load %arg4[%c0_20, %c0_21, %c0_22] : memref<8x16x196xf32, #tpu.memory_space<vmem>>, vector<1x16x196xf32>
    %22 = vector.shape_cast %21 : vector<1x16x196xf32> to vector<16x196xf32>
    %23 = vector.shape_cast %20 : vector<16x196xf32> to vector<1x16x196xf32>
    tpu.vector_store %arg4[%c0_20, %c0_21, %c0_22], %23 {strides = array<i32>} : memref<8x16x196xf32, #tpu.memory_space<vmem>>, vector<1x16x196xf32>,
    %c1_23 = arith.constant 1 : index
    %c0_24 = arith.constant 0 : index
    %c0_25 = arith.constant 0 : index
    %c0_26 = arith.constant 0 : index
    %24 = vector.load %arg1[%c1_23, %c0_24, %c0_25, %c0_26] : memref<8x4x9x196xf32, #tpu.memory_space<vmem>>, vector<1x1x9x196xf32>
    %25 = vector.shape_cast %24 : vector<1x1x9x196xf32> to vector<9x196xf32>
    %cst_27 = arith.constant dense<0.000000e+00> : vector<16x196xf32>
    %26 = tpu.matmul %0, %25, %cst_27 {dimension_numbers = #tpu.dot_dimension_numbers<[1], [0], [0], [1], [0, 0, 1, 1], [], []>} : vector<16x9xf32>, vector<9x196xf32>, vector<16x196xf32> -> vector<16x196xf32>
    %c1_28 = arith.constant 1 : index
    %c1_29 = arith.constant 1 : index
    %c0_30 = arith.constant 0 : index
    %c0_31 = arith.constant 0 : index
    %27 = vector.load %arg1[%c1_28, %c1_29, %c0_30, %c0_31] : memref<8x4x9x196xf32, #tpu.memory_space<vmem>>, vector<1x1x9x196xf32>
    %28 = vector.shape_cast %27 : vector<1x1x9x196xf32> to vector<9x196xf32>
    %cst_32 = arith.constant dense<0.000000e+00> : vector<16x196xf32>
    %29 = tpu.matmul %0, %28, %cst_32 {dimension_numbers = #tpu.dot_dimension_numbers<[1], [0], [0], [1], [0, 0, 1, 1], [], []>} : vector<16x9xf32>, vector<9x196xf32>, vector<16x196xf32> -> vector<16x196xf32>
    %c1_33 = arith.constant 1 : index
    %c2_34 = arith.constant 2 : index
    %c0_35 = arith.constant 0 : index
    %c0_36 = arith.constant 0 : index
    %30 = vector.load %arg1[%c1_33, %c2_34, %c0_35, %c0_36] : memref<8x4x9x196xf32, #tpu.memory_space<vmem>>, vector<1x1x9x196xf32>
    %31 = vector.shape_cast %30 : vector<1x1x9x196xf32> to vector<9x196xf32>
    %cst_37 = arith.constant dense<0.000000e+00> : vector<16x196xf32>
    %32 = tpu.matmul %0, %31, %cst_37 {dimension_numbers = #tpu.dot_dimension_numbers<[1], [0], [0], [1], [0, 0, 1, 1], [], []>} : vector<16x9xf32>, vector<9x196xf32>, vector<16x196xf32> -> vector<16x196xf32>
    %c1_38 = arith.constant 1 : index
    %c3_39 = arith.constant 3 : index
    %c0_40 = arith.constant 0 : index
    %c0_41 = arith.constant 0 : index
    %33 = vector.load %arg1[%c1_38, %c3_39, %c0_40, %c0_41] : memref<8x4x9x196xf32, #tpu.memory_space<vmem>>, vector<1x1x9x196xf32>
    %34 = vector.shape_cast %33 : vector<1x1x9x196xf32> to vector<9x196xf32>
    %cst_42 = arith.constant dense<0.000000e+00> : vector<16x196xf32>
    %35 = tpu.matmul %0, %34, %cst_42 {dimension_numbers = #tpu.dot_dimension_numbers<[1], [0], [0], [1], [0, 0, 1, 1], [], []>} : vector<16x9xf32>, vector<9x196xf32>, vector<16x196xf32> -> vector<16x196xf32>
    %36 = arith.maximumf %26, %29 : vector<16x196xf32>
    %37 = arith.maximumf %32, %35 : vector<16x196xf32>
    %38 = arith.maximumf %36, %37 : vector<16x196xf32>
    %39 = vector.broadcast %1 : vector<16x1xf32> to vector<16x196xf32>
    %40 = arith.addf %38, %39 : vector<16x196xf32>
    %cst_43 = arith.constant 0.000000e+00 : f32
    %41 = vector.broadcast %cst_43 : f32 to vector<16x196xf32>
    %42 = arith.maximumf %40, %41 : vector<16x196xf32>
    %c1_44 = arith.constant 1 : index
    %c0_45 = arith.constant 0 : index
    %c0_46 = arith.constant 0 : index
    %43 = vector.load %arg4[%c1_44, %c0_45, %c0_46] : memref<8x16x196xf32, #tpu.memory_space<vmem>>, vector<1x16x196xf32>
    %44 = vector.shape_cast %43 : vector<1x16x196xf32> to vector<16x196xf32>
    %45 = vector.shape_cast %42 : vector<16x196xf32> to vector<1x16x196xf32>
    tpu.vector_store %arg4[%c1_44, %c0_45, %c0_46], %45 {strides = array<i32>} : memref<8x16x196xf32, #tpu.memory_space<vmem>>, vector<1x16x196xf32>,
    %c2_47 = arith.constant 2 : index
    %c0_48 = arith.constant 0 : index
    %c0_49 = arith.constant 0 : index
    %c0_50 = arith.constant 0 : index
    %46 = vector.load %arg1[%c2_47, %c0_48, %c0_49, %c0_50] : memref<8x4x9x196xf32, #tpu.memory_space<vmem>>, vector<1x1x9x196xf32>
    %47 = vector.shape_cast %46 : vector<1x1x9x196xf32> to vector<9x196xf32>
    %cst_51 = arith.constant dense<0.000000e+00> : vector<16x196xf32>
    %48 = tpu.matmul %0, %47, %cst_51 {dimension_numbers = #tpu.dot_dimension_numbers<[1], [0], [0], [1], [0, 0, 1, 1], [], []>} : vector<16x9xf32>, vector<9x196xf32>, vector<16x196xf32> -> vector<16x196xf32>
    %c2_52 = arith.constant 2 : index
    %c1_53 = arith.constant 1 : index
    %c0_54 = arith.constant 0 : index
    %c0_55 = arith.constant 0 : index
    %49 = vector.load %arg1[%c2_52, %c1_53, %c0_54, %c0_55] : memref<8x4x9x196xf32, #tpu.memory_space<vmem>>, vector<1x1x9x196xf32>
    %50 = vector.shape_cast %49 : vector<1x1x9x196xf32> to vector<9x196xf32>
    %cst_56 = arith.constant dense<0.000000e+00> : vector<16x196xf32>
    %51 = tpu.matmul %0, %50, %cst_56 {dimension_numbers = #tpu.dot_dimension_numbers<[1], [0], [0], [1], [0, 0, 1, 1], [], []>} : vector<16x9xf32>, vector<9x196xf32>, vector<16x196xf32> -> vector<16x196xf32>
    %c2_57 = arith.constant 2 : index
    %c2_58 = arith.constant 2 : index
    %c0_59 = arith.constant 0 : index
    %c0_60 = arith.constant 0 : index
    %52 = vector.load %arg1[%c2_57, %c2_58, %c0_59, %c0_60] : memref<8x4x9x196xf32, #tpu.memory_space<vmem>>, vector<1x1x9x196xf32>
    %53 = vector.shape_cast %52 : vector<1x1x9x196xf32> to vector<9x196xf32>
    %cst_61 = arith.constant dense<0.000000e+00> : vector<16x196xf32>
    %54 = tpu.matmul %0, %53, %cst_61 {dimension_numbers = #tpu.dot_dimension_numbers<[1], [0], [0], [1], [0, 0, 1, 1], [], []>} : vector<16x9xf32>, vector<9x196xf32>, vector<16x196xf32> -> vector<16x196xf32>
    %c2_62 = arith.constant 2 : index
    %c3_63 = arith.constant 3 : index
    %c0_64 = arith.constant 0 : index
    %c0_65 = arith.constant 0 : index
    %55 = vector.load %arg1[%c2_62, %c3_63, %c0_64, %c0_65] : memref<8x4x9x196xf32, #tpu.memory_space<vmem>>, vector<1x1x9x196xf32>
    %56 = vector.shape_cast %55 : vector<1x1x9x196xf32> to vector<9x196xf32>
    %cst_66 = arith.constant dense<0.000000e+00> : vector<16x196xf32>
    %57 = tpu.matmul %0, %56, %cst_66 {dimension_numbers = #tpu.dot_dimension_numbers<[1], [0], [0], [1], [0, 0, 1, 1], [], []>} : vector<16x9xf32>, vector<9x196xf32>, vector<16x196xf32> -> vector<16x196xf32>
    %58 = arith.maximumf %48, %51 : vector<16x196xf32>
    %59 = arith.maximumf %54, %57 : vector<16x196xf32>
    %60 = arith.maximumf %58, %59 : vector<16x196xf32>
    %61 = vector.broadcast %1 : vector<16x1xf32> to vector<16x196xf32>
    %62 = arith.addf %60, %61 : vector<16x196xf32>
    %cst_67 = arith.constant 0.000000e+00 : f32
    %63 = vector.broadcast %cst_67 : f32 to vector<16x196xf32>
    %64 = arith.maximumf %62, %63 : vector<16x196xf32>
    %c2_68 = arith.constant 2 : index
    %c0_69 = arith.constant 0 : index
    %c0_70 = arith.constant 0 : index
    %65 = vector.load %arg4[%c2_68, %c0_69, %c0_70] : memref<8x16x196xf32, #tpu.memory_space<vmem>>, vector<1x16x196xf32>
    %66 = vector.shape_cast %65 : vector<1x16x196xf32> to vector<16x196xf32>
    %67 = vector.shape_cast %64 : vector<16x196xf32> to vector<1x16x196xf32>
    tpu.vector_store %arg4[%c2_68, %c0_69, %c0_70], %67 {strides = array<i32>} : memref<8x16x196xf32, #tpu.memory_space<vmem>>, vector<1x16x196xf32>,
    %c3_71 = arith.constant 3 : index
    %c0_72 = arith.constant 0 : index
    %c0_73 = arith.constant 0 : index
    %c0_74 = arith.constant 0 : index
    %68 = vector.load %arg1[%c3_71, %c0_72, %c0_73, %c0_74] : memref<8x4x9x196xf32, #tpu.memory_space<vmem>>, vector<1x1x9x196xf32>
    %69 = vector.shape_cast %68 : vector<1x1x9x196xf32> to vector<9x196xf32>
    %cst_75 = arith.constant dense<0.000000e+00> : vector<16x196xf32>
    %70 = tpu.matmul %0, %69, %cst_75 {dimension_numbers = #tpu.dot_dimension_numbers<[1], [0], [0], [1], [0, 0, 1, 1], [], []>} : vector<16x9xf32>, vector<9x196xf32>, vector<16x196xf32> -> vector<16x196xf32>
    %c3_76 = arith.constant 3 : index
    %c1_77 = arith.constant 1 : index
    %c0_78 = arith.constant 0 : index
    %c0_79 = arith.constant 0 : index
    %71 = vector.load %arg1[%c3_76, %c1_77, %c0_78, %c0_79] : memref<8x4x9x196xf32, #tpu.memory_space<vmem>>, vector<1x1x9x196xf32>
    %72 = vector.shape_cast %71 : vector<1x1x9x196xf32> to vector<9x196xf32>
    %cst_80 = arith.constant dense<0.000000e+00> : vector<16x196xf32>
    %73 = tpu.matmul %0, %72, %cst_80 {dimension_numbers = #tpu.dot_dimension_numbers<[1], [0], [0], [1], [0, 0, 1, 1], [], []>} : vector<16x9xf32>, vector<9x196xf32>, vector<16x196xf32> -> vector<16x196xf32>
    %c3_81 = arith.constant 3 : index
    %c2_82 = arith.constant 2 : index
    %c0_83 = arith.constant 0 : index
    %c0_84 = arith.constant 0 : index
    %74 = vector.load %arg1[%c3_81, %c2_82, %c0_83, %c0_84] : memref<8x4x9x196xf32, #tpu.memory_space<vmem>>, vector<1x1x9x196xf32>
    %75 = vector.shape_cast %74 : vector<1x1x9x196xf32> to vector<9x196xf32>
    %cst_85 = arith.constant dense<0.000000e+00> : vector<16x196xf32>
    %76 = tpu.matmul %0, %75, %cst_85 {dimension_numbers = #tpu.dot_dimension_numbers<[1], [0], [0], [1], [0, 0, 1, 1], [], []>} : vector<16x9xf32>, vector<9x196xf32>, vector<16x196xf32> -> vector<16x196xf32>
    %c3_86 = arith.constant 3 : index
    %c3_87 = arith.constant 3 : index
    %c0_88 = arith.constant 0 : index
    %c0_89 = arith.constant 0 : index
    %77 = vector.load %arg1[%c3_86, %c3_87, %c0_88, %c0_89] : memref<8x4x9x196xf32, #tpu.memory_space<vmem>>, vector<1x1x9x196xf32>
    %78 = vector.shape_cast %77 : vector<1x1x9x196xf32> to vector<9x196xf32>
    %cst_90 = arith.constant dense<0.000000e+00> : vector<16x196xf32>
    %79 = tpu.matmul %0, %78, %cst_90 {dimension_numbers = #tpu.dot_dimension_numbers<[1], [0], [0], [1], [0, 0, 1, 1], [], []>} : vector<16x9xf32>, vector<9x196xf32>, vector<16x196xf32> -> vector<16x196xf32>
    %80 = arith.maximumf %70, %73 : vector<16x196xf32>
    %81 = arith.maximumf %76, %79 : vector<16x196xf32>
    %82 = arith.maximumf %80, %81 : vector<16x196xf32>
    %83 = vector.broadcast %1 : vector<16x1xf32> to vector<16x196xf32>
    %84 = arith.addf %82, %83 : vector<16x196xf32>
    %cst_91 = arith.constant 0.000000e+00 : f32
    %85 = vector.broadcast %cst_91 : f32 to vector<16x196xf32>
    %86 = arith.maximumf %84, %85 : vector<16x196xf32>
    %c3_92 = arith.constant 3 : index
    %c0_93 = arith.constant 0 : index
    %c0_94 = arith.constant 0 : index
    %87 = vector.load %arg4[%c3_92, %c0_93, %c0_94] : memref<8x16x196xf32, #tpu.memory_space<vmem>>, vector<1x16x196xf32>
    %88 = vector.shape_cast %87 : vector<1x16x196xf32> to vector<16x196xf32>
    %89 = vector.shape_cast %86 : vector<16x196xf32> to vector<1x16x196xf32>
    tpu.vector_store %arg4[%c3_92, %c0_93, %c0_94], %89 {strides = array<i32>} : memref<8x16x196xf32, #tpu.memory_space<vmem>>, vector<1x16x196xf32>,
    %c4 = arith.constant 4 : index
    %c0_95 = arith.constant 0 : index
    %c0_96 = arith.constant 0 : index
    %c0_97 = arith.constant 0 : index
    %90 = vector.load %arg1[%c4, %c0_95, %c0_96, %c0_97] : memref<8x4x9x196xf32, #tpu.memory_space<vmem>>, vector<1x1x9x196xf32>
    %91 = vector.shape_cast %90 : vector<1x1x9x196xf32> to vector<9x196xf32>
    %cst_98 = arith.constant dense<0.000000e+00> : vector<16x196xf32>
    %92 = tpu.matmul %0, %91, %cst_98 {dimension_numbers = #tpu.dot_dimension_numbers<[1], [0], [0], [1], [0, 0, 1, 1], [], []>} : vector<16x9xf32>, vector<9x196xf32>, vector<16x196xf32> -> vector<16x196xf32>
    %c4_99 = arith.constant 4 : index
    %c1_100 = arith.constant 1 : index
    %c0_101 = arith.constant 0 : index
    %c0_102 = arith.constant 0 : index
    %93 = vector.load %arg1[%c4_99, %c1_100, %c0_101, %c0_102] : memref<8x4x9x196xf32, #tpu.memory_space<vmem>>, vector<1x1x9x196xf32>
    %94 = vector.shape_cast %93 : vector<1x1x9x196xf32> to vector<9x196xf32>
    %cst_103 = arith.constant dense<0.000000e+00> : vector<16x196xf32>
    %95 = tpu.matmul %0, %94, %cst_103 {dimension_numbers = #tpu.dot_dimension_numbers<[1], [0], [0], [1], [0, 0, 1, 1], [], []>} : vector<16x9xf32>, vector<9x196xf32>, vector<16x196xf32> -> vector<16x196xf32>
    %c4_104 = arith.constant 4 : index
    %c2_105 = arith.constant 2 : index
    %c0_106 = arith.constant 0 : index
    %c0_107 = arith.constant 0 : index
    %96 = vector.load %arg1[%c4_104, %c2_105, %c0_106, %c0_107] : memref<8x4x9x196xf32, #tpu.memory_space<vmem>>, vector<1x1x9x196xf32>
    %97 = vector.shape_cast %96 : vector<1x1x9x196xf32> to vector<9x196xf32>
    %cst_108 = arith.constant dense<0.000000e+00> : vector<16x196xf32>
    %98 = tpu.matmul %0, %97, %cst_108 {dimension_numbers = #tpu.dot_dimension_numbers<[1], [0], [0], [1], [0, 0, 1, 1], [], []>} : vector<16x9xf32>, vector<9x196xf32>, vector<16x196xf32> -> vector<16x196xf32>
    %c4_109 = arith.constant 4 : index
    %c3_110 = arith.constant 3 : index
    %c0_111 = arith.constant 0 : index
    %c0_112 = arith.constant 0 : index
    %99 = vector.load %arg1[%c4_109, %c3_110, %c0_111, %c0_112] : memref<8x4x9x196xf32, #tpu.memory_space<vmem>>, vector<1x1x9x196xf32>
    %100 = vector.shape_cast %99 : vector<1x1x9x196xf32> to vector<9x196xf32>
    %cst_113 = arith.constant dense<0.000000e+00> : vector<16x196xf32>
    %101 = tpu.matmul %0, %100, %cst_113 {dimension_numbers = #tpu.dot_dimension_numbers<[1], [0], [0], [1], [0, 0, 1, 1], [], []>} : vector<16x9xf32>, vector<9x196xf32>, vector<16x196xf32> -> vector<16x196xf32>
    %102 = arith.maximumf %92, %95 : vector<16x196xf32>
    %103 = arith.maximumf %98, %101 : vector<16x196xf32>
    %104 = arith.maximumf %102, %103 : vector<16x196xf32>
    %105 = vector.broadcast %1 : vector<16x1xf32> to vector<16x196xf32>
    %106 = arith.addf %104, %105 : vector<16x196xf32>
    %cst_114 = arith.constant 0.000000e+00 : f32
    %107 = vector.broadcast %cst_114 : f32 to vector<16x196xf32>
    %108 = arith.maximumf %106, %107 : vector<16x196xf32>
    %c4_115 = arith.constant 4 : index
    %c0_116 = arith.constant 0 : index
    %c0_117 = arith.constant 0 : index
    %109 = vector.load %arg4[%c4_115, %c0_116, %c0_117] : memref<8x16x196xf32, #tpu.memory_space<vmem>>, vector<1x16x196xf32>
    %110 = vector.shape_cast %109 : vector<1x16x196xf32> to vector<16x196xf32>
    %111 = vector.shape_cast %108 : vector<16x196xf32> to vector<1x16x196xf32>
    tpu.vector_store %arg4[%c4_115, %c0_116, %c0_117], %111 {strides = array<i32>} : memref<8x16x196xf32, #tpu.memory_space<vmem>>, vector<1x16x196xf32>,
    %c5 = arith.constant 5 : index
    %c0_118 = arith.constant 0 : index
    %c0_119 = arith.constant 0 : index
    %c0_120 = arith.constant 0 : index
    %112 = vector.load %arg1[%c5, %c0_118, %c0_119, %c0_120] : memref<8x4x9x196xf32, #tpu.memory_space<vmem>>, vector<1x1x9x196xf32>
    %113 = vector.shape_cast %112 : vector<1x1x9x196xf32> to vector<9x196xf32>
    %cst_121 = arith.constant dense<0.000000e+00> : vector<16x196xf32>
    %114 = tpu.matmul %0, %113, %cst_121 {dimension_numbers = #tpu.dot_dimension_numbers<[1], [0], [0], [1], [0, 0, 1, 1], [], []>} : vector<16x9xf32>, vector<9x196xf32>, vector<16x196xf32> -> vector<16x196xf32>
    %c5_122 = arith.constant 5 : index
    %c1_123 = arith.constant 1 : index
    %c0_124 = arith.constant 0 : index
    %c0_125 = arith.constant 0 : index
    %115 = vector.load %arg1[%c5_122, %c1_123, %c0_124, %c0_125] : memref<8x4x9x196xf32, #tpu.memory_space<vmem>>, vector<1x1x9x196xf32>
    %116 = vector.shape_cast %115 : vector<1x1x9x196xf32> to vector<9x196xf32>
    %cst_126 = arith.constant dense<0.000000e+00> : vector<16x196xf32>
    %117 = tpu.matmul %0, %116, %cst_126 {dimension_numbers = #tpu.dot_dimension_numbers<[1], [0], [0], [1], [0, 0, 1, 1], [], []>} : vector<16x9xf32>, vector<9x196xf32>, vector<16x196xf32> -> vector<16x196xf32>
    %c5_127 = arith.constant 5 : index
    %c2_128 = arith.constant 2 : index
    %c0_129 = arith.constant 0 : index
    %c0_130 = arith.constant 0 : index
    %118 = vector.load %arg1[%c5_127, %c2_128, %c0_129, %c0_130] : memref<8x4x9x196xf32, #tpu.memory_space<vmem>>, vector<1x1x9x196xf32>
    %119 = vector.shape_cast %118 : vector<1x1x9x196xf32> to vector<9x196xf32>
    %cst_131 = arith.constant dense<0.000000e+00> : vector<16x196xf32>
    %120 = tpu.matmul %0, %119, %cst_131 {dimension_numbers = #tpu.dot_dimension_numbers<[1], [0], [0], [1], [0, 0, 1, 1], [], []>} : vector<16x9xf32>, vector<9x196xf32>, vector<16x196xf32> -> vector<16x196xf32>
    %c5_132 = arith.constant 5 : index
    %c3_133 = arith.constant 3 : index
    %c0_134 = arith.constant 0 : index
    %c0_135 = arith.constant 0 : index
    %121 = vector.load %arg1[%c5_132, %c3_133, %c0_134, %c0_135] : memref<8x4x9x196xf32, #tpu.memory_space<vmem>>, vector<1x1x9x196xf32>
    %122 = vector.shape_cast %121 : vector<1x1x9x196xf32> to vector<9x196xf32>
    %cst_136 = arith.constant dense<0.000000e+00> : vector<16x196xf32>
    %123 = tpu.matmul %0, %122, %cst_136 {dimension_numbers = #tpu.dot_dimension_numbers<[1], [0], [0], [1], [0, 0, 1, 1], [], []>} : vector<16x9xf32>, vector<9x196xf32>, vector<16x196xf32> -> vector<16x196xf32>
    %124 = arith.maximumf %114, %117 : vector<16x196xf32>
    %125 = arith.maximumf %120, %123 : vector<16x196xf32>
    %126 = arith.maximumf %124, %125 : vector<16x196xf32>
    %127 = vector.broadcast %1 : vector<16x1xf32> to vector<16x196xf32>
    %128 = arith.addf %126, %127 : vector<16x196xf32>
    %cst_137 = arith.constant 0.000000e+00 : f32
    %129 = vector.broadcast %cst_137 : f32 to vector<16x196xf32>
    %130 = arith.maximumf %128, %129 : vector<16x196xf32>
    %c5_138 = arith.constant 5 : index
    %c0_139 = arith.constant 0 : index
    %c0_140 = arith.constant 0 : index
    %131 = vector.load %arg4[%c5_138, %c0_139, %c0_140] : memref<8x16x196xf32, #tpu.memory_space<vmem>>, vector<1x16x196xf32>
    %132 = vector.shape_cast %131 : vector<1x16x196xf32> to vector<16x196xf32>
    %133 = vector.shape_cast %130 : vector<16x196xf32> to vector<1x16x196xf32>
    tpu.vector_store %arg4[%c5_138, %c0_139, %c0_140], %133 {strides = array<i32>} : memref<8x16x196xf32, #tpu.memory_space<vmem>>, vector<1x16x196xf32>,
    %c6 = arith.constant 6 : index
    %c0_141 = arith.constant 0 : index
    %c0_142 = arith.constant 0 : index
    %c0_143 = arith.constant 0 : index
    %134 = vector.load %arg1[%c6, %c0_141, %c0_142, %c0_143] : memref<8x4x9x196xf32, #tpu.memory_space<vmem>>, vector<1x1x9x196xf32>
    %135 = vector.shape_cast %134 : vector<1x1x9x196xf32> to vector<9x196xf32>
    %cst_144 = arith.constant dense<0.000000e+00> : vector<16x196xf32>
    %136 = tpu.matmul %0, %135, %cst_144 {dimension_numbers = #tpu.dot_dimension_numbers<[1], [0], [0], [1], [0, 0, 1, 1], [], []>} : vector<16x9xf32>, vector<9x196xf32>, vector<16x196xf32> -> vector<16x196xf32>
    %c6_145 = arith.constant 6 : index
    %c1_146 = arith.constant 1 : index
    %c0_147 = arith.constant 0 : index
    %c0_148 = arith.constant 0 : index
    %137 = vector.load %arg1[%c6_145, %c1_146, %c0_147, %c0_148] : memref<8x4x9x196xf32, #tpu.memory_space<vmem>>, vector<1x1x9x196xf32>
    %138 = vector.shape_cast %137 : vector<1x1x9x196xf32> to vector<9x196xf32>
    %cst_149 = arith.constant dense<0.000000e+00> : vector<16x196xf32>
    %139 = tpu.matmul %0, %138, %cst_149 {dimension_numbers = #tpu.dot_dimension_numbers<[1], [0], [0], [1], [0, 0, 1, 1], [], []>} : vector<16x9xf32>, vector<9x196xf32>, vector<16x196xf32> -> vector<16x196xf32>
    %c6_150 = arith.constant 6 : index
    %c2_151 = arith.constant 2 : index
    %c0_152 = arith.constant 0 : index
    %c0_153 = arith.constant 0 : index
    %140 = vector.load %arg1[%c6_150, %c2_151, %c0_152, %c0_153] : memref<8x4x9x196xf32, #tpu.memory_space<vmem>>, vector<1x1x9x196xf32>
    %141 = vector.shape_cast %140 : vector<1x1x9x196xf32> to vector<9x196xf32>
    %cst_154 = arith.constant dense<0.000000e+00> : vector<16x196xf32>
    %142 = tpu.matmul %0, %141, %cst_154 {dimension_numbers = #tpu.dot_dimension_numbers<[1], [0], [0], [1], [0, 0, 1, 1], [], []>} : vector<16x9xf32>, vector<9x196xf32>, vector<16x196xf32> -> vector<16x196xf32>
    %c6_155 = arith.constant 6 : index
    %c3_156 = arith.constant 3 : index
    %c0_157 = arith.constant 0 : index
    %c0_158 = arith.constant 0 : index
    %143 = vector.load %arg1[%c6_155, %c3_156, %c0_157, %c0_158] : memref<8x4x9x196xf32, #tpu.memory_space<vmem>>, vector<1x1x9x196xf32>
    %144 = vector.shape_cast %143 : vector<1x1x9x196xf32> to vector<9x196xf32>
    %cst_159 = arith.constant dense<0.000000e+00> : vector<16x196xf32>
    %145 = tpu.matmul %0, %144, %cst_159 {dimension_numbers = #tpu.dot_dimension_numbers<[1], [0], [0], [1], [0, 0, 1, 1], [], []>} : vector<16x9xf32>, vector<9x196xf32>, vector<16x196xf32> -> vector<16x196xf32>
    %146 = arith.maximumf %136, %139 : vector<16x196xf32>
    %147 = arith.maximumf %142, %145 : vector<16x196xf32>
    %148 = arith.maximumf %146, %147 : vector<16x196xf32>
    %149 = vector.broadcast %1 : vector<16x1xf32> to vector<16x196xf32>
    %150 = arith.addf %148, %149 : vector<16x196xf32>
    %cst_160 = arith.constant 0.000000e+00 : f32
    %151 = vector.broadcast %cst_160 : f32 to vector<16x196xf32>
    %152 = arith.maximumf %150, %151 : vector<16x196xf32>
    %c6_161 = arith.constant 6 : index
    %c0_162 = arith.constant 0 : index
    %c0_163 = arith.constant 0 : index
    %153 = vector.load %arg4[%c6_161, %c0_162, %c0_163] : memref<8x16x196xf32, #tpu.memory_space<vmem>>, vector<1x16x196xf32>
    %154 = vector.shape_cast %153 : vector<1x16x196xf32> to vector<16x196xf32>
    %155 = vector.shape_cast %152 : vector<16x196xf32> to vector<1x16x196xf32>
    tpu.vector_store %arg4[%c6_161, %c0_162, %c0_163], %155 {strides = array<i32>} : memref<8x16x196xf32, #tpu.memory_space<vmem>>, vector<1x16x196xf32>,
    %c7 = arith.constant 7 : index
    %c0_164 = arith.constant 0 : index
    %c0_165 = arith.constant 0 : index
    %c0_166 = arith.constant 0 : index
    %156 = vector.load %arg1[%c7, %c0_164, %c0_165, %c0_166] : memref<8x4x9x196xf32, #tpu.memory_space<vmem>>, vector<1x1x9x196xf32>
    %157 = vector.shape_cast %156 : vector<1x1x9x196xf32> to vector<9x196xf32>
    %cst_167 = arith.constant dense<0.000000e+00> : vector<16x196xf32>
    %158 = tpu.matmul %0, %157, %cst_167 {dimension_numbers = #tpu.dot_dimension_numbers<[1], [0], [0], [1], [0, 0, 1, 1], [], []>} : vector<16x9xf32>, vector<9x196xf32>, vector<16x196xf32> -> vector<16x196xf32>
    %c7_168 = arith.constant 7 : index
    %c1_169 = arith.constant 1 : index
    %c0_170 = arith.constant 0 : index
    %c0_171 = arith.constant 0 : index
    %159 = vector.load %arg1[%c7_168, %c1_169, %c0_170, %c0_171] : memref<8x4x9x196xf32, #tpu.memory_space<vmem>>, vector<1x1x9x196xf32>
    %160 = vector.shape_cast %159 : vector<1x1x9x196xf32> to vector<9x196xf32>
    %cst_172 = arith.constant dense<0.000000e+00> : vector<16x196xf32>
    %161 = tpu.matmul %0, %160, %cst_172 {dimension_numbers = #tpu.dot_dimension_numbers<[1], [0], [0], [1], [0, 0, 1, 1], [], []>} : vector<16x9xf32>, vector<9x196xf32>, vector<16x196xf32> -> vector<16x196xf32>
    %c7_173 = arith.constant 7 : index
    %c2_174 = arith.constant 2 : index
    %c0_175 = arith.constant 0 : index
    %c0_176 = arith.constant 0 : index
    %162 = vector.load %arg1[%c7_173, %c2_174, %c0_175, %c0_176] : memref<8x4x9x196xf32, #tpu.memory_space<vmem>>, vector<1x1x9x196xf32>
    %163 = vector.shape_cast %162 : vector<1x1x9x196xf32> to vector<9x196xf32>
    %cst_177 = arith.constant dense<0.000000e+00> : vector<16x196xf32>
    %164 = tpu.matmul %0, %163, %cst_177 {dimension_numbers = #tpu.dot_dimension_numbers<[1], [0], [0], [1], [0, 0, 1, 1], [], []>} : vector<16x9xf32>, vector<9x196xf32>, vector<16x196xf32> -> vector<16x196xf32>
    %c7_178 = arith.constant 7 : index
    %c3_179 = arith.constant 3 : index
    %c0_180 = arith.constant 0 : index
    %c0_181 = arith.constant 0 : index
    %165 = vector.load %arg1[%c7_178, %c3_179, %c0_180, %c0_181] : memref<8x4x9x196xf32, #tpu.memory_space<vmem>>, vector<1x1x9x196xf32>
    %166 = vector.shape_cast %165 : vector<1x1x9x196xf32> to vector<9x196xf32>
    %cst_182 = arith.constant dense<0.000000e+00> : vector<16x196xf32>
    %167 = tpu.matmul %0, %166, %cst_182 {dimension_numbers = #tpu.dot_dimension_numbers<[1], [0], [0], [1], [0, 0, 1, 1], [], []>} : vector<16x9xf32>, vector<9x196xf32>, vector<16x196xf32> -> vector<16x196xf32>
    %168 = arith.maximumf %158, %161 : vector<16x196xf32>
    %169 = arith.maximumf %164, %167 : vector<16x196xf32>
    %170 = arith.maximumf %168, %169 : vector<16x196xf32>
    %171 = vector.broadcast %1 : vector<16x1xf32> to vector<16x196xf32>
    %172 = arith.addf %170, %171 : vector<16x196xf32>
    %cst_183 = arith.constant 0.000000e+00 : f32
    %173 = vector.broadcast %cst_183 : f32 to vector<16x196xf32>
    %174 = arith.maximumf %172, %173 : vector<16x196xf32>
    %c7_184 = arith.constant 7 : index
    %c0_185 = arith.constant 0 : index
    %c0_186 = arith.constant 0 : index
    %175 = vector.load %arg4[%c7_184, %c0_185, %c0_186] : memref<8x16x196xf32, #tpu.memory_space<vmem>>, vector<1x16x196xf32>
    %176 = vector.shape_cast %175 : vector<1x16x196xf32> to vector<16x196xf32>
    %177 = vector.shape_cast %174 : vector<16x196xf32> to vector<1x16x196xf32>
    tpu.vector_store %arg4[%c7_184, %c0_185, %c0_186], %177 {strides = array<i32>} : memref<8x16x196xf32, #tpu.memory_space<vmem>>, vector<1x16x196xf32>,
    return
  }
  func.func @transform_0(%arg0: i32) -> (i32, i32, i32, i32) {
    %c0_i32 = arith.constant 0 : i32
    %c0_i32_0 = arith.constant 0 : i32
    %c0_i32_1 = arith.constant 0 : i32
    %c0_i32_2 = arith.constant 0 : i32
    return %arg0, %c0_i32, %c0_i32_0, %c0_i32_1 : i32, i32, i32, i32
  }
  func.func @transform_1(%arg0: i32) -> (i32, i32) {
    %c0_i32 = arith.constant 0 : i32
    %c0_i32_0 = arith.constant 0 : i32
    %c0_i32_1 = arith.constant 0 : i32
    return %c0_i32, %c0_i32_0 : i32, i32
  }
  func.func @transform_2(%arg0: i32) -> (i32, i32) {
    %c0_i32 = arith.constant 0 : i32
    %c0_i32_0 = arith.constant 0 : i32
    %c0_i32_1 = arith.constant 0 : i32
    return %c0_i32, %c0_i32_0 : i32, i32
  }
  func.func @transform_3(%arg0: i32) -> (i32, i32, i32) {
    %c0_i32 = arith.constant 0 : i32
    %c0_i32_0 = arith.constant 0 : i32
    %c0_i32_1 = arith.constant 0 : i32
    return %arg0, %c0_i32, %c0_i32_0 : i32, i32, i32
  }
}

module attributes {stable_mosaic.version = 11 : i64} {
  func.func @_conv_pool_relu_kernel(%arg0: i32, %arg1: memref<8x4x144x49xf32, #tpu.memory_space<vmem>>, %arg2: memref<32x144xf32, #tpu.memory_space<vmem>>, %arg3: memref<32x1xf32, #tpu.memory_space<vmem>>, %arg4: memref<8x32x49xf32, #tpu.memory_space<vmem>>) attributes {dimension_semantics = [#tpu.dimension_semantics<parallel>], iteration_bounds = array<i64: 1>, scalar_prefetch = 0 : i64, scratch_operands = 0 : i64, tpu.core_type = #tpu.core_type<tc>, window_params = [{transform_indices = @transform_0, window_bounds = array<i64: 8, 4, 144, 49>}, {pipeline_mode = #tpu.pipeline_mode<synchronous>, transform_indices = @transform_1, window_bounds = array<i64: 32, 144>}, {pipeline_mode = #tpu.pipeline_mode<synchronous>, transform_indices = @transform_2, window_bounds = array<i64: 32, 1>}, {transform_indices = @transform_3, window_bounds = array<i64: 8, 32, 49>}]} {
    %c0 = arith.constant 0 : index
    %c0_0 = arith.constant 0 : index
    %0 = vector.load %arg2[%c0, %c0_0] : memref<32x144xf32, #tpu.memory_space<vmem>>, vector<32x144xf32>
    %c0_1 = arith.constant 0 : index
    %c0_2 = arith.constant 0 : index
    %1 = vector.load %arg3[%c0_1, %c0_2] : memref<32x1xf32, #tpu.memory_space<vmem>>, vector<32x1xf32>
    %c0_3 = arith.constant 0 : index
    %c0_4 = arith.constant 0 : index
    %c0_5 = arith.constant 0 : index
    %c0_6 = arith.constant 0 : index
    %2 = vector.load %arg1[%c0_3, %c0_4, %c0_5, %c0_6] : memref<8x4x144x49xf32, #tpu.memory_space<vmem>>, vector<1x1x144x49xf32>
    %3 = vector.shape_cast %2 : vector<1x1x144x49xf32> to vector<144x49xf32>
    %cst = arith.constant dense<0.000000e+00> : vector<32x49xf32>
    %4 = tpu.matmul %0, %3, %cst {dimension_numbers = #tpu.dot_dimension_numbers<[1], [0], [0], [1], [0, 0, 1, 1], [], []>} : vector<32x144xf32>, vector<144x49xf32>, vector<32x49xf32> -> vector<32x49xf32>
    %c0_7 = arith.constant 0 : index
    %c1 = arith.constant 1 : index
    %c0_8 = arith.constant 0 : index
    %c0_9 = arith.constant 0 : index
    %5 = vector.load %arg1[%c0_7, %c1, %c0_8, %c0_9] : memref<8x4x144x49xf32, #tpu.memory_space<vmem>>, vector<1x1x144x49xf32>
    %6 = vector.shape_cast %5 : vector<1x1x144x49xf32> to vector<144x49xf32>
    %cst_10 = arith.constant dense<0.000000e+00> : vector<32x49xf32>
    %7 = tpu.matmul %0, %6, %cst_10 {dimension_numbers = #tpu.dot_dimension_numbers<[1], [0], [0], [1], [0, 0, 1, 1], [], []>} : vector<32x144xf32>, vector<144x49xf32>, vector<32x49xf32> -> vector<32x49xf32>
    %c0_11 = arith.constant 0 : index
    %c2 = arith.constant 2 : index
    %c0_12 = arith.constant 0 : index
    %c0_13 = arith.constant 0 : index
    %8 = vector.load %arg1[%c0_11, %c2, %c0_12, %c0_13] : memref<8x4x144x49xf32, #tpu.memory_space<vmem>>, vector<1x1x144x49xf32>
    %9 = vector.shape_cast %8 : vector<1x1x144x49xf32> to vector<144x49xf32>
    %cst_14 = arith.constant dense<0.000000e+00> : vector<32x49xf32>
    %10 = tpu.matmul %0, %9, %cst_14 {dimension_numbers = #tpu.dot_dimension_numbers<[1], [0], [0], [1], [0, 0, 1, 1], [], []>} : vector<32x144xf32>, vector<144x49xf32>, vector<32x49xf32> -> vector<32x49xf32>
    %c0_15 = arith.constant 0 : index
    %c3 = arith.constant 3 : index
    %c0_16 = arith.constant 0 : index
    %c0_17 = arith.constant 0 : index
    %11 = vector.load %arg1[%c0_15, %c3, %c0_16, %c0_17] : memref<8x4x144x49xf32, #tpu.memory_space<vmem>>, vector<1x1x144x49xf32>
    %12 = vector.shape_cast %11 : vector<1x1x144x49xf32> to vector<144x49xf32>
    %cst_18 = arith.constant dense<0.000000e+00> : vector<32x49xf32>
    %13 = tpu.matmul %0, %12, %cst_18 {dimension_numbers = #tpu.dot_dimension_numbers<[1], [0], [0], [1], [0, 0, 1, 1], [], []>} : vector<32x144xf32>, vector<144x49xf32>, vector<32x49xf32> -> vector<32x49xf32>
    %14 = arith.maximumf %4, %7 : vector<32x49xf32>
    %15 = arith.maximumf %10, %13 : vector<32x49xf32>
    %16 = arith.maximumf %14, %15 : vector<32x49xf32>
    %17 = vector.broadcast %1 : vector<32x1xf32> to vector<32x49xf32>
    %18 = arith.addf %16, %17 : vector<32x49xf32>
    %cst_19 = arith.constant 0.000000e+00 : f32
    %19 = vector.broadcast %cst_19 : f32 to vector<32x49xf32>
    %20 = arith.maximumf %18, %19 : vector<32x49xf32>
    %c0_20 = arith.constant 0 : index
    %c0_21 = arith.constant 0 : index
    %c0_22 = arith.constant 0 : index
    %21 = vector.load %arg4[%c0_20, %c0_21, %c0_22] : memref<8x32x49xf32, #tpu.memory_space<vmem>>, vector<1x32x49xf32>
    %22 = vector.shape_cast %21 : vector<1x32x49xf32> to vector<32x49xf32>
    %23 = vector.shape_cast %20 : vector<32x49xf32> to vector<1x32x49xf32>
    tpu.vector_store %arg4[%c0_20, %c0_21, %c0_22], %23 {strides = array<i32>} : memref<8x32x49xf32, #tpu.memory_space<vmem>>, vector<1x32x49xf32>,
    %c1_23 = arith.constant 1 : index
    %c0_24 = arith.constant 0 : index
    %c0_25 = arith.constant 0 : index
    %c0_26 = arith.constant 0 : index
    %24 = vector.load %arg1[%c1_23, %c0_24, %c0_25, %c0_26] : memref<8x4x144x49xf32, #tpu.memory_space<vmem>>, vector<1x1x144x49xf32>
    %25 = vector.shape_cast %24 : vector<1x1x144x49xf32> to vector<144x49xf32>
    %cst_27 = arith.constant dense<0.000000e+00> : vector<32x49xf32>
    %26 = tpu.matmul %0, %25, %cst_27 {dimension_numbers = #tpu.dot_dimension_numbers<[1], [0], [0], [1], [0, 0, 1, 1], [], []>} : vector<32x144xf32>, vector<144x49xf32>, vector<32x49xf32> -> vector<32x49xf32>
    %c1_28 = arith.constant 1 : index
    %c1_29 = arith.constant 1 : index
    %c0_30 = arith.constant 0 : index
    %c0_31 = arith.constant 0 : index
    %27 = vector.load %arg1[%c1_28, %c1_29, %c0_30, %c0_31] : memref<8x4x144x49xf32, #tpu.memory_space<vmem>>, vector<1x1x144x49xf32>
    %28 = vector.shape_cast %27 : vector<1x1x144x49xf32> to vector<144x49xf32>
    %cst_32 = arith.constant dense<0.000000e+00> : vector<32x49xf32>
    %29 = tpu.matmul %0, %28, %cst_32 {dimension_numbers = #tpu.dot_dimension_numbers<[1], [0], [0], [1], [0, 0, 1, 1], [], []>} : vector<32x144xf32>, vector<144x49xf32>, vector<32x49xf32> -> vector<32x49xf32>
    %c1_33 = arith.constant 1 : index
    %c2_34 = arith.constant 2 : index
    %c0_35 = arith.constant 0 : index
    %c0_36 = arith.constant 0 : index
    %30 = vector.load %arg1[%c1_33, %c2_34, %c0_35, %c0_36] : memref<8x4x144x49xf32, #tpu.memory_space<vmem>>, vector<1x1x144x49xf32>
    %31 = vector.shape_cast %30 : vector<1x1x144x49xf32> to vector<144x49xf32>
    %cst_37 = arith.constant dense<0.000000e+00> : vector<32x49xf32>
    %32 = tpu.matmul %0, %31, %cst_37 {dimension_numbers = #tpu.dot_dimension_numbers<[1], [0], [0], [1], [0, 0, 1, 1], [], []>} : vector<32x144xf32>, vector<144x49xf32>, vector<32x49xf32> -> vector<32x49xf32>
    %c1_38 = arith.constant 1 : index
    %c3_39 = arith.constant 3 : index
    %c0_40 = arith.constant 0 : index
    %c0_41 = arith.constant 0 : index
    %33 = vector.load %arg1[%c1_38, %c3_39, %c0_40, %c0_41] : memref<8x4x144x49xf32, #tpu.memory_space<vmem>>, vector<1x1x144x49xf32>
    %34 = vector.shape_cast %33 : vector<1x1x144x49xf32> to vector<144x49xf32>
    %cst_42 = arith.constant dense<0.000000e+00> : vector<32x49xf32>
    %35 = tpu.matmul %0, %34, %cst_42 {dimension_numbers = #tpu.dot_dimension_numbers<[1], [0], [0], [1], [0, 0, 1, 1], [], []>} : vector<32x144xf32>, vector<144x49xf32>, vector<32x49xf32> -> vector<32x49xf32>
    %36 = arith.maximumf %26, %29 : vector<32x49xf32>
    %37 = arith.maximumf %32, %35 : vector<32x49xf32>
    %38 = arith.maximumf %36, %37 : vector<32x49xf32>
    %39 = vector.broadcast %1 : vector<32x1xf32> to vector<32x49xf32>
    %40 = arith.addf %38, %39 : vector<32x49xf32>
    %cst_43 = arith.constant 0.000000e+00 : f32
    %41 = vector.broadcast %cst_43 : f32 to vector<32x49xf32>
    %42 = arith.maximumf %40, %41 : vector<32x49xf32>
    %c1_44 = arith.constant 1 : index
    %c0_45 = arith.constant 0 : index
    %c0_46 = arith.constant 0 : index
    %43 = vector.load %arg4[%c1_44, %c0_45, %c0_46] : memref<8x32x49xf32, #tpu.memory_space<vmem>>, vector<1x32x49xf32>
    %44 = vector.shape_cast %43 : vector<1x32x49xf32> to vector<32x49xf32>
    %45 = vector.shape_cast %42 : vector<32x49xf32> to vector<1x32x49xf32>
    tpu.vector_store %arg4[%c1_44, %c0_45, %c0_46], %45 {strides = array<i32>} : memref<8x32x49xf32, #tpu.memory_space<vmem>>, vector<1x32x49xf32>,
    %c2_47 = arith.constant 2 : index
    %c0_48 = arith.constant 0 : index
    %c0_49 = arith.constant 0 : index
    %c0_50 = arith.constant 0 : index
    %46 = vector.load %arg1[%c2_47, %c0_48, %c0_49, %c0_50] : memref<8x4x144x49xf32, #tpu.memory_space<vmem>>, vector<1x1x144x49xf32>
    %47 = vector.shape_cast %46 : vector<1x1x144x49xf32> to vector<144x49xf32>
    %cst_51 = arith.constant dense<0.000000e+00> : vector<32x49xf32>
    %48 = tpu.matmul %0, %47, %cst_51 {dimension_numbers = #tpu.dot_dimension_numbers<[1], [0], [0], [1], [0, 0, 1, 1], [], []>} : vector<32x144xf32>, vector<144x49xf32>, vector<32x49xf32> -> vector<32x49xf32>
    %c2_52 = arith.constant 2 : index
    %c1_53 = arith.constant 1 : index
    %c0_54 = arith.constant 0 : index
    %c0_55 = arith.constant 0 : index
    %49 = vector.load %arg1[%c2_52, %c1_53, %c0_54, %c0_55] : memref<8x4x144x49xf32, #tpu.memory_space<vmem>>, vector<1x1x144x49xf32>
    %50 = vector.shape_cast %49 : vector<1x1x144x49xf32> to vector<144x49xf32>
    %cst_56 = arith.constant dense<0.000000e+00> : vector<32x49xf32>
    %51 = tpu.matmul %0, %50, %cst_56 {dimension_numbers = #tpu.dot_dimension_numbers<[1], [0], [0], [1], [0, 0, 1, 1], [], []>} : vector<32x144xf32>, vector<144x49xf32>, vector<32x49xf32> -> vector<32x49xf32>
    %c2_57 = arith.constant 2 : index
    %c2_58 = arith.constant 2 : index
    %c0_59 = arith.constant 0 : index
    %c0_60 = arith.constant 0 : index
    %52 = vector.load %arg1[%c2_57, %c2_58, %c0_59, %c0_60] : memref<8x4x144x49xf32, #tpu.memory_space<vmem>>, vector<1x1x144x49xf32>
    %53 = vector.shape_cast %52 : vector<1x1x144x49xf32> to vector<144x49xf32>
    %cst_61 = arith.constant dense<0.000000e+00> : vector<32x49xf32>
    %54 = tpu.matmul %0, %53, %cst_61 {dimension_numbers = #tpu.dot_dimension_numbers<[1], [0], [0], [1], [0, 0, 1, 1], [], []>} : vector<32x144xf32>, vector<144x49xf32>, vector<32x49xf32> -> vector<32x49xf32>
    %c2_62 = arith.constant 2 : index
    %c3_63 = arith.constant 3 : index
    %c0_64 = arith.constant 0 : index
    %c0_65 = arith.constant 0 : index
    %55 = vector.load %arg1[%c2_62, %c3_63, %c0_64, %c0_65] : memref<8x4x144x49xf32, #tpu.memory_space<vmem>>, vector<1x1x144x49xf32>
    %56 = vector.shape_cast %55 : vector<1x1x144x49xf32> to vector<144x49xf32>
    %cst_66 = arith.constant dense<0.000000e+00> : vector<32x49xf32>
    %57 = tpu.matmul %0, %56, %cst_66 {dimension_numbers = #tpu.dot_dimension_numbers<[1], [0], [0], [1], [0, 0, 1, 1], [], []>} : vector<32x144xf32>, vector<144x49xf32>, vector<32x49xf32> -> vector<32x49xf32>
    %58 = arith.maximumf %48, %51 : vector<32x49xf32>
    %59 = arith.maximumf %54, %57 : vector<32x49xf32>
    %60 = arith.maximumf %58, %59 : vector<32x49xf32>
    %61 = vector.broadcast %1 : vector<32x1xf32> to vector<32x49xf32>
    %62 = arith.addf %60, %61 : vector<32x49xf32>
    %cst_67 = arith.constant 0.000000e+00 : f32
    %63 = vector.broadcast %cst_67 : f32 to vector<32x49xf32>
    %64 = arith.maximumf %62, %63 : vector<32x49xf32>
    %c2_68 = arith.constant 2 : index
    %c0_69 = arith.constant 0 : index
    %c0_70 = arith.constant 0 : index
    %65 = vector.load %arg4[%c2_68, %c0_69, %c0_70] : memref<8x32x49xf32, #tpu.memory_space<vmem>>, vector<1x32x49xf32>
    %66 = vector.shape_cast %65 : vector<1x32x49xf32> to vector<32x49xf32>
    %67 = vector.shape_cast %64 : vector<32x49xf32> to vector<1x32x49xf32>
    tpu.vector_store %arg4[%c2_68, %c0_69, %c0_70], %67 {strides = array<i32>} : memref<8x32x49xf32, #tpu.memory_space<vmem>>, vector<1x32x49xf32>,
    %c3_71 = arith.constant 3 : index
    %c0_72 = arith.constant 0 : index
    %c0_73 = arith.constant 0 : index
    %c0_74 = arith.constant 0 : index
    %68 = vector.load %arg1[%c3_71, %c0_72, %c0_73, %c0_74] : memref<8x4x144x49xf32, #tpu.memory_space<vmem>>, vector<1x1x144x49xf32>
    %69 = vector.shape_cast %68 : vector<1x1x144x49xf32> to vector<144x49xf32>
    %cst_75 = arith.constant dense<0.000000e+00> : vector<32x49xf32>
    %70 = tpu.matmul %0, %69, %cst_75 {dimension_numbers = #tpu.dot_dimension_numbers<[1], [0], [0], [1], [0, 0, 1, 1], [], []>} : vector<32x144xf32>, vector<144x49xf32>, vector<32x49xf32> -> vector<32x49xf32>
    %c3_76 = arith.constant 3 : index
    %c1_77 = arith.constant 1 : index
    %c0_78 = arith.constant 0 : index
    %c0_79 = arith.constant 0 : index
    %71 = vector.load %arg1[%c3_76, %c1_77, %c0_78, %c0_79] : memref<8x4x144x49xf32, #tpu.memory_space<vmem>>, vector<1x1x144x49xf32>
    %72 = vector.shape_cast %71 : vector<1x1x144x49xf32> to vector<144x49xf32>
    %cst_80 = arith.constant dense<0.000000e+00> : vector<32x49xf32>
    %73 = tpu.matmul %0, %72, %cst_80 {dimension_numbers = #tpu.dot_dimension_numbers<[1], [0], [0], [1], [0, 0, 1, 1], [], []>} : vector<32x144xf32>, vector<144x49xf32>, vector<32x49xf32> -> vector<32x49xf32>
    %c3_81 = arith.constant 3 : index
    %c2_82 = arith.constant 2 : index
    %c0_83 = arith.constant 0 : index
    %c0_84 = arith.constant 0 : index
    %74 = vector.load %arg1[%c3_81, %c2_82, %c0_83, %c0_84] : memref<8x4x144x49xf32, #tpu.memory_space<vmem>>, vector<1x1x144x49xf32>
    %75 = vector.shape_cast %74 : vector<1x1x144x49xf32> to vector<144x49xf32>
    %cst_85 = arith.constant dense<0.000000e+00> : vector<32x49xf32>
    %76 = tpu.matmul %0, %75, %cst_85 {dimension_numbers = #tpu.dot_dimension_numbers<[1], [0], [0], [1], [0, 0, 1, 1], [], []>} : vector<32x144xf32>, vector<144x49xf32>, vector<32x49xf32> -> vector<32x49xf32>
    %c3_86 = arith.constant 3 : index
    %c3_87 = arith.constant 3 : index
    %c0_88 = arith.constant 0 : index
    %c0_89 = arith.constant 0 : index
    %77 = vector.load %arg1[%c3_86, %c3_87, %c0_88, %c0_89] : memref<8x4x144x49xf32, #tpu.memory_space<vmem>>, vector<1x1x144x49xf32>
    %78 = vector.shape_cast %77 : vector<1x1x144x49xf32> to vector<144x49xf32>
    %cst_90 = arith.constant dense<0.000000e+00> : vector<32x49xf32>
    %79 = tpu.matmul %0, %78, %cst_90 {dimension_numbers = #tpu.dot_dimension_numbers<[1], [0], [0], [1], [0, 0, 1, 1], [], []>} : vector<32x144xf32>, vector<144x49xf32>, vector<32x49xf32> -> vector<32x49xf32>
    %80 = arith.maximumf %70, %73 : vector<32x49xf32>
    %81 = arith.maximumf %76, %79 : vector<32x49xf32>
    %82 = arith.maximumf %80, %81 : vector<32x49xf32>
    %83 = vector.broadcast %1 : vector<32x1xf32> to vector<32x49xf32>
    %84 = arith.addf %82, %83 : vector<32x49xf32>
    %cst_91 = arith.constant 0.000000e+00 : f32
    %85 = vector.broadcast %cst_91 : f32 to vector<32x49xf32>
    %86 = arith.maximumf %84, %85 : vector<32x49xf32>
    %c3_92 = arith.constant 3 : index
    %c0_93 = arith.constant 0 : index
    %c0_94 = arith.constant 0 : index
    %87 = vector.load %arg4[%c3_92, %c0_93, %c0_94] : memref<8x32x49xf32, #tpu.memory_space<vmem>>, vector<1x32x49xf32>
    %88 = vector.shape_cast %87 : vector<1x32x49xf32> to vector<32x49xf32>
    %89 = vector.shape_cast %86 : vector<32x49xf32> to vector<1x32x49xf32>
    tpu.vector_store %arg4[%c3_92, %c0_93, %c0_94], %89 {strides = array<i32>} : memref<8x32x49xf32, #tpu.memory_space<vmem>>, vector<1x32x49xf32>,
    %c4 = arith.constant 4 : index
    %c0_95 = arith.constant 0 : index
    %c0_96 = arith.constant 0 : index
    %c0_97 = arith.constant 0 : index
    %90 = vector.load %arg1[%c4, %c0_95, %c0_96, %c0_97] : memref<8x4x144x49xf32, #tpu.memory_space<vmem>>, vector<1x1x144x49xf32>
    %91 = vector.shape_cast %90 : vector<1x1x144x49xf32> to vector<144x49xf32>
    %cst_98 = arith.constant dense<0.000000e+00> : vector<32x49xf32>
    %92 = tpu.matmul %0, %91, %cst_98 {dimension_numbers = #tpu.dot_dimension_numbers<[1], [0], [0], [1], [0, 0, 1, 1], [], []>} : vector<32x144xf32>, vector<144x49xf32>, vector<32x49xf32> -> vector<32x49xf32>
    %c4_99 = arith.constant 4 : index
    %c1_100 = arith.constant 1 : index
    %c0_101 = arith.constant 0 : index
    %c0_102 = arith.constant 0 : index
    %93 = vector.load %arg1[%c4_99, %c1_100, %c0_101, %c0_102] : memref<8x4x144x49xf32, #tpu.memory_space<vmem>>, vector<1x1x144x49xf32>
    %94 = vector.shape_cast %93 : vector<1x1x144x49xf32> to vector<144x49xf32>
    %cst_103 = arith.constant dense<0.000000e+00> : vector<32x49xf32>
    %95 = tpu.matmul %0, %94, %cst_103 {dimension_numbers = #tpu.dot_dimension_numbers<[1], [0], [0], [1], [0, 0, 1, 1], [], []>} : vector<32x144xf32>, vector<144x49xf32>, vector<32x49xf32> -> vector<32x49xf32>
    %c4_104 = arith.constant 4 : index
    %c2_105 = arith.constant 2 : index
    %c0_106 = arith.constant 0 : index
    %c0_107 = arith.constant 0 : index
    %96 = vector.load %arg1[%c4_104, %c2_105, %c0_106, %c0_107] : memref<8x4x144x49xf32, #tpu.memory_space<vmem>>, vector<1x1x144x49xf32>
    %97 = vector.shape_cast %96 : vector<1x1x144x49xf32> to vector<144x49xf32>
    %cst_108 = arith.constant dense<0.000000e+00> : vector<32x49xf32>
    %98 = tpu.matmul %0, %97, %cst_108 {dimension_numbers = #tpu.dot_dimension_numbers<[1], [0], [0], [1], [0, 0, 1, 1], [], []>} : vector<32x144xf32>, vector<144x49xf32>, vector<32x49xf32> -> vector<32x49xf32>
    %c4_109 = arith.constant 4 : index
    %c3_110 = arith.constant 3 : index
    %c0_111 = arith.constant 0 : index
    %c0_112 = arith.constant 0 : index
    %99 = vector.load %arg1[%c4_109, %c3_110, %c0_111, %c0_112] : memref<8x4x144x49xf32, #tpu.memory_space<vmem>>, vector<1x1x144x49xf32>
    %100 = vector.shape_cast %99 : vector<1x1x144x49xf32> to vector<144x49xf32>
    %cst_113 = arith.constant dense<0.000000e+00> : vector<32x49xf32>
    %101 = tpu.matmul %0, %100, %cst_113 {dimension_numbers = #tpu.dot_dimension_numbers<[1], [0], [0], [1], [0, 0, 1, 1], [], []>} : vector<32x144xf32>, vector<144x49xf32>, vector<32x49xf32> -> vector<32x49xf32>
    %102 = arith.maximumf %92, %95 : vector<32x49xf32>
    %103 = arith.maximumf %98, %101 : vector<32x49xf32>
    %104 = arith.maximumf %102, %103 : vector<32x49xf32>
    %105 = vector.broadcast %1 : vector<32x1xf32> to vector<32x49xf32>
    %106 = arith.addf %104, %105 : vector<32x49xf32>
    %cst_114 = arith.constant 0.000000e+00 : f32
    %107 = vector.broadcast %cst_114 : f32 to vector<32x49xf32>
    %108 = arith.maximumf %106, %107 : vector<32x49xf32>
    %c4_115 = arith.constant 4 : index
    %c0_116 = arith.constant 0 : index
    %c0_117 = arith.constant 0 : index
    %109 = vector.load %arg4[%c4_115, %c0_116, %c0_117] : memref<8x32x49xf32, #tpu.memory_space<vmem>>, vector<1x32x49xf32>
    %110 = vector.shape_cast %109 : vector<1x32x49xf32> to vector<32x49xf32>
    %111 = vector.shape_cast %108 : vector<32x49xf32> to vector<1x32x49xf32>
    tpu.vector_store %arg4[%c4_115, %c0_116, %c0_117], %111 {strides = array<i32>} : memref<8x32x49xf32, #tpu.memory_space<vmem>>, vector<1x32x49xf32>,
    %c5 = arith.constant 5 : index
    %c0_118 = arith.constant 0 : index
    %c0_119 = arith.constant 0 : index
    %c0_120 = arith.constant 0 : index
    %112 = vector.load %arg1[%c5, %c0_118, %c0_119, %c0_120] : memref<8x4x144x49xf32, #tpu.memory_space<vmem>>, vector<1x1x144x49xf32>
    %113 = vector.shape_cast %112 : vector<1x1x144x49xf32> to vector<144x49xf32>
    %cst_121 = arith.constant dense<0.000000e+00> : vector<32x49xf32>
    %114 = tpu.matmul %0, %113, %cst_121 {dimension_numbers = #tpu.dot_dimension_numbers<[1], [0], [0], [1], [0, 0, 1, 1], [], []>} : vector<32x144xf32>, vector<144x49xf32>, vector<32x49xf32> -> vector<32x49xf32>
    %c5_122 = arith.constant 5 : index
    %c1_123 = arith.constant 1 : index
    %c0_124 = arith.constant 0 : index
    %c0_125 = arith.constant 0 : index
    %115 = vector.load %arg1[%c5_122, %c1_123, %c0_124, %c0_125] : memref<8x4x144x49xf32, #tpu.memory_space<vmem>>, vector<1x1x144x49xf32>
    %116 = vector.shape_cast %115 : vector<1x1x144x49xf32> to vector<144x49xf32>
    %cst_126 = arith.constant dense<0.000000e+00> : vector<32x49xf32>
    %117 = tpu.matmul %0, %116, %cst_126 {dimension_numbers = #tpu.dot_dimension_numbers<[1], [0], [0], [1], [0, 0, 1, 1], [], []>} : vector<32x144xf32>, vector<144x49xf32>, vector<32x49xf32> -> vector<32x49xf32>
    %c5_127 = arith.constant 5 : index
    %c2_128 = arith.constant 2 : index
    %c0_129 = arith.constant 0 : index
    %c0_130 = arith.constant 0 : index
    %118 = vector.load %arg1[%c5_127, %c2_128, %c0_129, %c0_130] : memref<8x4x144x49xf32, #tpu.memory_space<vmem>>, vector<1x1x144x49xf32>
    %119 = vector.shape_cast %118 : vector<1x1x144x49xf32> to vector<144x49xf32>
    %cst_131 = arith.constant dense<0.000000e+00> : vector<32x49xf32>
    %120 = tpu.matmul %0, %119, %cst_131 {dimension_numbers = #tpu.dot_dimension_numbers<[1], [0], [0], [1], [0, 0, 1, 1], [], []>} : vector<32x144xf32>, vector<144x49xf32>, vector<32x49xf32> -> vector<32x49xf32>
    %c5_132 = arith.constant 5 : index
    %c3_133 = arith.constant 3 : index
    %c0_134 = arith.constant 0 : index
    %c0_135 = arith.constant 0 : index
    %121 = vector.load %arg1[%c5_132, %c3_133, %c0_134, %c0_135] : memref<8x4x144x49xf32, #tpu.memory_space<vmem>>, vector<1x1x144x49xf32>
    %122 = vector.shape_cast %121 : vector<1x1x144x49xf32> to vector<144x49xf32>
    %cst_136 = arith.constant dense<0.000000e+00> : vector<32x49xf32>
    %123 = tpu.matmul %0, %122, %cst_136 {dimension_numbers = #tpu.dot_dimension_numbers<[1], [0], [0], [1], [0, 0, 1, 1], [], []>} : vector<32x144xf32>, vector<144x49xf32>, vector<32x49xf32> -> vector<32x49xf32>
    %124 = arith.maximumf %114, %117 : vector<32x49xf32>
    %125 = arith.maximumf %120, %123 : vector<32x49xf32>
    %126 = arith.maximumf %124, %125 : vector<32x49xf32>
    %127 = vector.broadcast %1 : vector<32x1xf32> to vector<32x49xf32>
    %128 = arith.addf %126, %127 : vector<32x49xf32>
    %cst_137 = arith.constant 0.000000e+00 : f32
    %129 = vector.broadcast %cst_137 : f32 to vector<32x49xf32>
    %130 = arith.maximumf %128, %129 : vector<32x49xf32>
    %c5_138 = arith.constant 5 : index
    %c0_139 = arith.constant 0 : index
    %c0_140 = arith.constant 0 : index
    %131 = vector.load %arg4[%c5_138, %c0_139, %c0_140] : memref<8x32x49xf32, #tpu.memory_space<vmem>>, vector<1x32x49xf32>
    %132 = vector.shape_cast %131 : vector<1x32x49xf32> to vector<32x49xf32>
    %133 = vector.shape_cast %130 : vector<32x49xf32> to vector<1x32x49xf32>
    tpu.vector_store %arg4[%c5_138, %c0_139, %c0_140], %133 {strides = array<i32>} : memref<8x32x49xf32, #tpu.memory_space<vmem>>, vector<1x32x49xf32>,
    %c6 = arith.constant 6 : index
    %c0_141 = arith.constant 0 : index
    %c0_142 = arith.constant 0 : index
    %c0_143 = arith.constant 0 : index
    %134 = vector.load %arg1[%c6, %c0_141, %c0_142, %c0_143] : memref<8x4x144x49xf32, #tpu.memory_space<vmem>>, vector<1x1x144x49xf32>
    %135 = vector.shape_cast %134 : vector<1x1x144x49xf32> to vector<144x49xf32>
    %cst_144 = arith.constant dense<0.000000e+00> : vector<32x49xf32>
    %136 = tpu.matmul %0, %135, %cst_144 {dimension_numbers = #tpu.dot_dimension_numbers<[1], [0], [0], [1], [0, 0, 1, 1], [], []>} : vector<32x144xf32>, vector<144x49xf32>, vector<32x49xf32> -> vector<32x49xf32>
    %c6_145 = arith.constant 6 : index
    %c1_146 = arith.constant 1 : index
    %c0_147 = arith.constant 0 : index
    %c0_148 = arith.constant 0 : index
    %137 = vector.load %arg1[%c6_145, %c1_146, %c0_147, %c0_148] : memref<8x4x144x49xf32, #tpu.memory_space<vmem>>, vector<1x1x144x49xf32>
    %138 = vector.shape_cast %137 : vector<1x1x144x49xf32> to vector<144x49xf32>
    %cst_149 = arith.constant dense<0.000000e+00> : vector<32x49xf32>
    %139 = tpu.matmul %0, %138, %cst_149 {dimension_numbers = #tpu.dot_dimension_numbers<[1], [0], [0], [1], [0, 0, 1, 1], [], []>} : vector<32x144xf32>, vector<144x49xf32>, vector<32x49xf32> -> vector<32x49xf32>
    %c6_150 = arith.constant 6 : index
    %c2_151 = arith.constant 2 : index
    %c0_152 = arith.constant 0 : index
    %c0_153 = arith.constant 0 : index
    %140 = vector.load %arg1[%c6_150, %c2_151, %c0_152, %c0_153] : memref<8x4x144x49xf32, #tpu.memory_space<vmem>>, vector<1x1x144x49xf32>
    %141 = vector.shape_cast %140 : vector<1x1x144x49xf32> to vector<144x49xf32>
    %cst_154 = arith.constant dense<0.000000e+00> : vector<32x49xf32>
    %142 = tpu.matmul %0, %141, %cst_154 {dimension_numbers = #tpu.dot_dimension_numbers<[1], [0], [0], [1], [0, 0, 1, 1], [], []>} : vector<32x144xf32>, vector<144x49xf32>, vector<32x49xf32> -> vector<32x49xf32>
    %c6_155 = arith.constant 6 : index
    %c3_156 = arith.constant 3 : index
    %c0_157 = arith.constant 0 : index
    %c0_158 = arith.constant 0 : index
    %143 = vector.load %arg1[%c6_155, %c3_156, %c0_157, %c0_158] : memref<8x4x144x49xf32, #tpu.memory_space<vmem>>, vector<1x1x144x49xf32>
    %144 = vector.shape_cast %143 : vector<1x1x144x49xf32> to vector<144x49xf32>
    %cst_159 = arith.constant dense<0.000000e+00> : vector<32x49xf32>
    %145 = tpu.matmul %0, %144, %cst_159 {dimension_numbers = #tpu.dot_dimension_numbers<[1], [0], [0], [1], [0, 0, 1, 1], [], []>} : vector<32x144xf32>, vector<144x49xf32>, vector<32x49xf32> -> vector<32x49xf32>
    %146 = arith.maximumf %136, %139 : vector<32x49xf32>
    %147 = arith.maximumf %142, %145 : vector<32x49xf32>
    %148 = arith.maximumf %146, %147 : vector<32x49xf32>
    %149 = vector.broadcast %1 : vector<32x1xf32> to vector<32x49xf32>
    %150 = arith.addf %148, %149 : vector<32x49xf32>
    %cst_160 = arith.constant 0.000000e+00 : f32
    %151 = vector.broadcast %cst_160 : f32 to vector<32x49xf32>
    %152 = arith.maximumf %150, %151 : vector<32x49xf32>
    %c6_161 = arith.constant 6 : index
    %c0_162 = arith.constant 0 : index
    %c0_163 = arith.constant 0 : index
    %153 = vector.load %arg4[%c6_161, %c0_162, %c0_163] : memref<8x32x49xf32, #tpu.memory_space<vmem>>, vector<1x32x49xf32>
    %154 = vector.shape_cast %153 : vector<1x32x49xf32> to vector<32x49xf32>
    %155 = vector.shape_cast %152 : vector<32x49xf32> to vector<1x32x49xf32>
    tpu.vector_store %arg4[%c6_161, %c0_162, %c0_163], %155 {strides = array<i32>} : memref<8x32x49xf32, #tpu.memory_space<vmem>>, vector<1x32x49xf32>,
    %c7 = arith.constant 7 : index
    %c0_164 = arith.constant 0 : index
    %c0_165 = arith.constant 0 : index
    %c0_166 = arith.constant 0 : index
    %156 = vector.load %arg1[%c7, %c0_164, %c0_165, %c0_166] : memref<8x4x144x49xf32, #tpu.memory_space<vmem>>, vector<1x1x144x49xf32>
    %157 = vector.shape_cast %156 : vector<1x1x144x49xf32> to vector<144x49xf32>
    %cst_167 = arith.constant dense<0.000000e+00> : vector<32x49xf32>
    %158 = tpu.matmul %0, %157, %cst_167 {dimension_numbers = #tpu.dot_dimension_numbers<[1], [0], [0], [1], [0, 0, 1, 1], [], []>} : vector<32x144xf32>, vector<144x49xf32>, vector<32x49xf32> -> vector<32x49xf32>
    %c7_168 = arith.constant 7 : index
    %c1_169 = arith.constant 1 : index
    %c0_170 = arith.constant 0 : index
    %c0_171 = arith.constant 0 : index
    %159 = vector.load %arg1[%c7_168, %c1_169, %c0_170, %c0_171] : memref<8x4x144x49xf32, #tpu.memory_space<vmem>>, vector<1x1x144x49xf32>
    %160 = vector.shape_cast %159 : vector<1x1x144x49xf32> to vector<144x49xf32>
    %cst_172 = arith.constant dense<0.000000e+00> : vector<32x49xf32>
    %161 = tpu.matmul %0, %160, %cst_172 {dimension_numbers = #tpu.dot_dimension_numbers<[1], [0], [0], [1], [0, 0, 1, 1], [], []>} : vector<32x144xf32>, vector<144x49xf32>, vector<32x49xf32> -> vector<32x49xf32>
    %c7_173 = arith.constant 7 : index
    %c2_174 = arith.constant 2 : index
    %c0_175 = arith.constant 0 : index
    %c0_176 = arith.constant 0 : index
    %162 = vector.load %arg1[%c7_173, %c2_174, %c0_175, %c0_176] : memref<8x4x144x49xf32, #tpu.memory_space<vmem>>, vector<1x1x144x49xf32>
    %163 = vector.shape_cast %162 : vector<1x1x144x49xf32> to vector<144x49xf32>
    %cst_177 = arith.constant dense<0.000000e+00> : vector<32x49xf32>
    %164 = tpu.matmul %0, %163, %cst_177 {dimension_numbers = #tpu.dot_dimension_numbers<[1], [0], [0], [1], [0, 0, 1, 1], [], []>} : vector<32x144xf32>, vector<144x49xf32>, vector<32x49xf32> -> vector<32x49xf32>
    %c7_178 = arith.constant 7 : index
    %c3_179 = arith.constant 3 : index
    %c0_180 = arith.constant 0 : index
    %c0_181 = arith.constant 0 : index
    %165 = vector.load %arg1[%c7_178, %c3_179, %c0_180, %c0_181] : memref<8x4x144x49xf32, #tpu.memory_space<vmem>>, vector<1x1x144x49xf32>
    %166 = vector.shape_cast %165 : vector<1x1x144x49xf32> to vector<144x49xf32>
    %cst_182 = arith.constant dense<0.000000e+00> : vector<32x49xf32>
    %167 = tpu.matmul %0, %166, %cst_182 {dimension_numbers = #tpu.dot_dimension_numbers<[1], [0], [0], [1], [0, 0, 1, 1], [], []>} : vector<32x144xf32>, vector<144x49xf32>, vector<32x49xf32> -> vector<32x49xf32>
    %168 = arith.maximumf %158, %161 : vector<32x49xf32>
    %169 = arith.maximumf %164, %167 : vector<32x49xf32>
    %170 = arith.maximumf %168, %169 : vector<32x49xf32>
    %171 = vector.broadcast %1 : vector<32x1xf32> to vector<32x49xf32>
    %172 = arith.addf %170, %171 : vector<32x49xf32>
    %cst_183 = arith.constant 0.000000e+00 : f32
    %173 = vector.broadcast %cst_183 : f32 to vector<32x49xf32>
    %174 = arith.maximumf %172, %173 : vector<32x49xf32>
    %c7_184 = arith.constant 7 : index
    %c0_185 = arith.constant 0 : index
    %c0_186 = arith.constant 0 : index
    %175 = vector.load %arg4[%c7_184, %c0_185, %c0_186] : memref<8x32x49xf32, #tpu.memory_space<vmem>>, vector<1x32x49xf32>
    %176 = vector.shape_cast %175 : vector<1x32x49xf32> to vector<32x49xf32>
    %177 = vector.shape_cast %174 : vector<32x49xf32> to vector<1x32x49xf32>
    tpu.vector_store %arg4[%c7_184, %c0_185, %c0_186], %177 {strides = array<i32>} : memref<8x32x49xf32, #tpu.memory_space<vmem>>, vector<1x32x49xf32>,
    return
  }
  func.func @transform_0(%arg0: i32) -> (i32, i32, i32, i32) {
    %c0_i32 = arith.constant 0 : i32
    %c0_i32_0 = arith.constant 0 : i32
    %c0_i32_1 = arith.constant 0 : i32
    %c0_i32_2 = arith.constant 0 : i32
    return %arg0, %c0_i32, %c0_i32_0, %c0_i32_1 : i32, i32, i32, i32
  }
  func.func @transform_1(%arg0: i32) -> (i32, i32) {
    %c0_i32 = arith.constant 0 : i32
    %c0_i32_0 = arith.constant 0 : i32
    %c0_i32_1 = arith.constant 0 : i32
    return %c0_i32, %c0_i32_0 : i32, i32
  }
  func.func @transform_2(%arg0: i32) -> (i32, i32) {
    %c0_i32 = arith.constant 0 : i32
    %c0_i32_0 = arith.constant 0 : i32
    %c0_i32_1 = arith.constant 0 : i32
    return %c0_i32, %c0_i32_0 : i32, i32
  }
  func.func @transform_3(%arg0: i32) -> (i32, i32, i32) {
    %c0_i32 = arith.constant 0 : i32
    %c0_i32_0 = arith.constant 0 : i32
    %c0_i32_1 = arith.constant 0 : i32
    return %arg0, %c0_i32, %c0_i32_0 : i32, i32, i32
  }
}

module attributes {stable_mosaic.version = 11 : i64} {
  func.func @_mlp_head_kernel(%arg0: i32, %arg1: memref<8x1568xf32, #tpu.memory_space<vmem>>, %arg2: memref<1568x128xf32, #tpu.memory_space<vmem>>, %arg3: memref<1x128xf32, #tpu.memory_space<vmem>>, %arg4: memref<128x10xf32, #tpu.memory_space<vmem>>, %arg5: memref<1x10xf32, #tpu.memory_space<vmem>>, %arg6: memref<8x10xf32, #tpu.memory_space<vmem>>) attributes {dimension_semantics = [#tpu.dimension_semantics<parallel>], iteration_bounds = array<i64: 1>, scalar_prefetch = 0 : i64, scratch_operands = 0 : i64, tpu.core_type = #tpu.core_type<tc>, window_params = [{transform_indices = @transform_0, window_bounds = array<i64: 8, 1568>}, {pipeline_mode = #tpu.pipeline_mode<synchronous>, transform_indices = @transform_1, window_bounds = array<i64: 1568, 128>}, {pipeline_mode = #tpu.pipeline_mode<synchronous>, transform_indices = @transform_2, window_bounds = array<i64: 1, 128>}, {pipeline_mode = #tpu.pipeline_mode<synchronous>, transform_indices = @transform_3, window_bounds = array<i64: 128, 10>}, {pipeline_mode = #tpu.pipeline_mode<synchronous>, transform_indices = @transform_4, window_bounds = array<i64: 1, 10>}, {transform_indices = @transform_5, window_bounds = array<i64: 8, 10>}]} {
    %c0 = arith.constant 0 : index
    %c0_0 = arith.constant 0 : index
    %0 = vector.load %arg1[%c0, %c0_0] : memref<8x1568xf32, #tpu.memory_space<vmem>>, vector<8x1568xf32>
    %c0_1 = arith.constant 0 : index
    %c0_2 = arith.constant 0 : index
    %1 = vector.load %arg2[%c0_1, %c0_2] : memref<1568x128xf32, #tpu.memory_space<vmem>>, vector<1568x128xf32>
    %cst = arith.constant dense<0.000000e+00> : vector<8x128xf32>
    %2 = tpu.matmul %0, %1, %cst {dimension_numbers = #tpu.dot_dimension_numbers<[1], [0], [0], [1], [0, 0, 1, 1], [], []>} : vector<8x1568xf32>, vector<1568x128xf32>, vector<8x128xf32> -> vector<8x128xf32>
    %c0_3 = arith.constant 0 : index
    %c0_4 = arith.constant 0 : index
    %3 = vector.load %arg3[%c0_3, %c0_4] : memref<1x128xf32, #tpu.memory_space<vmem>>, vector<1x128xf32>
    %4 = vector.broadcast %3 : vector<1x128xf32> to vector<8x128xf32>
    %5 = arith.addf %2, %4 : vector<8x128xf32>
    %cst_5 = arith.constant 0.000000e+00 : f32
    %6 = vector.broadcast %cst_5 : f32 to vector<8x128xf32>
    %7 = arith.maximumf %5, %6 : vector<8x128xf32>
    %c0_6 = arith.constant 0 : index
    %c0_7 = arith.constant 0 : index
    %8 = vector.load %arg4[%c0_6, %c0_7] : memref<128x10xf32, #tpu.memory_space<vmem>>, vector<128x10xf32>
    %cst_8 = arith.constant dense<0.000000e+00> : vector<8x10xf32>
    %9 = tpu.matmul %7, %8, %cst_8 {dimension_numbers = #tpu.dot_dimension_numbers<[1], [0], [0], [1], [0, 0, 1, 1], [], []>} : vector<8x128xf32>, vector<128x10xf32>, vector<8x10xf32> -> vector<8x10xf32>
    %c0_9 = arith.constant 0 : index
    %c0_10 = arith.constant 0 : index
    %10 = vector.load %arg5[%c0_9, %c0_10] : memref<1x10xf32, #tpu.memory_space<vmem>>, vector<1x10xf32>
    %11 = vector.broadcast %10 : vector<1x10xf32> to vector<8x10xf32>
    %12 = arith.addf %9, %11 : vector<8x10xf32>
    %cst_11 = arith.constant dense<0xFF800000> : vector<8xf32>
    %13 = vector.multi_reduction <maximumf>, %12, %cst_11 [1] : vector<8x10xf32> to vector<8xf32>
    %14 = vector.shape_cast %13 : vector<8xf32> to vector<8x1xf32>
    %15 = vector.broadcast %14 : vector<8x1xf32> to vector<8x10xf32>
    %16 = arith.subf %12, %15 : vector<8x10xf32>
    %17 = math.exp %16 : vector<8x10xf32>
    %cst_12 = arith.constant dense<0.000000e+00> : vector<8xf32>
    %18 = vector.multi_reduction <add>, %17, %cst_12 [1] : vector<8x10xf32> to vector<8xf32>
    %19 = vector.shape_cast %18 : vector<8xf32> to vector<8x1xf32>
    %20 = math.log %19 : vector<8x1xf32>
    %21 = vector.broadcast %20 : vector<8x1xf32> to vector<8x10xf32>
    %22 = arith.subf %16, %21 : vector<8x10xf32>
    %c0_13 = arith.constant 0 : index
    %c0_14 = arith.constant 0 : index
    %23 = vector.load %arg6[%c0_13, %c0_14] : memref<8x10xf32, #tpu.memory_space<vmem>>, vector<8x10xf32>
    tpu.vector_store %arg6[%c0_13, %c0_14], %22 {strides = array<i32>} : memref<8x10xf32, #tpu.memory_space<vmem>>, vector<8x10xf32>,
    return
  }
  func.func @transform_0(%arg0: i32) -> (i32, i32) {
    %c0_i32 = arith.constant 0 : i32
    %c0_i32_0 = arith.constant 0 : i32
    return %arg0, %c0_i32 : i32, i32
  }
  func.func @transform_1(%arg0: i32) -> (i32, i32) {
    %c0_i32 = arith.constant 0 : i32
    %c0_i32_0 = arith.constant 0 : i32
    %c0_i32_1 = arith.constant 0 : i32
    return %c0_i32, %c0_i32_0 : i32, i32
  }
  func.func @transform_2(%arg0: i32) -> (i32, i32) {
    %c0_i32 = arith.constant 0 : i32
    %c0_i32_0 = arith.constant 0 : i32
    %c0_i32_1 = arith.constant 0 : i32
    return %c0_i32, %c0_i32_0 : i32, i32
  }
  func.func @transform_3(%arg0: i32) -> (i32, i32) {
    %c0_i32 = arith.constant 0 : i32
    %c0_i32_0 = arith.constant 0 : i32
    %c0_i32_1 = arith.constant 0 : i32
    return %c0_i32, %c0_i32_0 : i32, i32
  }
  func.func @transform_4(%arg0: i32) -> (i32, i32) {
    %c0_i32 = arith.constant 0 : i32
    %c0_i32_0 = arith.constant 0 : i32
    %c0_i32_1 = arith.constant 0 : i32
    return %c0_i32, %c0_i32_0 : i32, i32
  }
  func.func @transform_5(%arg0: i32) -> (i32, i32) {
    %c0_i32 = arith.constant 0 : i32
    %c0_i32_0 = arith.constant 0 : i32
    return %arg0, %c0_i32 : i32, i32
  }
}

</mosaic_0001>

<llo_original>
// kernel: net_forward.3
$region0: #{net_forward.3}
  #allocation0 [shape = 'u32[]', space=smem, size = 0x4, offset = 0x4, fixed_abs, tag = 'smem constant byte address 0x4 - core index']
  #allocation1 [shape = 'u32[144,128]{1,0:T(1,128)}', space=vmem, size = 0x12000, scoped, tag = 'internal scratch']
  %s0 = inlined_call_operand.vmem [shape: f32[8,4,9,196], index: 0, kind: input, shape index: {}]
  %s1 = inlined_call_operand.vmem [shape: f32[16,9], index: 1, kind: input, shape index: {}]
  %s2 = inlined_call_operand.vmem [shape: f32[16,1], index: 2, kind: input, shape index: {}]
  %s3 = inlined_call_operand.vmem [shape: f32[8,16,196], index: 3, kind: output, shape index: {}]
  %s4 = sld [smem:[#allocation0]]
  $region22: #{net_forward.3} parent=0
    _
  %s6 = ssub.s32 1, %s4
  %s7 = scalar_select 0, %s6, %s4
  // Predicated region
  $region2: #{net_forward.3} parent=0 // pred_check
    _
  $region3: #{net_forward.3} parent=0 // pred_check_branch
    %9 = sbr.rel (0) target = $region5
  $region4: #{net_forward.3} parent=0 // pred_region
    _
  $region5: #{net_forward.3} parent=0 // pred_fallthru
    _
  // Predicated region
  $region6: #{net_forward.3} parent=0 // pred_check
    _
  $region7: #{net_forward.3} parent=0 // pred_check_branch
    %11 = sbr.rel (0) target = $region9
  $region8: #{net_forward.3} parent=0 // pred_region
    _
  $region9: #{net_forward.3} parent=0 // pred_fallthru
    _
  // Predicated region
  $region10: #{net_forward.3} parent=0 // pred_check
    _
  $region11: #{net_forward.3} parent=0 // pred_check_branch
    %13 = sbr.rel (0) target = $region13
  $region12: #{net_forward.3} parent=0 // pred_region
    _
  $region13: #{net_forward.3} parent=0 // pred_fallthru
    _
  %v14 = vld [vmem:[%s1] sm:$0xff]
  %v15 = vld [vmem:[%s1 + $0x8] sm:$0xff]
  %v16 = vld [vmem:[%s2] sm:$0xff]
  %v17 = vld [vmem:[%s2 + $0x8] sm:$0xff]
  %v18 = vld [vmem:[%s0] sm:$0xff]
  %v19 = vld [vmem:[%s0 + $0x8] sm:$0xff]
  %v20 = vld [vmem:[%s0 + $0x10] sm:$0x1]
  %v21 = vld [vmem:[%s0 + $0x18] sm:$0x1]
  %vm22 = vcmask 72704
  %v24 = vsel %vm22, %v14, 0
  %v27 = vsel %vm22, %v15, 0
  %vm29 = vcmask 1040384
  %v31 = vsel %vm29, %v20, 0
  %v34 = vsel %vm29, %v21, 0
  %36 = vmatprep.subr.mxu0 0.0
  %37 = vmatpush1.msra.mxu0 0.0
  %38 = vmatprep.subr.mxu0 0.0
  %39 = vmatpush1.msra.mxu0 0.0
  %40 = vmatprep.subr.mxu0 0.0
  %41 = vmatpush1.msra.mxu0 0.0
  %42 = vmatprep.subr.mxu0 0.0
  %43 = vmatpush1.msra.mxu0 0.0
  %44 = vmatprep.subr.mxu0 0.0
  %45 = vmatpush1.msra.mxu0 0.0
  %46 = vmatprep.subr.mxu0 0.0
  %47 = vmatpush1.msra.mxu0 0.0
  %48 = vmatprep.subr.mxu0 0.0
  %49 = vmatpush1.msra.mxu0 0.0
  %50 = vmatprep.subr.mxu0 0.0
  %51 = vmatpush1.msra.mxu0 0.0
  %52 = vmatprep.subr.mxu0 0.0
  %53 = vmatpush1.msra.mxu0 0.0
  %54 = vmatprep.subr.mxu0 0.0
  %55 = vmatpush1.msra.mxu0 0.0
  %56 = vmatprep.subr.mxu0 0.0
  %57 = vmatpush1.msra.mxu0 0.0
  %58 = vmatprep.subr.mxu0 0.0
  %59 = vmatpush1.msra.mxu0 0.0
  %60 = vmatprep.subr.mxu0 0.0
  %61 = vmatpush1.msra.mxu0 0.0
  %62 = vmatprep.subr.mxu0 0.0
  %63 = vmatpush1.msra.mxu0 0.0
  %64 = vmatprep.subr.mxu0 %v34
  %65 = vmatpush1.msra.mxu0 %v31
  %66 = vmatprep.subr.mxu0 %v19
  %67 = vmatpush1.msra.mxu0 %v18
  %68 = vmatprep.subr.mxu0 0.0
  %69 = vmatpush2.msra.mxu0 0.0
  %70 = vmatprep.subr.mxu0 0.0
  %71 = vmatpush2.msra.mxu0 0.0
  %72 = vmatprep.subr.mxu0 0.0
  %73 = vmatpush2.msra.mxu0 0.0
  %74 = vmatprep.subr.mxu0 0.0
  %75 = vmatpush2.msra.mxu0 0.0
  %76 = vmatprep.subr.mxu0 0.0
  %77 = vmatpush2.msra.mxu0 0.0
  %78 = vmatprep.subr.mxu0 0.0
  %79 = vmatpush2.msra.mxu0 0.0
  %80 = vmatprep.subr.mxu0 0.0
  %81 = vmatpush2.msra.mxu0 0.0
  %82 = vmatprep.subr.mxu0 0.0
  %83 = vmatpush2.msra.mxu0 0.0
  %84 = vmatprep.subr.mxu0 0.0
  %85 = vmatpush2.msra.mxu0 0.0
  %86 = vmatprep.subr.mxu0 0.0
  %87 = vmatpush2.msra.mxu0 0.0
  %88 = vmatprep.subr.mxu0 0.0
  %89 = vmatpush2.msra.mxu0 0.0
  %90 = vmatprep.subr.mxu0 0.0
  %91 = vmatpush2.msra.mxu0 0.0
  %92 = vmatprep.subr.mxu0 0.0
  %93 = vmatpush2.msra.mxu0 0.0
  %94 = vmatprep.subr.mxu0 0.0
  %95 = vmatpush2.msra.mxu0 0.0
  %96 = vmatprep.subr.mxu0 0.0
  %97 = vmatpush2.msra.mxu0 0.0
  %98 = vmatprep.subr.mxu0 0.0
  %99 = vmatpush2.msra.mxu0 0.0
  %100 = vmatprep.mubr.f32.mxu0 0.0
  %101 = vmatmul.mubr.f32.gmra.mxu0 %v24
  %v102 = vpop.f32.mrf.mxu0
  %v103 = vadd.f32 0.0, %v102
  %v104 = vpop.f32.mrf.mxu0
  %v105 = vadd.f32 0.0, %v104
  %106 = vmatprep.mubr.f32.mxu0 0.0
  %107 = vmatmul.mubr.f32.gmra.mxu0 %v27
  %v108 = vpop.f32.mrf.mxu0
  %v109 = vadd.f32 0.0, %v108
  %v110 = vpop.f32.mrf.mxu0
  %v111 = vadd.f32 0.0, %v110
  %112 = vdwg.mxu0
  %s113 = scalar_lea.vmem %s0, 32
  %v114 = vld [vmem:[%s113] sm:$0xff]
  %v115 = vld [vmem:[%s113 + $0x8] sm:$0xff]
  %v116 = vld [vmem:[%s113 + $0x10] sm:$0x1]
  %v117 = vld [vmem:[%s113 + $0x18] sm:$0x1]
  %v119 = vsel %vm29, %v116, 0
  %v122 = vsel %vm29, %v117, 0
  %124 = vmatprep.subr.mxu0 0.0
  %125 = vmatpush1.msra.mxu0 0.0
  %126 = vmatprep.subr.mxu0 0.0
  %127 = vmatpush1.msra.mxu0 0.0
  %128 = vmatprep.subr.mxu0 0.0
  %129 = vmatpush1.msra.mxu0 0.0
  %130 = vmatprep.subr.mxu0 0.0
  %131 = vmatpush1.msra.mxu0 0.0
  %132 = vmatprep.subr.mxu0 0.0
  %133 = vmatpush1.msra.mxu0 0.0
  %134 = vmatprep.subr.mxu0 0.0
  %135 = vmatpush1.msra.mxu0 0.0
  %136 = vmatprep.subr.mxu0 0.0
  %137 = vmatpush1.msra.mxu0 0.0
  %138 = vmatprep.subr.mxu0 0.0
  %139 = vmatpush1.msra.mxu0 0.0
  %140 = vmatprep.subr.mxu0 0.0
  %141 = vmatpush1.msra.mxu0 0.0
  %142 = vmatprep.subr.mxu0 0.0
  %143 = vmatpush1.msra.mxu0 0.0
  %144 = vmatprep.subr.mxu0 0.0
  %145 = vmatpush1.msra.mxu0 0.0
  %146 = vmatprep.subr.mxu0 0.0
  %147 = vmatpush1.msra.mxu0 0.0
  %148 = vmatprep.subr.mxu0 0.0
  %149 = vmatpush1.msra.mxu0 0.0
  %150 = vmatprep.subr.mxu0 0.0
  %151 = vmatpush1.msra.mxu0 0.0
  %152 = vmatprep.subr.mxu0 %v122
  %153 = vmatpush1.msra.mxu0 %v119
  %154 = vmatprep.subr.mxu0 %v115
  %155 = vmatpush1.msra.mxu0 %v114
  %156 = vmatprep.subr.mxu0 0.0
  %157 = vmatpush2.msra.mxu0 0.0
  %158 = vmatprep.subr.mxu0 0.0
  %159 = vmatpush2.msra.mxu0 0.0
  %160 = vmatprep.subr.mxu0 0.0
  %161 = vmatpush2.msra.mxu0 0.0
  %162 = vmatprep.subr.mxu0 0.0
  %163 = vmatpush2.msra.mxu0 0.0
  %164 = vmatprep.subr.mxu0 0.0
  %165 = vmatpush2.msra.mxu0 0.0
  %166 = vmatprep.subr.mxu0 0.0
  %167 = vmatpush2.msra.mxu0 0.0
  %168 = vmatprep.subr.mxu0 0.0
  %169 = vmatpush2.msra.mxu0 0.0
  %170 = vmatprep.subr.mxu0 0.0
  %171 = vmatpush2.msra.mxu0 0.0
  %172 = vmatprep.subr.mxu0 0.0
  %173 = vmatpush2.msra.mxu0 0.0
  %174 = vmatprep.subr.mxu0 0.0
  %175 = vmatpush2.msra.mxu0 0.0
  %176 = vmatprep.subr.mxu0 0.0
  %177 = vmatpush2.msra.mxu0 0.0
  %178 = vmatprep.subr.mxu0 0.0
  %179 = vmatpush2.msra.mxu0 0.0
  %180 = vmatprep.subr.mxu0 0.0
  %181 = vmatpush2.msra.mxu0 0.0
  %182 = vmatprep.subr.mxu0 0.0
  %183 = vmatpush2.msra.mxu0 0.0
  %184 = vmatprep.subr.mxu0 0.0
  %185 = vmatpush2.msra.mxu0 0.0
  %186 = vmatprep.subr.mxu0 0.0
  %187 = vmatpush2.msra.mxu0 0.0
  %188 = vmatprep.mubr.f32.mxu0 0.0
  %189 = vmatmul.mubr.f32.gmra.mxu0 %v24
  %v190 = vpop.f32.mrf.mxu0
  %v191 = vadd.f32 0.0, %v190
  %v192 = vpop.f32.mrf.mxu0
  %v193 = vadd.f32 0.0, %v192
  %194 = vmatprep.mubr.f32.mxu0 0.0
  %195 = vmatmul.mubr.f32.gmra.mxu0 %v27
  %v196 = vpop.f32.mrf.mxu0
  %v197 = vadd.f32 0.0, %v196
  %v198 = vpop.f32.mrf.mxu0
  %v199 = vadd.f32 0.0, %v198
  %200 = vdwg.mxu0
  %s201 = scalar_lea.vmem %s0, 64
  %v202 = vld [vmem:[%s201] sm:$0xff]
  %v203 = vld [vmem:[%s201 + $0x8] sm:$0xff]
  %v204 = vld [vmem:[%s201 + $0x10] sm:$0x1]
  %v205 = vld [vmem:[%s201 + $0x18] sm:$0x1]
  %v207 = vsel %vm29, %v204, 0
  %v210 = vsel %vm29, %v205, 0
  %212 = vmatprep.subr.mxu0 0.0
  %213 = vmatpush1.msra.mxu0 0.0
  %214 = vmatprep.subr.mxu0 0.0
  %215 = vmatpush1.msra.mxu0 0.0
  %216 = vmatprep.subr.mxu0 0.0
  %217 = vmatpush1.msra.mxu0 0.0
  %218 = vmatprep.subr.mxu0 0.0
  %219 = vmatpush1.msra.mxu0 0.0
  %220 = vmatprep.subr.mxu0 0.0
  %221 = vmatpush1.msra.mxu0 0.0
  %222 = vmatprep.subr.mxu0 0.0
  %223 = vmatpush1.msra.mxu0 0.0
  %224 = vmatprep.subr.mxu0 0.0
  %225 = vmatpush1.msra.mxu0 0.0
  %226 = vmatprep.subr.mxu0 0.0
  %227 = vmatpush1.msra.mxu0 0.0
  %228 = vmatprep.subr.mxu0 0.0
  %229 = vmatpush1.msra.mxu0 0.0
  %230 = vmatprep.subr.mxu0 0.0
  %231 = vmatpush1.msra.mxu0 0.0
  %232 = vmatprep.subr.mxu0 0.0
  %233 = vmatpush1.msra.mxu0 0.0
  %234 = vmatprep.subr.mxu0 0.0
  %235 = vmatpush1.msra.mxu0 0.0
  %236 = vmatprep.subr.mxu0 0.0
  %237 = vmatpush1.msra.mxu0 0.0
  %238 = vmatprep.subr.mxu0 0.0
  %239 = vmatpush1.msra.mxu0 0.0
  %240 = vmatprep.subr.mxu0 %v210
  %241 = vmatpush1.msra.mxu0 %v207
  %242 = vmatprep.subr.mxu0 %v203
  %243 = vmatpush1.msra.mxu0 %v202
  %244 = vmatprep.subr.mxu0 0.0
  %245 = vmatpush2.msra.mxu0 0.0
  %246 = vmatprep.subr.mxu0 0.0
  %247 = vmatpush2.msra.mxu0 0.0
  %248 = vmatprep.subr.mxu0 0.0
  %249 = vmatpush2.msra.mxu0 0.0
  %250 = vmatprep.subr.mxu0 0.0
  %251 = vmatpush2.msra.mxu0 0.0
  %252 = vmatprep.subr.mxu0 0.0
  %253 = vmatpush2.msra.mxu0 0.0
  %254 = vmatprep.subr.mxu0 0.0
  %255 = vmatpush2.msra.mxu0 0.0
  %256 = vmatprep.subr.mxu0 0.0
  %257 = vmatpush2.msra.mxu0 0.0
  %258 = vmatprep.subr.mxu0 0.0
  %259 = vmatpush2.msra.mxu0 0.0
  %260 = vmatprep.subr.mxu0 0.0
  %261 = vmatpush2.msra.mxu0 0.0
  %262 = vmatprep.subr.mxu0 0.0
  %263 = vmatpush2.msra.mxu0 0.0
  %264 = vmatprep.subr.mxu0 0.0
  %265 = vmatpush2.msra.mxu0 0.0
  %266 = vmatprep.subr.mxu0 0.0
  %267 = vmatpush2.msra.mxu0 0.0
  %268 = vmatprep.subr.mxu0 0.0
  %269 = vmatpush2.msra.mxu0 0.0
  %270 = vmatprep.subr.mxu0 0.0
  %271 = vmatpush2.msra.mxu0 0.0
  %272 = vmatprep.subr.mxu0 0.0
  %273 = vmatpush2.msra.mxu0 0.0
  %274 = vmatprep.subr.mxu0 0.0
  %275 = vmatpush2.msra.mxu0 0.0
  %276 = vmatprep.mubr.f32.mxu0 0.0
  %277 = vmatmul.mubr.f32.gmra.mxu0 %v24
  %v278 = vpop.f32.mrf.mxu0
  %v279 = vadd.f32 0.0, %v278
  %v280 = vpop.f32.mrf.mxu0
  %v281 = vadd.f32 0.0, %v280
  %282 = vmatprep.mubr.f32.mxu0 0.0
  %283 = vmatmul.mubr.f32.gmra.mxu0 %v27
  %v284 = vpop.f32.mrf.mxu0
  %v285 = vadd.f32 0.0, %v284
  %v286 = vpop.f32.mrf.mxu0
  %v287 = vadd.f32 0.0, %v286
  %288 = vdwg.mxu0
  %s289 = scalar_lea.vmem %s0, 96
  %v290 = vld [vmem:[%s289] sm:$0xff]
  %v291 = vld [vmem:[%s289 + $0x8] sm:$0xff]
  %v292 = vld [vmem:[%s289 + $0x10] sm:$0x1]
  %v293 = vld [vmem:[%s289 + $0x18] sm:$0x1]
  %v295 = vsel %vm29, %v292, 0
  %v298 = vsel %vm29, %v293, 0
  %300 = vmatprep.subr.mxu0 0.0
  %301 = vmatpush1.msra.mxu0 0.0
  %302 = vmatprep.subr.mxu0 0.0
  %303 = vmatpush1.msra.mxu0 0.0
  %304 = vmatprep.subr.mxu0 0.0
  %305 = vmatpush1.msra.mxu0 0.0
  %306 = vmatprep.subr.mxu0 0.0
  %307 = vmatpush1.msra.mxu0 0.0
  %308 = vmatprep.subr.mxu0 0.0
  %309 = vmatpush1.msra.mxu0 0.0
  %310 = vmatprep.subr.mxu0 0.0
  %311 = vmatpush1.msra.mxu0 0.0
  %312 = vmatprep.subr.mxu0 0.0
  %313 = vmatpush1.msra.mxu0 0.0
  %314 = vmatprep.subr.mxu0 0.0
  %315 = vmatpush1.msra.mxu0 0.0
  %316 = vmatprep.subr.mxu0 0.0
  %317 = vmatpush1.msra.mxu0 0.0
  %318 = vmatprep.subr.mxu0 0.0
  %319 = vmatpush1.msra.mxu0 0.0
  %320 = vmatprep.subr.mxu0 0.0
  %321 = vmatpush1.msra.mxu0 0.0
  %322 = vmatprep.subr.mxu0 0.0
  %323 = vmatpush1.msra.mxu0 0.0
  %324 = vmatprep.subr.mxu0 0.0
  %325 = vmatpush1.msra.mxu0 0.0
  %326 = vmatprep.subr.mxu0 0.0
  %327 = vmatpush1.msra.mxu0 0.0
  %328 = vmatprep.subr.mxu0 %v298
  %329 = vmatpush1.msra.mxu0 %v295
  %330 = vmatprep.subr.mxu0 %v291
  %331 = vmatpush1.msra.mxu0 %v290
  %332 = vmatprep.subr.mxu0 0.0
  %333 = vmatpush2.msra.mxu0 0.0
  %334 = vmatprep.subr.mxu0 0.0
  %335 = vmatpush2.msra.mxu0 0.0
  %336 = vmatprep.subr.mxu0 0.0
  %337 = vmatpush2.msra.mxu0 0.0
  %338 = vmatprep.subr.mxu0 0.0
  %339 = vmatpush2.msra.mxu0 0.0
  %340 = vmatprep.subr.mxu0 0.0
  %341 = vmatpush2.msra.mxu0 0.0
  %342 = vmatprep.subr.mxu0 0.0
  %343 = vmatpush2.msra.mxu0 0.0
  %344 = vmatprep.subr.mxu0 0.0
  %345 = vmatpush2.msra.mxu0 0.0
  %346 = vmatprep.subr.mxu0 0.0
  %347 = vmatpush2.msra.mxu0 0.0
  %348 = vmatprep.subr.mxu0 0.0
  %349 = vmatpush2.msra.mxu0 0.0
  %350 = vmatprep.subr.mxu0 0.0
  %351 = vmatpush2.msra.mxu0 0.0
  %352 = vmatprep.subr.mxu0 0.0
  %353 = vmatpush2.msra.mxu0 0.0
  %354 = vmatprep.subr.mxu0 0.0
  %355 = vmatpush2.msra.mxu0 0.0
  %356 = vmatprep.subr.mxu0 0.0
  %357 = vmatpush2.msra.mxu0 0.0
  %358 = vmatprep.subr.mxu0 0.0
  %359 = vmatpush2.msra.mxu0 0.0
  %360 = vmatprep.subr.mxu0 0.0
  %361 = vmatpush2.msra.mxu0 0.0
  %362 = vmatprep.subr.mxu0 0.0
  %363 = vmatpush2.msra.mxu0 0.0
  %364 = vmatprep.mubr.f32.mxu0 0.0
  %365 = vmatmul.mubr.f32.gmra.mxu0 %v24
  %v366 = vpop.f32.mrf.mxu0
  %v367 = vadd.f32 0.0, %v366
  %v368 = vpop.f32.mrf.mxu0
  %v369 = vadd.f32 0.0, %v368
  %370 = vmatprep.mubr.f32.mxu0 0.0
  %371 = vmatmul.mubr.f32.gmra.mxu0 %v27
  %v372 = vpop.f32.mrf.mxu0
  %v373 = vadd.f32 0.0, %v372
  %v374 = vpop.f32.mrf.mxu0
  %v375 = vadd.f32 0.0, %v374
  %376 = vdwg.mxu0
  %v377 = vmax.f32 %v103, %v191
  %v378 = vmax.f32 %v105, %v193
  %v379 = vmax.f32 %v109, %v197
  %v380 = vmax.f32 %v111, %v199
  %v381 = vmax.f32 %v279, %v367
  %v382 = vmax.f32 %v281, %v369
  %v383 = vmax.f32 %v285, %v373
  %v384 = vmax.f32 %v287, %v375
  %v385 = vmax.f32 %v377, %v381
  %v386 = vmax.f32 %v378, %v382
  %v387 = vmax.f32 %v379, %v383
  %v388 = vmax.f32 %v380, %v384
  %390 = vset.pattern.permute.xlu0 0
  %391 = vperm.xlu0 %390, %v16
  %v392 = vpop.permute.xlu0 %391
  %395 = vset.pattern.permute.xlu0 0
  %396 = vperm.xlu0 %395, %v17
  %v397 = vpop.permute.xlu0 %396
  %v399 = vadd.f32 %v385, %v392
  %v400 = vadd.f32 %v386, %v392
  %v401 = vadd.f32 %v387, %v397
  %v402 = vadd.f32 %v388, %v397
  %v403 = vmax.f32 %v399, 0.0
  %v404 = vmax.f32 %v400, 0.0
  %v405 = vmax.f32 %v401, 0.0
  %v406 = vmax.f32 %v402, 0.0
  %407 = vst [vmem:[%s3] sm:$0xff] %v403
  %vm408 = vcmask 556032
  %409 = vst.msk [vmem:[%s3 + $0x8] sm:$0xff] %vm408, %v404
  %410 = vst [vmem:[%s3 + $0x10] sm:$0xff] %v405
  %411 = vst.msk [vmem:[%s3 + $0x18] sm:$0xff] %vm408, %v406
  %s412 = scalar_lea.vmem %s0, 128
  %v413 = vld [vmem:[%s412] sm:$0xff]
  %v414 = vld [vmem:[%s412 + $0x8] sm:$0xff]
  %v415 = vld [vmem:[%s412 + $0x10] sm:$0x1]
  %v416 = vld [vmem:[%s412 + $0x18] sm:$0x1]
  %v418 = vsel %vm29, %v415, 0
  %v421 = vsel %vm29, %v416, 0
  %423 = vmatprep.subr.mxu0 0.0
  %424 = vmatpush1.msra.mxu0 0.0
  %425 = vmatprep.subr.mxu0 0.0
  %426 = vmatpush1.msra.mxu0 0.0
  %427 = vmatprep.subr.mxu0 0.0
  %428 = vmatpush1.msra.mxu0 0.0
  %429 = vmatprep.subr.mxu0 0.0
  %430 = vmatpush1.msra.mxu0 0.0
  %431 = vmatprep.subr.mxu0 0.0
  %432 = vmatpush1.msra.mxu0 0.0
  %433 = vmatprep.subr.mxu0 0.0
  %434 = vmatpush1.msra.mxu0 0.0
  %435 = vmatprep.subr.mxu0 0.0
  %436 = vmatpush1.msra.mxu0 0.0
  %437 = vmatprep.subr.mxu0 0.0
  %438 = vmatpush1.msra.mxu0 0.0
  %439 = vmatprep.subr.mxu0 0.0
  %440 = vmatpush1.msra.mxu0 0.0
  %441 = vmatprep.subr.mxu0 0.0
  %442 = vmatpush1.msra.mxu0 0.0
  %443 = vmatprep.subr.mxu0 0.0
  %444 = vmatpush1.msra.mxu0 0.0
  %445 = vmatprep.subr.mxu0 0.0
  %446 = vmatpush1.msra.mxu0 0.0
  %447 = vmatprep.subr.mxu0 0.0
  %448 = vmatpush1.msra.mxu0 0.0
  %449 = vmatprep.subr.mxu0 0.0
  %450 = vmatpush1.msra.mxu0 0.0
  %451 = vmatprep.subr.mxu0 %v421
  %452 = vmatpush1.msra.mxu0 %v418
  %453 = vmatprep.subr.mxu0 %v414
  %454 = vmatpush1.msra.mxu0 %v413
  %455 = vmatprep.subr.mxu0 0.0
  %456 = vmatpush2.msra.mxu0 0.0
  %457 = vmatprep.subr.mxu0 0.0
  %458 = vmatpush2.msra.mxu0 0.0
  %459 = vmatprep.subr.mxu0 0.0
  %460 = vmatpush2.msra.mxu0 0.0
  %461 = vmatprep.subr.mxu0 0.0
  %462 = vmatpush2.msra.mxu0 0.0
  %463 = vmatprep.subr.mxu0 0.0
  %464 = vmatpush2.msra.mxu0 0.0
  %465 = vmatprep.subr.mxu0 0.0
  %466 = vmatpush2.msra.mxu0 0.0
  %467 = vmatprep.subr.mxu0 0.0
  %468 = vmatpush2.msra.mxu0 0.0
  %469 = vmatprep.subr.mxu0 0.0
  %470 = vmatpush2.msra.mxu0 0.0
  %471 = vmatprep.subr.mxu0 0.0
  %472 = vmatpush2.msra.mxu0 0.0
  %473 = vmatprep.subr.mxu0 0.0
  %474 = vmatpush2.msra.mxu0 0.0
  %475 = vmatprep.subr.mxu0 0.0
  %476 = vmatpush2.msra.mxu0 0.0
  %477 = vmatprep.subr.mxu0 0.0
  %478 = vmatpush2.msra.mxu0 0.0
  %479 = vmatprep.subr.mxu0 0.0
  %480 = vmatpush2.msra.mxu0 0.0
  %481 = vmatprep.subr.mxu0 0.0
  %482 = vmatpush2.msra.mxu0 0.0
  %483 = vmatprep.subr.mxu0 0.0
  %484 = vmatpush2.msra.mxu0 0.0
  %485 = vmatprep.subr.mxu0 0.0
  %486 = vmatpush2.msra.mxu0 0.0
  %487 = vmatprep.mubr.f32.mxu0 0.0
  %488 = vmatmul.mubr.f32.gmra.mxu0 %v24
  %v489 = vpop.f32.mrf.mxu0
  %v490 = vadd.f32 0.0, %v489
  %v491 = vpop.f32.mrf.mxu0
  %v492 = vadd.f32 0.0, %v491
  %493 = vmatprep.mubr.f32.mxu0 0.0
  %494 = vmatmul.mubr.f32.gmra.mxu0 %v27
  %v495 = vpop.f32.mrf.mxu0
  %v496 = vadd.f32 0.0, %v495
  %v497 = vpop.f32.mrf.mxu0
  %v498 = vadd.f32 0.0, %v497
  %499 = vdwg.mxu0
  %s500 = scalar_lea.vmem %s0, 160
  %v501 = vld [vmem:[%s500] sm:$0xff]
  %v502 = vld [vmem:[%s500 + $0x8] sm:$0xff]
  %v503 = vld [vmem:[%s500 + $0x10] sm:$0x1]
  %v504 = vld [vmem:[%s500 + $0x18] sm:$0x1]
  %v506 = vsel %vm29, %v503, 0
  %v509 = vsel %vm29, %v504, 0
  %511 = vmatprep.subr.mxu0 0.0
  %512 = vmatpush1.msra.mxu0 0.0
  %513 = vmatprep.subr.mxu0 0.0
  %514 = vmatpush1.msra.mxu0 0.0
  %515 = vmatprep.subr.mxu0 0.0
  %516 = vmatpush1.msra.mxu0 0.0
  %517 = vmatprep.subr.mxu0 0.0
  %518 = vmatpush1.msra.mxu0 0.0
  %519 = vmatprep.subr.mxu0 0.0
  %520 = vmatpush1.msra.mxu0 0.0
  %521 = vmatprep.subr.mxu0 0.0
  %522 = vmatpush1.msra.mxu0 0.0
  %523 = vmatprep.subr.mxu0 0.0
  %524 = vmatpush1.msra.mxu0 0.0
  %525 = vmatprep.subr.mxu0 0.0
  %526 = vmatpush1.msra.mxu0 0.0
  %527 = vmatprep.subr.mxu0 0.0
  %528 = vmatpush1.msra.mxu0 0.0
  %529 = vmatprep.subr.mxu0 0.0
  %530 = vmatpush1.msra.mxu0 0.0
  %531 = vmatprep.subr.mxu0 0.0
  %532 = vmatpush1.msra.mxu0 0.0
  %533 = vmatprep.subr.mxu0 0.0
  %534 = vmatpush1.msra.mxu0 0.0
  %535 = vmatprep.subr.mxu0 0.0
  %536 = vmatpush1.msra.mxu0 0.0
  %537 = vmatprep.subr.mxu0 0.0
  %538 = vmatpush1.msra.mxu0 0.0
  %539 = vmatprep.subr.mxu0 %v509
  %540 = vmatpush1.msra.mxu0 %v506
  %541 = vmatprep.subr.mxu0 %v502
  %542 = vmatpush1.msra.mxu0 %v501
  %543 = vmatprep.subr.mxu0 0.0
  %544 = vmatpush2.msra.mxu0 0.0
  %545 = vmatprep.subr.mxu0 0.0
  %546 = vmatpush2.msra.mxu0 0.0
  %547 = vmatprep.subr.mxu0 0.0
  %548 = vmatpush2.msra.mxu0 0.0
  %549 = vmatprep.subr.mxu0 0.0
  %550 = vmatpush2.msra.mxu0 0.0
  %551 = vmatprep.subr.mxu0 0.0
  %552 = vmatpush2.msra.mxu0 0.0
  %553 = vmatprep.subr.mxu0 0.0
  %554 = vmatpush2.msra.mxu0 0.0
  %555 = vmatprep.subr.mxu0 0.0
  %556 = vmatpush2.msra.mxu0 0.0
  %557 = vmatprep.subr.mxu0 0.0
  %558 = vmatpush2.msra.mxu0 0.0
  %559 = vmatprep.subr.mxu0 0.0
  %560 = vmatpush2.msra.mxu0 0.0
  %561 = vmatprep.subr.mxu0 0.0
  %562 = vmatpush2.msra.mxu0 0.0
  %563 = vmatprep.subr.mxu0 0.0
  %564 = vmatpush2.msra.mxu0 0.0
  %565 = vmatprep.subr.mxu0 0.0
  %566 = vmatpush2.msra.mxu0 0.0
  %567 = vmatprep.subr.mxu0 0.0
  %568 = vmatpush2.msra.mxu0 0.0
  %569 = vmatprep.subr.mxu0 0.0
  %570 = vmatpush2.msra.mxu0 0.0
  %571 = vmatprep.subr.mxu0 0.0
  %572 = vmatpush2.msra.mxu0 0.0
  %573 = vmatprep.subr.mxu0 0.0
  %574 = vmatpush2.msra.mxu0 0.0
  %575 = vmatprep.mubr.f32.mxu0 0.0
  %576 = vmatmul.mubr.f32.gmra.mxu0 %v24
  %v577 = vpop.f32.mrf.mxu0
  %v578 = vadd.f32 0.0, %v577
  %v579 = vpop.f32.mrf.mxu0
  %v580 = vadd.f32 0.0, %v579
  %581 = vmatprep.mubr.f32.mxu0 0.0
  %582 = vmatmul.mubr.f32.gmra.mxu0 %v27
  %v583 = vpop.f32.mrf.mxu0
  %v584 = vadd.f32 0.0, %v583
  %v585 = vpop.f32.mrf.mxu0
  %v586 = vadd.f32 0.0, %v585
  %587 = vdwg.mxu0
  %s588 = scalar_lea.vmem %s0, 192
  %v589 = vld [vmem:[%s588] sm:$0xff]
  %v590 = vld [vmem:[%s588 + $0x8] sm:$0xff]
  %v591 = vld [vmem:[%s588 + $0x10] sm:$0x1]
  %v592 = vld [vmem:[%s588 + $0x18] sm:$0x1]
  %v594 = vsel %vm29, %v591, 0
  %v597 = vsel %vm29, %v592, 0
  %599 = vmatprep.subr.mxu0 0.0
  %600 = vmatpush1.msra.mxu0 0.0
  %601 = vmatprep.subr.mxu0 0.0
  %602 = vmatpush1.msra.mxu0 0.0
  %603 = vmatprep.subr.mxu0 0.0
  %604 = vmatpush1.msra.mxu0 0.0
  %605 = vmatprep.subr.mxu0 0.0
  %606 = vmatpush1.msra.mxu0 0.0
  %607 = vmatprep.subr.mxu0 0.0
  %608 = vmatpush1.msra.mxu0 0.0
  %609 = vmatprep.subr.mxu0 0.0
  %610 = vmatpush1.msra.mxu0 0.0
  %611 = vmatprep.subr.mxu0 0.0
  %612 = vmatpush1.msra.mxu0 0.0
  %613 = vmatprep.subr.mxu0 0.0
  %614 = vmatpush1.msra.mxu0 0.0
  %615 = vmatprep.subr.mxu0 0.0
  %616 = vmatpush1.msra.mxu0 0.0
  %617 = vmatprep.subr.mxu0 0.0
  %618 = vmatpush1.msra.mxu0 0.0
  %619 = vmatprep.subr.mxu0 0.0
  %620 = vmatpush1.msra.mxu0 0.0
  %621 = vmatprep.subr.mxu0 0.0
  %622 = vmatpush1.msra.mxu0 0.0
  %623 = vmatprep.subr.mxu0 0.0
  %624 = vmatpush1.msra.mxu0 0.0
  %625 = vmatprep.subr.mxu0 0.0
  %626 = vmatpush1.msra.mxu0 0.0
  %627 = vmatprep.subr.mxu0 %v597
  %628 = vmatpush1.msra.mxu0 %v594
  %629 = vmatprep.subr.mxu0 %v590
  %630 = vmatpush1.msra.mxu0 %v589
  %631 = vmatprep.subr.mxu0 0.0
  %632 = vmatpush2.msra.mxu0 0.0
  %633 = vmatprep.subr.mxu0 0.0
  %634 = vmatpush2.msra.mxu0 0.0
  %635 = vmatprep.subr.mxu0 0.0
  %636 = vmatpush2.msra.mxu0 0.0
  %637 = vmatprep.subr.mxu0 0.0
  %638 = vmatpush2.msra.mxu0 0.0
  %639 = vmatprep.subr.mxu0 0.0
  %640 = vmatpush2.msra.mxu0 0.0
  %641 = vmatprep.subr.mxu0 0.0
  %642 = vmatpush2.msra.mxu0 0.0
  %643 = vmatprep.subr.mxu0 0.0
  %644 = vmatpush2.msra.mxu0 0.0
  %645 = vmatprep.subr.mxu0 0.0
  %646 = vmatpush2.msra.mxu0 0.0
  %647 = vmatprep.subr.mxu0 0.0
  %648 = vmatpush2.msra.mxu0 0.0
  %649 = vmatprep.subr.mxu0 0.0
  %650 = vmatpush2.msra.mxu0 0.0
  %651 = vmatprep.subr.mxu0 0.0
  %652 = vmatpush2.msra.mxu0 0.0
  %653 = vmatprep.subr.mxu0 0.0
  %654 = vmatpush2.msra.mxu0 0.0
  %655 = vmatprep.subr.mxu0 0.0
  %656 = vmatpush2.msra.mxu0 0.0
  %657 = vmatprep.subr.mxu0 0.0
  %658 = vmatpush2.msra.mxu0 0.0
  %659 = vmatprep.subr.mxu0 0.0
  %660 = vmatpush2.msra.mxu0 0.0
  %661 = vmatprep.subr.mxu0 0.0
  %662 = vmatpush2.msra.mxu0 0.0
  %663 = vmatprep.mubr.f32.mxu0 0.0
  %664 = vmatmul.mubr.f32.gmra.mxu0 %v24
  %v665 = vpop.f32.mrf.mxu0
  %v666 = vadd.f32 0.0, %v665
  %v667 = vpop.f32.mrf.mxu0
  %v668 = vadd.f32 0.0, %v667
  %669 = vmatprep.mubr.f32.mxu0 0.0
  %670 = vmatmul.mubr.f32.gmra.mxu0 %v27
  %v671 = vpop.f32.mrf.mxu0
  %v672 = vadd.f32 0.0, %v671
  %v673 = vpop.f32.mrf.mxu0
  %v674 = vadd.f32 0.0, %v673
  %675 = vdwg.mxu0
  %s676 = scalar_lea.vmem %s0, 224
  %v677 = vld [vmem:[%s676] sm:$0xff]
  %v678 = vld [vmem:[%s676 + $0x8] sm:$0xff]
  %v679 = vld [vmem:[%s676 + $0x10] sm:$0x1]
  %v680 = vld [vmem:[%s676 + $0x18] sm:$0x1]
  %v682 = vsel %vm29, %v679, 0
  %v685 = vsel %vm29, %v680, 0
  %687 = vmatprep.subr.mxu0 0.0
  %688 = vmatpush1.msra.mxu0 0.0
  %689 = vmatprep.subr.mxu0 0.0
  %690 = vmatpush1.msra.mxu0 0.0
  %691 = vmatprep.subr.mxu0 0.0
  %692 = vmatpush1.msra.mxu0 0.0
  %693 = vmatprep.subr.mxu0 0.0
  %694 = vmatpush1.msra.mxu0 0.0
  %695 = vmatprep.subr.mxu0 0.0
  %696 = vmatpush1.msra.mxu0 0.0
  %697 = vmatprep.subr.mxu0 0.0
  %698 = vmatpush1.msra.mxu0 0.0
  %699 = vmatprep.subr.mxu0 0.0
  %700 = vmatpush1.msra.mxu0 0.0
  %701 = vmatprep.subr.mxu0 0.0
  %702 = vmatpush1.msra.mxu0 0.0
  %703 = vmatprep.subr.mxu0 0.0
  %704 = vmatpush1.msra.mxu0 0.0
  %705 = vmatprep.subr.mxu0 0.0
  %706 = vmatpush1.msra.mxu0 0.0
  %707 = vmatprep.subr.mxu0 0.0
  %708 = vmatpush1.msra.mxu0 0.0
  %709 = vmatprep.subr.mxu0 0.0
  %710 = vmatpush1.msra.mxu0 0.0
  %711 = vmatprep.subr.mxu0 0.0
  %712 = vmatpush1.msra.mxu0 0.0
  %713 = vmatprep.subr.mxu0 0.0
  %714 = vmatpush1.msra.mxu0 0.0
  %715 = vmatprep.subr.mxu0 %v685
  %716 = vmatpush1.msra.mxu0 %v682
  %717 = vmatprep.subr.mxu0 %v678
  %718 = vmatpush1.msra.mxu0 %v677
  %719 = vmatprep.subr.mxu0 0.0
  %720 = vmatpush2.msra.mxu0 0.0
  %721 = vmatprep.subr.mxu0 0.0
  %722 = vmatpush2.msra.mxu0 0.0
  %723 = vmatprep.subr.mxu0 0.0
  %724 = vmatpush2.msra.mxu0 0.0
  %725 = vmatprep.subr.mxu0 0.0
  %726 = vmatpush2.msra.mxu0 0.0
  %727 = vmatprep.subr.mxu0 0.0
  %728 = vmatpush2.msra.mxu0 0.0
  %729 = vmatprep.subr.mxu0 0.0
  %730 = vmatpush2.msra.mxu0 0.0
  %731 = vmatprep.subr.mxu0 0.0
  %732 = vmatpush2.msra.mxu0 0.0
  %733 = vmatprep.subr.mxu0 0.0
  %734 = vmatpush2.msra.mxu0 0.0
  %735 = vmatprep.subr.mxu0 0.0
  %736 = vmatpush2.msra.mxu0 0.0
  %737 = vmatprep.subr.mxu0 0.0
  %738 = vmatpush2.msra.mxu0 0.0
  %739 = vmatprep.subr.mxu0 0.0
  %740 = vmatpush2.msra.mxu0 0.0
  %741 = vmatprep.subr.mxu0 0.0
  %742 = vmatpush2.msra.mxu0 0.0
  %743 = vmatprep.subr.mxu0 0.0
  %744 = vmatpush2.msra.mxu0 0.0
  %745 = vmatprep.subr.mxu0 0.0
  %746 = vmatpush2.msra.mxu0 0.0
  %747 = vmatprep.subr.mxu0 0.0
  %748 = vmatpush2.msra.mxu0 0.0
  %749 = vmatprep.subr.mxu0 0.0
  %750 = vmatpush2.msra.mxu0 0.0
  %751 = vmatprep.mubr.f32.mxu0 0.0
  %752 = vmatmul.mubr.f32.gmra.mxu0 %v24
  %v753 = vpop.f32.mrf.mxu0
  %v754 = vadd.f32 0.0, %v753
  %v755 = vpop.f32.mrf.mxu0
  %v756 = vadd.f32 0.0, %v755
  %757 = vmatprep.mubr.f32.mxu0 0.0
  %758 = vmatmul.mubr.f32.gmra.mxu0 %v27
  %v759 = vpop.f32.mrf.mxu0
  %v760 = vadd.f32 0.0, %v759
  %v761 = vpop.f32.mrf.mxu0
  %v762 = vadd.f32 0.0, %v761
  %763 = vdwg.mxu0
  %v764 = vmax.f32 %v490, %v578
  %v765 = vmax.f32 %v492, %v580
  %v766 = vmax.f32 %v496, %v584
  %v767 = vmax.f32 %v498, %v586
  %v768 = vmax.f32 %v666, %v754
  %v769 = vmax.f32 %v668, %v756
  %v770 = vmax.f32 %v672, %v760
  %v771 = vmax.f32 %v674, %v762
  %v772 = vmax.f32 %v764, %v768
  %v773 = vmax.f32 %v765, %v769
  %v774 = vmax.f32 %v766, %v770
  %v775 = vmax.f32 %v767, %v771
  %v776 = vadd.f32 %v772, %v392
  %v777 = vadd.f32 %v773, %v392
  %v778 = vadd.f32 %v774, %v397
  %v779 = vadd.f32 %v775, %v397
  %v780 = vmax.f32 %v776, 0.0
  %v781 = vmax.f32 %v777, 0.0
  %v782 = vmax.f32 %v778, 0.0
  %v783 = vmax.f32 %v779, 0.0
  %s784 = scalar_lea.vmem %s3, 32
  %785 = vst [vmem:[%s784] sm:$0xff] %v780
  %786 = vst.msk [vmem:[%s784 + $0x8] sm:$0xff] %vm408, %v781
  %787 = vst [vmem:[%s784 + $0x10] sm:$0xff] %v782
  %788 = vst.msk [vmem:[%s784 + $0x18] sm:$0xff] %vm408, %v783
  %s789 = scalar_lea.vmem %s0, 256
  %v790 = vld [vmem:[%s789] sm:$0xff]
  %v791 = vld [vmem:[%s789 + $0x8] sm:$0xff]
  %v792 = vld [vmem:[%s789 + $0x10] sm:$0x1]
  %v793 = vld [vmem:[%s789 + $0x18] sm:$0x1]
  %v795 = vsel %vm29, %v792, 0
  %v798 = vsel %vm29, %v793, 0
  %800 = vmatprep.subr.mxu0 0.0
  %801 = vmatpush1.msra.mxu0 0.0
  %802 = vmatprep.subr.mxu0 0.0
  %803 = vmatpush1.msra.mxu0 0.0
  %804 = vmatprep.subr.mxu0 0.0
  %805 = vmatpush1.msra.mxu0 0.0
  %806 = vmatprep.subr.mxu0 0.0
  %807 = vmatpush1.msra.mxu0 0.0
  %808 = vmatprep.subr.mxu0 0.0
  %809 = vmatpush1.msra.mxu0 0.0
  %810 = vmatprep.subr.mxu0 0.0
  %811 = vmatpush1.msra.mxu0 0.0
  %812 = vmatprep.subr.mxu0 0.0
  %813 = vmatpush1.msra.mxu0 0.0
  %814 = vmatprep.subr.mxu0 0.0
  %815 = vmatpush1.msra.mxu0 0.0
  %816 = vmatprep.subr.mxu0 0.0
  %817 = vmatpush1.msra.mxu0 0.0
  %818 = vmatprep.subr.mxu0 0.0
  %819 = vmatpush1.msra.mxu0 0.0
  %820 = vmatprep.subr.mxu0 0.0
  %821 = vmatpush1.msra.mxu0 0.0
  %822 = vmatprep.subr.mxu0 0.0
  %823 = vmatpush1.msra.mxu0 0.0
  %824 = vmatprep.subr.mxu0 0.0
  %825 = vmatpush1.msra.mxu0 0.0
  %826 = vmatprep.subr.mxu0 0.0
  %827 = vmatpush1.msra.mxu0 0.0
  %828 = vmatprep.subr.mxu0 %v798
  %829 = vmatpush1.msra.mxu0 %v795
  %830 = vmatprep.subr.mxu0 %v791
  %831 = vmatpush1.msra.mxu0 %v790
  %832 = vmatprep.subr.mxu0 0.0
  %833 = vmatpush2.msra.mxu0 0.0
  %834 = vmatprep.subr.mxu0 0.0
  %835 = vmatpush2.msra.mxu0 0.0
  %836 = vmatprep.subr.mxu0 0.0
  %837 = vmatpush2.msra.mxu0 0.0
  %838 = vmatprep.subr.mxu0 0.0
  %839 = vmatpush2.msra.mxu0 0.0
  %840 = vmatprep.subr.mxu0 0.0
  %841 = vmatpush2.msra.mxu0 0.0
  %842 = vmatprep.subr.mxu0 0.0
  %843 = vmatpush2.msra.mxu0 0.0
  %844 = vmatprep.subr.mxu0 0.0
  %845 = vmatpush2.msra.mxu0 0.0
  %846 = vmatprep.subr.mxu0 0.0
  %847 = vmatpush2.msra.mxu0 0.0
  %848 = vmatprep.subr.mxu0 0.0
  %849 = vmatpush2.msra.mxu0 0.0
  %850 = vmatprep.subr.mxu0 0.0
  %851 = vmatpush2.msra.mxu0 0.0
  %852 = vmatprep.subr.mxu0 0.0
  %853 = vmatpush2.msra.mxu0 0.0
  %854 = vmatprep.subr.mxu0 0.0
  %855 = vmatpush2.msra.mxu0 0.0
  %856 = vmatprep.subr.mxu0 0.0
  %857 = vmatpush2.msra.mxu0 0.0
  %858 = vmatprep.subr.mxu0 0.0
  %859 = vmatpush2.msra.mxu0 0.0
  %860 = vmatprep.subr.mxu0 0.0
  %861 = vmatpush2.msra.mxu0 0.0
  %862 = vmatprep.subr.mxu0 0.0
  %863 = vmatpush2.msra.mxu0 0.0
  %864 = vmatprep.mubr.f32.mxu0 0.0
  %865 = vmatmul.mubr.f32.gmra.mxu0 %v24
  %v866 = vpop.f32.mrf.mxu0
  %v867 = vadd.f32 0.0, %v866
  %v868 = vpop.f32.mrf.mxu0
  %v869 = vadd.f32 0.0, %v868
  %870 = vmatprep.mubr.f32.mxu0 0.0
  %871 = vmatmul.mubr.f32.gmra.mxu0 %v27
  %v872 = vpop.f32.mrf.mxu0
  %v873 = vadd.f32 0.0, %v872
  %v874 = vpop.f32.mrf.mxu0
  %v875 = vadd.f32 0.0, %v874
  %876 = vdwg.mxu0
  %s877 = scalar_lea.vmem %s0, 288
  %v878 = vld [vmem:[%s877] sm:$0xff]
  %v879 = vld [vmem:[%s877 + $0x8] sm:$0xff]
  %v880 = vld [vmem:[%s877 + $0x10] sm:$0x1]
  %v881 = vld [vmem:[%s877 + $0x18] sm:$0x1]
  %v883 = vsel %vm29, %v880, 0
  %v886 = vsel %vm29, %v881, 0
  %888 = vmatprep.subr.mxu0 0.0
  %889 = vmatpush1.msra.mxu0 0.0
  %890 = vmatprep.subr.mxu0 0.0
  %891 = vmatpush1.msra.mxu0 0.0
  %892 = vmatprep.subr.mxu0 0.0
  %893 = vmatpush1.msra.mxu0 0.0
  %894 = vmatprep.subr.mxu0 0.0
  %895 = vmatpush1.msra.mxu0 0.0
  %896 = vmatprep.subr.mxu0 0.0
  %897 = vmatpush1.msra.mxu0 0.0
  %898 = vmatprep.subr.mxu0 0.0
  %899 = vmatpush1.msra.mxu0 0.0
  %900 = vmatprep.subr.mxu0 0.0
  %901 = vmatpush1.msra.mxu0 0.0
  %902 = vmatprep.subr.mxu0 0.0
  %903 = vmatpush1.msra.mxu0 0.0
  %904 = vmatprep.subr.mxu0 0.0
  %905 = vmatpush1.msra.mxu0 0.0
  %906 = vmatprep.subr.mxu0 0.0
  %907 = vmatpush1.msra.mxu0 0.0
  %908 = vmatprep.subr.mxu0 0.0
  %909 = vmatpush1.msra.mxu0 0.0
  %910 = vmatprep.subr.mxu0 0.0
  %911 = vmatpush1.msra.mxu0 0.0
  %912 = vmatprep.subr.mxu0 0.0
  %913 = vmatpush1.msra.mxu0 0.0
  %914 = vmatprep.subr.mxu0 0.0
  %915 = vmatpush1.msra.mxu0 0.0
  %916 = vmatprep.subr.mxu0 %v886
  %917 = vmatpush1.msra.mxu0 %v883
  %918 = vmatprep.subr.mxu0 %v879
  %919 = vmatpush1.msra.mxu0 %v878
  %920 = vmatprep.subr.mxu0 0.0
  %921 = vmatpush2.msra.mxu0 0.0
  %922 = vmatprep.subr.mxu0 0.0
  %923 = vmatpush2.msra.mxu0 0.0
  %924 = vmatprep.subr.mxu0 0.0
  %925 = vmatpush2.msra.mxu0 0.0
  %926 = vmatprep.subr.mxu0 0.0
  %927 = vmatpush2.msra.mxu0 0.0
  %928 = vmatprep.subr.mxu0 0.0
  %929 = vmatpush2.msra.mxu0 0.0
  %930 = vmatprep.subr.mxu0 0.0
  %931 = vmatpush2.msra.mxu0 0.0
  %932 = vmatprep.subr.mxu0 0.0
  %933 = vmatpush2.msra.mxu0 0.0
  %934 = vmatprep.subr.mxu0 0.0
  %935 = vmatpush2.msra.mxu0 0.0
  %936 = vmatprep.subr.mxu0 0.0
  %937 = vmatpush2.msra.mxu0 0.0
  %938 = vmatprep.subr.mxu0 0.0
  %939 = vmatpush2.msra.mxu0 0.0
  %940 = vmatprep.subr.mxu0 0.0
  %941 = vmatpush2.msra.mxu0 0.0
  %942 = vmatprep.subr.mxu0 0.0
  %943 = vmatpush2.msra.mxu0 0.0
  %944 = vmatprep.subr.mxu0 0.0
  %945 = vmatpush2.msra.mxu0 0.0
  %946 = vmatprep.subr.mxu0 0.0
  %947 = vmatpush2.msra.mxu0 0.0
  %948 = vmatprep.subr.mxu0 0.0
  %949 = vmatpush2.msra.mxu0 0.0
  %950 = vmatprep.subr.mxu0 0.0
  %951 = vmatpush2.msra.mxu0 0.0
  %952 = vmatprep.mubr.f32.mxu0 0.0
  %953 = vmatmul.mubr.f32.gmra.mxu0 %v24
  %v954 = vpop.f32.mrf.mxu0
  %v955 = vadd.f32 0.0, %v954
  %v956 = vpop.f32.mrf.mxu0
  %v957 = vadd.f32 0.0, %v956
  %958 = vmatprep.mubr.f32.mxu0 0.0
  %959 = vmatmul.mubr.f32.gmra.mxu0 %v27
  %v960 = vpop.f32.mrf.mxu0
  %v961 = vadd.f32 0.0, %v960
  %v962 = vpop.f32.mrf.mxu0
  %v963 = vadd.f32 0.0, %v962
  %964 = vdwg.mxu0
  %s965 = scalar_lea.vmem %s0, 320
  %v966 = vld [vmem:[%s965] sm:$0xff]
  %v967 = vld [vmem:[%s965 + $0x8] sm:$0xff]
  %v968 = vld [vmem:[%s965 + $0x10] sm:$0x1]
  %v969 = vld [vmem:[%s965 + $0x18] sm:$0x1]
  %v971 = vsel %vm29, %v968, 0
  %v974 = vsel %vm29, %v969, 0
  %976 = vmatprep.subr.mxu0 0.0
  %977 = vmatpush1.msra.mxu0 0.0
  %978 = vmatprep.subr.mxu0 0.0
  %979 = vmatpush1.msra.mxu0 0.0
  %980 = vmatprep.subr.mxu0 0.0
  %981 = vmatpush1.msra.mxu0 0.0
  %982 = vmatprep.subr.mxu0 0.0
  %983 = vmatpush1.msra.mxu0 0.0
  %984 = vmatprep.subr.mxu0 0.0
  %985 = vmatpush1.msra.mxu0 0.0
  %986 = vmatprep.subr.mxu0 0.0
  %987 = vmatpush1.msra.mxu0 0.0
  %988 = vmatprep.subr.mxu0 0.0
  %989 = vmatpush1.msra.mxu0 0.0
  %990 = vmatprep.subr.mxu0 0.0
  %991 = vmatpush1.msra.mxu0 0.0
  %992 = vmatprep.subr.mxu0 0.0
  %993 = vmatpush1.msra.mxu0 0.0
  %994 = vmatprep.subr.mxu0 0.0
  %995 = vmatpush1.msra.mxu0 0.0
  %996 = vmatprep.subr.mxu0 0.0
  %997 = vmatpush1.msra.mxu0 0.0
  %998 = vmatprep.subr.mxu0 0.0
  %999 = vmatpush1.msra.mxu0 0.0
  %1000 = vmatprep.subr.mxu0 0.0
  %1001 = vmatpush1.msra.mxu0 0.0
  %1002 = vmatprep.subr.mxu0 0.0
  %1003 = vmatpush1.msra.mxu0 0.0
  %1004 = vmatprep.subr.mxu0 %v974
  %1005 = vmatpush1.msra.mxu0 %v971
  %1006 = vmatprep.subr.mxu0 %v967
  %1007 = vmatpush1.msra.mxu0 %v966
  %1008 = vmatprep.subr.mxu0 0.0
  %1009 = vmatpush2.msra.mxu0 0.0
  %1010 = vmatprep.subr.mxu0 0.0
  %1011 = vmatpush2.msra.mxu0 0.0
  %1012 = vmatprep.subr.mxu0 0.0
  %1013 = vmatpush2.msra.mxu0 0.0
  %1014 = vmatprep.subr.mxu0 0.0
  %1015 = vmatpush2.msra.mxu0 0.0
  %1016 = vmatprep.subr.mxu0 0.0
  %1017 = vmatpush2.msra.mxu0 0.0
  %1018 = vmatprep.subr.mxu0 0.0
  %1019 = vmatpush2.msra.mxu0 0.0
  %1020 = vmatprep.subr.mxu0 0.0
  %1021 = vmatpush2.msra.mxu0 0.0
  %1022 = vmatprep.subr.mxu0 0.0
  %1023 = vmatpush2.msra.mxu0 0.0
  %1024 = vmatprep.subr.mxu0 0.0
  %1025 = vmatpush2.msra.mxu0 0.0
  %1026 = vmatprep.subr.mxu0 0.0
  %1027 = vmatpush2.msra.mxu0 0.0
  %1028 = vmatprep.subr.mxu0 0.0
  %1029 = vmatpush2.msra.mxu0 0.0
  %1030 = vmatprep.subr.mxu0 0.0
  %1031 = vmatpush2.msra.mxu0 0.0
  %1032 = vmatprep.subr.mxu0 0.0
  %1033 = vmatpush2.msra.mxu0 0.0
  %1034 = vmatprep.subr.mxu0 0.0
  %1035 = vmatpush2.msra.mxu0 0.0
  %1036 = vmatprep.subr.mxu0 0.0
  %1037 = vmatpush2.msra.mxu0 0.0
  %1038 = vmatprep.subr.mxu0 0.0
  %1039 = vmatpush2.msra.mxu0 0.0
  %1040 = vmatprep.mubr.f32.mxu0 0.0
  %1041 = vmatmul.mubr.f32.gmra.mxu0 %v24
  %v1042 = vpop.f32.mrf.mxu0
  %v1043 = vadd.f32 0.0, %v1042
  %v1044 = vpop.f32.mrf.mxu0
  %v1045 = vadd.f32 0.0, %v1044
  %1046 = vmatprep.mubr.f32.mxu0 0.0
  %1047 = vmatmul.mubr.f32.gmra.mxu0 %v27
  %v1048 = vpop.f32.mrf.mxu0
  %v1049 = vadd.f32 0.0, %v1048
  %v1050 = vpop.f32.mrf.mxu0
  %v1051 = vadd.f32 0.0, %v1050
  %1052 = vdwg.mxu0
  %s1053 = scalar_lea.vmem %s0, 352
  %v1054 = vld [vmem:[%s1053] sm:$0xff]
  %v1055 = vld [vmem:[%s1053 + $0x8] sm:$0xff]
  %v1056 = vld [vmem:[%s1053 + $0x10] sm:$0x1]
  %v1057 = vld [vmem:[%s1053 + $0x18] sm:$0x1]
  %v1059 = vsel %vm29, %v1056, 0
  %v1062 = vsel %vm29, %v1057, 0
  %1064 = vmatprep.subr.mxu0 0.0
  %1065 = vmatpush1.msra.mxu0 0.0
  %1066 = vmatprep.subr.mxu0 0.0
  %1067 = vmatpush1.msra.mxu0 0.0
  %1068 = vmatprep.subr.mxu0 0.0
  %1069 = vmatpush1.msra.mxu0 0.0
  %1070 = vmatprep.subr.mxu0 0.0
  %1071 = vmatpush1.msra.mxu0 0.0
  %1072 = vmatprep.subr.mxu0 0.0
  %1073 = vmatpush1.msra.mxu0 0.0
  %1074 = vmatprep.subr.mxu0 0.0
  %1075 = vmatpush1.msra.mxu0 0.0
  %1076 = vmatprep.subr.mxu0 0.0
  %1077 = vmatpush1.msra.mxu0 0.0
  %1078 = vmatprep.subr.mxu0 0.0
  %1079 = vmatpush1.msra.mxu0 0.0
  %1080 = vmatprep.subr.mxu0 0.0
  %1081 = vmatpush1.msra.mxu0 0.0
  %1082 = vmatprep.subr.mxu0 0.0
  %1083 = vmatpush1.msra.mxu0 0.0
  %1084 = vmatprep.subr.mxu0 0.0
  %1085 = vmatpush1.msra.mxu0 0.0
  %1086 = vmatprep.subr.mxu0 0.0
  %1087 = vmatpush1.msra.mxu0 0.0
  %1088 = vmatprep.subr.mxu0 0.0
  %1089 = vmatpush1.msra.mxu0 0.0
  %1090 = vmatprep.subr.mxu0 0.0
  %1091 = vmatpush1.msra.mxu0 0.0
  %1092 = vmatprep.subr.mxu0 %v1062
  %1093 = vmatpush1.msra.mxu0 %v1059
  %1094 = vmatprep.subr.mxu0 %v1055
  %1095 = vmatpush1.msra.mxu0 %v1054
  %1096 = vmatprep.subr.mxu0 0.0
  %1097 = vmatpush2.msra.mxu0 0.0
  %1098 = vmatprep.subr.mxu0 0.0
  %1099 = vmatpush2.msra.mxu0 0.0
  %1100 = vmatprep.subr.mxu0 0.0
  %1101 = vmatpush2.msra.mxu0 0.0
  %1102 = vmatprep.subr.mxu0 0.0
  %1103 = vmatpush2.msra.mxu0 0.0
  %1104 = vmatprep.subr.mxu0 0.0
  %1105 = vmatpush2.msra.mxu0 0.0
  %1106 = vmatprep.subr.mxu0 0.0
  %1107 = vmatpush2.msra.mxu0 0.0
  %1108 = vmatprep.subr.mxu0 0.0
  %1109 = vmatpush2.msra.mxu0 0.0
  %1110 = vmatprep.subr.mxu0 0.0
  %1111 = vmatpush2.msra.mxu0 0.0
  %1112 = vmatprep.subr.mxu0 0.0
  %1113 = vmatpush2.msra.mxu0 0.0
  %1114 = vmatprep.subr.mxu0 0.0
  %1115 = vmatpush2.msra.mxu0 0.0
  %1116 = vmatprep.subr.mxu0 0.0
  %1117 = vmatpush2.msra.mxu0 0.0
  %1118 = vmatprep.subr.mxu0 0.0
  %1119 = vmatpush2.msra.mxu0 0.0
  %1120 = vmatprep.subr.mxu0 0.0
  %1121 = vmatpush2.msra.mxu0 0.0
  %1122 = vmatprep.subr.mxu0 0.0
  %1123 = vmatpush2.msra.mxu0 0.0
  %1124 = vmatprep.subr.mxu0 0.0
  %1125 = vmatpush2.msra.mxu0 0.0
  %1126 = vmatprep.subr.mxu0 0.0
  %1127 = vmatpush2.msra.mxu0 0.0
  %1128 = vmatprep.mubr.f32.mxu0 0.0
  %1129 = vmatmul.mubr.f32.gmra.mxu0 %v24
  %v1130 = vpop.f32.mrf.mxu0
  %v1131 = vadd.f32 0.0, %v1130
  %v1132 = vpop.f32.mrf.mxu0
  %v1133 = vadd.f32 0.0, %v1132
  %1134 = vmatprep.mubr.f32.mxu0 0.0
  %1135 = vmatmul.mubr.f32.gmra.mxu0 %v27
  %v1136 = vpop.f32.mrf.mxu0
  %v1137 = vadd.f32 0.0, %v1136
  %v1138 = vpop.f32.mrf.mxu0
  %v1139 = vadd.f32 0.0, %v1138
  %1140 = vdwg.mxu0
  %v1141 = vmax.f32 %v867, %v955
  %v1142 = vmax.f32 %v869, %v957
  %v1143 = vmax.f32 %v873, %v961
  %v1144 = vmax.f32 %v875, %v963
  %v1145 = vmax.f32 %v1043, %v1131
  %v1146 = vmax.f32 %v1045, %v1133
  %v1147 = vmax.f32 %v1049, %v1137
  %v1148 = vmax.f32 %v1051, %v1139
  %v1149 = vmax.f32 %v1141, %v1145
  %v1150 = vmax.f32 %v1142, %v1146
  %v1151 = vmax.f32 %v1143, %v1147
  %v1152 = vmax.f32 %v1144, %v1148
  %v1153 = vadd.f32 %v1149, %v392
  %v1154 = vadd.f32 %v1150, %v392
  %v1155 = vadd.f32 %v1151, %v397
  %v1156 = vadd.f32 %v1152, %v397
  %v1157 = vmax.f32 %v1153, 0.0
  %v1158 = vmax.f32 %v1154, 0.0
  %v1159 = vmax.f32 %v1155, 0.0
  %v1160 = vmax.f32 %v1156, 0.0
  %s1161 = scalar_lea.vmem %s3, 64
  %1162 = vst [vmem:[%s1161] sm:$0xff] %v1157
  %1163 = vst.msk [vmem:[%s1161 + $0x8] sm:$0xff] %vm408, %v1158
  %1164 = vst [vmem:[%s1161 + $0x10] sm:$0xff] %v1159
  %1165 = vst.msk [vmem:[%s1161 + $0x18] sm:$0xff] %vm408, %v1160
  %s1166 = scalar_lea.vmem %s0, 384
  %v1167 = vld [vmem:[%s1166] sm:$0xff]
  %v1168 = vld [vmem:[%s1166 + $0x8] sm:$0xff]
  %v1169 = vld [vmem:[%s1166 + $0x10] sm:$0x1]
  %v1170 = vld [vmem:[%s1166 + $0x18] sm:$0x1]
  %v1172 = vsel %vm29, %v1169, 0
  %v1175 = vsel %vm29, %v1170, 0
  %1177 = vmatprep.subr.mxu0 0.0
  %1178 = vmatpush1.msra.mxu0 0.0
  %1179 = vmatprep.subr.mxu0 0.0
  %1180 = vmatpush1.msra.mxu0 0.0
  %1181 = vmatprep.subr.mxu0 0.0
  %1182 = vmatpush1.msra.mxu0 0.0
  %1183 = vmatprep.subr.mxu0 0.0
  %1184 = vmatpush1.msra.mxu0 0.0
  %1185 = vmatprep.subr.mxu0 0.0
  %1186 = vmatpush1.msra.mxu0 0.0
  %1187 = vmatprep.subr.mxu0 0.0
  %1188 = vmatpush1.msra.mxu0 0.0
  %1189 = vmatprep.subr.mxu0 0.0
  %1190 = vmatpush1.msra.mxu0 0.0
  %1191 = vmatprep.subr.mxu0 0.0
  %1192 = vmatpush1.msra.mxu0 0.0
  %1193 = vmatprep.subr.mxu0 0.0
  %1194 = vmatpush1.msra.mxu0 0.0
  %1195 = vmatprep.subr.mxu0 0.0
  %1196 = vmatpush1.msra.mxu0 0.0
  %1197 = vmatprep.subr.mxu0 0.0
  %1198 = vmatpush1.msra.mxu0 0.0
  %1199 = vmatprep.subr.mxu0 0.0
  %1200 = vmatpush1.msra.mxu0 0.0
  %1201 = vmatprep.subr.mxu0 0.0
  %1202 = vmatpush1.msra.mxu0 0.0
  %1203 = vmatprep.subr.mxu0 0.0
  %1204 = vmatpush1.msra.mxu0 0.0
  %1205 = vmatprep.subr.mxu0 %v1175
  %1206 = vmatpush1.msra.mxu0 %v1172
  %1207 = vmatprep.subr.mxu0 %v1168
  %1208 = vmatpush1.msra.mxu0 %v1167
  %1209 = vmatprep.subr.mxu0 0.0
  %1210 = vmatpush2.msra.mxu0 0.0
  %1211 = vmatprep.subr.mxu0 0.0
  %1212 = vmatpush2.msra.mxu0 0.0
  %1213 = vmatprep.subr.mxu0 0.0
  %1214 = vmatpush2.msra.mxu0 0.0
  %1215 = vmatprep.subr.mxu0 0.0
  %1216 = vmatpush2.msra.mxu0 0.0
  %1217 = vmatprep.subr.mxu0 0.0
  %1218 = vmatpush2.msra.mxu0 0.0
  %1219 = vmatprep.subr.mxu0 0.0
  %1220 = vmatpush2.msra.mxu0 0.0
  %1221 = vmatprep.subr.mxu0 0.0
  %1222 = vmatpush2.msra.mxu0 0.0
  %1223 = vmatprep.subr.mxu0 0.0
  %1224 = vmatpush2.msra.mxu0 0.0
  %1225 = vmatprep.subr.mxu0 0.0
  %1226 = vmatpush2.msra.mxu0 0.0
  %1227 = vmatprep.subr.mxu0 0.0
  %1228 = vmatpush2.msra.mxu0 0.0
  %1229 = vmatprep.subr.mxu0 0.0
  %1230 = vmatpush2.msra.mxu0 0.0
  %1231 = vmatprep.subr.mxu0 0.0
  %1232 = vmatpush2.msra.mxu0 0.0
  %1233 = vmatprep.subr.mxu0 0.0
  %1234 = vmatpush2.msra.mxu0 0.0
  %1235 = vmatprep.subr.mxu0 0.0
  %1236 = vmatpush2.msra.mxu0 0.0
  %1237 = vmatprep.subr.mxu0 0.0
  %1238 = vmatpush2.msra.mxu0 0.0
  %1239 = vmatprep.subr.mxu0 0.0
  %1240 = vmatpush2.msra.mxu0 0.0
  %1241 = vmatprep.mubr.f32.mxu0 0.0
  %1242 = vmatmul.mubr.f32.gmra.mxu0 %v24
  %v1243 = vpop.f32.mrf.mxu0
  %v1244 = vadd.f32 0.0, %v1243
  %v1245 = vpop.f32.mrf.mxu0
  %v1246 = vadd.f32 0.0, %v1245
  %1247 = vmatprep.mubr.f32.mxu0 0.0
  %1248 = vmatmul.mubr.f32.gmra.mxu0 %v27
  %v1249 = vpop.f32.mrf.mxu0
  %v1250 = vadd.f32 0.0, %v1249
  %v1251 = vpop.f32.mrf.mxu0
  %v1252 = vadd.f32 0.0, %v1251
  %1253 = vdwg.mxu0
  %s1254 = scalar_lea.vmem %s0, 416
  %v1255 = vld [vmem:[%s1254] sm:$0xff]
  %v1256 = vld [vmem:[%s1254 + $0x8] sm:$0xff]
  %v1257 = vld [vmem:[%s1254 + $0x10] sm:$0x1]
  %v1258 = vld [vmem:[%s1254 + $0x18] sm:$0x1]
  %v1260 = vsel %vm29, %v1257, 0
  %v1263 = vsel %vm29, %v1258, 0
  %1265 = vmatprep.subr.mxu0 0.0
  %1266 = vmatpush1.msra.mxu0 0.0
  %1267 = vmatprep.subr.mxu0 0.0
  %1268 = vmatpush1.msra.mxu0 0.0
  %1269 = vmatprep.subr.mxu0 0.0
  %1270 = vmatpush1.msra.mxu0 0.0
  %1271 = vmatprep.subr.mxu0 0.0
  %1272 = vmatpush1.msra.mxu0 0.0
  %1273 = vmatprep.subr.mxu0 0.0
  %1274 = vmatpush1.msra.mxu0 0.0
  %1275 = vmatprep.subr.mxu0 0.0
  %1276 = vmatpush1.msra.mxu0 0.0
  %1277 = vmatprep.subr.mxu0 0.0
  %1278 = vmatpush1.msra.mxu0 0.0
  %1279 = vmatprep.subr.mxu0 0.0
  %1280 = vmatpush1.msra.mxu0 0.0
  %1281 = vmatprep.subr.mxu0 0.0
  %1282 = vmatpush1.msra.mxu0 0.0
  %1283 = vmatprep.subr.mxu0 0.0
  %1284 = vmatpush1.msra.mxu0 0.0
  %1285 = vmatprep.subr.mxu0 0.0
  %1286 = vmatpush1.msra.mxu0 0.0
  %1287 = vmatprep.subr.mxu0 0.0
  %1288 = vmatpush1.msra.mxu0 0.0
  %1289 = vmatprep.subr.mxu0 0.0
  %1290 = vmatpush1.msra.mxu0 0.0
  %1291 = vmatprep.subr.mxu0 0.0
  %1292 = vmatpush1.msra.mxu0 0.0
  %1293 = vmatprep.subr.mxu0 %v1263
  %1294 = vmatpush1.msra.mxu0 %v1260
  %1295 = vmatprep.subr.mxu0 %v1256
  %1296 = vmatpush1.msra.mxu0 %v1255
  %1297 = vmatprep.subr.mxu0 0.0
  %1298 = vmatpush2.msra.mxu0 0.0
  %1299 = vmatprep.subr.mxu0 0.0
  %1300 = vmatpush2.msra.mxu0 0.0
  %1301 = vmatprep.subr.mxu0 0.0
  %1302 = vmatpush2.msra.mxu0 0.0
  %1303 = vmatprep.subr.mxu0 0.0
  %1304 = vmatpush2.msra.mxu0 0.0
  %1305 = vmatprep.subr.mxu0 0.0
  %1306 = vmatpush2.msra.mxu0 0.0
  %1307 = vmatprep.subr.mxu0 0.0
  %1308 = vmatpush2.msra.mxu0 0.0
  %1309 = vmatprep.subr.mxu0 0.0
  %1310 = vmatpush2.msra.mxu0 0.0
  %1311 = vmatprep.subr.mxu0 0.0
  %1312 = vmatpush2.msra.mxu0 0.0
  %1313 = vmatprep.subr.mxu0 0.0
  %1314 = vmatpush2.msra.mxu0 0.0
  %1315 = vmatprep.subr.mxu0 0.0
  %1316 = vmatpush2.msra.mxu0 0.0
  %1317 = vmatprep.subr.mxu0 0.0
  %1318 = vmatpush2.msra.mxu0 0.0
  %1319 = vmatprep.subr.mxu0 0.0
  %1320 = vmatpush2.msra.mxu0 0.0
  %1321 = vmatprep.subr.mxu0 0.0
  %1322 = vmatpush2.msra.mxu0 0.0
  %1323 = vmatprep.subr.mxu0 0.0
  %1324 = vmatpush2.msra.mxu0 0.0
  %1325 = vmatprep.subr.mxu0 0.0
  %1326 = vmatpush2.msra.mxu0 0.0
  %1327 = vmatprep.subr.mxu0 0.0
  %1328 = vmatpush2.msra.mxu0 0.0
  %1329 = vmatprep.mubr.f32.mxu0 0.0
  %1330 = vmatmul.mubr.f32.gmra.mxu0 %v24
  %v1331 = vpop.f32.mrf.mxu0
  %v1332 = vadd.f32 0.0, %v1331
  %v1333 = vpop.f32.mrf.mxu0
  %v1334 = vadd.f32 0.0, %v1333
  %1335 = vmatprep.mubr.f32.mxu0 0.0
  %1336 = vmatmul.mubr.f32.gmra.mxu0 %v27
  %v1337 = vpop.f32.mrf.mxu0
  %v1338 = vadd.f32 0.0, %v1337
  %v1339 = vpop.f32.mrf.mxu0
  %v1340 = vadd.f32 0.0, %v1339
  %1341 = vdwg.mxu0
  %s1342 = scalar_lea.vmem %s0, 448
  %v1343 = vld [vmem:[%s1342] sm:$0xff]
  %v1344 = vld [vmem:[%s1342 + $0x8] sm:$0xff]
  %v1345 = vld [vmem:[%s1342 + $0x10] sm:$0x1]
  %v1346 = vld [vmem:[%s1342 + $0x18] sm:$0x1]
  %v1348 = vsel %vm29, %v1345, 0
  %v1351 = vsel %vm29, %v1346, 0
  %1353 = vmatprep.subr.mxu0 0.0
  %1354 = vmatpush1.msra.mxu0 0.0
  %1355 = vmatprep.subr.mxu0 0.0
  %1356 = vmatpush1.msra.mxu0 0.0
  %1357 = vmatprep.subr.mxu0 0.0
  %1358 = vmatpush1.msra.mxu0 0.0
  %1359 = vmatprep.subr.mxu0 0.0
  %1360 = vmatpush1.msra.mxu0 0.0
  %1361 = vmatprep.subr.mxu0 0.0
  %1362 = vmatpush1.msra.mxu0 0.0
  %1363 = vmatprep.subr.mxu0 0.0
  %1364 = vmatpush1.msra.mxu0 0.0
  %1365 = vmatprep.subr.mxu0 0.0
  %1366 = vmatpush1.msra.mxu0 0.0
  %1367 = vmatprep.subr.mxu0 0.0
  %1368 = vmatpush1.msra.mxu0 0.0
  %1369 = vmatprep.subr.mxu0 0.0
  %1370 = vmatpush1.msra.mxu0 0.0
  %1371 = vmatprep.subr.mxu0 0.0
  %1372 = vmatpush1.msra.mxu0 0.0
  %1373 = vmatprep.subr.mxu0 0.0
  %1374 = vmatpush1.msra.mxu0 0.0
  %1375 = vmatprep.subr.mxu0 0.0
  %1376 = vmatpush1.msra.mxu0 0.0
  %1377 = vmatprep.subr.mxu0 0.0
  %1378 = vmatpush1.msra.mxu0 0.0
  %1379 = vmatprep.subr.mxu0 0.0
  %1380 = vmatpush1.msra.mxu0 0.0
  %1381 = vmatprep.subr.mxu0 %v1351
  %1382 = vmatpush1.msra.mxu0 %v1348
  %1383 = vmatprep.subr.mxu0 %v1344
  %1384 = vmatpush1.msra.mxu0 %v1343
  %1385 = vmatprep.subr.mxu0 0.0
  %1386 = vmatpush2.msra.mxu0 0.0
  %1387 = vmatprep.subr.mxu0 0.0
  %1388 = vmatpush2.msra.mxu0 0.0
  %1389 = vmatprep.subr.mxu0 0.0
  %1390 = vmatpush2.msra.mxu0 0.0
  %1391 = vmatprep.subr.mxu0 0.0
  %1392 = vmatpush2.msra.mxu0 0.0
  %1393 = vmatprep.subr.mxu0 0.0
  %1394 = vmatpush2.msra.mxu0 0.0
  %1395 = vmatprep.subr.mxu0 0.0
  %1396 = vmatpush2.msra.mxu0 0.0
  %1397 = vmatprep.subr.mxu0 0.0
  %1398 = vmatpush2.msra.mxu0 0.0
  %1399 = vmatprep.subr.mxu0 0.0
  %1400 = vmatpush2.msra.mxu0 0.0
  %1401 = vmatprep.subr.mxu0 0.0
  %1402 = vmatpush2.msra.mxu0 0.0
  %1403 = vmatprep.subr.mxu0 0.0
  %1404 = vmatpush2.msra.mxu0 0.0
  %1405 = vmatprep.subr.mxu0 0.0
  %1406 = vmatpush2.msra.mxu0 0.0
  %1407 = vmatprep.subr.mxu0 0.0
  %1408 = vmatpush2.msra.mxu0 0.0
  %1409 = vmatprep.subr.mxu0 0.0
  %1410 = vmatpush2.msra.mxu0 0.0
  %1411 = vmatprep.subr.mxu0 0.0
  %1412 = vmatpush2.msra.mxu0 0.0
  %1413 = vmatprep.subr.mxu0 0.0
  %1414 = vmatpush2.msra.mxu0 0.0
  %1415 = vmatprep.subr.mxu0 0.0
  %1416 = vmatpush2.msra.mxu0 0.0
  %1417 = vmatprep.mubr.f32.mxu0 0.0
  %1418 = vmatmul.mubr.f32.gmra.mxu0 %v24
  %v1419 = vpop.f32.mrf.mxu0
  %v1420 = vadd.f32 0.0, %v1419
  %v1421 = vpop.f32.mrf.mxu0
  %v1422 = vadd.f32 0.0, %v1421
  %1423 = vmatprep.mubr.f32.mxu0 0.0
  %1424 = vmatmul.mubr.f32.gmra.mxu0 %v27
  %v1425 = vpop.f32.mrf.mxu0
  %v1426 = vadd.f32 0.0, %v1425
  %v1427 = vpop.f32.mrf.mxu0
  %v1428 = vadd.f32 0.0, %v1427
  %1429 = vdwg.mxu0
  %s1430 = scalar_lea.vmem %s0, 480
  %v1431 = vld [vmem:[%s1430] sm:$0xff]
  %v1432 = vld [vmem:[%s1430 + $0x8] sm:$0xff]
  %v1433 = vld [vmem:[%s1430 + $0x10] sm:$0x1]
  %v1434 = vld [vmem:[%s1430 + $0x18] sm:$0x1]
  %v1436 = vsel %vm29, %v1433, 0
  %v1439 = vsel %vm29, %v1434, 0
  %1441 = vmatprep.subr.mxu0 0.0
  %1442 = vmatpush1.msra.mxu0 0.0
  %1443 = vmatprep.subr.mxu0 0.0
  %1444 = vmatpush1.msra.mxu0 0.0
  %1445 = vmatprep.subr.mxu0 0.0
  %1446 = vmatpush1.msra.mxu0 0.0
  %1447 = vmatprep.subr.mxu0 0.0
  %1448 = vmatpush1.msra.mxu0 0.0
  %1449 = vmatprep.subr.mxu0 0.0
  %1450 = vmatpush1.msra.mxu0 0.0
  %1451 = vmatprep.subr.mxu0 0.0
  %1452 = vmatpush1.msra.mxu0 0.0
  %1453 = vmatprep.subr.mxu0 0.0
  %1454 = vmatpush1.msra.mxu0 0.0
  %1455 = vmatprep.subr.mxu0 0.0
  %1456 = vmatpush1.msra.mxu0 0.0
  %1457 = vmatprep.subr.mxu0 0.0
  %1458 = vmatpush1.msra.mxu0 0.0
  %1459 = vmatprep.subr.mxu0 0.0
  %1460 = vmatpush1.msra.mxu0 0.0
  %1461 = vmatprep.subr.mxu0 0.0
  %1462 = vmatpush1.msra.mxu0 0.0
  %1463 = vmatprep.subr.mxu0 0.0
  %1464 = vmatpush1.msra.mxu0 0.0
  %1465 = vmatprep.subr.mxu0 0.0
  %1466 = vmatpush1.msra.mxu0 0.0
  %1467 = vmatprep.subr.mxu0 0.0
  %1468 = vmatpush1.msra.mxu0 0.0
  %1469 = vmatprep.subr.mxu0 %v1439
  %1470 = vmatpush1.msra.mxu0 %v1436
  %1471 = vmatprep.subr.mxu0 %v1432
  %1472 = vmatpush1.msra.mxu0 %v1431
  %1473 = vmatprep.subr.mxu0 0.0
  %1474 = vmatpush2.msra.mxu0 0.0
  %1475 = vmatprep.subr.mxu0 0.0
  %1476 = vmatpush2.msra.mxu0 0.0
  %1477 = vmatprep.subr.mxu0 0.0
  %1478 = vmatpush2.msra.mxu0 0.0
  %1479 = vmatprep.subr.mxu0 0.0
  %1480 = vmatpush2.msra.mxu0 0.0
  %1481 = vmatprep.subr.mxu0 0.0
  %1482 = vmatpush2.msra.mxu0 0.0
  %1483 = vmatprep.subr.mxu0 0.0
  %1484 = vmatpush2.msra.mxu0 0.0
  %1485 = vmatprep.subr.mxu0 0.0
  %1486 = vmatpush2.msra.mxu0 0.0
  %1487 = vmatprep.subr.mxu0 0.0
  %1488 = vmatpush2.msra.mxu0 0.0
  %1489 = vmatprep.subr.mxu0 0.0
  %1490 = vmatpush2.msra.mxu0 0.0
  %1491 = vmatprep.subr.mxu0 0.0
  %1492 = vmatpush2.msra.mxu0 0.0
  %1493 = vmatprep.subr.mxu0 0.0
  %1494 = vmatpush2.msra.mxu0 0.0
  %1495 = vmatprep.subr.mxu0 0.0
  %1496 = vmatpush2.msra.mxu0 0.0
  %1497 = vmatprep.subr.mxu0 0.0
  %1498 = vmatpush2.msra.mxu0 0.0
  %1499 = vmatprep.subr.mxu0 0.0
  %1500 = vmatpush2.msra.mxu0 0.0
  %1501 = vmatprep.subr.mxu0 0.0
  %1502 = vmatpush2.msra.mxu0 0.0
  %1503 = vmatprep.subr.mxu0 0.0
  %1504 = vmatpush2.msra.mxu0 0.0
  %1505 = vmatprep.mubr.f32.mxu0 0.0
  %1506 = vmatmul.mubr.f32.gmra.mxu0 %v24
  %v1507 = vpop.f32.mrf.mxu0
  %v1508 = vadd.f32 0.0, %v1507
  %v1509 = vpop.f32.mrf.mxu0
  %v1510 = vadd.f32 0.0, %v1509
  %1511 = vmatprep.mubr.f32.mxu0 0.0
  %1512 = vmatmul.mubr.f32.gmra.mxu0 %v27
  %v1513 = vpop.f32.mrf.mxu0
  %v1514 = vadd.f32 0.0, %v1513
  %v1515 = vpop.f32.mrf.mxu0
  %v1516 = vadd.f32 0.0, %v1515
  %1517 = vdwg.mxu0
  %v1518 = vmax.f32 %v1244, %v1332
  %v1519 = vmax.f32 %v1246, %v1334
  %v1520 = vmax.f32 %v1250, %v1338
  %v1521 = vmax.f32 %v1252, %v1340
  %v1522 = vmax.f32 %v1420, %v1508
  %v1523 = vmax.f32 %v1422, %v1510
  %v1524 = vmax.f32 %v1426, %v1514
  %v1525 = vmax.f32 %v1428, %v1516
  %v1526 = vmax.f32 %v1518, %v1522
  %v1527 = vmax.f32 %v1519, %v1523
  %v1528 = vmax.f32 %v1520, %v1524
  %v1529 = vmax.f32 %v1521, %v1525
  %v1530 = vadd.f32 %v1526, %v392
  %v1531 = vadd.f32 %v1527, %v392
  %v1532 = vadd.f32 %v1528, %v397
  %v1533 = vadd.f32 %v1529, %v397
  %v1534 = vmax.f32 %v1530, 0.0
  %v1535 = vmax.f32 %v1531, 0.0
  %v1536 = vmax.f32 %v1532, 0.0
  %v1537 = vmax.f32 %v1533, 0.0
  %s1538 = scalar_lea.vmem %s3, 96
  %1539 = vst [vmem:[%s1538] sm:$0xff] %v1534
  %1540 = vst.msk [vmem:[%s1538 + $0x8] sm:$0xff] %vm408, %v1535
  %1541 = vst [vmem:[%s1538 + $0x10] sm:$0xff] %v1536
  %1542 = vst.msk [vmem:[%s1538 + $0x18] sm:$0xff] %vm408, %v1537
  %s1543 = scalar_lea.vmem %s0, 512
  %v1544 = vld [vmem:[%s1543] sm:$0xff]
  %v1545 = vld [vmem:[%s1543 + $0x8] sm:$0xff]
  %v1546 = vld [vmem:[%s1543 + $0x10] sm:$0x1]
  %v1547 = vld [vmem:[%s1543 + $0x18] sm:$0x1]
  %v1549 = vsel %vm29, %v1546, 0
  %v1552 = vsel %vm29, %v1547, 0
  %1554 = vmatprep.subr.mxu0 0.0
  %1555 = vmatpush1.msra.mxu0 0.0
  %1556 = vmatprep.subr.mxu0 0.0
  %1557 = vmatpush1.msra.mxu0 0.0
  %1558 = vmatprep.subr.mxu0 0.0
  %1559 = vmatpush1.msra.mxu0 0.0
  %1560 = vmatprep.subr.mxu0 0.0
  %1561 = vmatpush1.msra.mxu0 0.0
  %1562 = vmatprep.subr.mxu0 0.0
  %1563 = vmatpush1.msra.mxu0 0.0
  %1564 = vmatprep.subr.mxu0 0.0
  %1565 = vmatpush1.msra.mxu0 0.0
  %1566 = vmatprep.subr.mxu0 0.0
  %1567 = vmatpush1.msra.mxu0 0.0
  %1568 = vmatprep.subr.mxu0 0.0
  %1569 = vmatpush1.msra.mxu0 0.0
  %1570 = vmatprep.subr.mxu0 0.0
  %1571 = vmatpush1.msra.mxu0 0.0
  %1572 = vmatprep.subr.mxu0 0.0
  %1573 = vmatpush1.msra.mxu0 0.0
  %1574 = vmatprep.subr.mxu0 0.0
  %1575 = vmatpush1.msra.mxu0 0.0
  %1576 = vmatprep.subr.mxu0 0.0
  %1577 = vmatpush1.msra.mxu0 0.0
  %1578 = vmatprep.subr.mxu0 0.0
  %1579 = vmatpush1.msra.mxu0 0.0
  %1580 = vmatprep.subr.mxu0 0.0
  %1581 = vmatpush1.msra.mxu0 0.0
  %1582 = vmatprep.subr.mxu0 %v1552
  %1583 = vmatpush1.msra.mxu0 %v1549
  %1584 = vmatprep.subr.mxu0 %v1545
  %1585 = vmatpush1.msra.mxu0 %v1544
  %1586 = vmatprep.subr.mxu0 0.0
  %1587 = vmatpush2.msra.mxu0 0.0
  %1588 = vmatprep.subr.mxu0 0.0
  %1589 = vmatpush2.msra.mxu0 0.0
  %1590 = vmatprep.subr.mxu0 0.0
  %1591 = vmatpush2.msra.mxu0 0.0
  %1592 = vmatprep.subr.mxu0 0.0
  %1593 = vmatpush2.msra.mxu0 0.0
  %1594 = vmatprep.subr.mxu0 0.0
  %1595 = vmatpush2.msra.mxu0 0.0
  %1596 = vmatprep.subr.mxu0 0.0
  %1597 = vmatpush2.msra.mxu0 0.0
  %1598 = vmatprep.subr.mxu0 0.0
  %1599 = vmatpush2.msra.mxu0 0.0
  %1600 = vmatprep.subr.mxu0 0.0
  %1601 = vmatpush2.msra.mxu0 0.0
  %1602 = vmatprep.subr.mxu0 0.0
  %1603 = vmatpush2.msra.mxu0 0.0
  %1604 = vmatprep.subr.mxu0 0.0
  %1605 = vmatpush2.msra.mxu0 0.0
  %1606 = vmatprep.subr.mxu0 0.0
  %1607 = vmatpush2.msra.mxu0 0.0
  %1608 = vmatprep.subr.mxu0 0.0
  %1609 = vmatpush2.msra.mxu0 0.0
  %1610 = vmatprep.subr.mxu0 0.0
  %1611 = vmatpush2.msra.mxu0 0.0
  %1612 = vmatprep.subr.mxu0 0.0
  %1613 = vmatpush2.msra.mxu0 0.0
  %1614 = vmatprep.subr.mxu0 0.0
  %1615 = vmatpush2.msra.mxu0 0.0
  %1616 = vmatprep.subr.mxu0 0.0
  %1617 = vmatpush2.msra.mxu0 0.0
  %1618 = vmatprep.mubr.f32.mxu0 0.0
  %1619 = vmatmul.mubr.f32.gmra.mxu0 %v24
  %v1620 = vpop.f32.mrf.mxu0
  %v1621 = vadd.f32 0.0, %v1620
  %v1622 = vpop.f32.mrf.mxu0
  %v1623 = vadd.f32 0.0, %v1622
  %1624 = vmatprep.mubr.f32.mxu0 0.0
  %1625 = vmatmul.mubr.f32.gmra.mxu0 %v27
  %v1626 = vpop.f32.mrf.mxu0
  %v1627 = vadd.f32 0.0, %v1626
  %v1628 = vpop.f32.mrf.mxu0
  %v1629 = vadd.f32 0.0, %v1628
  %1630 = vdwg.mxu0
  %s1631 = scalar_lea.vmem %s0, 544
  %v1632 = vld [vmem:[%s1631] sm:$0xff]
  %v1633 = vld [vmem:[%s1631 + $0x8] sm:$0xff]
  %v1634 = vld [vmem:[%s1631 + $0x10] sm:$0x1]
  %v1635 = vld [vmem:[%s1631 + $0x18] sm:$0x1]
  %v1637 = vsel %vm29, %v1634, 0
  %v1640 = vsel %vm29, %v1635, 0
  %1642 = vmatprep.subr.mxu0 0.0
  %1643 = vmatpush1.msra.mxu0 0.0
  %1644 = vmatprep.subr.mxu0 0.0
  %1645 = vmatpush1.msra.mxu0 0.0
  %1646 = vmatprep.subr.mxu0 0.0
  %1647 = vmatpush1.msra.mxu0 0.0
  %1648 = vmatprep.subr.mxu0 0.0
  %1649 = vmatpush1.msra.mxu0 0.0
  %1650 = vmatprep.subr.mxu0 0.0
  %1651 = vmatpush1.msra.mxu0 0.0
  %1652 = vmatprep.subr.mxu0 0.0
  %1653 = vmatpush1.msra.mxu0 0.0
  %1654 = vmatprep.subr.mxu0 0.0
  %1655 = vmatpush1.msra.mxu0 0.0
  %1656 = vmatprep.subr.mxu0 0.0
  %1657 = vmatpush1.msra.mxu0 0.0
  %1658 = vmatprep.subr.mxu0 0.0
  %1659 = vmatpush1.msra.mxu0 0.0
  %1660 = vmatprep.subr.mxu0 0.0
  %1661 = vmatpush1.msra.mxu0 0.0
  %1662 = vmatprep.subr.mxu0 0.0
  %1663 = vmatpush1.msra.mxu0 0.0
  %1664 = vmatprep.subr.mxu0 0.0
  %1665 = vmatpush1.msra.mxu0 0.0
  %1666 = vmatprep.subr.mxu0 0.0
  %1667 = vmatpush1.msra.mxu0 0.0
  %1668 = vmatprep.subr.mxu0 0.0
  %1669 = vmatpush1.msra.mxu0 0.0
  %1670 = vmatprep.subr.mxu0 %v1640
  %1671 = vmatpush1.msra.mxu0 %v1637
  %1672 = vmatprep.subr.mxu0 %v1633
  %1673 = vmatpush1.msra.mxu0 %v1632
  %1674 = vmatprep.subr.mxu0 0.0
  %1675 = vmatpush2.msra.mxu0 0.0
  %1676 = vmatprep.subr.mxu0 0.0
  %1677 = vmatpush2.msra.mxu0 0.0
  %1678 = vmatprep.subr.mxu0 0.0
  %1679 = vmatpush2.msra.mxu0 0.0
  %1680 = vmatprep.subr.mxu0 0.0
  %1681 = vmatpush2.msra.mxu0 0.0
  %1682 = vmatprep.subr.mxu0 0.0
  %1683 = vmatpush2.msra.mxu0 0.0
  %1684 = vmatprep.subr.mxu0 0.0
  %1685 = vmatpush2.msra.mxu0 0.0
  %1686 = vmatprep.subr.mxu0 0.0
  %1687 = vmatpush2.msra.mxu0 0.0
  %1688 = vmatprep.subr.mxu0 0.0
  %1689 = vmatpush2.msra.mxu0 0.0
  %1690 = vmatprep.subr.mxu0 0.0
  %1691 = vmatpush2.msra.mxu0 0.0
  %1692 = vmatprep.subr.mxu0 0.0
  %1693 = vmatpush2.msra.mxu0 0.0
  %1694 = vmatprep.subr.mxu0 0.0
  %1695 = vmatpush2.msra.mxu0 0.0
  %1696 = vmatprep.subr.mxu0 0.0
  %1697 = vmatpush2.msra.mxu0 0.0
  %1698 = vmatprep.subr.mxu0 0.0
  %1699 = vmatpush2.msra.mxu0 0.0
  %1700 = vmatprep.subr.mxu0 0.0
  %1701 = vmatpush2.msra.mxu0 0.0
  %1702 = vmatprep.subr.mxu0 0.0
  %1703 = vmatpush2.msra.mxu0 0.0
  %1704 = vmatprep.subr.mxu0 0.0
  %1705 = vmatpush2.msra.mxu0 0.0
  %1706 = vmatprep.mubr.f32.mxu0 0.0
  %1707 = vmatmul.mubr.f32.gmra.mxu0 %v24
  %v1708 = vpop.f32.mrf.mxu0
  %v1709 = vadd.f32 0.0, %v1708
  %v1710 = vpop.f32.mrf.mxu0
  %v1711 = vadd.f32 0.0, %v1710
  %1712 = vmatprep.mubr.f32.mxu0 0.0
  %1713 = vmatmul.mubr.f32.gmra.mxu0 %v27
  %v1714 = vpop.f32.mrf.mxu0
  %v1715 = vadd.f32 0.0, %v1714
  %v1716 = vpop.f32.mrf.mxu0
  %v1717 = vadd.f32 0.0, %v1716
  %1718 = vdwg.mxu0
  %s1719 = scalar_lea.vmem %s0, 576
  %v1720 = vld [vmem:[%s1719] sm:$0xff]
  %v1721 = vld [vmem:[%s1719 + $0x8] sm:$0xff]
  %v1722 = vld [vmem:[%s1719 + $0x10] sm:$0x1]
  %v1723 = vld [vmem:[%s1719 + $0x18] sm:$0x1]
  %v1725 = vsel %vm29, %v1722, 0
  %v1728 = vsel %vm29, %v1723, 0
  %1730 = vmatprep.subr.mxu0 0.0
  %1731 = vmatpush1.msra.mxu0 0.0
  %1732 = vmatprep.subr.mxu0 0.0
  %1733 = vmatpush1.msra.mxu0 0.0
  %1734 = vmatprep.subr.mxu0 0.0
  %1735 = vmatpush1.msra.mxu0 0.0
  %1736 = vmatprep.subr.mxu0 0.0
  %1737 = vmatpush1.msra.mxu0 0.0
  %1738 = vmatprep.subr.mxu0 0.0
  %1739 = vmatpush1.msra.mxu0 0.0
  %1740 = vmatprep.subr.mxu0 0.0
  %1741 = vmatpush1.msra.mxu0 0.0
  %1742 = vmatprep.subr.mxu0 0.0
  %1743 = vmatpush1.msra.mxu0 0.0
  %1744 = vmatprep.subr.mxu0 0.0
  %1745 = vmatpush1.msra.mxu0 0.0
  %1746 = vmatprep.subr.mxu0 0.0
  %1747 = vmatpush1.msra.mxu0 0.0
  %1748 = vmatprep.subr.mxu0 0.0
  %1749 = vmatpush1.msra.mxu0 0.0
  %1750 = vmatprep.subr.mxu0 0.0
  %1751 = vmatpush1.msra.mxu0 0.0
  %1752 = vmatprep.subr.mxu0 0.0
  %1753 = vmatpush1.msra.mxu0 0.0
  %1754 = vmatprep.subr.mxu0 0.0
  %1755 = vmatpush1.msra.mxu0 0.0
  %1756 = vmatprep.subr.mxu0 0.0
  %1757 = vmatpush1.msra.mxu0 0.0
  %1758 = vmatprep.subr.mxu0 %v1728
  %1759 = vmatpush1.msra.mxu0 %v1725
  %1760 = vmatprep.subr.mxu0 %v1721
  %1761 = vmatpush1.msra.mxu0 %v1720
  %1762 = vmatprep.subr.mxu0 0.0
  %1763 = vmatpush2.msra.mxu0 0.0
  %1764 = vmatprep.subr.mxu0 0.0
  %1765 = vmatpush2.msra.mxu0 0.0
  %1766 = vmatprep.subr.mxu0 0.0
  %1767 = vmatpush2.msra.mxu0 0.0
  %1768 = vmatprep.subr.mxu0 0.0
  %1769 = vmatpush2.msra.mxu0 0.0
  %1770 = vmatprep.subr.mxu0 0.0
  %1771 = vmatpush2.msra.mxu0 0.0
  %1772 = vmatprep.subr.mxu0 0.0
  %1773 = vmatpush2.msra.mxu0 0.0
  %1774 = vmatprep.subr.mxu0 0.0
  %1775 = vmatpush2.msra.mxu0 0.0
  %1776 = vmatprep.subr.mxu0 0.0
  %1777 = vmatpush2.msra.mxu0 0.0
  %1778 = vmatprep.subr.mxu0 0.0
  %1779 = vmatpush2.msra.mxu0 0.0
  %1780 = vmatprep.subr.mxu0 0.0
  %1781 = vmatpush2.msra.mxu0 0.0
  %1782 = vmatprep.subr.mxu0 0.0
  %1783 = vmatpush2.msra.mxu0 0.0
  %1784 = vmatprep.subr.mxu0 0.0
  %1785 = vmatpush2.msra.mxu0 0.0
  %1786 = vmatprep.subr.mxu0 0.0
  %1787 = vmatpush2.msra.mxu0 0.0
  %1788 = vmatprep.subr.mxu0 0.0
  %1789 = vmatpush2.msra.mxu0 0.0
  %1790 = vmatprep.subr.mxu0 0.0
  %1791 = vmatpush2.msra.mxu0 0.0
  %1792 = vmatprep.subr.mxu0 0.0
  %1793 = vmatpush2.msra.mxu0 0.0
  %1794 = vmatprep.mubr.f32.mxu0 0.0
  %1795 = vmatmul.mubr.f32.gmra.mxu0 %v24
  %v1796 = vpop.f32.mrf.mxu0
  %v1797 = vadd.f32 0.0, %v1796
  %v1798 = vpop.f32.mrf.mxu0
  %v1799 = vadd.f32 0.0, %v1798
  %1800 = vmatprep.mubr.f32.mxu0 0.0
  %1801 = vmatmul.mubr.f32.gmra.mxu0 %v27
  %v1802 = vpop.f32.mrf.mxu0
  %v1803 = vadd.f32 0.0, %v1802
  %v1804 = vpop.f32.mrf.mxu0
  %v1805 = vadd.f32 0.0, %v1804
  %1806 = vdwg.mxu0
  %s1807 = scalar_lea.vmem %s0, 608
  %v1808 = vld [vmem:[%s1807] sm:$0xff]
  %v1809 = vld [vmem:[%s1807 + $0x8] sm:$0xff]
  %v1810 = vld [vmem:[%s1807 + $0x10] sm:$0x1]
  %v1811 = vld [vmem:[%s1807 + $0x18] sm:$0x1]
  %v1813 = vsel %vm29, %v1810, 0
  %v1816 = vsel %vm29, %v1811, 0
  %1818 = vmatprep.subr.mxu0 0.0
  %1819 = vmatpush1.msra.mxu0 0.0
  %1820 = vmatprep.subr.mxu0 0.0
  %1821 = vmatpush1.msra.mxu0 0.0
  %1822 = vmatprep.subr.mxu0 0.0
  %1823 = vmatpush1.msra.mxu0 0.0
  %1824 = vmatprep.subr.mxu0 0.0
  %1825 = vmatpush1.msra.mxu0 0.0
  %1826 = vmatprep.subr.mxu0 0.0
  %1827 = vmatpush1.msra.mxu0 0.0
  %1828 = vmatprep.subr.mxu0 0.0
  %1829 = vmatpush1.msra.mxu0 0.0
  %1830 = vmatprep.subr.mxu0 0.0
  %1831 = vmatpush1.msra.mxu0 0.0
  %1832 = vmatprep.subr.mxu0 0.0
  %1833 = vmatpush1.msra.mxu0 0.0
  %1834 = vmatprep.subr.mxu0 0.0
  %1835 = vmatpush1.msra.mxu0 0.0
  %1836 = vmatprep.subr.mxu0 0.0
  %1837 = vmatpush1.msra.mxu0 0.0
  %1838 = vmatprep.subr.mxu0 0.0
  %1839 = vmatpush1.msra.mxu0 0.0
  %1840 = vmatprep.subr.mxu0 0.0
  %1841 = vmatpush1.msra.mxu0 0.0
  %1842 = vmatprep.subr.mxu0 0.0
  %1843 = vmatpush1.msra.mxu0 0.0
  %1844 = vmatprep.subr.mxu0 0.0
  %1845 = vmatpush1.msra.mxu0 0.0
  %1846 = vmatprep.subr.mxu0 %v1816
  %1847 = vmatpush1.msra.mxu0 %v1813
  %1848 = vmatprep.subr.mxu0 %v1809
  %1849 = vmatpush1.msra.mxu0 %v1808
  %1850 = vmatprep.subr.mxu0 0.0
  %1851 = vmatpush2.msra.mxu0 0.0
  %1852 = vmatprep.subr.mxu0 0.0
  %1853 = vmatpush2.msra.mxu0 0.0
  %1854 = vmatprep.subr.mxu0 0.0
  %1855 = vmatpush2.msra.mxu0 0.0
  %1856 = vmatprep.subr.mxu0 0.0
  %1857 = vmatpush2.msra.mxu0 0.0
  %1858 = vmatprep.subr.mxu0 0.0
  %1859 = vmatpush2.msra.mxu0 0.0
  %1860 = vmatprep.subr.mxu0 0.0
  %1861 = vmatpush2.msra.mxu0 0.0
  %1862 = vmatprep.subr.mxu0 0.0
  %1863 = vmatpush2.msra.mxu0 0.0
  %1864 = vmatprep.subr.mxu0 0.0
  %1865 = vmatpush2.msra.mxu0 0.0
  %1866 = vmatprep.subr.mxu0 0.0
  %1867 = vmatpush2.msra.mxu0 0.0
  %1868 = vmatprep.subr.mxu0 0.0
  %1869 = vmatpush2.msra.mxu0 0.0
  %1870 = vmatprep.subr.mxu0 0.0
  %1871 = vmatpush2.msra.mxu0 0.0
  %1872 = vmatprep.subr.mxu0 0.0
  %1873 = vmatpush2.msra.mxu0 0.0
  %1874 = vmatprep.subr.mxu0 0.0
  %1875 = vmatpush2.msra.mxu0 0.0
  %1876 = vmatprep.subr.mxu0 0.0
  %1877 = vmatpush2.msra.mxu0 0.0
  %1878 = vmatprep.subr.mxu0 0.0
  %1879 = vmatpush2.msra.mxu0 0.0
  %1880 = vmatprep.subr.mxu0 0.0
  %1881 = vmatpush2.msra.mxu0 0.0
  %1882 = vmatprep.mubr.f32.mxu0 0.0
  %1883 = vmatmul.mubr.f32.gmra.mxu0 %v24
  %v1884 = vpop.f32.mrf.mxu0
  %v1885 = vadd.f32 0.0, %v1884
  %v1886 = vpop.f32.mrf.mxu0
  %v1887 = vadd.f32 0.0, %v1886
  %1888 = vmatprep.mubr.f32.mxu0 0.0
  %1889 = vmatmul.mubr.f32.gmra.mxu0 %v27
  %v1890 = vpop.f32.mrf.mxu0
  %v1891 = vadd.f32 0.0, %v1890
  %v1892 = vpop.f32.mrf.mxu0
  %v1893 = vadd.f32 0.0, %v1892
  %1894 = vdwg.mxu0
  %v1895 = vmax.f32 %v1621, %v1709
  %v1896 = vmax.f32 %v1623, %v1711
  %v1897 = vmax.f32 %v1627, %v1715
  %v1898 = vmax.f32 %v1629, %v1717
  %v1899 = vmax.f32 %v1797, %v1885
  %v1900 = vmax.f32 %v1799, %v1887
  %v1901 = vmax.f32 %v1803, %v1891
  %v1902 = vmax.f32 %v1805, %v1893
  %v1903 = vmax.f32 %v1895, %v1899
  %v1904 = vmax.f32 %v1896, %v1900
  %v1905 = vmax.f32 %v1897, %v1901
  %v1906 = vmax.f32 %v1898, %v1902
  %v1907 = vadd.f32 %v1903, %v392
  %v1908 = vadd.f32 %v1904, %v392
  %v1909 = vadd.f32 %v1905, %v397
  %v1910 = vadd.f32 %v1906, %v397
  %v1911 = vmax.f32 %v1907, 0.0
  %v1912 = vmax.f32 %v1908, 0.0
  %v1913 = vmax.f32 %v1909, 0.0
  %v1914 = vmax.f32 %v1910, 0.0
  %s1915 = scalar_lea.vmem %s3, 128
  %1916 = vst [vmem:[%s1915] sm:$0xff] %v1911
  %1917 = vst.msk [vmem:[%s1915 + $0x8] sm:$0xff] %vm408, %v1912
  %1918 = vst [vmem:[%s1915 + $0x10] sm:$0xff] %v1913
  %1919 = vst.msk [vmem:[%s1915 + $0x18] sm:$0xff] %vm408, %v1914
  %s1920 = scalar_lea.vmem %s0, 640
  %v1921 = vld [vmem:[%s1920] sm:$0xff]
  %v1922 = vld [vmem:[%s1920 + $0x8] sm:$0xff]
  %v1923 = vld [vmem:[%s1920 + $0x10] sm:$0x1]
  %v1924 = vld [vmem:[%s1920 + $0x18] sm:$0x1]
  %v1926 = vsel %vm29, %v1923, 0
  %v1929 = vsel %vm29, %v1924, 0
  %1931 = vmatprep.subr.mxu0 0.0
  %1932 = vmatpush1.msra.mxu0 0.0
  %1933 = vmatprep.subr.mxu0 0.0
  %1934 = vmatpush1.msra.mxu0 0.0
  %1935 = vmatprep.subr.mxu0 0.0
  %1936 = vmatpush1.msra.mxu0 0.0
  %1937 = vmatprep.subr.mxu0 0.0
  %1938 = vmatpush1.msra.mxu0 0.0
  %1939 = vmatprep.subr.mxu0 0.0
  %1940 = vmatpush1.msra.mxu0 0.0
  %1941 = vmatprep.subr.mxu0 0.0
  %1942 = vmatpush1.msra.mxu0 0.0
  %1943 = vmatprep.subr.mxu0 0.0
  %1944 = vmatpush1.msra.mxu0 0.0
  %1945 = vmatprep.subr.mxu0 0.0
  %1946 = vmatpush1.msra.mxu0 0.0
  %1947 = vmatprep.subr.mxu0 0.0
  %1948 = vmatpush1.msra.mxu0 0.0
  %1949 = vmatprep.subr.mxu0 0.0
  %1950 = vmatpush1.msra.mxu0 0.0
  %1951 = vmatprep.subr.mxu0 0.0
  %1952 = vmatpush1.msra.mxu0 0.0
  %1953 = vmatprep.subr.mxu0 0.0
  %1954 = vmatpush1.msra.mxu0 0.0
  %1955 = vmatprep.subr.mxu0 0.0
  %1956 = vmatpush1.msra.mxu0 0.0
  %1957 = vmatprep.subr.mxu0 0.0
  %1958 = vmatpush1.msra.mxu0 0.0
  %1959 = vmatprep.subr.mxu0 %v1929
  %1960 = vmatpush1.msra.mxu0 %v1926
  %1961 = vmatprep.subr.mxu0 %v1922
  %1962 = vmatpush1.msra.mxu0 %v1921
  %1963 = vmatprep.subr.mxu0 0.0
  %1964 = vmatpush2.msra.mxu0 0.0
  %1965 = vmatprep.subr.mxu0 0.0
  %1966 = vmatpush2.msra.mxu0 0.0
  %1967 = vmatprep.subr.mxu0 0.0
  %1968 = vmatpush2.msra.mxu0 0.0
  %1969 = vmatprep.subr.mxu0 0.0
  %1970 = vmatpush2.msra.mxu0 0.0
  %1971 = vmatprep.subr.mxu0 0.0
  %1972 = vmatpush2.msra.mxu0 0.0
  %1973 = vmatprep.subr.mxu0 0.0
  %1974 = vmatpush2.msra.mxu0 0.0
  %1975 = vmatprep.subr.mxu0 0.0
  %1976 = vmatpush2.msra.mxu0 0.0
  %1977 = vmatprep.subr.mxu0 0.0
  %1978 = vmatpush2.msra.mxu0 0.0
  %1979 = vmatprep.subr.mxu0 0.0
  %1980 = vmatpush2.msra.mxu0 0.0
  %1981 = vmatprep.subr.mxu0 0.0
  %1982 = vmatpush2.msra.mxu0 0.0
  %1983 = vmatprep.subr.mxu0 0.0
  %1984 = vmatpush2.msra.mxu0 0.0
  %1985 = vmatprep.subr.mxu0 0.0
  %1986 = vmatpush2.msra.mxu0 0.0
  %1987 = vmatprep.subr.mxu0 0.0
  %1988 = vmatpush2.msra.mxu0 0.0
  %1989 = vmatprep.subr.mxu0 0.0
  %1990 = vmatpush2.msra.mxu0 0.0
  %1991 = vmatprep.subr.mxu0 0.0
  %1992 = vmatpush2.msra.mxu0 0.0
  %1993 = vmatprep.subr.mxu0 0.0
  %1994 = vmatpush2.msra.mxu0 0.0
  %1995 = vmatprep.mubr.f32.mxu0 0.0
  %1996 = vmatmul.mubr.f32.gmra.mxu0 %v24
  %v1997 = vpop.f32.mrf.mxu0
  %v1998 = vadd.f32 0.0, %v1997
  %v1999 = vpop.f32.mrf.mxu0
  %v2000 = vadd.f32 0.0, %v1999
  %2001 = vmatprep.mubr.f32.mxu0 0.0
  %2002 = vmatmul.mubr.f32.gmra.mxu0 %v27
  %v2003 = vpop.f32.mrf.mxu0
  %v2004 = vadd.f32 0.0, %v2003
  %v2005 = vpop.f32.mrf.mxu0
  %v2006 = vadd.f32 0.0, %v2005
  %2007 = vdwg.mxu0
  %s2008 = scalar_lea.vmem %s0, 672
  %v2009 = vld [vmem:[%s2008] sm:$0xff]
  %v2010 = vld [vmem:[%s2008 + $0x8] sm:$0xff]
  %v2011 = vld [vmem:[%s2008 + $0x10] sm:$0x1]
  %v2012 = vld [vmem:[%s2008 + $0x18] sm:$0x1]
  %v2014 = vsel %vm29, %v2011, 0
  %v2017 = vsel %vm29, %v2012, 0
  %2019 = vmatprep.subr.mxu0 0.0
  %2020 = vmatpush1.msra.mxu0 0.0
  %2021 = vmatprep.subr.mxu0 0.0
  %2022 = vmatpush1.msra.mxu0 0.0
  %2023 = vmatprep.subr.mxu0 0.0
  %2024 = vmatpush1.msra.mxu0 0.0
  %2025 = vmatprep.subr.mxu0 0.0
  %2026 = vmatpush1.msra.mxu0 0.0
  %2027 = vmatprep.subr.mxu0 0.0
  %2028 = vmatpush1.msra.mxu0 0.0
  %2029 = vmatprep.subr.mxu0 0.0
  %2030 = vmatpush1.msra.mxu0 0.0
  %2031 = vmatprep.subr.mxu0 0.0
  %2032 = vmatpush1.msra.mxu0 0.0
  %2033 = vmatprep.subr.mxu0 0.0
  %2034 = vmatpush1.msra.mxu0 0.0
  %2035 = vmatprep.subr.mxu0 0.0
  %2036 = vmatpush1.msra.mxu0 0.0
  %2037 = vmatprep.subr.mxu0 0.0
  %2038 = vmatpush1.msra.mxu0 0.0
  %2039 = vmatprep.subr.mxu0 0.0
  %2040 = vmatpush1.msra.mxu0 0.0
  %2041 = vmatprep.subr.mxu0 0.0
  %2042 = vmatpush1.msra.mxu0 0.0
  %2043 = vmatprep.subr.mxu0 0.0
  %2044 = vmatpush1.msra.mxu0 0.0
  %2045 = vmatprep.subr.mxu0 0.0
  %2046 = vmatpush1.msra.mxu0 0.0
  %2047 = vmatprep.subr.mxu0 %v2017
  %2048 = vmatpush1.msra.mxu0 %v2014
  %2049 = vmatprep.subr.mxu0 %v2010
  %2050 = vmatpush1.msra.mxu0 %v2009
  %2051 = vmatprep.subr.mxu0 0.0
  %2052 = vmatpush2.msra.mxu0 0.0
  %2053 = vmatprep.subr.mxu0 0.0
  %2054 = vmatpush2.msra.mxu0 0.0
  %2055 = vmatprep.subr.mxu0 0.0
  %2056 = vmatpush2.msra.mxu0 0.0
  %2057 = vmatprep.subr.mxu0 0.0
  %2058 = vmatpush2.msra.mxu0 0.0
  %2059 = vmatprep.subr.mxu0 0.0
  %2060 = vmatpush2.msra.mxu0 0.0
  %2061 = vmatprep.subr.mxu0 0.0
  %2062 = vmatpush2.msra.mxu0 0.0
  %2063 = vmatprep.subr.mxu0 0.0
  %2064 = vmatpush2.msra.mxu0 0.0
  %2065 = vmatprep.subr.mxu0 0.0
  %2066 = vmatpush2.msra.mxu0 0.0
  %2067 = vmatprep.subr.mxu0 0.0
  %2068 = vmatpush2.msra.mxu0 0.0
  %2069 = vmatprep.subr.mxu0 0.0
  %2070 = vmatpush2.msra.mxu0 0.0
  %2071 = vmatprep.subr.mxu0 0.0
  %2072 = vmatpush2.msra.mxu0 0.0
  %2073 = vmatprep.subr.mxu0 0.0
  %2074 = vmatpush2.msra.mxu0 0.0
  %2075 = vmatprep.subr.mxu0 0.0
  %2076 = vmatpush2.msra.mxu0 0.0
  %2077 = vmatprep.subr.mxu0 0.0
  %2078 = vmatpush2.msra.mxu0 0.0
  %2079 = vmatprep.subr.mxu0 0.0
  %2080 = vmatpush2.msra.mxu0 0.0
  %2081 = vmatprep.subr.mxu0 0.0
  %2082 = vmatpush2.msra.mxu0 0.0
  %2083 = vmatprep.mubr.f32.mxu0 0.0
  %2084 = vmatmul.mubr.f32.gmra.mxu0 %v24
  %v2085 = vpop.f32.mrf.mxu0
  %v2086 = vadd.f32 0.0, %v2085
  %v2087 = vpop.f32.mrf.mxu0
  %v2088 = vadd.f32 0.0, %v2087
  %2089 = vmatprep.mubr.f32.mxu0 0.0
  %2090 = vmatmul.mubr.f32.gmra.mxu0 %v27
  %v2091 = vpop.f32.mrf.mxu0
  %v2092 = vadd.f32 0.0, %v2091
  %v2093 = vpop.f32.mrf.mxu0
  %v2094 = vadd.f32 0.0, %v2093
  %2095 = vdwg.mxu0
  %s2096 = scalar_lea.vmem %s0, 704
  %v2097 = vld [vmem:[%s2096] sm:$0xff]
  %v2098 = vld [vmem:[%s2096 + $0x8] sm:$0xff]
  %v2099 = vld [vmem:[%s2096 + $0x10] sm:$0x1]
  %v2100 = vld [vmem:[%s2096 + $0x18] sm:$0x1]
  %v2102 = vsel %vm29, %v2099, 0
  %v2105 = vsel %vm29, %v2100, 0
  %2107 = vmatprep.subr.mxu0 0.0
  %2108 = vmatpush1.msra.mxu0 0.0
  %2109 = vmatprep.subr.mxu0 0.0
  %2110 = vmatpush1.msra.mxu0 0.0
  %2111 = vmatprep.subr.mxu0 0.0
  %2112 = vmatpush1.msra.mxu0 0.0
  %2113 = vmatprep.subr.mxu0 0.0
  %2114 = vmatpush1.msra.mxu0 0.0
  %2115 = vmatprep.subr.mxu0 0.0
  %2116 = vmatpush1.msra.mxu0 0.0
  %2117 = vmatprep.subr.mxu0 0.0
  %2118 = vmatpush1.msra.mxu0 0.0
  %2119 = vmatprep.subr.mxu0 0.0
  %2120 = vmatpush1.msra.mxu0 0.0
  %2121 = vmatprep.subr.mxu0 0.0
  %2122 = vmatpush1.msra.mxu0 0.0
  %2123 = vmatprep.subr.mxu0 0.0
  %2124 = vmatpush1.msra.mxu0 0.0
  %2125 = vmatprep.subr.mxu0 0.0
  %2126 = vmatpush1.msra.mxu0 0.0
  %2127 = vmatprep.subr.mxu0 0.0
  %2128 = vmatpush1.msra.mxu0 0.0
  %2129 = vmatprep.subr.mxu0 0.0
  %2130 = vmatpush1.msra.mxu0 0.0
  %2131 = vmatprep.subr.mxu0 0.0
  %2132 = vmatpush1.msra.mxu0 0.0
  %2133 = vmatprep.subr.mxu0 0.0
  %2134 = vmatpush1.msra.mxu0 0.0
  %2135 = vmatprep.subr.mxu0 %v2105
  %2136 = vmatpush1.msra.mxu0 %v2102
  %2137 = vmatprep.subr.mxu0 %v2098
  %2138 = vmatpush1.msra.mxu0 %v2097
  %2139 = vmatprep.subr.mxu0 0.0
  %2140 = vmatpush2.msra.mxu0 0.0
  %2141 = vmatprep.subr.mxu0 0.0
  %2142 = vmatpush2.msra.mxu0 0.0
  %2143 = vmatprep.subr.mxu0 0.0
  %2144 = vmatpush2.msra.mxu0 0.0
  %2145 = vmatprep.subr.mxu0 0.0
  %2146 = vmatpush2.msra.mxu0 0.0
  %2147 = vmatprep.subr.mxu0 0.0
  %2148 = vmatpush2.msra.mxu0 0.0
  %2149 = vmatprep.subr.mxu0 0.0
  %2150 = vmatpush2.msra.mxu0 0.0
  %2151 = vmatprep.subr.mxu0 0.0
  %2152 = vmatpush2.msra.mxu0 0.0
  %2153 = vmatprep.subr.mxu0 0.0
  %2154 = vmatpush2.msra.mxu0 0.0
  %2155 = vmatprep.subr.mxu0 0.0
  %2156 = vmatpush2.msra.mxu0 0.0
  %2157 = vmatprep.subr.mxu0 0.0
  %2158 = vmatpush2.msra.mxu0 0.0
  %2159 = vmatprep.subr.mxu0 0.0
  %2160 = vmatpush2.msra.mxu0 0.0
  %2161 = vmatprep.subr.mxu0 0.0
  %2162 = vmatpush2.msra.mxu0 0.0
  %2163 = vmatprep.subr.mxu0 0.0
  %2164 = vmatpush2.msra.mxu0 0.0
  %2165 = vmatprep.subr.mxu0 0.0
  %2166 = vmatpush2.msra.mxu0 0.0
  %2167 = vmatprep.subr.mxu0 0.0
  %2168 = vmatpush2.msra.mxu0 0.0
  %2169 = vmatprep.subr.mxu0 0.0
  %2170 = vmatpush2.msra.mxu0 0.0
  %2171 = vmatprep.mubr.f32.mxu0 0.0
  %2172 = vmatmul.mubr.f32.gmra.mxu0 %v24
  %v2173 = vpop.f32.mrf.mxu0
  %v2174 = vadd.f32 0.0, %v2173
  %v2175 = vpop.f32.mrf.mxu0
  %v2176 = vadd.f32 0.0, %v2175
  %2177 = vmatprep.mubr.f32.mxu0 0.0
  %2178 = vmatmul.mubr.f32.gmra.mxu0 %v27
  %v2179 = vpop.f32.mrf.mxu0
  %v2180 = vadd.f32 0.0, %v2179
  %v2181 = vpop.f32.mrf.mxu0
  %v2182 = vadd.f32 0.0, %v2181
  %2183 = vdwg.mxu0
  %s2184 = scalar_lea.vmem %s0, 736
  %v2185 = vld [vmem:[%s2184] sm:$0xff]
  %v2186 = vld [vmem:[%s2184 + $0x8] sm:$0xff]
  %v2187 = vld [vmem:[%s2184 + $0x10] sm:$0x1]
  %v2188 = vld [vmem:[%s2184 + $0x18] sm:$0x1]
  %v2190 = vsel %vm29, %v2187, 0
  %v2193 = vsel %vm29, %v2188, 0
  %2195 = vmatprep.subr.mxu0 0.0
  %2196 = vmatpush1.msra.mxu0 0.0
  %2197 = vmatprep.subr.mxu0 0.0
  %2198 = vmatpush1.msra.mxu0 0.0
  %2199 = vmatprep.subr.mxu0 0.0
  %2200 = vmatpush1.msra.mxu0 0.0
  %2201 = vmatprep.subr.mxu0 0.0
  %2202 = vmatpush1.msra.mxu0 0.0
  %2203 = vmatprep.subr.mxu0 0.0
  %2204 = vmatpush1.msra.mxu0 0.0
  %2205 = vmatprep.subr.mxu0 0.0
  %2206 = vmatpush1.msra.mxu0 0.0
  %2207 = vmatprep.subr.mxu0 0.0
  %2208 = vmatpush1.msra.mxu0 0.0
  %2209 = vmatprep.subr.mxu0 0.0
  %2210 = vmatpush1.msra.mxu0 0.0
  %2211 = vmatprep.subr.mxu0 0.0
  %2212 = vmatpush1.msra.mxu0 0.0
  %2213 = vmatprep.subr.mxu0 0.0
  %2214 = vmatpush1.msra.mxu0 0.0
  %2215 = vmatprep.subr.mxu0 0.0
  %2216 = vmatpush1.msra.mxu0 0.0
  %2217 = vmatprep.subr.mxu0 0.0
  %2218 = vmatpush1.msra.mxu0 0.0
  %2219 = vmatprep.subr.mxu0 0.0
  %2220 = vmatpush1.msra.mxu0 0.0
  %2221 = vmatprep.subr.mxu0 0.0
  %2222 = vmatpush1.msra.mxu0 0.0
  %2223 = vmatprep.subr.mxu0 %v2193
  %2224 = vmatpush1.msra.mxu0 %v2190
  %2225 = vmatprep.subr.mxu0 %v2186
  %2226 = vmatpush1.msra.mxu0 %v2185
  %2227 = vmatprep.subr.mxu0 0.0
  %2228 = vmatpush2.msra.mxu0 0.0
  %2229 = vmatprep.subr.mxu0 0.0
  %2230 = vmatpush2.msra.mxu0 0.0
  %2231 = vmatprep.subr.mxu0 0.0
  %2232 = vmatpush2.msra.mxu0 0.0
  %2233 = vmatprep.subr.mxu0 0.0
  %2234 = vmatpush2.msra.mxu0 0.0
  %2235 = vmatprep.subr.mxu0 0.0
  %2236 = vmatpush2.msra.mxu0 0.0
  %2237 = vmatprep.subr.mxu0 0.0
  %2238 = vmatpush2.msra.mxu0 0.0
  %2239 = vmatprep.subr.mxu0 0.0
  %2240 = vmatpush2.msra.mxu0 0.0
  %2241 = vmatprep.subr.mxu0 0.0
  %2242 = vmatpush2.msra.mxu0 0.0
  %2243 = vmatprep.subr.mxu0 0.0
  %2244 = vmatpush2.msra.mxu0 0.0
  %2245 = vmatprep.subr.mxu0 0.0
  %2246 = vmatpush2.msra.mxu0 0.0
  %2247 = vmatprep.subr.mxu0 0.0
  %2248 = vmatpush2.msra.mxu0 0.0
  %2249 = vmatprep.subr.mxu0 0.0
  %2250 = vmatpush2.msra.mxu0 0.0
  %2251 = vmatprep.subr.mxu0 0.0
  %2252 = vmatpush2.msra.mxu0 0.0
  %2253 = vmatprep.subr.mxu0 0.0
  %2254 = vmatpush2.msra.mxu0 0.0
  %2255 = vmatprep.subr.mxu0 0.0
  %2256 = vmatpush2.msra.mxu0 0.0
  %2257 = vmatprep.subr.mxu0 0.0
  %2258 = vmatpush2.msra.mxu0 0.0
  %2259 = vmatprep.mubr.f32.mxu0 0.0
  %2260 = vmatmul.mubr.f32.gmra.mxu0 %v24
  %v2261 = vpop.f32.mrf.mxu0
  %v2262 = vadd.f32 0.0, %v2261
  %v2263 = vpop.f32.mrf.mxu0
  %v2264 = vadd.f32 0.0, %v2263
  %2265 = vmatprep.mubr.f32.mxu0 0.0
  %2266 = vmatmul.mubr.f32.gmra.mxu0 %v27
  %v2267 = vpop.f32.mrf.mxu0
  %v2268 = vadd.f32 0.0, %v2267
  %v2269 = vpop.f32.mrf.mxu0
  %v2270 = vadd.f32 0.0, %v2269
  %2271 = vdwg.mxu0
  %v2272 = vmax.f32 %v1998, %v2086
  %v2273 = vmax.f32 %v2000, %v2088
  %v2274 = vmax.f32 %v2004, %v2092
  %v2275 = vmax.f32 %v2006, %v2094
  %v2276 = vmax.f32 %v2174, %v2262
  %v2277 = vmax.f32 %v2176, %v2264
  %v2278 = vmax.f32 %v2180, %v2268
  %v2279 = vmax.f32 %v2182, %v2270
  %v2280 = vmax.f32 %v2272, %v2276
  %v2281 = vmax.f32 %v2273, %v2277
  %v2282 = vmax.f32 %v2274, %v2278
  %v2283 = vmax.f32 %v2275, %v2279
  %v2284 = vadd.f32 %v2280, %v392
  %v2285 = vadd.f32 %v2281, %v392
  %v2286 = vadd.f32 %v2282, %v397
  %v2287 = vadd.f32 %v2283, %v397
  %v2288 = vmax.f32 %v2284, 0.0
  %v2289 = vmax.f32 %v2285, 0.0
  %v2290 = vmax.f32 %v2286, 0.0
  %v2291 = vmax.f32 %v2287, 0.0
  %s2292 = scalar_lea.vmem %s3, 160
  %2293 = vst [vmem:[%s2292] sm:$0xff] %v2288
  %2294 = vst.msk [vmem:[%s2292 + $0x8] sm:$0xff] %vm408, %v2289
  %2295 = vst [vmem:[%s2292 + $0x10] sm:$0xff] %v2290
  %2296 = vst.msk [vmem:[%s2292 + $0x18] sm:$0xff] %vm408, %v2291
  %s2297 = scalar_lea.vmem %s0, 768
  %v2298 = vld [vmem:[%s2297] sm:$0xff]
  %v2299 = vld [vmem:[%s2297 + $0x8] sm:$0xff]
  %v2300 = vld [vmem:[%s2297 + $0x10] sm:$0x1]
  %v2301 = vld [vmem:[%s2297 + $0x18] sm:$0x1]
  %v2303 = vsel %vm29, %v2300, 0
  %v2306 = vsel %vm29, %v2301, 0
  %2308 = vmatprep.subr.mxu0 0.0
  %2309 = vmatpush1.msra.mxu0 0.0
  %2310 = vmatprep.subr.mxu0 0.0
  %2311 = vmatpush1.msra.mxu0 0.0
  %2312 = vmatprep.subr.mxu0 0.0
  %2313 = vmatpush1.msra.mxu0 0.0
  %2314 = vmatprep.subr.mxu0 0.0
  %2315 = vmatpush1.msra.mxu0 0.0
  %2316 = vmatprep.subr.mxu0 0.0
  %2317 = vmatpush1.msra.mxu0 0.0
  %2318 = vmatprep.subr.mxu0 0.0
  %2319 = vmatpush1.msra.mxu0 0.0
  %2320 = vmatprep.subr.mxu0 0.0
  %2321 = vmatpush1.msra.mxu0 0.0
  %2322 = vmatprep.subr.mxu0 0.0
  %2323 = vmatpush1.msra.mxu0 0.0
  %2324 = vmatprep.subr.mxu0 0.0
  %2325 = vmatpush1.msra.mxu0 0.0
  %2326 = vmatprep.subr.mxu0 0.0
  %2327 = vmatpush1.msra.mxu0 0.0
  %2328 = vmatprep.subr.mxu0 0.0
  %2329 = vmatpush1.msra.mxu0 0.0
  %2330 = vmatprep.subr.mxu0 0.0
  %2331 = vmatpush1.msra.mxu0 0.0
  %2332 = vmatprep.subr.mxu0 0.0
  %2333 = vmatpush1.msra.mxu0 0.0
  %2334 = vmatprep.subr.mxu0 0.0
  %2335 = vmatpush1.msra.mxu0 0.0
  %2336 = vmatprep.subr.mxu0 %v2306
  %2337 = vmatpush1.msra.mxu0 %v2303
  %2338 = vmatprep.subr.mxu0 %v2299
  %2339 = vmatpush1.msra.mxu0 %v2298
  %2340 = vmatprep.subr.mxu0 0.0
  %2341 = vmatpush2.msra.mxu0 0.0
  %2342 = vmatprep.subr.mxu0 0.0
  %2343 = vmatpush2.msra.mxu0 0.0
  %2344 = vmatprep.subr.mxu0 0.0
  %2345 = vmatpush2.msra.mxu0 0.0
  %2346 = vmatprep.subr.mxu0 0.0
  %2347 = vmatpush2.msra.mxu0 0.0
  %2348 = vmatprep.subr.mxu0 0.0
  %2349 = vmatpush2.msra.mxu0 0.0
  %2350 = vmatprep.subr.mxu0 0.0
  %2351 = vmatpush2.msra.mxu0 0.0
  %2352 = vmatprep.subr.mxu0 0.0
  %2353 = vmatpush2.msra.mxu0 0.0
  %2354 = vmatprep.subr.mxu0 0.0
  %2355 = vmatpush2.msra.mxu0 0.0
  %2356 = vmatprep.subr.mxu0 0.0
  %2357 = vmatpush2.msra.mxu0 0.0
  %2358 = vmatprep.subr.mxu0 0.0
  %2359 = vmatpush2.msra.mxu0 0.0
  %2360 = vmatprep.subr.mxu0 0.0
  %2361 = vmatpush2.msra.mxu0 0.0
  %2362 = vmatprep.subr.mxu0 0.0
  %2363 = vmatpush2.msra.mxu0 0.0
  %2364 = vmatprep.subr.mxu0 0.0
  %2365 = vmatpush2.msra.mxu0 0.0
  %2366 = vmatprep.subr.mxu0 0.0
  %2367 = vmatpush2.msra.mxu0 0.0
  %2368 = vmatprep.subr.mxu0 0.0
  %2369 = vmatpush2.msra.mxu0 0.0
  %2370 = vmatprep.subr.mxu0 0.0
  %2371 = vmatpush2.msra.mxu0 0.0
  %2372 = vmatprep.mubr.f32.mxu0 0.0
  %2373 = vmatmul.mubr.f32.gmra.mxu0 %v24
  %v2374 = vpop.f32.mrf.mxu0
  %v2375 = vadd.f32 0.0, %v2374
  %v2376 = vpop.f32.mrf.mxu0
  %v2377 = vadd.f32 0.0, %v2376
  %2378 = vmatprep.mubr.f32.mxu0 0.0
  %2379 = vmatmul.mubr.f32.gmra.mxu0 %v27
  %v2380 = vpop.f32.mrf.mxu0
  %v2381 = vadd.f32 0.0, %v2380
  %v2382 = vpop.f32.mrf.mxu0
  %v2383 = vadd.f32 0.0, %v2382
  %2384 = vdwg.mxu0
  %s2385 = scalar_lea.vmem %s0, 800
  %v2386 = vld [vmem:[%s2385] sm:$0xff]
  %v2387 = vld [vmem:[%s2385 + $0x8] sm:$0xff]
  %v2388 = vld [vmem:[%s2385 + $0x10] sm:$0x1]
  %v2389 = vld [vmem:[%s2385 + $0x18] sm:$0x1]
  %v2391 = vsel %vm29, %v2388, 0
  %v2394 = vsel %vm29, %v2389, 0
  %2396 = vmatprep.subr.mxu0 0.0
  %2397 = vmatpush1.msra.mxu0 0.0
  %2398 = vmatprep.subr.mxu0 0.0
  %2399 = vmatpush1.msra.mxu0 0.0
  %2400 = vmatprep.subr.mxu0 0.0
  %2401 = vmatpush1.msra.mxu0 0.0
  %2402 = vmatprep.subr.mxu0 0.0
  %2403 = vmatpush1.msra.mxu0 0.0
  %2404 = vmatprep.subr.mxu0 0.0
  %2405 = vmatpush1.msra.mxu0 0.0
  %2406 = vmatprep.subr.mxu0 0.0
  %2407 = vmatpush1.msra.mxu0 0.0
  %2408 = vmatprep.subr.mxu0 0.0
  %2409 = vmatpush1.msra.mxu0 0.0
  %2410 = vmatprep.subr.mxu0 0.0
  %2411 = vmatpush1.msra.mxu0 0.0
  %2412 = vmatprep.subr.mxu0 0.0
  %2413 = vmatpush1.msra.mxu0 0.0
  %2414 = vmatprep.subr.mxu0 0.0
  %2415 = vmatpush1.msra.mxu0 0.0
  %2416 = vmatprep.subr.mxu0 0.0
  %2417 = vmatpush1.msra.mxu0 0.0
  %2418 = vmatprep.subr.mxu0 0.0
  %2419 = vmatpush1.msra.mxu0 0.0
  %2420 = vmatprep.subr.mxu0 0.0
  %2421 = vmatpush1.msra.mxu0 0.0
  %2422 = vmatprep.subr.mxu0 0.0
  %2423 = vmatpush1.msra.mxu0 0.0
  %2424 = vmatprep.subr.mxu0 %v2394
  %2425 = vmatpush1.msra.mxu0 %v2391
  %2426 = vmatprep.subr.mxu0 %v2387
  %2427 = vmatpush1.msra.mxu0 %v2386
  %2428 = vmatprep.subr.mxu0 0.0
  %2429 = vmatpush2.msra.mxu0 0.0
  %2430 = vmatprep.subr.mxu0 0.0
  %2431 = vmatpush2.msra.mxu0 0.0
  %2432 = vmatprep.subr.mxu0 0.0
  %2433 = vmatpush2.msra.mxu0 0.0
  %2434 = vmatprep.subr.mxu0 0.0
  %2435 = vmatpush2.msra.mxu0 0.0
  %2436 = vmatprep.subr.mxu0 0.0
  %2437 = vmatpush2.msra.mxu0 0.0
  %2438 = vmatprep.subr.mxu0 0.0
  %2439 = vmatpush2.msra.mxu0 0.0
  %2440 = vmatprep.subr.mxu0 0.0
  %2441 = vmatpush2.msra.mxu0 0.0
  %2442 = vmatprep.subr.mxu0 0.0
  %2443 = vmatpush2.msra.mxu0 0.0
  %2444 = vmatprep.subr.mxu0 0.0
  %2445 = vmatpush2.msra.mxu0 0.0
  %2446 = vmatprep.subr.mxu0 0.0
  %2447 = vmatpush2.msra.mxu0 0.0
  %2448 = vmatprep.subr.mxu0 0.0
  %2449 = vmatpush2.msra.mxu0 0.0
  %2450 = vmatprep.subr.mxu0 0.0
  %2451 = vmatpush2.msra.mxu0 0.0
  %2452 = vmatprep.subr.mxu0 0.0
  %2453 = vmatpush2.msra.mxu0 0.0
  %2454 = vmatprep.subr.mxu0 0.0
  %2455 = vmatpush2.msra.mxu0 0.0
  %2456 = vmatprep.subr.mxu0 0.0
  %2457 = vmatpush2.msra.mxu0 0.0
  %2458 = vmatprep.subr.mxu0 0.0
  %2459 = vmatpush2.msra.mxu0 0.0
  %2460 = vmatprep.mubr.f32.mxu0 0.0
  %2461 = vmatmul.mubr.f32.gmra.mxu0 %v24
  %v2462 = vpop.f32.mrf.mxu0
  %v2463 = vadd.f32 0.0, %v2462
  %v2464 = vpop.f32.mrf.mxu0
  %v2465 = vadd.f32 0.0, %v2464
  %2466 = vmatprep.mubr.f32.mxu0 0.0
  %2467 = vmatmul.mubr.f32.gmra.mxu0 %v27
  %v2468 = vpop.f32.mrf.mxu0
  %v2469 = vadd.f32 0.0, %v2468
  %v2470 = vpop.f32.mrf.mxu0
  %v2471 = vadd.f32 0.0, %v2470
  %2472 = vdwg.mxu0
  %s2473 = scalar_lea.vmem %s0, 832
  %v2474 = vld [vmem:[%s2473] sm:$0xff]
  %v2475 = vld [vmem:[%s2473 + $0x8] sm:$0xff]
  %v2476 = vld [vmem:[%s2473 + $0x10] sm:$0x1]
  %v2477 = vld [vmem:[%s2473 + $0x18] sm:$0x1]
  %v2479 = vsel %vm29, %v2476, 0
  %v2482 = vsel %vm29, %v2477, 0
  %2484 = vmatprep.subr.mxu0 0.0
  %2485 = vmatpush1.msra.mxu0 0.0
  %2486 = vmatprep.subr.mxu0 0.0
  %2487 = vmatpush1.msra.mxu0 0.0
  %2488 = vmatprep.subr.mxu0 0.0
  %2489 = vmatpush1.msra.mxu0 0.0
  %2490 = vmatprep.subr.mxu0 0.0
  %2491 = vmatpush1.msra.mxu0 0.0
  %2492 = vmatprep.subr.mxu0 0.0
  %2493 = vmatpush1.msra.mxu0 0.0
  %2494 = vmatprep.subr.mxu0 0.0
  %2495 = vmatpush1.msra.mxu0 0.0
  %2496 = vmatprep.subr.mxu0 0.0
  %2497 = vmatpush1.msra.mxu0 0.0
  %2498 = vmatprep.subr.mxu0 0.0
  %2499 = vmatpush1.msra.mxu0 0.0
  %2500 = vmatprep.subr.mxu0 0.0
  %2501 = vmatpush1.msra.mxu0 0.0
  %2502 = vmatprep.subr.mxu0 0.0
  %2503 = vmatpush1.msra.mxu0 0.0
  %2504 = vmatprep.subr.mxu0 0.0
  %2505 = vmatpush1.msra.mxu0 0.0
  %2506 = vmatprep.subr.mxu0 0.0
  %2507 = vmatpush1.msra.mxu0 0.0
  %2508 = vmatprep.subr.mxu0 0.0
  %2509 = vmatpush1.msra.mxu0 0.0
  %2510 = vmatprep.subr.mxu0 0.0
  %2511 = vmatpush1.msra.mxu0 0.0
  %2512 = vmatprep.subr.mxu0 %v2482
  %2513 = vmatpush1.msra.mxu0 %v2479
  %2514 = vmatprep.subr.mxu0 %v2475
  %2515 = vmatpush1.msra.mxu0 %v2474
  %2516 = vmatprep.subr.mxu0 0.0
  %2517 = vmatpush2.msra.mxu0 0.0
  %2518 = vmatprep.subr.mxu0 0.0
  %2519 = vmatpush2.msra.mxu0 0.0
  %2520 = vmatprep.subr.mxu0 0.0
  %2521 = vmatpush2.msra.mxu0 0.0
  %2522 = vmatprep.subr.mxu0 0.0
  %2523 = vmatpush2.msra.mxu0 0.0
  %2524 = vmatprep.subr.mxu0 0.0
  %2525 = vmatpush2.msra.mxu0 0.0
  %2526 = vmatprep.subr.mxu0 0.0
  %2527 = vmatpush2.msra.mxu0 0.0
  %2528 = vmatprep.subr.mxu0 0.0
  %2529 = vmatpush2.msra.mxu0 0.0
  %2530 = vmatprep.subr.mxu0 0.0
  %2531 = vmatpush2.msra.mxu0 0.0
  %2532 = vmatprep.subr.mxu0 0.0
  %2533 = vmatpush2.msra.mxu0 0.0
  %2534 = vmatprep.subr.mxu0 0.0
  %2535 = vmatpush2.msra.mxu0 0.0
  %2536 = vmatprep.subr.mxu0 0.0
  %2537 = vmatpush2.msra.mxu0 0.0
  %2538 = vmatprep.subr.mxu0 0.0
  %2539 = vmatpush2.msra.mxu0 0.0
  %2540 = vmatprep.subr.mxu0 0.0
  %2541 = vmatpush2.msra.mxu0 0.0
  %2542 = vmatprep.subr.mxu0 0.0
  %2543 = vmatpush2.msra.mxu0 0.0
  %2544 = vmatprep.subr.mxu0 0.0
  %2545 = vmatpush2.msra.mxu0 0.0
  %2546 = vmatprep.subr.mxu0 0.0
  %2547 = vmatpush2.msra.mxu0 0.0
  %2548 = vmatprep.mubr.f32.mxu0 0.0
  %2549 = vmatmul.mubr.f32.gmra.mxu0 %v24
  %v2550 = vpop.f32.mrf.mxu0
  %v2551 = vadd.f32 0.0, %v2550
  %v2552 = vpop.f32.mrf.mxu0
  %v2553 = vadd.f32 0.0, %v2552
  %2554 = vmatprep.mubr.f32.mxu0 0.0
  %2555 = vmatmul.mubr.f32.gmra.mxu0 %v27
  %v2556 = vpop.f32.mrf.mxu0
  %v2557 = vadd.f32 0.0, %v2556
  %v2558 = vpop.f32.mrf.mxu0
  %v2559 = vadd.f32 0.0, %v2558
  %2560 = vdwg.mxu0
  %s2561 = scalar_lea.vmem %s0, 864
  %v2562 = vld [vmem:[%s2561] sm:$0xff]
  %v2563 = vld [vmem:[%s2561 + $0x8] sm:$0xff]
  %v2564 = vld [vmem:[%s2561 + $0x10] sm:$0x1]
  %v2565 = vld [vmem:[%s2561 + $0x18] sm:$0x1]
  %v2567 = vsel %vm29, %v2564, 0
  %v2570 = vsel %vm29, %v2565, 0
  %2572 = vmatprep.subr.mxu0 0.0
  %2573 = vmatpush1.msra.mxu0 0.0
  %2574 = vmatprep.subr.mxu0 0.0
  %2575 = vmatpush1.msra.mxu0 0.0
  %2576 = vmatprep.subr.mxu0 0.0
  %2577 = vmatpush1.msra.mxu0 0.0
  %2578 = vmatprep.subr.mxu0 0.0
  %2579 = vmatpush1.msra.mxu0 0.0
  %2580 = vmatprep.subr.mxu0 0.0
  %2581 = vmatpush1.msra.mxu0 0.0
  %2582 = vmatprep.subr.mxu0 0.0
  %2583 = vmatpush1.msra.mxu0 0.0
  %2584 = vmatprep.subr.mxu0 0.0
  %2585 = vmatpush1.msra.mxu0 0.0
  %2586 = vmatprep.subr.mxu0 0.0
  %2587 = vmatpush1.msra.mxu0 0.0
  %2588 = vmatprep.subr.mxu0 0.0
  %2589 = vmatpush1.msra.mxu0 0.0
  %2590 = vmatprep.subr.mxu0 0.0
  %2591 = vmatpush1.msra.mxu0 0.0
  %2592 = vmatprep.subr.mxu0 0.0
  %2593 = vmatpush1.msra.mxu0 0.0
  %2594 = vmatprep.subr.mxu0 0.0
  %2595 = vmatpush1.msra.mxu0 0.0
  %2596 = vmatprep.subr.mxu0 0.0
  %2597 = vmatpush1.msra.mxu0 0.0
  %2598 = vmatprep.subr.mxu0 0.0
  %2599 = vmatpush1.msra.mxu0 0.0
  %2600 = vmatprep.subr.mxu0 %v2570
  %2601 = vmatpush1.msra.mxu0 %v2567
  %2602 = vmatprep.subr.mxu0 %v2563
  %2603 = vmatpush1.msra.mxu0 %v2562
  %2604 = vmatprep.subr.mxu0 0.0
  %2605 = vmatpush2.msra.mxu0 0.0
  %2606 = vmatprep.subr.mxu0 0.0
  %2607 = vmatpush2.msra.mxu0 0.0
  %2608 = vmatprep.subr.mxu0 0.0
  %2609 = vmatpush2.msra.mxu0 0.0
  %2610 = vmatprep.subr.mxu0 0.0
  %2611 = vmatpush2.msra.mxu0 0.0
  %2612 = vmatprep.subr.mxu0 0.0
  %2613 = vmatpush2.msra.mxu0 0.0
  %2614 = vmatprep.subr.mxu0 0.0
  %2615 = vmatpush2.msra.mxu0 0.0
  %2616 = vmatprep.subr.mxu0 0.0
  %2617 = vmatpush2.msra.mxu0 0.0
  %2618 = vmatprep.subr.mxu0 0.0
  %2619 = vmatpush2.msra.mxu0 0.0
  %2620 = vmatprep.subr.mxu0 0.0
  %2621 = vmatpush2.msra.mxu0 0.0
  %2622 = vmatprep.subr.mxu0 0.0
  %2623 = vmatpush2.msra.mxu0 0.0
  %2624 = vmatprep.subr.mxu0 0.0
  %2625 = vmatpush2.msra.mxu0 0.0
  %2626 = vmatprep.subr.mxu0 0.0
  %2627 = vmatpush2.msra.mxu0 0.0
  %2628 = vmatprep.subr.mxu0 0.0
  %2629 = vmatpush2.msra.mxu0 0.0
  %2630 = vmatprep.subr.mxu0 0.0
  %2631 = vmatpush2.msra.mxu0 0.0
  %2632 = vmatprep.subr.mxu0 0.0
  %2633 = vmatpush2.msra.mxu0 0.0
  %2634 = vmatprep.subr.mxu0 0.0
  %2635 = vmatpush2.msra.mxu0 0.0
  %2636 = vmatprep.mubr.f32.mxu0 0.0
  %2637 = vmatmul.mubr.f32.gmra.mxu0 %v24
  %v2638 = vpop.f32.mrf.mxu0
  %v2639 = vadd.f32 0.0, %v2638
  %v2640 = vpop.f32.mrf.mxu0
  %v2641 = vadd.f32 0.0, %v2640
  %2642 = vmatprep.mubr.f32.mxu0 0.0
  %2643 = vmatmul.mubr.f32.gmra.mxu0 %v27
  %v2644 = vpop.f32.mrf.mxu0
  %v2645 = vadd.f32 0.0, %v2644
  %v2646 = vpop.f32.mrf.mxu0
  %v2647 = vadd.f32 0.0, %v2646
  %2648 = vdwg.mxu0
  %v2649 = vmax.f32 %v2375, %v2463
  %v2650 = vmax.f32 %v2377, %v2465
  %v2651 = vmax.f32 %v2381, %v2469
  %v2652 = vmax.f32 %v2383, %v2471
  %v2653 = vmax.f32 %v2551, %v2639
  %v2654 = vmax.f32 %v2553, %v2641
  %v2655 = vmax.f32 %v2557, %v2645
  %v2656 = vmax.f32 %v2559, %v2647
  %v2657 = vmax.f32 %v2649, %v2653
  %v2658 = vmax.f32 %v2650, %v2654
  %v2659 = vmax.f32 %v2651, %v2655
  %v2660 = vmax.f32 %v2652, %v2656
  %v2661 = vadd.f32 %v2657, %v392
  %v2662 = vadd.f32 %v2658, %v392
  %v2663 = vadd.f32 %v2659, %v397
  %v2664 = vadd.f32 %v2660, %v397
  %v2665 = vmax.f32 %v2661, 0.0
  %v2666 = vmax.f32 %v2662, 0.0
  %v2667 = vmax.f32 %v2663, 0.0
  %v2668 = vmax.f32 %v2664, 0.0
  %s2669 = scalar_lea.vmem %s3, 192
  %2670 = vst [vmem:[%s2669] sm:$0xff] %v2665
  %2671 = vst.msk [vmem:[%s2669 + $0x8] sm:$0xff] %vm408, %v2666
  %2672 = vst [vmem:[%s2669 + $0x10] sm:$0xff] %v2667
  %2673 = vst.msk [vmem:[%s2669 + $0x18] sm:$0xff] %vm408, %v2668
  %s2674 = scalar_lea.vmem %s0, 896
  %v2675 = vld [vmem:[%s2674] sm:$0xff]
  %v2676 = vld [vmem:[%s2674 + $0x8] sm:$0xff]
  %v2677 = vld [vmem:[%s2674 + $0x10] sm:$0x1]
  %v2678 = vld [vmem:[%s2674 + $0x18] sm:$0x1]
  %v2680 = vsel %vm29, %v2677, 0
  %v2683 = vsel %vm29, %v2678, 0
  %2685 = vmatprep.subr.mxu0 0.0
  %2686 = vmatpush1.msra.mxu0 0.0
  %2687 = vmatprep.subr.mxu0 0.0
  %2688 = vmatpush1.msra.mxu0 0.0
  %2689 = vmatprep.subr.mxu0 0.0
  %2690 = vmatpush1.msra.mxu0 0.0
  %2691 = vmatprep.subr.mxu0 0.0
  %2692 = vmatpush1.msra.mxu0 0.0
  %2693 = vmatprep.subr.mxu0 0.0
  %2694 = vmatpush1.msra.mxu0 0.0
  %2695 = vmatprep.subr.mxu0 0.0
  %2696 = vmatpush1.msra.mxu0 0.0
  %2697 = vmatprep.subr.mxu0 0.0
  %2698 = vmatpush1.msra.mxu0 0.0
  %2699 = vmatprep.subr.mxu0 0.0
  %2700 = vmatpush1.msra.mxu0 0.0
  %2701 = vmatprep.subr.mxu0 0.0
  %2702 = vmatpush1.msra.mxu0 0.0
  %2703 = vmatprep.subr.mxu0 0.0
  %2704 = vmatpush1.msra.mxu0 0.0
  %2705 = vmatprep.subr.mxu0 0.0
  %2706 = vmatpush1.msra.mxu0 0.0
  %2707 = vmatprep.subr.mxu0 0.0
  %2708 = vmatpush1.msra.mxu0 0.0
  %2709 = vmatprep.subr.mxu0 0.0
  %2710 = vmatpush1.msra.mxu0 0.0
  %2711 = vmatprep.subr.mxu0 0.0
  %2712 = vmatpush1.msra.mxu0 0.0
  %2713 = vmatprep.subr.mxu0 %v2683
  %2714 = vmatpush1.msra.mxu0 %v2680
  %2715 = vmatprep.subr.mxu0 %v2676
  %2716 = vmatpush1.msra.mxu0 %v2675
  %2717 = vmatprep.subr.mxu0 0.0
  %2718 = vmatpush2.msra.mxu0 0.0
  %2719 = vmatprep.subr.mxu0 0.0
  %2720 = vmatpush2.msra.mxu0 0.0
  %2721 = vmatprep.subr.mxu0 0.0
  %2722 = vmatpush2.msra.mxu0 0.0
  %2723 = vmatprep.subr.mxu0 0.0
  %2724 = vmatpush2.msra.mxu0 0.0
  %2725 = vmatprep.subr.mxu0 0.0
  %2726 = vmatpush2.msra.mxu0 0.0
  %2727 = vmatprep.subr.mxu0 0.0
  %2728 = vmatpush2.msra.mxu0 0.0
  %2729 = vmatprep.subr.mxu0 0.0
  %2730 = vmatpush2.msra.mxu0 0.0
  %2731 = vmatprep.subr.mxu0 0.0
  %2732 = vmatpush2.msra.mxu0 0.0
  %2733 = vmatprep.subr.mxu0 0.0
  %2734 = vmatpush2.msra.mxu0 0.0
  %2735 = vmatprep.subr.mxu0 0.0
  %2736 = vmatpush2.msra.mxu0 0.0
  %2737 = vmatprep.subr.mxu0 0.0
  %2738 = vmatpush2.msra.mxu0 0.0
  %2739 = vmatprep.subr.mxu0 0.0
  %2740 = vmatpush2.msra.mxu0 0.0
  %2741 = vmatprep.subr.mxu0 0.0
  %2742 = vmatpush2.msra.mxu0 0.0
  %2743 = vmatprep.subr.mxu0 0.0
  %2744 = vmatpush2.msra.mxu0 0.0
  %2745 = vmatprep.subr.mxu0 0.0
  %2746 = vmatpush2.msra.mxu0 0.0
  %2747 = vmatprep.subr.mxu0 0.0
  %2748 = vmatpush2.msra.mxu0 0.0
  %2749 = vmatprep.mubr.f32.mxu0 0.0
  %2750 = vmatmul.mubr.f32.gmra.mxu0 %v24
  %v2751 = vpop.f32.mrf.mxu0
  %v2752 = vadd.f32 0.0, %v2751
  %v2753 = vpop.f32.mrf.mxu0
  %v2754 = vadd.f32 0.0, %v2753
  %2755 = vmatprep.mubr.f32.mxu0 0.0
  %2756 = vmatmul.mubr.f32.gmra.mxu0 %v27
  %v2757 = vpop.f32.mrf.mxu0
  %v2758 = vadd.f32 0.0, %v2757
  %v2759 = vpop.f32.mrf.mxu0
  %v2760 = vadd.f32 0.0, %v2759
  %2761 = vdwg.mxu0
  %s2762 = scalar_lea.vmem %s0, 928
  %v2763 = vld [vmem:[%s2762] sm:$0xff]
  %v2764 = vld [vmem:[%s2762 + $0x8] sm:$0xff]
  %v2765 = vld [vmem:[%s2762 + $0x10] sm:$0x1]
  %v2766 = vld [vmem:[%s2762 + $0x18] sm:$0x1]
  %v2768 = vsel %vm29, %v2765, 0
  %v2771 = vsel %vm29, %v2766, 0
  %2773 = vmatprep.subr.mxu0 0.0
  %2774 = vmatpush1.msra.mxu0 0.0
  %2775 = vmatprep.subr.mxu0 0.0
  %2776 = vmatpush1.msra.mxu0 0.0
  %2777 = vmatprep.subr.mxu0 0.0
  %2778 = vmatpush1.msra.mxu0 0.0
  %2779 = vmatprep.subr.mxu0 0.0
  %2780 = vmatpush1.msra.mxu0 0.0
  %2781 = vmatprep.subr.mxu0 0.0
  %2782 = vmatpush1.msra.mxu0 0.0
  %2783 = vmatprep.subr.mxu0 0.0
  %2784 = vmatpush1.msra.mxu0 0.0
  %2785 = vmatprep.subr.mxu0 0.0
  %2786 = vmatpush1.msra.mxu0 0.0
  %2787 = vmatprep.subr.mxu0 0.0
  %2788 = vmatpush1.msra.mxu0 0.0
  %2789 = vmatprep.subr.mxu0 0.0
  %2790 = vmatpush1.msra.mxu0 0.0
  %2791 = vmatprep.subr.mxu0 0.0
  %2792 = vmatpush1.msra.mxu0 0.0
  %2793 = vmatprep.subr.mxu0 0.0
  %2794 = vmatpush1.msra.mxu0 0.0
  %2795 = vmatprep.subr.mxu0 0.0
  %2796 = vmatpush1.msra.mxu0 0.0
  %2797 = vmatprep.subr.mxu0 0.0
  %2798 = vmatpush1.msra.mxu0 0.0
  %2799 = vmatprep.subr.mxu0 0.0
  %2800 = vmatpush1.msra.mxu0 0.0
  %2801 = vmatprep.subr.mxu0 %v2771
  %2802 = vmatpush1.msra.mxu0 %v2768
  %2803 = vmatprep.subr.mxu0 %v2764
  %2804 = vmatpush1.msra.mxu0 %v2763
  %2805 = vmatprep.subr.mxu0 0.0
  %2806 = vmatpush2.msra.mxu0 0.0
  %2807 = vmatprep.subr.mxu0 0.0
  %2808 = vmatpush2.msra.mxu0 0.0
  %2809 = vmatprep.subr.mxu0 0.0
  %2810 = vmatpush2.msra.mxu0 0.0
  %2811 = vmatprep.subr.mxu0 0.0
  %2812 = vmatpush2.msra.mxu0 0.0
  %2813 = vmatprep.subr.mxu0 0.0
  %2814 = vmatpush2.msra.mxu0 0.0
  %2815 = vmatprep.subr.mxu0 0.0
  %2816 = vmatpush2.msra.mxu0 0.0
  %2817 = vmatprep.subr.mxu0 0.0
  %2818 = vmatpush2.msra.mxu0 0.0
  %2819 = vmatprep.subr.mxu0 0.0
  %2820 = vmatpush2.msra.mxu0 0.0
  %2821 = vmatprep.subr.mxu0 0.0
  %2822 = vmatpush2.msra.mxu0 0.0
  %2823 = vmatprep.subr.mxu0 0.0
  %2824 = vmatpush2.msra.mxu0 0.0
  %2825 = vmatprep.subr.mxu0 0.0
  %2826 = vmatpush2.msra.mxu0 0.0
  %2827 = vmatprep.subr.mxu0 0.0
  %2828 = vmatpush2.msra.mxu0 0.0
  %2829 = vmatprep.subr.mxu0 0.0
  %2830 = vmatpush2.msra.mxu0 0.0
  %2831 = vmatprep.subr.mxu0 0.0
  %2832 = vmatpush2.msra.mxu0 0.0
  %2833 = vmatprep.subr.mxu0 0.0
  %2834 = vmatpush2.msra.mxu0 0.0
  %2835 = vmatprep.subr.mxu0 0.0
  %2836 = vmatpush2.msra.mxu0 0.0
  %2837 = vmatprep.mubr.f32.mxu0 0.0
  %2838 = vmatmul.mubr.f32.gmra.mxu0 %v24
  %v2839 = vpop.f32.mrf.mxu0
  %v2840 = vadd.f32 0.0, %v2839
  %v2841 = vpop.f32.mrf.mxu0
  %v2842 = vadd.f32 0.0, %v2841
  %2843 = vmatprep.mubr.f32.mxu0 0.0
  %2844 = vmatmul.mubr.f32.gmra.mxu0 %v27
  %v2845 = vpop.f32.mrf.mxu0
  %v2846 = vadd.f32 0.0, %v2845
  %v2847 = vpop.f32.mrf.mxu0
  %v2848 = vadd.f32 0.0, %v2847
  %2849 = vdwg.mxu0
  %s2850 = scalar_lea.vmem %s0, 960
  %v2851 = vld [vmem:[%s2850] sm:$0xff]
  %v2852 = vld [vmem:[%s2850 + $0x8] sm:$0xff]
  %v2853 = vld [vmem:[%s2850 + $0x10] sm:$0x1]
  %v2854 = vld [vmem:[%s2850 + $0x18] sm:$0x1]
  %v2856 = vsel %vm29, %v2853, 0
  %v2859 = vsel %vm29, %v2854, 0
  %2861 = vmatprep.subr.mxu0 0.0
  %2862 = vmatpush1.msra.mxu0 0.0
  %2863 = vmatprep.subr.mxu0 0.0
  %2864 = vmatpush1.msra.mxu0 0.0
  %2865 = vmatprep.subr.mxu0 0.0
  %2866 = vmatpush1.msra.mxu0 0.0
  %2867 = vmatprep.subr.mxu0 0.0
  %2868 = vmatpush1.msra.mxu0 0.0
  %2869 = vmatprep.subr.mxu0 0.0
  %2870 = vmatpush1.msra.mxu0 0.0
  %2871 = vmatprep.subr.mxu0 0.0
  %2872 = vmatpush1.msra.mxu0 0.0
  %2873 = vmatprep.subr.mxu0 0.0
  %2874 = vmatpush1.msra.mxu0 0.0
  %2875 = vmatprep.subr.mxu0 0.0
  %2876 = vmatpush1.msra.mxu0 0.0
  %2877 = vmatprep.subr.mxu0 0.0
  %2878 = vmatpush1.msra.mxu0 0.0
  %2879 = vmatprep.subr.mxu0 0.0
  %2880 = vmatpush1.msra.mxu0 0.0
  %2881 = vmatprep.subr.mxu0 0.0
  %2882 = vmatpush1.msra.mxu0 0.0
  %2883 = vmatprep.subr.mxu0 0.0
  %2884 = vmatpush1.msra.mxu0 0.0
  %2885 = vmatprep.subr.mxu0 0.0
  %2886 = vmatpush1.msra.mxu0 0.0
  %2887 = vmatprep.subr.mxu0 0.0
  %2888 = vmatpush1.msra.mxu0 0.0
  %2889 = vmatprep.subr.mxu0 %v2859
  %2890 = vmatpush1.msra.mxu0 %v2856
  %2891 = vmatprep.subr.mxu0 %v2852
  %2892 = vmatpush1.msra.mxu0 %v2851
  %2893 = vmatprep.subr.mxu0 0.0
  %2894 = vmatpush2.msra.mxu0 0.0
  %2895 = vmatprep.subr.mxu0 0.0
  %2896 = vmatpush2.msra.mxu0 0.0
  %2897 = vmatprep.subr.mxu0 0.0
  %2898 = vmatpush2.msra.mxu0 0.0
  %2899 = vmatprep.subr.mxu0 0.0
  %2900 = vmatpush2.msra.mxu0 0.0
  %2901 = vmatprep.subr.mxu0 0.0
  %2902 = vmatpush2.msra.mxu0 0.0
  %2903 = vmatprep.subr.mxu0 0.0
  %2904 = vmatpush2.msra.mxu0 0.0
  %2905 = vmatprep.subr.mxu0 0.0
  %2906 = vmatpush2.msra.mxu0 0.0
  %2907 = vmatprep.subr.mxu0 0.0
  %2908 = vmatpush2.msra.mxu0 0.0
  %2909 = vmatprep.subr.mxu0 0.0
  %2910 = vmatpush2.msra.mxu0 0.0
  %2911 = vmatprep.subr.mxu0 0.0
  %2912 = vmatpush2.msra.mxu0 0.0
  %2913 = vmatprep.subr.mxu0 0.0
  %2914 = vmatpush2.msra.mxu0 0.0
  %2915 = vmatprep.subr.mxu0 0.0
  %2916 = vmatpush2.msra.mxu0 0.0
  %2917 = vmatprep.subr.mxu0 0.0
  %2918 = vmatpush2.msra.mxu0 0.0
  %2919 = vmatprep.subr.mxu0 0.0
  %2920 = vmatpush2.msra.mxu0 0.0
  %2921 = vmatprep.subr.mxu0 0.0
  %2922 = vmatpush2.msra.mxu0 0.0
  %2923 = vmatprep.subr.mxu0 0.0
  %2924 = vmatpush2.msra.mxu0 0.0
  %2925 = vmatprep.mubr.f32.mxu0 0.0
  %2926 = vmatmul.mubr.f32.gmra.mxu0 %v24
  %v2927 = vpop.f32.mrf.mxu0
  %v2928 = vadd.f32 0.0, %v2927
  %v2929 = vpop.f32.mrf.mxu0
  %v2930 = vadd.f32 0.0, %v2929
  %2931 = vmatprep.mubr.f32.mxu0 0.0
  %2932 = vmatmul.mubr.f32.gmra.mxu0 %v27
  %v2933 = vpop.f32.mrf.mxu0
  %v2934 = vadd.f32 0.0, %v2933
  %v2935 = vpop.f32.mrf.mxu0
  %v2936 = vadd.f32 0.0, %v2935
  %2937 = vdwg.mxu0
  %s2938 = scalar_lea.vmem %s0, 992
  %v2939 = vld [vmem:[%s2938] sm:$0xff]
  %v2940 = vld [vmem:[%s2938 + $0x8] sm:$0xff]
  %v2941 = vld [vmem:[%s2938 + $0x10] sm:$0x1]
  %v2942 = vld [vmem:[%s2938 + $0x18] sm:$0x1]
  %v2944 = vsel %vm29, %v2941, 0
  %v2947 = vsel %vm29, %v2942, 0
  %2949 = vmatprep.subr.mxu0 0.0
  %2950 = vmatpush1.msra.mxu0 0.0
  %2951 = vmatprep.subr.mxu0 0.0
  %2952 = vmatpush1.msra.mxu0 0.0
  %2953 = vmatprep.subr.mxu0 0.0
  %2954 = vmatpush1.msra.mxu0 0.0
  %2955 = vmatprep.subr.mxu0 0.0
  %2956 = vmatpush1.msra.mxu0 0.0
  %2957 = vmatprep.subr.mxu0 0.0
  %2958 = vmatpush1.msra.mxu0 0.0
  %2959 = vmatprep.subr.mxu0 0.0
  %2960 = vmatpush1.msra.mxu0 0.0
  %2961 = vmatprep.subr.mxu0 0.0
  %2962 = vmatpush1.msra.mxu0 0.0
  %2963 = vmatprep.subr.mxu0 0.0
  %2964 = vmatpush1.msra.mxu0 0.0
  %2965 = vmatprep.subr.mxu0 0.0
  %2966 = vmatpush1.msra.mxu0 0.0
  %2967 = vmatprep.subr.mxu0 0.0
  %2968 = vmatpush1.msra.mxu0 0.0
  %2969 = vmatprep.subr.mxu0 0.0
  %2970 = vmatpush1.msra.mxu0 0.0
  %2971 = vmatprep.subr.mxu0 0.0
  %2972 = vmatpush1.msra.mxu0 0.0
  %2973 = vmatprep.subr.mxu0 0.0
  %2974 = vmatpush1.msra.mxu0 0.0
  %2975 = vmatprep.subr.mxu0 0.0
  %2976 = vmatpush1.msra.mxu0 0.0
  %2977 = vmatprep.subr.mxu0 %v2947
  %2978 = vmatpush1.msra.mxu0 %v2944
  %2979 = vmatprep.subr.mxu0 %v2940
  %2980 = vmatpush1.msra.mxu0 %v2939
  %2981 = vmatprep.subr.mxu0 0.0
  %2982 = vmatpush2.msra.mxu0 0.0
  %2983 = vmatprep.subr.mxu0 0.0
  %2984 = vmatpush2.msra.mxu0 0.0
  %2985 = vmatprep.subr.mxu0 0.0
  %2986 = vmatpush2.msra.mxu0 0.0
  %2987 = vmatprep.subr.mxu0 0.0
  %2988 = vmatpush2.msra.mxu0 0.0
  %2989 = vmatprep.subr.mxu0 0.0
  %2990 = vmatpush2.msra.mxu0 0.0
  %2991 = vmatprep.subr.mxu0 0.0
  %2992 = vmatpush2.msra.mxu0 0.0
  %2993 = vmatprep.subr.mxu0 0.0
  %2994 = vmatpush2.msra.mxu0 0.0
  %2995 = vmatprep.subr.mxu0 0.0
  %2996 = vmatpush2.msra.mxu0 0.0
  %2997 = vmatprep.subr.mxu0 0.0
  %2998 = vmatpush2.msra.mxu0 0.0
  %2999 = vmatprep.subr.mxu0 0.0
  %3000 = vmatpush2.msra.mxu0 0.0
  %3001 = vmatprep.subr.mxu0 0.0
  %3002 = vmatpush2.msra.mxu0 0.0
  %3003 = vmatprep.subr.mxu0 0.0
  %3004 = vmatpush2.msra.mxu0 0.0
  %3005 = vmatprep.subr.mxu0 0.0
  %3006 = vmatpush2.msra.mxu0 0.0
  %3007 = vmatprep.subr.mxu0 0.0
  %3008 = vmatpush2.msra.mxu0 0.0
  %3009 = vmatprep.subr.mxu0 0.0
  %3010 = vmatpush2.msra.mxu0 0.0
  %3011 = vmatprep.subr.mxu0 0.0
  %3012 = vmatpush2.msra.mxu0 0.0
  %3013 = vmatprep.mubr.f32.mxu0 0.0
  %3014 = vmatmul.mubr.f32.gmra.mxu0 %v24
  %v3015 = vpop.f32.mrf.mxu0
  %v3016 = vadd.f32 0.0, %v3015
  %v3017 = vpop.f32.mrf.mxu0
  %v3018 = vadd.f32 0.0, %v3017
  %3019 = vmatprep.mubr.f32.mxu0 0.0
  %3020 = vmatmul.mubr.f32.gmra.mxu0 %v27
  %v3021 = vpop.f32.mrf.mxu0
  %v3022 = vadd.f32 0.0, %v3021
  %v3023 = vpop.f32.mrf.mxu0
  %v3024 = vadd.f32 0.0, %v3023
  %3025 = vdwg.mxu0
  %v3026 = vmax.f32 %v2752, %v2840
  %v3027 = vmax.f32 %v2754, %v2842
  %v3028 = vmax.f32 %v2758, %v2846
  %v3029 = vmax.f32 %v2760, %v2848
  %v3030 = vmax.f32 %v2928, %v3016
  %v3031 = vmax.f32 %v2930, %v3018
  %v3032 = vmax.f32 %v2934, %v3022
  %v3033 = vmax.f32 %v2936, %v3024
  %v3034 = vmax.f32 %v3026, %v3030
  %v3035 = vmax.f32 %v3027, %v3031
  %v3036 = vmax.f32 %v3028, %v3032
  %v3037 = vmax.f32 %v3029, %v3033
  %v3038 = vadd.f32 %v3034, %v392
  %v3039 = vadd.f32 %v3035, %v392
  %v3040 = vadd.f32 %v3036, %v397
  %v3041 = vadd.f32 %v3037, %v397
  %v3042 = vmax.f32 %v3038, 0.0
  %v3043 = vmax.f32 %v3039, 0.0
  %v3044 = vmax.f32 %v3040, 0.0
  %v3045 = vmax.f32 %v3041, 0.0
  %s3046 = scalar_lea.vmem %s3, 224
  %3047 = vst [vmem:[%s3046] sm:$0xff] %v3042
  %3048 = vst.msk [vmem:[%s3046 + $0x8] sm:$0xff] %vm408, %v3043
  %3049 = vst [vmem:[%s3046 + $0x10] sm:$0xff] %v3044
  %3050 = vst.msk [vmem:[%s3046 + $0x18] sm:$0xff] %vm408, %v3045
  // Predicated region
  $region14: #{net_forward.3} parent=0 // pred_check
    _
  $region15: #{net_forward.3} parent=0 // pred_check_branch
    %3052 = sbr.rel (0) target = $region17
  $region16: #{net_forward.3} parent=0 // pred_region
    _
  $region17: #{net_forward.3} parent=0 // pred_fallthru
    _
  // Predicated region
  $region18: #{net_forward.3} parent=0 // pred_check
    _
  $region19: #{net_forward.3} parent=0 // pred_check_branch
    %3054 = sbr.rel (0) target = $region21
  $region20: #{net_forward.3} parent=0 // pred_region
    _
  $region21: #{net_forward.3} parent=0 // pred_fallthru
    _

// kernel: net_forward.5
$region0: #{net_forward.5}
  #allocation0 [shape = 'u32[]', space=smem, size = 0x4, offset = 0x4, fixed_abs, tag = 'smem constant byte address 0x4 - core index']
  #allocation1 [shape = 'u32[144,128]{1,0:T(1,128)}', space=vmem, size = 0x12000, scoped, tag = 'internal scratch']
  %s0 = inlined_call_operand.vmem [shape: f32[8,1568], index: 0, kind: input, shape index: {}]
  %s1 = inlined_call_operand.vmem [shape: f32[1568,128], index: 1, kind: input, shape index: {}]
  %s2 = inlined_call_operand.vmem [shape: f32[1,128], index: 2, kind: input, shape index: {}]
  %s3 = inlined_call_operand.vmem [shape: f32[128,10], index: 3, kind: input, shape index: {}]
  %s4 = inlined_call_operand.vmem [shape: f32[1,10], index: 4, kind: input, shape index: {}]
  %s5 = inlined_call_operand.vmem [shape: f32[8,10], index: 5, kind: output, shape index: {}]
  %s6 = sld [smem:[#allocation0]]
  $region30: #{net_forward.5} parent=0
    _
  %s8 = ssub.s32 1, %s6
  %s9 = scalar_select 0, %s8, %s6
  // Predicated region
  $region2: #{net_forward.5} parent=0 // pred_check
    _
  $region3: #{net_forward.5} parent=0 // pred_check_branch
    %11 = sbr.rel (0) target = $region5
  $region4: #{net_forward.5} parent=0 // pred_region
    _
  $region5: #{net_forward.5} parent=0 // pred_fallthru
    _
  // Predicated region
  $region6: #{net_forward.5} parent=0 // pred_check
    _
  $region7: #{net_forward.5} parent=0 // pred_check_branch
    %13 = sbr.rel (0) target = $region9
  $region8: #{net_forward.5} parent=0 // pred_region
    _
  $region9: #{net_forward.5} parent=0 // pred_fallthru
    _
  // Predicated region
  $region10: #{net_forward.5} parent=0 // pred_check
    _
  $region11: #{net_forward.5} parent=0 // pred_check_branch
    %15 = sbr.rel (0) target = $region13
  $region12: #{net_forward.5} parent=0 // pred_region
    _
  $region13: #{net_forward.5} parent=0 // pred_fallthru
    _
  // Predicated region
  $region14: #{net_forward.5} parent=0 // pred_check
    _
  $region15: #{net_forward.5} parent=0 // pred_check_branch
    %17 = sbr.rel (0) target = $region17
  $region16: #{net_forward.5} parent=0 // pred_region
    _
  $region17: #{net_forward.5} parent=0 // pred_fallthru
    _
  // Predicated region
  $region18: #{net_forward.5} parent=0 // pred_check
    _
  $region19: #{net_forward.5} parent=0 // pred_check_branch
    %19 = sbr.rel (0) target = $region21
  $region20: #{net_forward.5} parent=0 // pred_region
    _
  $region21: #{net_forward.5} parent=0 // pred_fallthru
    _
  %v20 = vld [vmem:[%s0] sm:$0xff]
  %v21 = vld [vmem:[%s0 + $0x8] sm:$0xff]
  %v22 = vld [vmem:[%s0 + $0x10] sm:$0xff]
  %v23 = vld [vmem:[%s0 + $0x18] sm:$0xff]
  %v24 = vld [vmem:[%s0 + $0x20] sm:$0xff]
  %v25 = vld [vmem:[%s0 + $0x28] sm:$0xff]
  %v26 = vld [vmem:[%s0 + $0x30] sm:$0xff]
  %v27 = vld [vmem:[%s0 + $0x38] sm:$0xff]
  %v28 = vld [vmem:[%s0 + $0x40] sm:$0xff]
  %v29 = vld [vmem:[%s0 + $0x48] sm:$0xff]
  %v30 = vld [vmem:[%s0 + $0x50] sm:$0xff]
  %v31 = vld [vmem:[%s0 + $0x58] sm:$0xff]
  %v32 = vld [vmem:[%s0 + $0x60] sm:$0xff]
  %v33 = vld [vmem:[%s1] sm:$0xff]
  %v34 = vld [vmem:[%s1 + $0x8] sm:$0xff]
  %v35 = vld [vmem:[%s1 + $0x10] sm:$0xff]
  %v36 = vld [vmem:[%s1 + $0x18] sm:$0xff]
  %v37 = vld [vmem:[%s1 + $0x20] sm:$0xff]
  %v38 = vld [vmem:[%s1 + $0x28] sm:$0xff]
  %v39 = vld [vmem:[%s1 + $0x30] sm:$0xff]
  %v40 = vld [vmem:[%s1 + $0x38] sm:$0xff]
  %v41 = vld [vmem:[%s1 + $0x40] sm:$0xff]
  %v42 = vld [vmem:[%s1 + $0x48] sm:$0xff]
  %v43 = vld [vmem:[%s1 + $0x50] sm:$0xff]
  %v44 = vld [vmem:[%s1 + $0x58] sm:$0xff]
  %v45 = vld [vmem:[%s1 + $0x60] sm:$0xff]
  %v46 = vld [vmem:[%s1 + $0x68] sm:$0xff]
  %v47 = vld [vmem:[%s1 + $0x70] sm:$0xff]
  %v48 = vld [vmem:[%s1 + $0x78] sm:$0xff]
  %v49 = vld [vmem:[%s1 + $0x80] sm:$0xff]
  %v50 = vld [vmem:[%s1 + $0x88] sm:$0xff]
  %v51 = vld [vmem:[%s1 + $0x90] sm:$0xff]
  %v52 = vld [vmem:[%s1 + $0x98] sm:$0xff]
  %v53 = vld [vmem:[%s1 + $0xa0] sm:$0xff]
  %v54 = vld [vmem:[%s1 + $0xa8] sm:$0xff]
  %v55 = vld [vmem:[%s1 + $0xb0] sm:$0xff]
  %v56 = vld [vmem:[%s1 + $0xb8] sm:$0xff]
  %v57 = vld [vmem:[%s1 + $0xc0] sm:$0xff]
  %v58 = vld [vmem:[%s1 + $0xc8] sm:$0xff]
  %v59 = vld [vmem:[%s1 + $0xd0] sm:$0xff]
  %v60 = vld [vmem:[%s1 + $0xd8] sm:$0xff]
  %v61 = vld [vmem:[%s1 + $0xe0] sm:$0xff]
  %v62 = vld [vmem:[%s1 + $0xe8] sm:$0xff]
  %v63 = vld [vmem:[%s1 + $0xf0] sm:$0xff]
  %v64 = vld [vmem:[%s1 + $0xf8] sm:$0xff]
  %v65 = vld [vmem:[%s1 + $0x100] sm:$0xff]
  %v66 = vld [vmem:[%s1 + $0x108] sm:$0xff]
  %v67 = vld [vmem:[%s1 + $0x110] sm:$0xff]
  %v68 = vld [vmem:[%s1 + $0x118] sm:$0xff]
  %v69 = vld [vmem:[%s1 + $0x120] sm:$0xff]
  %v70 = vld [vmem:[%s1 + $0x128] sm:$0xff]
  %v71 = vld [vmem:[%s1 + $0x130] sm:$0xff]
  %v72 = vld [vmem:[%s1 + $0x138] sm:$0xff]
  %v73 = vld [vmem:[%s1 + $0x140] sm:$0xff]
  %v74 = vld [vmem:[%s1 + $0x148] sm:$0xff]
  %v75 = vld [vmem:[%s1 + $0x150] sm:$0xff]
  %v76 = vld [vmem:[%s1 + $0x158] sm:$0xff]
  %v77 = vld [vmem:[%s1 + $0x160] sm:$0xff]
  %v78 = vld [vmem:[%s1 + $0x168] sm:$0xff]
  %v79 = vld [vmem:[%s1 + $0x170] sm:$0xff]
  %v80 = vld [vmem:[%s1 + $0x178] sm:$0xff]
  %v81 = vld [vmem:[%s1 + $0x180] sm:$0xff]
  %v82 = vld [vmem:[%s1 + $0x188] sm:$0xff]
  %v83 = vld [vmem:[%s1 + $0x190] sm:$0xff]
  %v84 = vld [vmem:[%s1 + $0x198] sm:$0xff]
  %v85 = vld [vmem:[%s1 + $0x1a0] sm:$0xff]
  %v86 = vld [vmem:[%s1 + $0x1a8] sm:$0xff]
  %v87 = vld [vmem:[%s1 + $0x1b0] sm:$0xff]
  %v88 = vld [vmem:[%s1 + $0x1b8] sm:$0xff]
  %v89 = vld [vmem:[%s1 + $0x1c0] sm:$0xff]
  %v90 = vld [vmem:[%s1 + $0x1c8] sm:$0xff]
  %v91 = vld [vmem:[%s1 + $0x1d0] sm:$0xff]
  %v92 = vld [vmem:[%s1 + $0x1d8] sm:$0xff]
  %v93 = vld [vmem:[%s1 + $0x1e0] sm:$0xff]
  %v94 = vld [vmem:[%s1 + $0x1e8] sm:$0xff]
  %v95 = vld [vmem:[%s1 + $0x1f0] sm:$0xff]
  %v96 = vld [vmem:[%s1 + $0x1f8] sm:$0xff]
  %v97 = vld [vmem:[%s1 + $0x200] sm:$0xff]
  %v98 = vld [vmem:[%s1 + $0x208] sm:$0xff]
  %v99 = vld [vmem:[%s1 + $0x210] sm:$0xff]
  %v100 = vld [vmem:[%s1 + $0x218] sm:$0xff]
  %v101 = vld [vmem:[%s1 + $0x220] sm:$0xff]
  %v102 = vld [vmem:[%s1 + $0x228] sm:$0xff]
  %v103 = vld [vmem:[%s1 + $0x230] sm:$0xff]
  %v104 = vld [vmem:[%s1 + $0x238] sm:$0xff]
  %v105 = vld [vmem:[%s1 + $0x240] sm:$0xff]
  %v106 = vld [vmem:[%s1 + $0x248] sm:$0xff]
  %v107 = vld [vmem:[%s1 + $0x250] sm:$0xff]
  %v108 = vld [vmem:[%s1 + $0x258] sm:$0xff]
  %v109 = vld [vmem:[%s1 + $0x260] sm:$0xff]
  %v110 = vld [vmem:[%s1 + $0x268] sm:$0xff]
  %v111 = vld [vmem:[%s1 + $0x270] sm:$0xff]
  %v112 = vld [vmem:[%s1 + $0x278] sm:$0xff]
  %v113 = vld [vmem:[%s1 + $0x280] sm:$0xff]
  %v114 = vld [vmem:[%s1 + $0x288] sm:$0xff]
  %v115 = vld [vmem:[%s1 + $0x290] sm:$0xff]
  %v116 = vld [vmem:[%s1 + $0x298] sm:$0xff]
  %v117 = vld [vmem:[%s1 + $0x2a0] sm:$0xff]
  %v118 = vld [vmem:[%s1 + $0x2a8] sm:$0xff]
  %v119 = vld [vmem:[%s1 + $0x2b0] sm:$0xff]
  %v120 = vld [vmem:[%s1 + $0x2b8] sm:$0xff]
  %v121 = vld [vmem:[%s1 + $0x2c0] sm:$0xff]
  %v122 = vld [vmem:[%s1 + $0x2c8] sm:$0xff]
  %v123 = vld [vmem:[%s1 + $0x2d0] sm:$0xff]
  %v124 = vld [vmem:[%s1 + $0x2d8] sm:$0xff]
  %v125 = vld [vmem:[%s1 + $0x2e0] sm:$0xff]
  %v126 = vld [vmem:[%s1 + $0x2e8] sm:$0xff]
  %v127 = vld [vmem:[%s1 + $0x2f0] sm:$0xff]
  %v128 = vld [vmem:[%s1 + $0x2f8] sm:$0xff]
  %v129 = vld [vmem:[%s1 + $0x300] sm:$0xff]
  %v130 = vld [vmem:[%s1 + $0x308] sm:$0xff]
  %v131 = vld [vmem:[%s1 + $0x310] sm:$0xff]
  %v132 = vld [vmem:[%s1 + $0x318] sm:$0xff]
  %v133 = vld [vmem:[%s1 + $0x320] sm:$0xff]
  %v134 = vld [vmem:[%s1 + $0x328] sm:$0xff]
  %v135 = vld [vmem:[%s1 + $0x330] sm:$0xff]
  %v136 = vld [vmem:[%s1 + $0x338] sm:$0xff]
  %v137 = vld [vmem:[%s1 + $0x340] sm:$0xff]
  %v138 = vld [vmem:[%s1 + $0x348] sm:$0xff]
  %v139 = vld [vmem:[%s1 + $0x350] sm:$0xff]
  %v140 = vld [vmem:[%s1 + $0x358] sm:$0xff]
  %v141 = vld [vmem:[%s1 + $0x360] sm:$0xff]
  %v142 = vld [vmem:[%s1 + $0x368] sm:$0xff]
  %v143 = vld [vmem:[%s1 + $0x370] sm:$0xff]
  %v144 = vld [vmem:[%s1 + $0x378] sm:$0xff]
  %v145 = vld [vmem:[%s1 + $0x380] sm:$0xff]
  %v146 = vld [vmem:[%s1 + $0x388] sm:$0xff]
  %v147 = vld [vmem:[%s1 + $0x390] sm:$0xff]
  %v148 = vld [vmem:[%s1 + $0x398] sm:$0xff]
  %v149 = vld [vmem:[%s1 + $0x3a0] sm:$0xff]
  %v150 = vld [vmem:[%s1 + $0x3a8] sm:$0xff]
  %v151 = vld [vmem:[%s1 + $0x3b0] sm:$0xff]
  %v152 = vld [vmem:[%s1 + $0x3b8] sm:$0xff]
  %v153 = vld [vmem:[%s1 + $0x3c0] sm:$0xff]
  %v154 = vld [vmem:[%s1 + $0x3c8] sm:$0xff]
  %v155 = vld [vmem:[%s1 + $0x3d0] sm:$0xff]
  %v156 = vld [vmem:[%s1 + $0x3d8] sm:$0xff]
  %v157 = vld [vmem:[%s1 + $0x3e0] sm:$0xff]
  %v158 = vld [vmem:[%s1 + $0x3e8] sm:$0xff]
  %v159 = vld [vmem:[%s1 + $0x3f0] sm:$0xff]
  %v160 = vld [vmem:[%s1 + $0x3f8] sm:$0xff]
  %v161 = vld [vmem:[%s1 + $0x400] sm:$0xff]
  %v162 = vld [vmem:[%s1 + $0x408] sm:$0xff]
  %v163 = vld [vmem:[%s1 + $0x410] sm:$0xff]
  %v164 = vld [vmem:[%s1 + $0x418] sm:$0xff]
  %v165 = vld [vmem:[%s1 + $0x420] sm:$0xff]
  %v166 = vld [vmem:[%s1 + $0x428] sm:$0xff]
  %v167 = vld [vmem:[%s1 + $0x430] sm:$0xff]
  %v168 = vld [vmem:[%s1 + $0x438] sm:$0xff]
  %v169 = vld [vmem:[%s1 + $0x440] sm:$0xff]
  %v170 = vld [vmem:[%s1 + $0x448] sm:$0xff]
  %v171 = vld [vmem:[%s1 + $0x450] sm:$0xff]
  %v172 = vld [vmem:[%s1 + $0x458] sm:$0xff]
  %v173 = vld [vmem:[%s1 + $0x460] sm:$0xff]
  %v174 = vld [vmem:[%s1 + $0x468] sm:$0xff]
  %v175 = vld [vmem:[%s1 + $0x470] sm:$0xff]
  %v176 = vld [vmem:[%s1 + $0x478] sm:$0xff]
  %v177 = vld [vmem:[%s1 + $0x480] sm:$0xff]
  %v178 = vld [vmem:[%s1 + $0x488] sm:$0xff]
  %v179 = vld [vmem:[%s1 + $0x490] sm:$0xff]
  %v180 = vld [vmem:[%s1 + $0x498] sm:$0xff]
  %v181 = vld [vmem:[%s1 + $0x4a0] sm:$0xff]
  %v182 = vld [vmem:[%s1 + $0x4a8] sm:$0xff]
  %v183 = vld [vmem:[%s1 + $0x4b0] sm:$0xff]
  %v184 = vld [vmem:[%s1 + $0x4b8] sm:$0xff]
  %v185 = vld [vmem:[%s1 + $0x4c0] sm:$0xff]
  %v186 = vld [vmem:[%s1 + $0x4c8] sm:$0xff]
  %v187 = vld [vmem:[%s1 + $0x4d0] sm:$0xff]
  %v188 = vld [vmem:[%s1 + $0x4d8] sm:$0xff]
  %v189 = vld [vmem:[%s1 + $0x4e0] sm:$0xff]
  %v190 = vld [vmem:[%s1 + $0x4e8] sm:$0xff]
  %v191 = vld [vmem:[%s1 + $0x4f0] sm:$0xff]
  %v192 = vld [vmem:[%s1 + $0x4f8] sm:$0xff]
  %v193 = vld [vmem:[%s1 + $0x500] sm:$0xff]
  %v194 = vld [vmem:[%s1 + $0x508] sm:$0xff]
  %v195 = vld [vmem:[%s1 + $0x510] sm:$0xff]
  %v196 = vld [vmem:[%s1 + $0x518] sm:$0xff]
  %v197 = vld [vmem:[%s1 + $0x520] sm:$0xff]
  %v198 = vld [vmem:[%s1 + $0x528] sm:$0xff]
  %v199 = vld [vmem:[%s1 + $0x530] sm:$0xff]
  %v200 = vld [vmem:[%s1 + $0x538] sm:$0xff]
  %v201 = vld [vmem:[%s1 + $0x540] sm:$0xff]
  %v202 = vld [vmem:[%s1 + $0x548] sm:$0xff]
  %v203 = vld [vmem:[%s1 + $0x550] sm:$0xff]
  %v204 = vld [vmem:[%s1 + $0x558] sm:$0xff]
  %v205 = vld [vmem:[%s1 + $0x560] sm:$0xff]
  %v206 = vld [vmem:[%s1 + $0x568] sm:$0xff]
  %v207 = vld [vmem:[%s1 + $0x570] sm:$0xff]
  %v208 = vld [vmem:[%s1 + $0x578] sm:$0xff]
  %v209 = vld [vmem:[%s1 + $0x580] sm:$0xff]
  %v210 = vld [vmem:[%s1 + $0x588] sm:$0xff]
  %v211 = vld [vmem:[%s1 + $0x590] sm:$0xff]
  %v212 = vld [vmem:[%s1 + $0x598] sm:$0xff]
  %v213 = vld [vmem:[%s1 + $0x5a0] sm:$0xff]
  %v214 = vld [vmem:[%s1 + $0x5a8] sm:$0xff]
  %v215 = vld [vmem:[%s1 + $0x5b0] sm:$0xff]
  %v216 = vld [vmem:[%s1 + $0x5b8] sm:$0xff]
  %v217 = vld [vmem:[%s1 + $0x5c0] sm:$0xff]
  %v218 = vld [vmem:[%s1 + $0x5c8] sm:$0xff]
  %v219 = vld [vmem:[%s1 + $0x5d0] sm:$0xff]
  %v220 = vld [vmem:[%s1 + $0x5d8] sm:$0xff]
  %v221 = vld [vmem:[%s1 + $0x5e0] sm:$0xff]
  %v222 = vld [vmem:[%s1 + $0x5e8] sm:$0xff]
  %v223 = vld [vmem:[%s1 + $0x5f0] sm:$0xff]
  %v224 = vld [vmem:[%s1 + $0x5f8] sm:$0xff]
  %v225 = vld [vmem:[%s1 + $0x600] sm:$0xff]
  %v226 = vld [vmem:[%s1 + $0x608] sm:$0xff]
  %v227 = vld [vmem:[%s1 + $0x610] sm:$0xff]
  %v228 = vld [vmem:[%s1 + $0x618] sm:$0xff]
  %v229 = vld [vmem:[%s2] sm:$0x1]
  %v231 = vlaneseq
  %v232 = vshrl.u32 %v231, 7
  %v233 = vsub.s32 0, %v232
  %v234 = vrot.slane %v229, %v233
  %vm236 = vcmask 261120
  %v238 = vsel %vm236, %v32, 0
  %240 = vmatprep.subr.mxu0 0.0
  %241 = vmatpush1.msra.mxu0 %v48
  %242 = vmatprep.subr.mxu0 0.0
  %243 = vmatpush1.msra.mxu0 %v47
  %244 = vmatprep.subr.mxu0 0.0
  %245 = vmatpush1.msra.mxu0 %v46
  %246 = vmatprep.subr.mxu0 0.0
  %247 = vmatpush1.msra.mxu0 %v45
  %248 = vmatprep.subr.mxu0 0.0
  %249 = vmatpush1.msra.mxu0 %v44
  %250 = vmatprep.subr.mxu0 0.0
  %251 = vmatpush1.msra.mxu0 %v43
  %252 = vmatprep.subr.mxu0 0.0
  %253 = vmatpush1.msra.mxu0 %v42
  %254 = vmatprep.subr.mxu0 0.0
  %255 = vmatpush1.msra.mxu0 %v41
  %256 = vmatprep.subr.mxu0 0.0
  %257 = vmatpush1.msra.mxu0 %v40
  %258 = vmatprep.subr.mxu0 0.0
  %259 = vmatpush1.msra.mxu0 %v39
  %260 = vmatprep.subr.mxu0 0.0
  %261 = vmatpush1.msra.mxu0 %v38
  %262 = vmatprep.subr.mxu0 0.0
  %263 = vmatpush1.msra.mxu0 %v37
  %264 = vmatprep.subr.mxu0 0.0
  %265 = vmatpush1.msra.mxu0 %v36
  %266 = vmatprep.subr.mxu0 0.0
  %267 = vmatpush1.msra.mxu0 %v35
  %268 = vmatprep.subr.mxu0 0.0
  %269 = vmatpush1.msra.mxu0 %v34
  %270 = vmatprep.subr.mxu0 0.0
  %271 = vmatpush1.msra.mxu0 %v33
  %272 = vmatprep.subr.mxu0 0.0
  %273 = vmatpush2.msra.mxu0 %v64
  %274 = vmatprep.subr.mxu0 0.0
  %275 = vmatpush2.msra.mxu0 %v63
  %276 = vmatprep.subr.mxu0 0.0
  %277 = vmatpush2.msra.mxu0 %v62
  %278 = vmatprep.subr.mxu0 0.0
  %279 = vmatpush2.msra.mxu0 %v61
  %280 = vmatprep.subr.mxu0 0.0
  %281 = vmatpush2.msra.mxu0 %v60
  %282 = vmatprep.subr.mxu0 0.0
  %283 = vmatpush2.msra.mxu0 %v59
  %284 = vmatprep.subr.mxu0 0.0
  %285 = vmatpush2.msra.mxu0 %v58
  %286 = vmatprep.subr.mxu0 0.0
  %287 = vmatpush2.msra.mxu0 %v57
  %288 = vmatprep.subr.mxu0 0.0
  %289 = vmatpush2.msra.mxu0 %v56
  %290 = vmatprep.subr.mxu0 0.0
  %291 = vmatpush2.msra.mxu0 %v55
  %292 = vmatprep.subr.mxu0 0.0
  %293 = vmatpush2.msra.mxu0 %v54
  %294 = vmatprep.subr.mxu0 0.0
  %295 = vmatpush2.msra.mxu0 %v53
  %296 = vmatprep.subr.mxu0 0.0
  %297 = vmatpush2.msra.mxu0 %v52
  %298 = vmatprep.subr.mxu0 0.0
  %299 = vmatpush2.msra.mxu0 %v51
  %300 = vmatprep.subr.mxu0 0.0
  %301 = vmatpush2.msra.mxu0 %v50
  %302 = vmatprep.subr.mxu0 0.0
  %303 = vmatpush2.msra.mxu0 %v49
  %304 = vmatprep.mubr.f32.mxu0 %v21
  %305 = vmatmul.mubr.f32.gmra.mxu0 %v20
  %v306 = vpop.f32.mrf.mxu0
  %v307 = vadd.f32 %v234, %v306
  %v308 = vpop.f32.mrf.mxu0
  %309 = vdwg.mxu0
  %310 = vmatprep.subr.mxu0 0.0
  %311 = vmatpush1.msra.mxu0 %v80
  %312 = vmatprep.subr.mxu0 0.0
  %313 = vmatpush1.msra.mxu0 %v79
  %314 = vmatprep.subr.mxu0 0.0
  %315 = vmatpush1.msra.mxu0 %v78
  %316 = vmatprep.subr.mxu0 0.0
  %317 = vmatpush1.msra.mxu0 %v77
  %318 = vmatprep.subr.mxu0 0.0
  %319 = vmatpush1.msra.mxu0 %v76
  %320 = vmatprep.subr.mxu0 0.0
  %321 = vmatpush1.msra.mxu0 %v75
  %322 = vmatprep.subr.mxu0 0.0
  %323 = vmatpush1.msra.mxu0 %v74
  %324 = vmatprep.subr.mxu0 0.0
  %325 = vmatpush1.msra.mxu0 %v73
  %326 = vmatprep.subr.mxu0 0.0
  %327 = vmatpush1.msra.mxu0 %v72
  %328 = vmatprep.subr.mxu0 0.0
  %329 = vmatpush1.msra.mxu0 %v71
  %330 = vmatprep.subr.mxu0 0.0
  %331 = vmatpush1.msra.mxu0 %v70
  %332 = vmatprep.subr.mxu0 0.0
  %333 = vmatpush1.msra.mxu0 %v69
  %334 = vmatprep.subr.mxu0 0.0
  %335 = vmatpush1.msra.mxu0 %v68
  %336 = vmatprep.subr.mxu0 0.0
  %337 = vmatpush1.msra.mxu0 %v67
  %338 = vmatprep.subr.mxu0 0.0
  %339 = vmatpush1.msra.mxu0 %v66
  %340 = vmatprep.subr.mxu0 0.0
  %341 = vmatpush1.msra.mxu0 %v65
  %342 = vmatprep.subr.mxu0 0.0
  %343 = vmatpush2.msra.mxu0 %v96
  %344 = vmatprep.subr.mxu0 0.0
  %345 = vmatpush2.msra.mxu0 %v95
  %346 = vmatprep.subr.mxu0 0.0
  %347 = vmatpush2.msra.mxu0 %v94
  %348 = vmatprep.subr.mxu0 0.0
  %349 = vmatpush2.msra.mxu0 %v93
  %350 = vmatprep.subr.mxu0 0.0
  %351 = vmatpush2.msra.mxu0 %v92
  %352 = vmatprep.subr.mxu0 0.0
  %353 = vmatpush2.msra.mxu0 %v91
  %354 = vmatprep.subr.mxu0 0.0
  %355 = vmatpush2.msra.mxu0 %v90
  %356 = vmatprep.subr.mxu0 0.0
  %357 = vmatpush2.msra.mxu0 %v89
  %358 = vmatprep.subr.mxu0 0.0
  %359 = vmatpush2.msra.mxu0 %v88
  %360 = vmatprep.subr.mxu0 0.0
  %361 = vmatpush2.msra.mxu0 %v87
  %362 = vmatprep.subr.mxu0 0.0
  %363 = vmatpush2.msra.mxu0 %v86
  %364 = vmatprep.subr.mxu0 0.0
  %365 = vmatpush2.msra.mxu0 %v85
  %366 = vmatprep.subr.mxu0 0.0
  %367 = vmatpush2.msra.mxu0 %v84
  %368 = vmatprep.subr.mxu0 0.0
  %369 = vmatpush2.msra.mxu0 %v83
  %370 = vmatprep.subr.mxu0 0.0
  %371 = vmatpush2.msra.mxu0 %v82
  %372 = vmatprep.subr.mxu0 0.0
  %373 = vmatpush2.msra.mxu0 %v81
  %374 = vmatprep.mubr.f32.mxu0 %v23
  %375 = vmatmul.mubr.f32.gmra.mxu0 %v22
  %v376 = vpop.f32.mrf.mxu0
  %v377 = vadd.f32 %v307, %v376
  %v378 = vpop.f32.mrf.mxu0
  %379 = vdwg.mxu0
  %380 = vmatprep.subr.mxu0 0.0
  %381 = vmatpush1.msra.mxu0 %v112
  %382 = vmatprep.subr.mxu0 0.0
  %383 = vmatpush1.msra.mxu0 %v111
  %384 = vmatprep.subr.mxu0 0.0
  %385 = vmatpush1.msra.mxu0 %v110
  %386 = vmatprep.subr.mxu0 0.0
  %387 = vmatpush1.msra.mxu0 %v109
  %388 = vmatprep.subr.mxu0 0.0
  %389 = vmatpush1.msra.mxu0 %v108
  %390 = vmatprep.subr.mxu0 0.0
  %391 = vmatpush1.msra.mxu0 %v107
  %392 = vmatprep.subr.mxu0 0.0
  %393 = vmatpush1.msra.mxu0 %v106
  %394 = vmatprep.subr.mxu0 0.0
  %395 = vmatpush1.msra.mxu0 %v105
  %396 = vmatprep.subr.mxu0 0.0
  %397 = vmatpush1.msra.mxu0 %v104
  %398 = vmatprep.subr.mxu0 0.0
  %399 = vmatpush1.msra.mxu0 %v103
  %400 = vmatprep.subr.mxu0 0.0
  %401 = vmatpush1.msra.mxu0 %v102
  %402 = vmatprep.subr.mxu0 0.0
  %403 = vmatpush1.msra.mxu0 %v101
  %404 = vmatprep.subr.mxu0 0.0
  %405 = vmatpush1.msra.mxu0 %v100
  %406 = vmatprep.subr.mxu0 0.0
  %407 = vmatpush1.msra.mxu0 %v99
  %408 = vmatprep.subr.mxu0 0.0
  %409 = vmatpush1.msra.mxu0 %v98
  %410 = vmatprep.subr.mxu0 0.0
  %411 = vmatpush1.msra.mxu0 %v97
  %412 = vmatprep.subr.mxu0 0.0
  %413 = vmatpush2.msra.mxu0 %v128
  %414 = vmatprep.subr.mxu0 0.0
  %415 = vmatpush2.msra.mxu0 %v127
  %416 = vmatprep.subr.mxu0 0.0
  %417 = vmatpush2.msra.mxu0 %v126
  %418 = vmatprep.subr.mxu0 0.0
  %419 = vmatpush2.msra.mxu0 %v125
  %420 = vmatprep.subr.mxu0 0.0
  %421 = vmatpush2.msra.mxu0 %v124
  %422 = vmatprep.subr.mxu0 0.0
  %423 = vmatpush2.msra.mxu0 %v123
  %424 = vmatprep.subr.mxu0 0.0
  %425 = vmatpush2.msra.mxu0 %v122
  %426 = vmatprep.subr.mxu0 0.0
  %427 = vmatpush2.msra.mxu0 %v121
  %428 = vmatprep.subr.mxu0 0.0
  %429 = vmatpush2.msra.mxu0 %v120
  %430 = vmatprep.subr.mxu0 0.0
  %431 = vmatpush2.msra.mxu0 %v119
  %432 = vmatprep.subr.mxu0 0.0
  %433 = vmatpush2.msra.mxu0 %v118
  %434 = vmatprep.subr.mxu0 0.0
  %435 = vmatpush2.msra.mxu0 %v117
  %436 = vmatprep.subr.mxu0 0.0
  %437 = vmatpush2.msra.mxu0 %v116
  %438 = vmatprep.subr.mxu0 0.0
  %439 = vmatpush2.msra.mxu0 %v115
  %440 = vmatprep.subr.mxu0 0.0
  %441 = vmatpush2.msra.mxu0 %v114
  %442 = vmatprep.subr.mxu0 0.0
  %443 = vmatpush2.msra.mxu0 %v113
  %444 = vmatprep.mubr.f32.mxu0 %v25
  %445 = vmatmul.mubr.f32.gmra.mxu0 %v24
  %v446 = vpop.f32.mrf.mxu0
  %v447 = vadd.f32 %v377, %v446
  %v448 = vpop.f32.mrf.mxu0
  %449 = vdwg.mxu0
  %450 = vmatprep.subr.mxu0 0.0
  %451 = vmatpush1.msra.mxu0 %v144
  %452 = vmatprep.subr.mxu0 0.0
  %453 = vmatpush1.msra.mxu0 %v143
  %454 = vmatprep.subr.mxu0 0.0
  %455 = vmatpush1.msra.mxu0 %v142
  %456 = vmatprep.subr.mxu0 0.0
  %457 = vmatpush1.msra.mxu0 %v141
  %458 = vmatprep.subr.mxu0 0.0
  %459 = vmatpush1.msra.mxu0 %v140
  %460 = vmatprep.subr.mxu0 0.0
  %461 = vmatpush1.msra.mxu0 %v139
  %462 = vmatprep.subr.mxu0 0.0
  %463 = vmatpush1.msra.mxu0 %v138
  %464 = vmatprep.subr.mxu0 0.0
  %465 = vmatpush1.msra.mxu0 %v137
  %466 = vmatprep.subr.mxu0 0.0
  %467 = vmatpush1.msra.mxu0 %v136
  %468 = vmatprep.subr.mxu0 0.0
  %469 = vmatpush1.msra.mxu0 %v135
  %470 = vmatprep.subr.mxu0 0.0
  %471 = vmatpush1.msra.mxu0 %v134
  %472 = vmatprep.subr.mxu0 0.0
  %473 = vmatpush1.msra.mxu0 %v133
  %474 = vmatprep.subr.mxu0 0.0
  %475 = vmatpush1.msra.mxu0 %v132
  %476 = vmatprep.subr.mxu0 0.0
  %477 = vmatpush1.msra.mxu0 %v131
  %478 = vmatprep.subr.mxu0 0.0
  %479 = vmatpush1.msra.mxu0 %v130
  %480 = vmatprep.subr.mxu0 0.0
  %481 = vmatpush1.msra.mxu0 %v129
  %482 = vmatprep.subr.mxu0 0.0
  %483 = vmatpush2.msra.mxu0 %v160
  %484 = vmatprep.subr.mxu0 0.0
  %485 = vmatpush2.msra.mxu0 %v159
  %486 = vmatprep.subr.mxu0 0.0
  %487 = vmatpush2.msra.mxu0 %v158
  %488 = vmatprep.subr.mxu0 0.0
  %489 = vmatpush2.msra.mxu0 %v157
  %490 = vmatprep.subr.mxu0 0.0
  %491 = vmatpush2.msra.mxu0 %v156
  %492 = vmatprep.subr.mxu0 0.0
  %493 = vmatpush2.msra.mxu0 %v155
  %494 = vmatprep.subr.mxu0 0.0
  %495 = vmatpush2.msra.mxu0 %v154
  %496 = vmatprep.subr.mxu0 0.0
  %497 = vmatpush2.msra.mxu0 %v153
  %498 = vmatprep.subr.mxu0 0.0
  %499 = vmatpush2.msra.mxu0 %v152
  %500 = vmatprep.subr.mxu0 0.0
  %501 = vmatpush2.msra.mxu0 %v151
  %502 = vmatprep.subr.mxu0 0.0
  %503 = vmatpush2.msra.mxu0 %v150
  %504 = vmatprep.subr.mxu0 0.0
  %505 = vmatpush2.msra.mxu0 %v149
  %506 = vmatprep.subr.mxu0 0.0
  %507 = vmatpush2.msra.mxu0 %v148
  %508 = vmatprep.subr.mxu0 0.0
  %509 = vmatpush2.msra.mxu0 %v147
  %510 = vmatprep.subr.mxu0 0.0
  %511 = vmatpush2.msra.mxu0 %v146
  %512 = vmatprep.subr.mxu0 0.0
  %513 = vmatpush2.msra.mxu0 %v145
  %514 = vmatprep.mubr.f32.mxu0 %v27
  %515 = vmatmul.mubr.f32.gmra.mxu0 %v26
  %v516 = vpop.f32.mrf.mxu0
  %v517 = vadd.f32 %v447, %v516
  %v518 = vpop.f32.mrf.mxu0
  %519 = vdwg.mxu0
  %520 = vmatprep.subr.mxu0 0.0
  %521 = vmatpush1.msra.mxu0 %v176
  %522 = vmatprep.subr.mxu0 0.0
  %523 = vmatpush1.msra.mxu0 %v175
  %524 = vmatprep.subr.mxu0 0.0
  %525 = vmatpush1.msra.mxu0 %v174
  %526 = vmatprep.subr.mxu0 0.0
  %527 = vmatpush1.msra.mxu0 %v173
  %528 = vmatprep.subr.mxu0 0.0
  %529 = vmatpush1.msra.mxu0 %v172
  %530 = vmatprep.subr.mxu0 0.0
  %531 = vmatpush1.msra.mxu0 %v171
  %532 = vmatprep.subr.mxu0 0.0
  %533 = vmatpush1.msra.mxu0 %v170
  %534 = vmatprep.subr.mxu0 0.0
  %535 = vmatpush1.msra.mxu0 %v169
  %536 = vmatprep.subr.mxu0 0.0
  %537 = vmatpush1.msra.mxu0 %v168
  %538 = vmatprep.subr.mxu0 0.0
  %539 = vmatpush1.msra.mxu0 %v167
  %540 = vmatprep.subr.mxu0 0.0
  %541 = vmatpush1.msra.mxu0 %v166
  %542 = vmatprep.subr.mxu0 0.0
  %543 = vmatpush1.msra.mxu0 %v165
  %544 = vmatprep.subr.mxu0 0.0
  %545 = vmatpush1.msra.mxu0 %v164
  %546 = vmatprep.subr.mxu0 0.0
  %547 = vmatpush1.msra.mxu0 %v163
  %548 = vmatprep.subr.mxu0 0.0
  %549 = vmatpush1.msra.mxu0 %v162
  %550 = vmatprep.subr.mxu0 0.0
  %551 = vmatpush1.msra.mxu0 %v161
  %552 = vmatprep.subr.mxu0 0.0
  %553 = vmatpush2.msra.mxu0 %v192
  %554 = vmatprep.subr.mxu0 0.0
  %555 = vmatpush2.msra.mxu0 %v191
  %556 = vmatprep.subr.mxu0 0.0
  %557 = vmatpush2.msra.mxu0 %v190
  %558 = vmatprep.subr.mxu0 0.0
  %559 = vmatpush2.msra.mxu0 %v189
  %560 = vmatprep.subr.mxu0 0.0
  %561 = vmatpush2.msra.mxu0 %v188
  %562 = vmatprep.subr.mxu0 0.0
  %563 = vmatpush2.msra.mxu0 %v187
  %564 = vmatprep.subr.mxu0 0.0
  %565 = vmatpush2.msra.mxu0 %v186
  %566 = vmatprep.subr.mxu0 0.0
  %567 = vmatpush2.msra.mxu0 %v185
  %568 = vmatprep.subr.mxu0 0.0
  %569 = vmatpush2.msra.mxu0 %v184
  %570 = vmatprep.subr.mxu0 0.0
  %571 = vmatpush2.msra.mxu0 %v183
  %572 = vmatprep.subr.mxu0 0.0
  %573 = vmatpush2.msra.mxu0 %v182
  %574 = vmatprep.subr.mxu0 0.0
  %575 = vmatpush2.msra.mxu0 %v181
  %576 = vmatprep.subr.mxu0 0.0
  %577 = vmatpush2.msra.mxu0 %v180
  %578 = vmatprep.subr.mxu0 0.0
  %579 = vmatpush2.msra.mxu0 %v179
  %580 = vmatprep.subr.mxu0 0.0
  %581 = vmatpush2.msra.mxu0 %v178
  %582 = vmatprep.subr.mxu0 0.0
  %583 = vmatpush2.msra.mxu0 %v177
  %584 = vmatprep.mubr.f32.mxu0 %v29
  %585 = vmatmul.mubr.f32.gmra.mxu0 %v28
  %v586 = vpop.f32.mrf.mxu0
  %v587 = vadd.f32 %v517, %v586
  %v588 = vpop.f32.mrf.mxu0
  %589 = vdwg.mxu0
  %590 = vmatprep.subr.mxu0 0.0
  %591 = vmatpush1.msra.mxu0 %v208
  %592 = vmatprep.subr.mxu0 0.0
  %593 = vmatpush1.msra.mxu0 %v207
  %594 = vmatprep.subr.mxu0 0.0
  %595 = vmatpush1.msra.mxu0 %v206
  %596 = vmatprep.subr.mxu0 0.0
  %597 = vmatpush1.msra.mxu0 %v205
  %598 = vmatprep.subr.mxu0 0.0
  %599 = vmatpush1.msra.mxu0 %v204
  %600 = vmatprep.subr.mxu0 0.0
  %601 = vmatpush1.msra.mxu0 %v203
  %602 = vmatprep.subr.mxu0 0.0
  %603 = vmatpush1.msra.mxu0 %v202
  %604 = vmatprep.subr.mxu0 0.0
  %605 = vmatpush1.msra.mxu0 %v201
  %606 = vmatprep.subr.mxu0 0.0
  %607 = vmatpush1.msra.mxu0 %v200
  %608 = vmatprep.subr.mxu0 0.0
  %609 = vmatpush1.msra.mxu0 %v199
  %610 = vmatprep.subr.mxu0 0.0
  %611 = vmatpush1.msra.mxu0 %v198
  %612 = vmatprep.subr.mxu0 0.0
  %613 = vmatpush1.msra.mxu0 %v197
  %614 = vmatprep.subr.mxu0 0.0
  %615 = vmatpush1.msra.mxu0 %v196
  %616 = vmatprep.subr.mxu0 0.0
  %617 = vmatpush1.msra.mxu0 %v195
  %618 = vmatprep.subr.mxu0 0.0
  %619 = vmatpush1.msra.mxu0 %v194
  %620 = vmatprep.subr.mxu0 0.0
  %621 = vmatpush1.msra.mxu0 %v193
  %622 = vmatprep.subr.mxu0 0.0
  %623 = vmatpush2.msra.mxu0 %v224
  %624 = vmatprep.subr.mxu0 0.0
  %625 = vmatpush2.msra.mxu0 %v223
  %626 = vmatprep.subr.mxu0 0.0
  %627 = vmatpush2.msra.mxu0 %v222
  %628 = vmatprep.subr.mxu0 0.0
  %629 = vmatpush2.msra.mxu0 %v221
  %630 = vmatprep.subr.mxu0 0.0
  %631 = vmatpush2.msra.mxu0 %v220
  %632 = vmatprep.subr.mxu0 0.0
  %633 = vmatpush2.msra.mxu0 %v219
  %634 = vmatprep.subr.mxu0 0.0
  %635 = vmatpush2.msra.mxu0 %v218
  %636 = vmatprep.subr.mxu0 0.0
  %637 = vmatpush2.msra.mxu0 %v217
  %638 = vmatprep.subr.mxu0 0.0
  %639 = vmatpush2.msra.mxu0 %v216
  %640 = vmatprep.subr.mxu0 0.0
  %641 = vmatpush2.msra.mxu0 %v215
  %642 = vmatprep.subr.mxu0 0.0
  %643 = vmatpush2.msra.mxu0 %v214
  %644 = vmatprep.subr.mxu0 0.0
  %645 = vmatpush2.msra.mxu0 %v213
  %646 = vmatprep.subr.mxu0 0.0
  %647 = vmatpush2.msra.mxu0 %v212
  %648 = vmatprep.subr.mxu0 0.0
  %649 = vmatpush2.msra.mxu0 %v211
  %650 = vmatprep.subr.mxu0 0.0
  %651 = vmatpush2.msra.mxu0 %v210
  %652 = vmatprep.subr.mxu0 0.0
  %653 = vmatpush2.msra.mxu0 %v209
  %654 = vmatprep.mubr.f32.mxu0 %v31
  %655 = vmatmul.mubr.f32.gmra.mxu0 %v30
  %v656 = vpop.f32.mrf.mxu0
  %v657 = vadd.f32 %v587, %v656
  %v658 = vpop.f32.mrf.mxu0
  %659 = vdwg.mxu0
  %660 = vmatprep.subr.mxu0 0.0
  %661 = vmatpush1.msra.mxu0 0.0
  %662 = vmatprep.subr.mxu0 0.0
  %663 = vmatpush1.msra.mxu0 0.0
  %664 = vmatprep.subr.mxu0 0.0
  %665 = vmatpush1.msra.mxu0 0.0
  %666 = vmatprep.subr.mxu0 0.0
  %667 = vmatpush1.msra.mxu0 0.0
  %668 = vmatprep.subr.mxu0 0.0
  %669 = vmatpush1.msra.mxu0 0.0
  %670 = vmatprep.subr.mxu0 0.0
  %671 = vmatpush1.msra.mxu0 0.0
  %672 = vmatprep.subr.mxu0 0.0
  %673 = vmatpush1.msra.mxu0 0.0
  %674 = vmatprep.subr.mxu0 0.0
  %675 = vmatpush1.msra.mxu0 0.0
  %676 = vmatprep.subr.mxu0 0.0
  %677 = vmatpush1.msra.mxu0 0.0
  %678 = vmatprep.subr.mxu0 0.0
  %679 = vmatpush1.msra.mxu0 0.0
  %680 = vmatprep.subr.mxu0 0.0
  %681 = vmatpush1.msra.mxu0 0.0
  %682 = vmatprep.subr.mxu0 0.0
  %683 = vmatpush1.msra.mxu0 0.0
  %684 = vmatprep.subr.mxu0 0.0
  %685 = vmatpush1.msra.mxu0 %v228
  %686 = vmatprep.subr.mxu0 0.0
  %687 = vmatpush1.msra.mxu0 %v227
  %688 = vmatprep.subr.mxu0 0.0
  %689 = vmatpush1.msra.mxu0 %v226
  %690 = vmatprep.subr.mxu0 0.0
  %691 = vmatpush1.msra.mxu0 %v225
  %692 = vmatprep.subr.mxu0 0.0
  %693 = vmatpush2.msra.mxu0 0.0
  %694 = vmatprep.subr.mxu0 0.0
  %695 = vmatpush2.msra.mxu0 0.0
  %696 = vmatprep.subr.mxu0 0.0
  %697 = vmatpush2.msra.mxu0 0.0
  %698 = vmatprep.subr.mxu0 0.0
  %699 = vmatpush2.msra.mxu0 0.0
  %700 = vmatprep.subr.mxu0 0.0
  %701 = vmatpush2.msra.mxu0 0.0
  %702 = vmatprep.subr.mxu0 0.0
  %703 = vmatpush2.msra.mxu0 0.0
  %704 = vmatprep.subr.mxu0 0.0
  %705 = vmatpush2.msra.mxu0 0.0
  %706 = vmatprep.subr.mxu0 0.0
  %707 = vmatpush2.msra.mxu0 0.0
  %708 = vmatprep.subr.mxu0 0.0
  %709 = vmatpush2.msra.mxu0 0.0
  %710 = vmatprep.subr.mxu0 0.0
  %711 = vmatpush2.msra.mxu0 0.0
  %712 = vmatprep.subr.mxu0 0.0
  %713 = vmatpush2.msra.mxu0 0.0
  %714 = vmatprep.subr.mxu0 0.0
  %715 = vmatpush2.msra.mxu0 0.0
  %716 = vmatprep.subr.mxu0 0.0
  %717 = vmatpush2.msra.mxu0 0.0
  %718 = vmatprep.subr.mxu0 0.0
  %719 = vmatpush2.msra.mxu0 0.0
  %720 = vmatprep.subr.mxu0 0.0
  %721 = vmatpush2.msra.mxu0 0.0
  %722 = vmatprep.subr.mxu0 0.0
  %723 = vmatpush2.msra.mxu0 0.0
  %724 = vmatprep.mubr.f32.mxu0 0.0
  %725 = vmatmul.mubr.f32.gmra.mxu0 %v238
  %v726 = vpop.f32.mrf.mxu0
  %v727 = vadd.f32 %v657, %v726
  %v728 = vpop.f32.mrf.mxu0
  %729 = vdwg.mxu0
  %v730 = vmax.f32 %v727, 0.0
  %v731 = vld [vmem:[%s3] sm:$0xff]
  %v732 = vld [vmem:[%s3 + $0x8] sm:$0xff]
  %v733 = vld [vmem:[%s3 + $0x10] sm:$0xff]
  %v734 = vld [vmem:[%s3 + $0x18] sm:$0xff]
  %v735 = vld [vmem:[%s3 + $0x20] sm:$0xff]
  %v736 = vld [vmem:[%s3 + $0x28] sm:$0xff]
  %v737 = vld [vmem:[%s3 + $0x30] sm:$0xff]
  %v738 = vld [vmem:[%s3 + $0x38] sm:$0xff]
  %v739 = vld [vmem:[%s3 + $0x40] sm:$0xff]
  %v740 = vld [vmem:[%s3 + $0x48] sm:$0xff]
  %v741 = vld [vmem:[%s3 + $0x50] sm:$0xff]
  %v742 = vld [vmem:[%s3 + $0x58] sm:$0xff]
  %v743 = vld [vmem:[%s3 + $0x60] sm:$0xff]
  %v744 = vld [vmem:[%s3 + $0x68] sm:$0xff]
  %v745 = vld [vmem:[%s3 + $0x70] sm:$0xff]
  %v746 = vld [vmem:[%s3 + $0x78] sm:$0xff]
  %v747 = vld [vmem:[%s4] sm:$0x1]
  %v749 = vlaneseq
  %v750 = vshrl.u32 %v749, 7
  %v751 = vsub.s32 0, %v750
  %v752 = vrot.slane %v747, %v751
  %754 = vmatprep.subr.mxu0 0.0
  %755 = vmatpush1.msra.mxu0 %v746
  %756 = vmatprep.subr.mxu0 0.0
  %757 = vmatpush1.msra.mxu0 %v745
  %758 = vmatprep.subr.mxu0 0.0
  %759 = vmatpush1.msra.mxu0 %v744
  %760 = vmatprep.subr.mxu0 0.0
  %761 = vmatpush1.msra.mxu0 %v743
  %762 = vmatprep.subr.mxu0 0.0
  %763 = vmatpush1.msra.mxu0 %v742
  %764 = vmatprep.subr.mxu0 0.0
  %765 = vmatpush1.msra.mxu0 %v741
  %766 = vmatprep.subr.mxu0 0.0
  %767 = vmatpush1.msra.mxu0 %v740
  %768 = vmatprep.subr.mxu0 0.0
  %769 = vmatpush1.msra.mxu0 %v739
  %770 = vmatprep.subr.mxu0 0.0
  %771 = vmatpush1.msra.mxu0 %v738
  %772 = vmatprep.subr.mxu0 0.0
  %773 = vmatpush1.msra.mxu0 %v737
  %774 = vmatprep.subr.mxu0 0.0
  %775 = vmatpush1.msra.mxu0 %v736
  %776 = vmatprep.subr.mxu0 0.0
  %777 = vmatpush1.msra.mxu0 %v735
  %778 = vmatprep.subr.mxu0 0.0
  %779 = vmatpush1.msra.mxu0 %v734
  %780 = vmatprep.subr.mxu0 0.0
  %781 = vmatpush1.msra.mxu0 %v733
  %782 = vmatprep.subr.mxu0 0.0
  %783 = vmatpush1.msra.mxu0 %v732
  %784 = vmatprep.subr.mxu0 0.0
  %785 = vmatpush1.msra.mxu0 %v731
  %786 = vmatprep.subr.mxu0 0.0
  %787 = vmatpush2.msra.mxu0 0.0
  %788 = vmatprep.subr.mxu0 0.0
  %789 = vmatpush2.msra.mxu0 0.0
  %790 = vmatprep.subr.mxu0 0.0
  %791 = vmatpush2.msra.mxu0 0.0
  %792 = vmatprep.subr.mxu0 0.0
  %793 = vmatpush2.msra.mxu0 0.0
  %794 = vmatprep.subr.mxu0 0.0
  %795 = vmatpush2.msra.mxu0 0.0
  %796 = vmatprep.subr.mxu0 0.0
  %797 = vmatpush2.msra.mxu0 0.0
  %798 = vmatprep.subr.mxu0 0.0
  %799 = vmatpush2.msra.mxu0 0.0
  %800 = vmatprep.subr.mxu0 0.0
  %801 = vmatpush2.msra.mxu0 0.0
  %802 = vmatprep.subr.mxu0 0.0
  %803 = vmatpush2.msra.mxu0 0.0
  %804 = vmatprep.subr.mxu0 0.0
  %805 = vmatpush2.msra.mxu0 0.0
  %806 = vmatprep.subr.mxu0 0.0
  %807 = vmatpush2.msra.mxu0 0.0
  %808 = vmatprep.subr.mxu0 0.0
  %809 = vmatpush2.msra.mxu0 0.0
  %810 = vmatprep.subr.mxu0 0.0
  %811 = vmatpush2.msra.mxu0 0.0
  %812 = vmatprep.subr.mxu0 0.0
  %813 = vmatpush2.msra.mxu0 0.0
  %814 = vmatprep.subr.mxu0 0.0
  %815 = vmatpush2.msra.mxu0 0.0
  %816 = vmatprep.subr.mxu0 0.0
  %817 = vmatpush2.msra.mxu0 0.0
  %818 = vmatprep.mubr.f32.mxu0 0.0
  %819 = vmatmul.mubr.f32.gmra.mxu0 %v730
  %v820 = vpop.f32.mrf.mxu0
  %v821 = vadd.f32 %v752, %v820
  %v822 = vpop.f32.mrf.mxu0
  %823 = vdwg.mxu0
  %vm824 = vcmask 80896
  %v825 = vsel %vm824, %v821, -inf
  %826 = vmax.xlane.f32.xlu0 %v825
  %v827 = vpop.xlane.xlu0 %826
  %v828 = vsub.f32 %v821, %v827
  %v829 = vmul.f32 %v828, 1.442695
  %v830 = vpow.pop %v829
  %v831 = vsel %vm824, %v830, 0.0
  %832 = vadd.xlane.f32.xlu0 %v831
  %v833 = vpop.xlane.xlu0 %832
  %v834 = vlog2.pop %v833
  %v835 = vmul.f32 %v834, 0.6931472
  %v836 = vsub.f32 %v828, %v835
  %837 = vst.msk [vmem:[%s5] sm:$0xff] %vm824, %v836
  // Predicated region
  $region22: #{net_forward.5} parent=0 // pred_check
    _
  $region23: #{net_forward.5} parent=0 // pred_check_branch
    %839 = sbr.rel (0) target = $region25
  $region24: #{net_forward.5} parent=0 // pred_region
    _
  $region25: #{net_forward.5} parent=0 // pred_fallthru
    _
  // Predicated region
  $region26: #{net_forward.5} parent=0 // pred_check
    _
  $region27: #{net_forward.5} parent=0 // pred_check_branch
    %841 = sbr.rel (0) target = $region29
  $region28: #{net_forward.5} parent=0 // pred_region
    _
  $region29: #{net_forward.5} parent=0 // pred_fallthru
    _

// kernel: net_forward.4
$region0: #{net_forward.4}
  #allocation0 [shape = 'u32[]', space=smem, size = 0x4, offset = 0x4, fixed_abs, tag = 'smem constant byte address 0x4 - core index']
  #allocation1 [shape = 'u32[144,128]{1,0:T(1,128)}', space=vmem, size = 0x12000, scoped, tag = 'internal scratch']
  %s0 = inlined_call_operand.vmem [shape: f32[8,4,144,49], index: 0, kind: input, shape index: {}]
  %s1 = inlined_call_operand.vmem [shape: f32[32,144], index: 1, kind: input, shape index: {}]
  %s2 = inlined_call_operand.vmem [shape: f32[32,1], index: 2, kind: input, shape index: {}]
  %s3 = inlined_call_operand.vmem [shape: f32[8,32,49], index: 3, kind: output, shape index: {}]
  %s4 = sld [smem:[#allocation0]]
  $region22: #{net_forward.4} parent=0
    _
  %s6 = ssub.s32 1, %s4
  %s7 = scalar_select 0, %s6, %s4
  // Predicated region
  $region2: #{net_forward.4} parent=0 // pred_check
    _
  $region3: #{net_forward.4} parent=0 // pred_check_branch
    %9 = sbr.rel (0) target = $region5
  $region4: #{net_forward.4} parent=0 // pred_region
    _
  $region5: #{net_forward.4} parent=0 // pred_fallthru
    _
  // Predicated region
  $region6: #{net_forward.4} parent=0 // pred_check
    _
  $region7: #{net_forward.4} parent=0 // pred_check_branch
    %11 = sbr.rel (0) target = $region9
  $region8: #{net_forward.4} parent=0 // pred_region
    _
  $region9: #{net_forward.4} parent=0 // pred_fallthru
    _
  // Predicated region
  $region10: #{net_forward.4} parent=0 // pred_check
    _
  $region11: #{net_forward.4} parent=0 // pred_check_branch
    %13 = sbr.rel (0) target = $region13
  $region12: #{net_forward.4} parent=0 // pred_region
    _
  $region13: #{net_forward.4} parent=0 // pred_fallthru
    _
  %v14 = vld [vmem:[%s1] sm:$0xff]
  %v15 = vld [vmem:[%s1 + $0x8] sm:$0xff]
  %v16 = vld [vmem:[%s1 + $0x10] sm:$0xff]
  %v17 = vld [vmem:[%s1 + $0x18] sm:$0xff]
  %v18 = vld [vmem:[%s1 + $0x20] sm:$0xff]
  %v19 = vld [vmem:[%s1 + $0x28] sm:$0xff]
  %v20 = vld [vmem:[%s1 + $0x30] sm:$0xff]
  %v21 = vld [vmem:[%s1 + $0x38] sm:$0xff]
  %v22 = vld [vmem:[%s2] sm:$0xff]
  %v23 = vld [vmem:[%s2 + $0x8] sm:$0xff]
  %v24 = vld [vmem:[%s2 + $0x10] sm:$0xff]
  %v25 = vld [vmem:[%s2 + $0x18] sm:$0xff]
  %v26 = vld [vmem:[%s0] sm:$0xff]
  %v27 = vld [vmem:[%s0 + $0x8] sm:$0xff]
  %v28 = vld [vmem:[%s0 + $0x10] sm:$0xff]
  %v29 = vld [vmem:[%s0 + $0x18] sm:$0xff]
  %v30 = vld [vmem:[%s0 + $0x20] sm:$0xff]
  %v31 = vld [vmem:[%s0 + $0x28] sm:$0xff]
  %v32 = vld [vmem:[%s0 + $0x30] sm:$0xff]
  %v33 = vld [vmem:[%s0 + $0x38] sm:$0xff]
  %v34 = vld [vmem:[%s0 + $0x40] sm:$0xff]
  %v35 = vld [vmem:[%s0 + $0x48] sm:$0xff]
  %v36 = vld [vmem:[%s0 + $0x50] sm:$0xff]
  %v37 = vld [vmem:[%s0 + $0x58] sm:$0xff]
  %v38 = vld [vmem:[%s0 + $0x60] sm:$0xff]
  %v39 = vld [vmem:[%s0 + $0x68] sm:$0xff]
  %v40 = vld [vmem:[%s0 + $0x70] sm:$0xff]
  %v41 = vld [vmem:[%s0 + $0x78] sm:$0xff]
  %v42 = vld [vmem:[%s0 + $0x80] sm:$0xff]
  %v43 = vld [vmem:[%s0 + $0x88] sm:$0xff]
  %vm44 = vcmask 130048
  %v46 = vsel %vm44, %v15, 0
  %v49 = vsel %vm44, %v17, 0
  %v52 = vsel %vm44, %v19, 0
  %v55 = vsel %vm44, %v21, 0
  %57 = vmatprep.subr.mxu0 0.0
  %58 = vmatpush1.msra.mxu0 %v41
  %59 = vmatprep.subr.mxu0 0.0
  %60 = vmatpush1.msra.mxu0 %v40
  %61 = vmatprep.subr.mxu0 0.0
  %62 = vmatpush1.msra.mxu0 %v39
  %63 = vmatprep.subr.mxu0 0.0
  %64 = vmatpush1.msra.mxu0 %v38
  %65 = vmatprep.subr.mxu0 0.0
  %66 = vmatpush1.msra.mxu0 %v37
  %67 = vmatprep.subr.mxu0 0.0
  %68 = vmatpush1.msra.mxu0 %v36
  %69 = vmatprep.subr.mxu0 0.0
  %70 = vmatpush1.msra.mxu0 %v35
  %71 = vmatprep.subr.mxu0 0.0
  %72 = vmatpush1.msra.mxu0 %v34
  %73 = vmatprep.subr.mxu0 0.0
  %74 = vmatpush1.msra.mxu0 %v33
  %75 = vmatprep.subr.mxu0 0.0
  %76 = vmatpush1.msra.mxu0 %v32
  %77 = vmatprep.subr.mxu0 0.0
  %78 = vmatpush1.msra.mxu0 %v31
  %79 = vmatprep.subr.mxu0 0.0
  %80 = vmatpush1.msra.mxu0 %v30
  %81 = vmatprep.subr.mxu0 0.0
  %82 = vmatpush1.msra.mxu0 %v29
  %83 = vmatprep.subr.mxu0 0.0
  %84 = vmatpush1.msra.mxu0 %v28
  %85 = vmatprep.subr.mxu0 0.0
  %86 = vmatpush1.msra.mxu0 %v27
  %87 = vmatprep.subr.mxu0 0.0
  %88 = vmatpush1.msra.mxu0 %v26
  %89 = vmatprep.subr.mxu0 0.0
  %90 = vmatpush2.msra.mxu0 0.0
  %91 = vmatprep.subr.mxu0 0.0
  %92 = vmatpush2.msra.mxu0 0.0
  %93 = vmatprep.subr.mxu0 0.0
  %94 = vmatpush2.msra.mxu0 0.0
  %95 = vmatprep.subr.mxu0 0.0
  %96 = vmatpush2.msra.mxu0 0.0
  %97 = vmatprep.subr.mxu0 0.0
  %98 = vmatpush2.msra.mxu0 0.0
  %99 = vmatprep.subr.mxu0 0.0
  %100 = vmatpush2.msra.mxu0 0.0
  %101 = vmatprep.subr.mxu0 0.0
  %102 = vmatpush2.msra.mxu0 0.0
  %103 = vmatprep.subr.mxu0 0.0
  %104 = vmatpush2.msra.mxu0 0.0
  %105 = vmatprep.subr.mxu0 0.0
  %106 = vmatpush2.msra.mxu0 0.0
  %107 = vmatprep.subr.mxu0 0.0
  %108 = vmatpush2.msra.mxu0 0.0
  %109 = vmatprep.subr.mxu0 0.0
  %110 = vmatpush2.msra.mxu0 0.0
  %111 = vmatprep.subr.mxu0 0.0
  %112 = vmatpush2.msra.mxu0 0.0
  %113 = vmatprep.subr.mxu0 0.0
  %114 = vmatpush2.msra.mxu0 0.0
  %115 = vmatprep.subr.mxu0 0.0
  %116 = vmatpush2.msra.mxu0 0.0
  %117 = vmatprep.subr.mxu0 0.0
  %118 = vmatpush2.msra.mxu0 %v43
  %119 = vmatprep.subr.mxu0 0.0
  %120 = vmatpush2.msra.mxu0 %v42
  %121 = vmatprep.mubr.f32.mxu0 %v46
  %122 = vmatmul.mubr.f32.gmra.mxu0 %v14
  %v123 = vpop.f32.mrf.mxu0
  %v124 = vadd.f32 0.0, %v123
  %v125 = vpop.f32.mrf.mxu0
  %126 = vmatprep.mubr.f32.mxu0 %v49
  %127 = vmatmul.mubr.f32.gmra.mxu0 %v16
  %v128 = vpop.f32.mrf.mxu0
  %v129 = vadd.f32 0.0, %v128
  %v130 = vpop.f32.mrf.mxu0
  %131 = vmatprep.mubr.f32.mxu0 %v52
  %132 = vmatmul.mubr.f32.gmra.mxu0 %v18
  %v133 = vpop.f32.mrf.mxu0
  %v134 = vadd.f32 0.0, %v133
  %v135 = vpop.f32.mrf.mxu0
  %136 = vmatprep.mubr.f32.mxu0 %v55
  %137 = vmatmul.mubr.f32.gmra.mxu0 %v20
  %v138 = vpop.f32.mrf.mxu0
  %v139 = vadd.f32 0.0, %v138
  %v140 = vpop.f32.mrf.mxu0
  %141 = vdwg.mxu0
  %s142 = scalar_lea.vmem %s0, 144
  %v143 = vld [vmem:[%s142] sm:$0xff]
  %v144 = vld [vmem:[%s142 + $0x8] sm:$0xff]
  %v145 = vld [vmem:[%s142 + $0x10] sm:$0xff]
  %v146 = vld [vmem:[%s142 + $0x18] sm:$0xff]
  %v147 = vld [vmem:[%s142 + $0x20] sm:$0xff]
  %v148 = vld [vmem:[%s142 + $0x28] sm:$0xff]
  %v149 = vld [vmem:[%s142 + $0x30] sm:$0xff]
  %v150 = vld [vmem:[%s142 + $0x38] sm:$0xff]
  %v151 = vld [vmem:[%s142 + $0x40] sm:$0xff]
  %v152 = vld [vmem:[%s142 + $0x48] sm:$0xff]
  %v153 = vld [vmem:[%s142 + $0x50] sm:$0xff]
  %v154 = vld [vmem:[%s142 + $0x58] sm:$0xff]
  %v155 = vld [vmem:[%s142 + $0x60] sm:$0xff]
  %v156 = vld [vmem:[%s142 + $0x68] sm:$0xff]
  %v157 = vld [vmem:[%s142 + $0x70] sm:$0xff]
  %v158 = vld [vmem:[%s142 + $0x78] sm:$0xff]
  %v159 = vld [vmem:[%s142 + $0x80] sm:$0xff]
  %v160 = vld [vmem:[%s142 + $0x88] sm:$0xff]
  %161 = vmatprep.subr.mxu0 0.0
  %162 = vmatpush1.msra.mxu0 %v158
  %163 = vmatprep.subr.mxu0 0.0
  %164 = vmatpush1.msra.mxu0 %v157
  %165 = vmatprep.subr.mxu0 0.0
  %166 = vmatpush1.msra.mxu0 %v156
  %167 = vmatprep.subr.mxu0 0.0
  %168 = vmatpush1.msra.mxu0 %v155
  %169 = vmatprep.subr.mxu0 0.0
  %170 = vmatpush1.msra.mxu0 %v154
  %171 = vmatprep.subr.mxu0 0.0
  %172 = vmatpush1.msra.mxu0 %v153
  %173 = vmatprep.subr.mxu0 0.0
  %174 = vmatpush1.msra.mxu0 %v152
  %175 = vmatprep.subr.mxu0 0.0
  %176 = vmatpush1.msra.mxu0 %v151
  %177 = vmatprep.subr.mxu0 0.0
  %178 = vmatpush1.msra.mxu0 %v150
  %179 = vmatprep.subr.mxu0 0.0
  %180 = vmatpush1.msra.mxu0 %v149
  %181 = vmatprep.subr.mxu0 0.0
  %182 = vmatpush1.msra.mxu0 %v148
  %183 = vmatprep.subr.mxu0 0.0
  %184 = vmatpush1.msra.mxu0 %v147
  %185 = vmatprep.subr.mxu0 0.0
  %186 = vmatpush1.msra.mxu0 %v146
  %187 = vmatprep.subr.mxu0 0.0
  %188 = vmatpush1.msra.mxu0 %v145
  %189 = vmatprep.subr.mxu0 0.0
  %190 = vmatpush1.msra.mxu0 %v144
  %191 = vmatprep.subr.mxu0 0.0
  %192 = vmatpush1.msra.mxu0 %v143
  %193 = vmatprep.subr.mxu0 0.0
  %194 = vmatpush2.msra.mxu0 0.0
  %195 = vmatprep.subr.mxu0 0.0
  %196 = vmatpush2.msra.mxu0 0.0
  %197 = vmatprep.subr.mxu0 0.0
  %198 = vmatpush2.msra.mxu0 0.0
  %199 = vmatprep.subr.mxu0 0.0
  %200 = vmatpush2.msra.mxu0 0.0
  %201 = vmatprep.subr.mxu0 0.0
  %202 = vmatpush2.msra.mxu0 0.0
  %203 = vmatprep.subr.mxu0 0.0
  %204 = vmatpush2.msra.mxu0 0.0
  %205 = vmatprep.subr.mxu0 0.0
  %206 = vmatpush2.msra.mxu0 0.0
  %207 = vmatprep.subr.mxu0 0.0
  %208 = vmatpush2.msra.mxu0 0.0
  %209 = vmatprep.subr.mxu0 0.0
  %210 = vmatpush2.msra.mxu0 0.0
  %211 = vmatprep.subr.mxu0 0.0
  %212 = vmatpush2.msra.mxu0 0.0
  %213 = vmatprep.subr.mxu0 0.0
  %214 = vmatpush2.msra.mxu0 0.0
  %215 = vmatprep.subr.mxu0 0.0
  %216 = vmatpush2.msra.mxu0 0.0
  %217 = vmatprep.subr.mxu0 0.0
  %218 = vmatpush2.msra.mxu0 0.0
  %219 = vmatprep.subr.mxu0 0.0
  %220 = vmatpush2.msra.mxu0 0.0
  %221 = vmatprep.subr.mxu0 0.0
  %222 = vmatpush2.msra.mxu0 %v160
  %223 = vmatprep.subr.mxu0 0.0
  %224 = vmatpush2.msra.mxu0 %v159
  %225 = vmatprep.mubr.f32.mxu0 %v46
  %226 = vmatmul.mubr.f32.gmra.mxu0 %v14
  %v227 = vpop.f32.mrf.mxu0
  %v228 = vadd.f32 0.0, %v227
  %v229 = vpop.f32.mrf.mxu0
  %230 = vmatprep.mubr.f32.mxu0 %v49
  %231 = vmatmul.mubr.f32.gmra.mxu0 %v16
  %v232 = vpop.f32.mrf.mxu0
  %v233 = vadd.f32 0.0, %v232
  %v234 = vpop.f32.mrf.mxu0
  %235 = vmatprep.mubr.f32.mxu0 %v52
  %236 = vmatmul.mubr.f32.gmra.mxu0 %v18
  %v237 = vpop.f32.mrf.mxu0
  %v238 = vadd.f32 0.0, %v237
  %v239 = vpop.f32.mrf.mxu0
  %240 = vmatprep.mubr.f32.mxu0 %v55
  %241 = vmatmul.mubr.f32.gmra.mxu0 %v20
  %v242 = vpop.f32.mrf.mxu0
  %v243 = vadd.f32 0.0, %v242
  %v244 = vpop.f32.mrf.mxu0
  %245 = vdwg.mxu0
  %s246 = scalar_lea.vmem %s0, 288
  %v247 = vld [vmem:[%s246] sm:$0xff]
  %v248 = vld [vmem:[%s246 + $0x8] sm:$0xff]
  %v249 = vld [vmem:[%s246 + $0x10] sm:$0xff]
  %v250 = vld [vmem:[%s246 + $0x18] sm:$0xff]
  %v251 = vld [vmem:[%s246 + $0x20] sm:$0xff]
  %v252 = vld [vmem:[%s246 + $0x28] sm:$0xff]
  %v253 = vld [vmem:[%s246 + $0x30] sm:$0xff]
  %v254 = vld [vmem:[%s246 + $0x38] sm:$0xff]
  %v255 = vld [vmem:[%s246 + $0x40] sm:$0xff]
  %v256 = vld [vmem:[%s246 + $0x48] sm:$0xff]
  %v257 = vld [vmem:[%s246 + $0x50] sm:$0xff]
  %v258 = vld [vmem:[%s246 + $0x58] sm:$0xff]
  %v259 = vld [vmem:[%s246 + $0x60] sm:$0xff]
  %v260 = vld [vmem:[%s246 + $0x68] sm:$0xff]
  %v261 = vld [vmem:[%s246 + $0x70] sm:$0xff]
  %v262 = vld [vmem:[%s246 + $0x78] sm:$0xff]
  %v263 = vld [vmem:[%s246 + $0x80] sm:$0xff]
  %v264 = vld [vmem:[%s246 + $0x88] sm:$0xff]
  %265 = vmatprep.subr.mxu0 0.0
  %266 = vmatpush1.msra.mxu0 %v262
  %267 = vmatprep.subr.mxu0 0.0
  %268 = vmatpush1.msra.mxu0 %v261
  %269 = vmatprep.subr.mxu0 0.0
  %270 = vmatpush1.msra.mxu0 %v260
  %271 = vmatprep.subr.mxu0 0.0
  %272 = vmatpush1.msra.mxu0 %v259
  %273 = vmatprep.subr.mxu0 0.0
  %274 = vmatpush1.msra.mxu0 %v258
  %275 = vmatprep.subr.mxu0 0.0
  %276 = vmatpush1.msra.mxu0 %v257
  %277 = vmatprep.subr.mxu0 0.0
  %278 = vmatpush1.msra.mxu0 %v256
  %279 = vmatprep.subr.mxu0 0.0
  %280 = vmatpush1.msra.mxu0 %v255
  %281 = vmatprep.subr.mxu0 0.0
  %282 = vmatpush1.msra.mxu0 %v254
  %283 = vmatprep.subr.mxu0 0.0
  %284 = vmatpush1.msra.mxu0 %v253
  %285 = vmatprep.subr.mxu0 0.0
  %286 = vmatpush1.msra.mxu0 %v252
  %287 = vmatprep.subr.mxu0 0.0
  %288 = vmatpush1.msra.mxu0 %v251
  %289 = vmatprep.subr.mxu0 0.0
  %290 = vmatpush1.msra.mxu0 %v250
  %291 = vmatprep.subr.mxu0 0.0
  %292 = vmatpush1.msra.mxu0 %v249
  %293 = vmatprep.subr.mxu0 0.0
  %294 = vmatpush1.msra.mxu0 %v248
  %295 = vmatprep.subr.mxu0 0.0
  %296 = vmatpush1.msra.mxu0 %v247
  %297 = vmatprep.subr.mxu0 0.0
  %298 = vmatpush2.msra.mxu0 0.0
  %299 = vmatprep.subr.mxu0 0.0
  %300 = vmatpush2.msra.mxu0 0.0
  %301 = vmatprep.subr.mxu0 0.0
  %302 = vmatpush2.msra.mxu0 0.0
  %303 = vmatprep.subr.mxu0 0.0
  %304 = vmatpush2.msra.mxu0 0.0
  %305 = vmatprep.subr.mxu0 0.0
  %306 = vmatpush2.msra.mxu0 0.0
  %307 = vmatprep.subr.mxu0 0.0
  %308 = vmatpush2.msra.mxu0 0.0
  %309 = vmatprep.subr.mxu0 0.0
  %310 = vmatpush2.msra.mxu0 0.0
  %311 = vmatprep.subr.mxu0 0.0
  %312 = vmatpush2.msra.mxu0 0.0
  %313 = vmatprep.subr.mxu0 0.0
  %314 = vmatpush2.msra.mxu0 0.0
  %315 = vmatprep.subr.mxu0 0.0
  %316 = vmatpush2.msra.mxu0 0.0
  %317 = vmatprep.subr.mxu0 0.0
  %318 = vmatpush2.msra.mxu0 0.0
  %319 = vmatprep.subr.mxu0 0.0
  %320 = vmatpush2.msra.mxu0 0.0
  %321 = vmatprep.subr.mxu0 0.0
  %322 = vmatpush2.msra.mxu0 0.0
  %323 = vmatprep.subr.mxu0 0.0
  %324 = vmatpush2.msra.mxu0 0.0
  %325 = vmatprep.subr.mxu0 0.0
  %326 = vmatpush2.msra.mxu0 %v264
  %327 = vmatprep.subr.mxu0 0.0
  %328 = vmatpush2.msra.mxu0 %v263
  %329 = vmatprep.mubr.f32.mxu0 %v46
  %330 = vmatmul.mubr.f32.gmra.mxu0 %v14
  %v331 = vpop.f32.mrf.mxu0
  %v332 = vadd.f32 0.0, %v331
  %v333 = vpop.f32.mrf.mxu0
  %334 = vmatprep.mubr.f32.mxu0 %v49
  %335 = vmatmul.mubr.f32.gmra.mxu0 %v16
  %v336 = vpop.f32.mrf.mxu0
  %v337 = vadd.f32 0.0, %v336
  %v338 = vpop.f32.mrf.mxu0
  %339 = vmatprep.mubr.f32.mxu0 %v52
  %340 = vmatmul.mubr.f32.gmra.mxu0 %v18
  %v341 = vpop.f32.mrf.mxu0
  %v342 = vadd.f32 0.0, %v341
  %v343 = vpop.f32.mrf.mxu0
  %344 = vmatprep.mubr.f32.mxu0 %v55
  %345 = vmatmul.mubr.f32.gmra.mxu0 %v20
  %v346 = vpop.f32.mrf.mxu0
  %v347 = vadd.f32 0.0, %v346
  %v348 = vpop.f32.mrf.mxu0
  %349 = vdwg.mxu0
  %s350 = scalar_lea.vmem %s0, 432
  %v351 = vld [vmem:[%s350] sm:$0xff]
  %v352 = vld [vmem:[%s350 + $0x8] sm:$0xff]
  %v353 = vld [vmem:[%s350 + $0x10] sm:$0xff]
  %v354 = vld [vmem:[%s350 + $0x18] sm:$0xff]
  %v355 = vld [vmem:[%s350 + $0x20] sm:$0xff]
  %v356 = vld [vmem:[%s350 + $0x28] sm:$0xff]
  %v357 = vld [vmem:[%s350 + $0x30] sm:$0xff]
  %v358 = vld [vmem:[%s350 + $0x38] sm:$0xff]
  %v359 = vld [vmem:[%s350 + $0x40] sm:$0xff]
  %v360 = vld [vmem:[%s350 + $0x48] sm:$0xff]
  %v361 = vld [vmem:[%s350 + $0x50] sm:$0xff]
  %v362 = vld [vmem:[%s350 + $0x58] sm:$0xff]
  %v363 = vld [vmem:[%s350 + $0x60] sm:$0xff]
  %v364 = vld [vmem:[%s350 + $0x68] sm:$0xff]
  %v365 = vld [vmem:[%s350 + $0x70] sm:$0xff]
  %v366 = vld [vmem:[%s350 + $0x78] sm:$0xff]
  %v367 = vld [vmem:[%s350 + $0x80] sm:$0xff]
  %v368 = vld [vmem:[%s350 + $0x88] sm:$0xff]
  %369 = vmatprep.subr.mxu0 0.0
  %370 = vmatpush1.msra.mxu0 %v366
  %371 = vmatprep.subr.mxu0 0.0
  %372 = vmatpush1.msra.mxu0 %v365
  %373 = vmatprep.subr.mxu0 0.0
  %374 = vmatpush1.msra.mxu0 %v364
  %375 = vmatprep.subr.mxu0 0.0
  %376 = vmatpush1.msra.mxu0 %v363
  %377 = vmatprep.subr.mxu0 0.0
  %378 = vmatpush1.msra.mxu0 %v362
  %379 = vmatprep.subr.mxu0 0.0
  %380 = vmatpush1.msra.mxu0 %v361
  %381 = vmatprep.subr.mxu0 0.0
  %382 = vmatpush1.msra.mxu0 %v360
  %383 = vmatprep.subr.mxu0 0.0
  %384 = vmatpush1.msra.mxu0 %v359
  %385 = vmatprep.subr.mxu0 0.0
  %386 = vmatpush1.msra.mxu0 %v358
  %387 = vmatprep.subr.mxu0 0.0
  %388 = vmatpush1.msra.mxu0 %v357
  %389 = vmatprep.subr.mxu0 0.0
  %390 = vmatpush1.msra.mxu0 %v356
  %391 = vmatprep.subr.mxu0 0.0
  %392 = vmatpush1.msra.mxu0 %v355
  %393 = vmatprep.subr.mxu0 0.0
  %394 = vmatpush1.msra.mxu0 %v354
  %395 = vmatprep.subr.mxu0 0.0
  %396 = vmatpush1.msra.mxu0 %v353
  %397 = vmatprep.subr.mxu0 0.0
  %398 = vmatpush1.msra.mxu0 %v352
  %399 = vmatprep.subr.mxu0 0.0
  %400 = vmatpush1.msra.mxu0 %v351
  %401 = vmatprep.subr.mxu0 0.0
  %402 = vmatpush2.msra.mxu0 0.0
  %403 = vmatprep.subr.mxu0 0.0
  %404 = vmatpush2.msra.mxu0 0.0
  %405 = vmatprep.subr.mxu0 0.0
  %406 = vmatpush2.msra.mxu0 0.0
  %407 = vmatprep.subr.mxu0 0.0
  %408 = vmatpush2.msra.mxu0 0.0
  %409 = vmatprep.subr.mxu0 0.0
  %410 = vmatpush2.msra.mxu0 0.0
  %411 = vmatprep.subr.mxu0 0.0
  %412 = vmatpush2.msra.mxu0 0.0
  %413 = vmatprep.subr.mxu0 0.0
  %414 = vmatpush2.msra.mxu0 0.0
  %415 = vmatprep.subr.mxu0 0.0
  %416 = vmatpush2.msra.mxu0 0.0
  %417 = vmatprep.subr.mxu0 0.0
  %418 = vmatpush2.msra.mxu0 0.0
  %419 = vmatprep.subr.mxu0 0.0
  %420 = vmatpush2.msra.mxu0 0.0
  %421 = vmatprep.subr.mxu0 0.0
  %422 = vmatpush2.msra.mxu0 0.0
  %423 = vmatprep.subr.mxu0 0.0
  %424 = vmatpush2.msra.mxu0 0.0
  %425 = vmatprep.subr.mxu0 0.0
  %426 = vmatpush2.msra.mxu0 0.0
  %427 = vmatprep.subr.mxu0 0.0
  %428 = vmatpush2.msra.mxu0 0.0
  %429 = vmatprep.subr.mxu0 0.0
  %430 = vmatpush2.msra.mxu0 %v368
  %431 = vmatprep.subr.mxu0 0.0
  %432 = vmatpush2.msra.mxu0 %v367
  %433 = vmatprep.mubr.f32.mxu0 %v46
  %434 = vmatmul.mubr.f32.gmra.mxu0 %v14
  %v435 = vpop.f32.mrf.mxu0
  %v436 = vadd.f32 0.0, %v435
  %v437 = vpop.f32.mrf.mxu0
  %438 = vmatprep.mubr.f32.mxu0 %v49
  %439 = vmatmul.mubr.f32.gmra.mxu0 %v16
  %v440 = vpop.f32.mrf.mxu0
  %v441 = vadd.f32 0.0, %v440
  %v442 = vpop.f32.mrf.mxu0
  %443 = vmatprep.mubr.f32.mxu0 %v52
  %444 = vmatmul.mubr.f32.gmra.mxu0 %v18
  %v445 = vpop.f32.mrf.mxu0
  %v446 = vadd.f32 0.0, %v445
  %v447 = vpop.f32.mrf.mxu0
  %448 = vmatprep.mubr.f32.mxu0 %v55
  %449 = vmatmul.mubr.f32.gmra.mxu0 %v20
  %v450 = vpop.f32.mrf.mxu0
  %v451 = vadd.f32 0.0, %v450
  %v452 = vpop.f32.mrf.mxu0
  %453 = vdwg.mxu0
  %v454 = vmax.f32 %v124, %v228
  %v455 = vmax.f32 %v129, %v233
  %v456 = vmax.f32 %v134, %v238
  %v457 = vmax.f32 %v139, %v243
  %v458 = vmax.f32 %v332, %v436
  %v459 = vmax.f32 %v337, %v441
  %v460 = vmax.f32 %v342, %v446
  %v461 = vmax.f32 %v347, %v451
  %v462 = vmax.f32 %v454, %v458
  %v463 = vmax.f32 %v455, %v459
  %v464 = vmax.f32 %v456, %v460
  %v465 = vmax.f32 %v457, %v461
  %467 = vset.pattern.permute.xlu0 0
  %468 = vperm.xlu0 %467, %v22
  %v469 = vpop.permute.xlu0 %468
  %472 = vset.pattern.permute.xlu0 0
  %473 = vperm.xlu0 %472, %v23
  %v474 = vpop.permute.xlu0 %473
  %477 = vset.pattern.permute.xlu0 0
  %478 = vperm.xlu0 %477, %v24
  %v479 = vpop.permute.xlu0 %478
  %482 = vset.pattern.permute.xlu0 0
  %483 = vperm.xlu0 %482, %v25
  %v484 = vpop.permute.xlu0 %483
  %v486 = vadd.f32 %v462, %v469
  %v487 = vadd.f32 %v463, %v474
  %v488 = vadd.f32 %v464, %v479
  %v489 = vadd.f32 %v465, %v484
  %v490 = vmax.f32 %v486, 0.0
  %v491 = vmax.f32 %v487, 0.0
  %v492 = vmax.f32 %v488, 0.0
  %v493 = vmax.f32 %v489, 0.0
  %vm494 = vcmask 400384
  %495 = vst.msk [vmem:[%s3] sm:$0xff] %vm494, %v490
  %496 = vst.msk [vmem:[%s3 + $0x8] sm:$0xff] %vm494, %v491
  %497 = vst.msk [vmem:[%s3 + $0x10] sm:$0xff] %vm494, %v492
  %498 = vst.msk [vmem:[%s3 + $0x18] sm:$0xff] %vm494, %v493
  %s499 = scalar_lea.vmem %s0, 576
  %v500 = vld [vmem:[%s499] sm:$0xff]
  %v501 = vld [vmem:[%s499 + $0x8] sm:$0xff]
  %v502 = vld [vmem:[%s499 + $0x10] sm:$0xff]
  %v503 = vld [vmem:[%s499 + $0x18] sm:$0xff]
  %v504 = vld [vmem:[%s499 + $0x20] sm:$0xff]
  %v505 = vld [vmem:[%s499 + $0x28] sm:$0xff]
  %v506 = vld [vmem:[%s499 + $0x30] sm:$0xff]
  %v507 = vld [vmem:[%s499 + $0x38] sm:$0xff]
  %v508 = vld [vmem:[%s499 + $0x40] sm:$0xff]
  %v509 = vld [vmem:[%s499 + $0x48] sm:$0xff]
  %v510 = vld [vmem:[%s499 + $0x50] sm:$0xff]
  %v511 = vld [vmem:[%s499 + $0x58] sm:$0xff]
  %v512 = vld [vmem:[%s499 + $0x60] sm:$0xff]
  %v513 = vld [vmem:[%s499 + $0x68] sm:$0xff]
  %v514 = vld [vmem:[%s499 + $0x70] sm:$0xff]
  %v515 = vld [vmem:[%s499 + $0x78] sm:$0xff]
  %v516 = vld [vmem:[%s499 + $0x80] sm:$0xff]
  %v517 = vld [vmem:[%s499 + $0x88] sm:$0xff]
  %518 = vmatprep.subr.mxu0 0.0
  %519 = vmatpush1.msra.mxu0 %v515
  %520 = vmatprep.subr.mxu0 0.0
  %521 = vmatpush1.msra.mxu0 %v514
  %522 = vmatprep.subr.mxu0 0.0
  %523 = vmatpush1.msra.mxu0 %v513
  %524 = vmatprep.subr.mxu0 0.0
  %525 = vmatpush1.msra.mxu0 %v512
  %526 = vmatprep.subr.mxu0 0.0
  %527 = vmatpush1.msra.mxu0 %v511
  %528 = vmatprep.subr.mxu0 0.0
  %529 = vmatpush1.msra.mxu0 %v510
  %530 = vmatprep.subr.mxu0 0.0
  %531 = vmatpush1.msra.mxu0 %v509
  %532 = vmatprep.subr.mxu0 0.0
  %533 = vmatpush1.msra.mxu0 %v508
  %534 = vmatprep.subr.mxu0 0.0
  %535 = vmatpush1.msra.mxu0 %v507
  %536 = vmatprep.subr.mxu0 0.0
  %537 = vmatpush1.msra.mxu0 %v506
  %538 = vmatprep.subr.mxu0 0.0
  %539 = vmatpush1.msra.mxu0 %v505
  %540 = vmatprep.subr.mxu0 0.0
  %541 = vmatpush1.msra.mxu0 %v504
  %542 = vmatprep.subr.mxu0 0.0
  %543 = vmatpush1.msra.mxu0 %v503
  %544 = vmatprep.subr.mxu0 0.0
  %545 = vmatpush1.msra.mxu0 %v502
  %546 = vmatprep.subr.mxu0 0.0
  %547 = vmatpush1.msra.mxu0 %v501
  %548 = vmatprep.subr.mxu0 0.0
  %549 = vmatpush1.msra.mxu0 %v500
  %550 = vmatprep.subr.mxu0 0.0
  %551 = vmatpush2.msra.mxu0 0.0
  %552 = vmatprep.subr.mxu0 0.0
  %553 = vmatpush2.msra.mxu0 0.0
  %554 = vmatprep.subr.mxu0 0.0
  %555 = vmatpush2.msra.mxu0 0.0
  %556 = vmatprep.subr.mxu0 0.0
  %557 = vmatpush2.msra.mxu0 0.0
  %558 = vmatprep.subr.mxu0 0.0
  %559 = vmatpush2.msra.mxu0 0.0
  %560 = vmatprep.subr.mxu0 0.0
  %561 = vmatpush2.msra.mxu0 0.0
  %562 = vmatprep.subr.mxu0 0.0
  %563 = vmatpush2.msra.mxu0 0.0
  %564 = vmatprep.subr.mxu0 0.0
  %565 = vmatpush2.msra.mxu0 0.0
  %566 = vmatprep.subr.mxu0 0.0
  %567 = vmatpush2.msra.mxu0 0.0
  %568 = vmatprep.subr.mxu0 0.0
  %569 = vmatpush2.msra.mxu0 0.0
  %570 = vmatprep.subr.mxu0 0.0
  %571 = vmatpush2.msra.mxu0 0.0
  %572 = vmatprep.subr.mxu0 0.0
  %573 = vmatpush2.msra.mxu0 0.0
  %574 = vmatprep.subr.mxu0 0.0
  %575 = vmatpush2.msra.mxu0 0.0
  %576 = vmatprep.subr.mxu0 0.0
  %577 = vmatpush2.msra.mxu0 0.0
  %578 = vmatprep.subr.mxu0 0.0
  %579 = vmatpush2.msra.mxu0 %v517
  %580 = vmatprep.subr.mxu0 0.0
  %581 = vmatpush2.msra.mxu0 %v516
  %582 = vmatprep.mubr.f32.mxu0 %v46
  %583 = vmatmul.mubr.f32.gmra.mxu0 %v14
  %v584 = vpop.f32.mrf.mxu0
  %v585 = vadd.f32 0.0, %v584
  %v586 = vpop.f32.mrf.mxu0
  %587 = vmatprep.mubr.f32.mxu0 %v49
  %588 = vmatmul.mubr.f32.gmra.mxu0 %v16
  %v589 = vpop.f32.mrf.mxu0
  %v590 = vadd.f32 0.0, %v589
  %v591 = vpop.f32.mrf.mxu0
  %592 = vmatprep.mubr.f32.mxu0 %v52
  %593 = vmatmul.mubr.f32.gmra.mxu0 %v18
  %v594 = vpop.f32.mrf.mxu0
  %v595 = vadd.f32 0.0, %v594
  %v596 = vpop.f32.mrf.mxu0
  %597 = vmatprep.mubr.f32.mxu0 %v55
  %598 = vmatmul.mubr.f32.gmra.mxu0 %v20
  %v599 = vpop.f32.mrf.mxu0
  %v600 = vadd.f32 0.0, %v599
  %v601 = vpop.f32.mrf.mxu0
  %602 = vdwg.mxu0
  %s603 = scalar_lea.vmem %s0, 720
  %v604 = vld [vmem:[%s603] sm:$0xff]
  %v605 = vld [vmem:[%s603 + $0x8] sm:$0xff]
  %v606 = vld [vmem:[%s603 + $0x10] sm:$0xff]
  %v607 = vld [vmem:[%s603 + $0x18] sm:$0xff]
  %v608 = vld [vmem:[%s603 + $0x20] sm:$0xff]
  %v609 = vld [vmem:[%s603 + $0x28] sm:$0xff]
  %v610 = vld [vmem:[%s603 + $0x30] sm:$0xff]
  %v611 = vld [vmem:[%s603 + $0x38] sm:$0xff]
  %v612 = vld [vmem:[%s603 + $0x40] sm:$0xff]
  %v613 = vld [vmem:[%s603 + $0x48] sm:$0xff]
  %v614 = vld [vmem:[%s603 + $0x50] sm:$0xff]
  %v615 = vld [vmem:[%s603 + $0x58] sm:$0xff]
  %v616 = vld [vmem:[%s603 + $0x60] sm:$0xff]
  %v617 = vld [vmem:[%s603 + $0x68] sm:$0xff]
  %v618 = vld [vmem:[%s603 + $0x70] sm:$0xff]
  %v619 = vld [vmem:[%s603 + $0x78] sm:$0xff]
  %v620 = vld [vmem:[%s603 + $0x80] sm:$0xff]
  %v621 = vld [vmem:[%s603 + $0x88] sm:$0xff]
  %622 = vmatprep.subr.mxu0 0.0
  %623 = vmatpush1.msra.mxu0 %v619
  %624 = vmatprep.subr.mxu0 0.0
  %625 = vmatpush1.msra.mxu0 %v618
  %626 = vmatprep.subr.mxu0 0.0
  %627 = vmatpush1.msra.mxu0 %v617
  %628 = vmatprep.subr.mxu0 0.0
  %629 = vmatpush1.msra.mxu0 %v616
  %630 = vmatprep.subr.mxu0 0.0
  %631 = vmatpush1.msra.mxu0 %v615
  %632 = vmatprep.subr.mxu0 0.0
  %633 = vmatpush1.msra.mxu0 %v614
  %634 = vmatprep.subr.mxu0 0.0
  %635 = vmatpush1.msra.mxu0 %v613
  %636 = vmatprep.subr.mxu0 0.0
  %637 = vmatpush1.msra.mxu0 %v612
  %638 = vmatprep.subr.mxu0 0.0
  %639 = vmatpush1.msra.mxu0 %v611
  %640 = vmatprep.subr.mxu0 0.0
  %641 = vmatpush1.msra.mxu0 %v610
  %642 = vmatprep.subr.mxu0 0.0
  %643 = vmatpush1.msra.mxu0 %v609
  %644 = vmatprep.subr.mxu0 0.0
  %645 = vmatpush1.msra.mxu0 %v608
  %646 = vmatprep.subr.mxu0 0.0
  %647 = vmatpush1.msra.mxu0 %v607
  %648 = vmatprep.subr.mxu0 0.0
  %649 = vmatpush1.msra.mxu0 %v606
  %650 = vmatprep.subr.mxu0 0.0
  %651 = vmatpush1.msra.mxu0 %v605
  %652 = vmatprep.subr.mxu0 0.0
  %653 = vmatpush1.msra.mxu0 %v604
  %654 = vmatprep.subr.mxu0 0.0
  %655 = vmatpush2.msra.mxu0 0.0
  %656 = vmatprep.subr.mxu0 0.0
  %657 = vmatpush2.msra.mxu0 0.0
  %658 = vmatprep.subr.mxu0 0.0
  %659 = vmatpush2.msra.mxu0 0.0
  %660 = vmatprep.subr.mxu0 0.0
  %661 = vmatpush2.msra.mxu0 0.0
  %662 = vmatprep.subr.mxu0 0.0
  %663 = vmatpush2.msra.mxu0 0.0
  %664 = vmatprep.subr.mxu0 0.0
  %665 = vmatpush2.msra.mxu0 0.0
  %666 = vmatprep.subr.mxu0 0.0
  %667 = vmatpush2.msra.mxu0 0.0
  %668 = vmatprep.subr.mxu0 0.0
  %669 = vmatpush2.msra.mxu0 0.0
  %670 = vmatprep.subr.mxu0 0.0
  %671 = vmatpush2.msra.mxu0 0.0
  %672 = vmatprep.subr.mxu0 0.0
  %673 = vmatpush2.msra.mxu0 0.0
  %674 = vmatprep.subr.mxu0 0.0
  %675 = vmatpush2.msra.mxu0 0.0
  %676 = vmatprep.subr.mxu0 0.0
  %677 = vmatpush2.msra.mxu0 0.0
  %678 = vmatprep.subr.mxu0 0.0
  %679 = vmatpush2.msra.mxu0 0.0
  %680 = vmatprep.subr.mxu0 0.0
  %681 = vmatpush2.msra.mxu0 0.0
  %682 = vmatprep.subr.mxu0 0.0
  %683 = vmatpush2.msra.mxu0 %v621
  %684 = vmatprep.subr.mxu0 0.0
  %685 = vmatpush2.msra.mxu0 %v620
  %686 = vmatprep.mubr.f32.mxu0 %v46
  %687 = vmatmul.mubr.f32.gmra.mxu0 %v14
  %v688 = vpop.f32.mrf.mxu0
  %v689 = vadd.f32 0.0, %v688
  %v690 = vpop.f32.mrf.mxu0
  %691 = vmatprep.mubr.f32.mxu0 %v49
  %692 = vmatmul.mubr.f32.gmra.mxu0 %v16
  %v693 = vpop.f32.mrf.mxu0
  %v694 = vadd.f32 0.0, %v693
  %v695 = vpop.f32.mrf.mxu0
  %696 = vmatprep.mubr.f32.mxu0 %v52
  %697 = vmatmul.mubr.f32.gmra.mxu0 %v18
  %v698 = vpop.f32.mrf.mxu0
  %v699 = vadd.f32 0.0, %v698
  %v700 = vpop.f32.mrf.mxu0
  %701 = vmatprep.mubr.f32.mxu0 %v55
  %702 = vmatmul.mubr.f32.gmra.mxu0 %v20
  %v703 = vpop.f32.mrf.mxu0
  %v704 = vadd.f32 0.0, %v703
  %v705 = vpop.f32.mrf.mxu0
  %706 = vdwg.mxu0
  %s707 = scalar_lea.vmem %s0, 864
  %v708 = vld [vmem:[%s707] sm:$0xff]
  %v709 = vld [vmem:[%s707 + $0x8] sm:$0xff]
  %v710 = vld [vmem:[%s707 + $0x10] sm:$0xff]
  %v711 = vld [vmem:[%s707 + $0x18] sm:$0xff]
  %v712 = vld [vmem:[%s707 + $0x20] sm:$0xff]
  %v713 = vld [vmem:[%s707 + $0x28] sm:$0xff]
  %v714 = vld [vmem:[%s707 + $0x30] sm:$0xff]
  %v715 = vld [vmem:[%s707 + $0x38] sm:$0xff]
  %v716 = vld [vmem:[%s707 + $0x40] sm:$0xff]
  %v717 = vld [vmem:[%s707 + $0x48] sm:$0xff]
  %v718 = vld [vmem:[%s707 + $0x50] sm:$0xff]
  %v719 = vld [vmem:[%s707 + $0x58] sm:$0xff]
  %v720 = vld [vmem:[%s707 + $0x60] sm:$0xff]
  %v721 = vld [vmem:[%s707 + $0x68] sm:$0xff]
  %v722 = vld [vmem:[%s707 + $0x70] sm:$0xff]
  %v723 = vld [vmem:[%s707 + $0x78] sm:$0xff]
  %v724 = vld [vmem:[%s707 + $0x80] sm:$0xff]
  %v725 = vld [vmem:[%s707 + $0x88] sm:$0xff]
  %726 = vmatprep.subr.mxu0 0.0
  %727 = vmatpush1.msra.mxu0 %v723
  %728 = vmatprep.subr.mxu0 0.0
  %729 = vmatpush1.msra.mxu0 %v722
  %730 = vmatprep.subr.mxu0 0.0
  %731 = vmatpush1.msra.mxu0 %v721
  %732 = vmatprep.subr.mxu0 0.0
  %733 = vmatpush1.msra.mxu0 %v720
  %734 = vmatprep.subr.mxu0 0.0
  %735 = vmatpush1.msra.mxu0 %v719
  %736 = vmatprep.subr.mxu0 0.0
  %737 = vmatpush1.msra.mxu0 %v718
  %738 = vmatprep.subr.mxu0 0.0
  %739 = vmatpush1.msra.mxu0 %v717
  %740 = vmatprep.subr.mxu0 0.0
  %741 = vmatpush1.msra.mxu0 %v716
  %742 = vmatprep.subr.mxu0 0.0
  %743 = vmatpush1.msra.mxu0 %v715
  %744 = vmatprep.subr.mxu0 0.0
  %745 = vmatpush1.msra.mxu0 %v714
  %746 = vmatprep.subr.mxu0 0.0
  %747 = vmatpush1.msra.mxu0 %v713
  %748 = vmatprep.subr.mxu0 0.0
  %749 = vmatpush1.msra.mxu0 %v712
  %750 = vmatprep.subr.mxu0 0.0
  %751 = vmatpush1.msra.mxu0 %v711
  %752 = vmatprep.subr.mxu0 0.0
  %753 = vmatpush1.msra.mxu0 %v710
  %754 = vmatprep.subr.mxu0 0.0
  %755 = vmatpush1.msra.mxu0 %v709
  %756 = vmatprep.subr.mxu0 0.0
  %757 = vmatpush1.msra.mxu0 %v708
  %758 = vmatprep.subr.mxu0 0.0
  %759 = vmatpush2.msra.mxu0 0.0
  %760 = vmatprep.subr.mxu0 0.0
  %761 = vmatpush2.msra.mxu0 0.0
  %762 = vmatprep.subr.mxu0 0.0
  %763 = vmatpush2.msra.mxu0 0.0
  %764 = vmatprep.subr.mxu0 0.0
  %765 = vmatpush2.msra.mxu0 0.0
  %766 = vmatprep.subr.mxu0 0.0
  %767 = vmatpush2.msra.mxu0 0.0
  %768 = vmatprep.subr.mxu0 0.0
  %769 = vmatpush2.msra.mxu0 0.0
  %770 = vmatprep.subr.mxu0 0.0
  %771 = vmatpush2.msra.mxu0 0.0
  %772 = vmatprep.subr.mxu0 0.0
  %773 = vmatpush2.msra.mxu0 0.0
  %774 = vmatprep.subr.mxu0 0.0
  %775 = vmatpush2.msra.mxu0 0.0
  %776 = vmatprep.subr.mxu0 0.0
  %777 = vmatpush2.msra.mxu0 0.0
  %778 = vmatprep.subr.mxu0 0.0
  %779 = vmatpush2.msra.mxu0 0.0
  %780 = vmatprep.subr.mxu0 0.0
  %781 = vmatpush2.msra.mxu0 0.0
  %782 = vmatprep.subr.mxu0 0.0
  %783 = vmatpush2.msra.mxu0 0.0
  %784 = vmatprep.subr.mxu0 0.0
  %785 = vmatpush2.msra.mxu0 0.0
  %786 = vmatprep.subr.mxu0 0.0
  %787 = vmatpush2.msra.mxu0 %v725
  %788 = vmatprep.subr.mxu0 0.0
  %789 = vmatpush2.msra.mxu0 %v724
  %790 = vmatprep.mubr.f32.mxu0 %v46
  %791 = vmatmul.mubr.f32.gmra.mxu0 %v14
  %v792 = vpop.f32.mrf.mxu0
  %v793 = vadd.f32 0.0, %v792
  %v794 = vpop.f32.mrf.mxu0
  %795 = vmatprep.mubr.f32.mxu0 %v49
  %796 = vmatmul.mubr.f32.gmra.mxu0 %v16
  %v797 = vpop.f32.mrf.mxu0
  %v798 = vadd.f32 0.0, %v797
  %v799 = vpop.f32.mrf.mxu0
  %800 = vmatprep.mubr.f32.mxu0 %v52
  %801 = vmatmul.mubr.f32.gmra.mxu0 %v18
  %v802 = vpop.f32.mrf.mxu0
  %v803 = vadd.f32 0.0, %v802
  %v804 = vpop.f32.mrf.mxu0
  %805 = vmatprep.mubr.f32.mxu0 %v55
  %806 = vmatmul.mubr.f32.gmra.mxu0 %v20
  %v807 = vpop.f32.mrf.mxu0
  %v808 = vadd.f32 0.0, %v807
  %v809 = vpop.f32.mrf.mxu0
  %810 = vdwg.mxu0
  %s811 = scalar_lea.vmem %s0, 1008
  %v812 = vld [vmem:[%s811] sm:$0xff]
  %v813 = vld [vmem:[%s811 + $0x8] sm:$0xff]
  %v814 = vld [vmem:[%s811 + $0x10] sm:$0xff]
  %v815 = vld [vmem:[%s811 + $0x18] sm:$0xff]
  %v816 = vld [vmem:[%s811 + $0x20] sm:$0xff]
  %v817 = vld [vmem:[%s811 + $0x28] sm:$0xff]
  %v818 = vld [vmem:[%s811 + $0x30] sm:$0xff]
  %v819 = vld [vmem:[%s811 + $0x38] sm:$0xff]
  %v820 = vld [vmem:[%s811 + $0x40] sm:$0xff]
  %v821 = vld [vmem:[%s811 + $0x48] sm:$0xff]
  %v822 = vld [vmem:[%s811 + $0x50] sm:$0xff]
  %v823 = vld [vmem:[%s811 + $0x58] sm:$0xff]
  %v824 = vld [vmem:[%s811 + $0x60] sm:$0xff]
  %v825 = vld [vmem:[%s811 + $0x68] sm:$0xff]
  %v826 = vld [vmem:[%s811 + $0x70] sm:$0xff]
  %v827 = vld [vmem:[%s811 + $0x78] sm:$0xff]
  %v828 = vld [vmem:[%s811 + $0x80] sm:$0xff]
  %v829 = vld [vmem:[%s811 + $0x88] sm:$0xff]
  %830 = vmatprep.subr.mxu0 0.0
  %831 = vmatpush1.msra.mxu0 %v827
  %832 = vmatprep.subr.mxu0 0.0
  %833 = vmatpush1.msra.mxu0 %v826
  %834 = vmatprep.subr.mxu0 0.0
  %835 = vmatpush1.msra.mxu0 %v825
  %836 = vmatprep.subr.mxu0 0.0
  %837 = vmatpush1.msra.mxu0 %v824
  %838 = vmatprep.subr.mxu0 0.0
  %839 = vmatpush1.msra.mxu0 %v823
  %840 = vmatprep.subr.mxu0 0.0
  %841 = vmatpush1.msra.mxu0 %v822
  %842 = vmatprep.subr.mxu0 0.0
  %843 = vmatpush1.msra.mxu0 %v821
  %844 = vmatprep.subr.mxu0 0.0
  %845 = vmatpush1.msra.mxu0 %v820
  %846 = vmatprep.subr.mxu0 0.0
  %847 = vmatpush1.msra.mxu0 %v819
  %848 = vmatprep.subr.mxu0 0.0
  %849 = vmatpush1.msra.mxu0 %v818
  %850 = vmatprep.subr.mxu0 0.0
  %851 = vmatpush1.msra.mxu0 %v817
  %852 = vmatprep.subr.mxu0 0.0
  %853 = vmatpush1.msra.mxu0 %v816
  %854 = vmatprep.subr.mxu0 0.0
  %855 = vmatpush1.msra.mxu0 %v815
  %856 = vmatprep.subr.mxu0 0.0
  %857 = vmatpush1.msra.mxu0 %v814
  %858 = vmatprep.subr.mxu0 0.0
  %859 = vmatpush1.msra.mxu0 %v813
  %860 = vmatprep.subr.mxu0 0.0
  %861 = vmatpush1.msra.mxu0 %v812
  %862 = vmatprep.subr.mxu0 0.0
  %863 = vmatpush2.msra.mxu0 0.0
  %864 = vmatprep.subr.mxu0 0.0
  %865 = vmatpush2.msra.mxu0 0.0
  %866 = vmatprep.subr.mxu0 0.0
  %867 = vmatpush2.msra.mxu0 0.0
  %868 = vmatprep.subr.mxu0 0.0
  %869 = vmatpush2.msra.mxu0 0.0
  %870 = vmatprep.subr.mxu0 0.0
  %871 = vmatpush2.msra.mxu0 0.0
  %872 = vmatprep.subr.mxu0 0.0
  %873 = vmatpush2.msra.mxu0 0.0
  %874 = vmatprep.subr.mxu0 0.0
  %875 = vmatpush2.msra.mxu0 0.0
  %876 = vmatprep.subr.mxu0 0.0
  %877 = vmatpush2.msra.mxu0 0.0
  %878 = vmatprep.subr.mxu0 0.0
  %879 = vmatpush2.msra.mxu0 0.0
  %880 = vmatprep.subr.mxu0 0.0
  %881 = vmatpush2.msra.mxu0 0.0
  %882 = vmatprep.subr.mxu0 0.0
  %883 = vmatpush2.msra.mxu0 0.0
  %884 = vmatprep.subr.mxu0 0.0
  %885 = vmatpush2.msra.mxu0 0.0
  %886 = vmatprep.subr.mxu0 0.0
  %887 = vmatpush2.msra.mxu0 0.0
  %888 = vmatprep.subr.mxu0 0.0
  %889 = vmatpush2.msra.mxu0 0.0
  %890 = vmatprep.subr.mxu0 0.0
  %891 = vmatpush2.msra.mxu0 %v829
  %892 = vmatprep.subr.mxu0 0.0
  %893 = vmatpush2.msra.mxu0 %v828
  %894 = vmatprep.mubr.f32.mxu0 %v46
  %895 = vmatmul.mubr.f32.gmra.mxu0 %v14
  %v896 = vpop.f32.mrf.mxu0
  %v897 = vadd.f32 0.0, %v896
  %v898 = vpop.f32.mrf.mxu0
  %899 = vmatprep.mubr.f32.mxu0 %v49
  %900 = vmatmul.mubr.f32.gmra.mxu0 %v16
  %v901 = vpop.f32.mrf.mxu0
  %v902 = vadd.f32 0.0, %v901
  %v903 = vpop.f32.mrf.mxu0
  %904 = vmatprep.mubr.f32.mxu0 %v52
  %905 = vmatmul.mubr.f32.gmra.mxu0 %v18
  %v906 = vpop.f32.mrf.mxu0
  %v907 = vadd.f32 0.0, %v906
  %v908 = vpop.f32.mrf.mxu0
  %909 = vmatprep.mubr.f32.mxu0 %v55
  %910 = vmatmul.mubr.f32.gmra.mxu0 %v20
  %v911 = vpop.f32.mrf.mxu0
  %v912 = vadd.f32 0.0, %v911
  %v913 = vpop.f32.mrf.mxu0
  %914 = vdwg.mxu0
  %v915 = vmax.f32 %v585, %v689
  %v916 = vmax.f32 %v590, %v694
  %v917 = vmax.f32 %v595, %v699
  %v918 = vmax.f32 %v600, %v704
  %v919 = vmax.f32 %v793, %v897
  %v920 = vmax.f32 %v798, %v902
  %v921 = vmax.f32 %v803, %v907
  %v922 = vmax.f32 %v808, %v912
  %v923 = vmax.f32 %v915, %v919
  %v924 = vmax.f32 %v916, %v920
  %v925 = vmax.f32 %v917, %v921
  %v926 = vmax.f32 %v918, %v922
  %v927 = vadd.f32 %v923, %v469
  %v928 = vadd.f32 %v924, %v474
  %v929 = vadd.f32 %v925, %v479
  %v930 = vadd.f32 %v926, %v484
  %v931 = vmax.f32 %v927, 0.0
  %v932 = vmax.f32 %v928, 0.0
  %v933 = vmax.f32 %v929, 0.0
  %v934 = vmax.f32 %v930, 0.0
  %s935 = scalar_lea.vmem %s3, 32
  %936 = vst.msk [vmem:[%s935] sm:$0xff] %vm494, %v931
  %937 = vst.msk [vmem:[%s935 + $0x8] sm:$0xff] %vm494, %v932
  %938 = vst.msk [vmem:[%s935 + $0x10] sm:$0xff] %vm494, %v933
  %939 = vst.msk [vmem:[%s935 + $0x18] sm:$0xff] %vm494, %v934
  %s940 = scalar_lea.vmem %s0, 1152
  %v941 = vld [vmem:[%s940] sm:$0xff]
  %v942 = vld [vmem:[%s940 + $0x8] sm:$0xff]
  %v943 = vld [vmem:[%s940 + $0x10] sm:$0xff]
  %v944 = vld [vmem:[%s940 + $0x18] sm:$0xff]
  %v945 = vld [vmem:[%s940 + $0x20] sm:$0xff]
  %v946 = vld [vmem:[%s940 + $0x28] sm:$0xff]
  %v947 = vld [vmem:[%s940 + $0x30] sm:$0xff]
  %v948 = vld [vmem:[%s940 + $0x38] sm:$0xff]
  %v949 = vld [vmem:[%s940 + $0x40] sm:$0xff]
  %v950 = vld [vmem:[%s940 + $0x48] sm:$0xff]
  %v951 = vld [vmem:[%s940 + $0x50] sm:$0xff]
  %v952 = vld [vmem:[%s940 + $0x58] sm:$0xff]
  %v953 = vld [vmem:[%s940 + $0x60] sm:$0xff]
  %v954 = vld [vmem:[%s940 + $0x68] sm:$0xff]
  %v955 = vld [vmem:[%s940 + $0x70] sm:$0xff]
  %v956 = vld [vmem:[%s940 + $0x78] sm:$0xff]
  %v957 = vld [vmem:[%s940 + $0x80] sm:$0xff]
  %v958 = vld [vmem:[%s940 + $0x88] sm:$0xff]
  %959 = vmatprep.subr.mxu0 0.0
  %960 = vmatpush1.msra.mxu0 %v956
  %961 = vmatprep.subr.mxu0 0.0
  %962 = vmatpush1.msra.mxu0 %v955
  %963 = vmatprep.subr.mxu0 0.0
  %964 = vmatpush1.msra.mxu0 %v954
  %965 = vmatprep.subr.mxu0 0.0
  %966 = vmatpush1.msra.mxu0 %v953
  %967 = vmatprep.subr.mxu0 0.0
  %968 = vmatpush1.msra.mxu0 %v952
  %969 = vmatprep.subr.mxu0 0.0
  %970 = vmatpush1.msra.mxu0 %v951
  %971 = vmatprep.subr.mxu0 0.0
  %972 = vmatpush1.msra.mxu0 %v950
  %973 = vmatprep.subr.mxu0 0.0
  %974 = vmatpush1.msra.mxu0 %v949
  %975 = vmatprep.subr.mxu0 0.0
  %976 = vmatpush1.msra.mxu0 %v948
  %977 = vmatprep.subr.mxu0 0.0
  %978 = vmatpush1.msra.mxu0 %v947
  %979 = vmatprep.subr.mxu0 0.0
  %980 = vmatpush1.msra.mxu0 %v946
  %981 = vmatprep.subr.mxu0 0.0
  %982 = vmatpush1.msra.mxu0 %v945
  %983 = vmatprep.subr.mxu0 0.0
  %984 = vmatpush1.msra.mxu0 %v944
  %985 = vmatprep.subr.mxu0 0.0
  %986 = vmatpush1.msra.mxu0 %v943
  %987 = vmatprep.subr.mxu0 0.0
  %988 = vmatpush1.msra.mxu0 %v942
  %989 = vmatprep.subr.mxu0 0.0
  %990 = vmatpush1.msra.mxu0 %v941
  %991 = vmatprep.subr.mxu0 0.0
  %992 = vmatpush2.msra.mxu0 0.0
  %993 = vmatprep.subr.mxu0 0.0
  %994 = vmatpush2.msra.mxu0 0.0
  %995 = vmatprep.subr.mxu0 0.0
  %996 = vmatpush2.msra.mxu0 0.0
  %997 = vmatprep.subr.mxu0 0.0
  %998 = vmatpush2.msra.mxu0 0.0
  %999 = vmatprep.subr.mxu0 0.0
  %1000 = vmatpush2.msra.mxu0 0.0
  %1001 = vmatprep.subr.mxu0 0.0
  %1002 = vmatpush2.msra.mxu0 0.0
  %1003 = vmatprep.subr.mxu0 0.0
  %1004 = vmatpush2.msra.mxu0 0.0
  %1005 = vmatprep.subr.mxu0 0.0
  %1006 = vmatpush2.msra.mxu0 0.0
  %1007 = vmatprep.subr.mxu0 0.0
  %1008 = vmatpush2.msra.mxu0 0.0
  %1009 = vmatprep.subr.mxu0 0.0
  %1010 = vmatpush2.msra.mxu0 0.0
  %1011 = vmatprep.subr.mxu0 0.0
  %1012 = vmatpush2.msra.mxu0 0.0
  %1013 = vmatprep.subr.mxu0 0.0
  %1014 = vmatpush2.msra.mxu0 0.0
  %1015 = vmatprep.subr.mxu0 0.0
  %1016 = vmatpush2.msra.mxu0 0.0
  %1017 = vmatprep.subr.mxu0 0.0
  %1018 = vmatpush2.msra.mxu0 0.0
  %1019 = vmatprep.subr.mxu0 0.0
  %1020 = vmatpush2.msra.mxu0 %v958
  %1021 = vmatprep.subr.mxu0 0.0
  %1022 = vmatpush2.msra.mxu0 %v957
  %1023 = vmatprep.mubr.f32.mxu0 %v46
  %1024 = vmatmul.mubr.f32.gmra.mxu0 %v14
  %v1025 = vpop.f32.mrf.mxu0
  %v1026 = vadd.f32 0.0, %v1025
  %v1027 = vpop.f32.mrf.mxu0
  %1028 = vmatprep.mubr.f32.mxu0 %v49
  %1029 = vmatmul.mubr.f32.gmra.mxu0 %v16
  %v1030 = vpop.f32.mrf.mxu0
  %v1031 = vadd.f32 0.0, %v1030
  %v1032 = vpop.f32.mrf.mxu0
  %1033 = vmatprep.mubr.f32.mxu0 %v52
  %1034 = vmatmul.mubr.f32.gmra.mxu0 %v18
  %v1035 = vpop.f32.mrf.mxu0
  %v1036 = vadd.f32 0.0, %v1035
  %v1037 = vpop.f32.mrf.mxu0
  %1038 = vmatprep.mubr.f32.mxu0 %v55
  %1039 = vmatmul.mubr.f32.gmra.mxu0 %v20
  %v1040 = vpop.f32.mrf.mxu0
  %v1041 = vadd.f32 0.0, %v1040
  %v1042 = vpop.f32.mrf.mxu0
  %1043 = vdwg.mxu0
  %s1044 = scalar_lea.vmem %s0, 1296
  %v1045 = vld [vmem:[%s1044] sm:$0xff]
  %v1046 = vld [vmem:[%s1044 + $0x8] sm:$0xff]
  %v1047 = vld [vmem:[%s1044 + $0x10] sm:$0xff]
  %v1048 = vld [vmem:[%s1044 + $0x18] sm:$0xff]
  %v1049 = vld [vmem:[%s1044 + $0x20] sm:$0xff]
  %v1050 = vld [vmem:[%s1044 + $0x28] sm:$0xff]
  %v1051 = vld [vmem:[%s1044 + $0x30] sm:$0xff]
  %v1052 = vld [vmem:[%s1044 + $0x38] sm:$0xff]
  %v1053 = vld [vmem:[%s1044 + $0x40] sm:$0xff]
  %v1054 = vld [vmem:[%s1044 + $0x48] sm:$0xff]
  %v1055 = vld [vmem:[%s1044 + $0x50] sm:$0xff]
  %v1056 = vld [vmem:[%s1044 + $0x58] sm:$0xff]
  %v1057 = vld [vmem:[%s1044 + $0x60] sm:$0xff]
  %v1058 = vld [vmem:[%s1044 + $0x68] sm:$0xff]
  %v1059 = vld [vmem:[%s1044 + $0x70] sm:$0xff]
  %v1060 = vld [vmem:[%s1044 + $0x78] sm:$0xff]
  %v1061 = vld [vmem:[%s1044 + $0x80] sm:$0xff]
  %v1062 = vld [vmem:[%s1044 + $0x88] sm:$0xff]
  %1063 = vmatprep.subr.mxu0 0.0
  %1064 = vmatpush1.msra.mxu0 %v1060
  %1065 = vmatprep.subr.mxu0 0.0
  %1066 = vmatpush1.msra.mxu0 %v1059
  %1067 = vmatprep.subr.mxu0 0.0
  %1068 = vmatpush1.msra.mxu0 %v1058
  %1069 = vmatprep.subr.mxu0 0.0
  %1070 = vmatpush1.msra.mxu0 %v1057
  %1071 = vmatprep.subr.mxu0 0.0
  %1072 = vmatpush1.msra.mxu0 %v1056
  %1073 = vmatprep.subr.mxu0 0.0
  %1074 = vmatpush1.msra.mxu0 %v1055
  %1075 = vmatprep.subr.mxu0 0.0
  %1076 = vmatpush1.msra.mxu0 %v1054
  %1077 = vmatprep.subr.mxu0 0.0
  %1078 = vmatpush1.msra.mxu0 %v1053
  %1079 = vmatprep.subr.mxu0 0.0
  %1080 = vmatpush1.msra.mxu0 %v1052
  %1081 = vmatprep.subr.mxu0 0.0
  %1082 = vmatpush1.msra.mxu0 %v1051
  %1083 = vmatprep.subr.mxu0 0.0
  %1084 = vmatpush1.msra.mxu0 %v1050
  %1085 = vmatprep.subr.mxu0 0.0
  %1086 = vmatpush1.msra.mxu0 %v1049
  %1087 = vmatprep.subr.mxu0 0.0
  %1088 = vmatpush1.msra.mxu0 %v1048
  %1089 = vmatprep.subr.mxu0 0.0
  %1090 = vmatpush1.msra.mxu0 %v1047
  %1091 = vmatprep.subr.mxu0 0.0
  %1092 = vmatpush1.msra.mxu0 %v1046
  %1093 = vmatprep.subr.mxu0 0.0
  %1094 = vmatpush1.msra.mxu0 %v1045
  %1095 = vmatprep.subr.mxu0 0.0
  %1096 = vmatpush2.msra.mxu0 0.0
  %1097 = vmatprep.subr.mxu0 0.0
  %1098 = vmatpush2.msra.mxu0 0.0
  %1099 = vmatprep.subr.mxu0 0.0
  %1100 = vmatpush2.msra.mxu0 0.0
  %1101 = vmatprep.subr.mxu0 0.0
  %1102 = vmatpush2.msra.mxu0 0.0
  %1103 = vmatprep.subr.mxu0 0.0
  %1104 = vmatpush2.msra.mxu0 0.0
  %1105 = vmatprep.subr.mxu0 0.0
  %1106 = vmatpush2.msra.mxu0 0.0
  %1107 = vmatprep.subr.mxu0 0.0
  %1108 = vmatpush2.msra.mxu0 0.0
  %1109 = vmatprep.subr.mxu0 0.0
  %1110 = vmatpush2.msra.mxu0 0.0
  %1111 = vmatprep.subr.mxu0 0.0
  %1112 = vmatpush2.msra.mxu0 0.0
  %1113 = vmatprep.subr.mxu0 0.0
  %1114 = vmatpush2.msra.mxu0 0.0
  %1115 = vmatprep.subr.mxu0 0.0
  %1116 = vmatpush2.msra.mxu0 0.0
  %1117 = vmatprep.subr.mxu0 0.0
  %1118 = vmatpush2.msra.mxu0 0.0
  %1119 = vmatprep.subr.mxu0 0.0
  %1120 = vmatpush2.msra.mxu0 0.0
  %1121 = vmatprep.subr.mxu0 0.0
  %1122 = vmatpush2.msra.mxu0 0.0
  %1123 = vmatprep.subr.mxu0 0.0
  %1124 = vmatpush2.msra.mxu0 %v1062
  %1125 = vmatprep.subr.mxu0 0.0
  %1126 = vmatpush2.msra.mxu0 %v1061
  %1127 = vmatprep.mubr.f32.mxu0 %v46
  %1128 = vmatmul.mubr.f32.gmra.mxu0 %v14
  %v1129 = vpop.f32.mrf.mxu0
  %v1130 = vadd.f32 0.0, %v1129
  %v1131 = vpop.f32.mrf.mxu0
  %1132 = vmatprep.mubr.f32.mxu0 %v49
  %1133 = vmatmul.mubr.f32.gmra.mxu0 %v16
  %v1134 = vpop.f32.mrf.mxu0
  %v1135 = vadd.f32 0.0, %v1134
  %v1136 = vpop.f32.mrf.mxu0
  %1137 = vmatprep.mubr.f32.mxu0 %v52
  %1138 = vmatmul.mubr.f32.gmra.mxu0 %v18
  %v1139 = vpop.f32.mrf.mxu0
  %v1140 = vadd.f32 0.0, %v1139
  %v1141 = vpop.f32.mrf.mxu0
  %1142 = vmatprep.mubr.f32.mxu0 %v55
  %1143 = vmatmul.mubr.f32.gmra.mxu0 %v20
  %v1144 = vpop.f32.mrf.mxu0
  %v1145 = vadd.f32 0.0, %v1144
  %v1146 = vpop.f32.mrf.mxu0
  %1147 = vdwg.mxu0
  %s1148 = scalar_lea.vmem %s0, 1440
  %v1149 = vld [vmem:[%s1148] sm:$0xff]
  %v1150 = vld [vmem:[%s1148 + $0x8] sm:$0xff]
  %v1151 = vld [vmem:[%s1148 + $0x10] sm:$0xff]
  %v1152 = vld [vmem:[%s1148 + $0x18] sm:$0xff]
  %v1153 = vld [vmem:[%s1148 + $0x20] sm:$0xff]
  %v1154 = vld [vmem:[%s1148 + $0x28] sm:$0xff]
  %v1155 = vld [vmem:[%s1148 + $0x30] sm:$0xff]
  %v1156 = vld [vmem:[%s1148 + $0x38] sm:$0xff]
  %v1157 = vld [vmem:[%s1148 + $0x40] sm:$0xff]
  %v1158 = vld [vmem:[%s1148 + $0x48] sm:$0xff]
  %v1159 = vld [vmem:[%s1148 + $0x50] sm:$0xff]
  %v1160 = vld [vmem:[%s1148 + $0x58] sm:$0xff]
  %v1161 = vld [vmem:[%s1148 + $0x60] sm:$0xff]
  %v1162 = vld [vmem:[%s1148 + $0x68] sm:$0xff]
  %v1163 = vld [vmem:[%s1148 + $0x70] sm:$0xff]
  %v1164 = vld [vmem:[%s1148 + $0x78] sm:$0xff]
  %v1165 = vld [vmem:[%s1148 + $0x80] sm:$0xff]
  %v1166 = vld [vmem:[%s1148 + $0x88] sm:$0xff]
  %1167 = vmatprep.subr.mxu0 0.0
  %1168 = vmatpush1.msra.mxu0 %v1164
  %1169 = vmatprep.subr.mxu0 0.0
  %1170 = vmatpush1.msra.mxu0 %v1163
  %1171 = vmatprep.subr.mxu0 0.0
  %1172 = vmatpush1.msra.mxu0 %v1162
  %1173 = vmatprep.subr.mxu0 0.0
  %1174 = vmatpush1.msra.mxu0 %v1161
  %1175 = vmatprep.subr.mxu0 0.0
  %1176 = vmatpush1.msra.mxu0 %v1160
  %1177 = vmatprep.subr.mxu0 0.0
  %1178 = vmatpush1.msra.mxu0 %v1159
  %1179 = vmatprep.subr.mxu0 0.0
  %1180 = vmatpush1.msra.mxu0 %v1158
  %1181 = vmatprep.subr.mxu0 0.0
  %1182 = vmatpush1.msra.mxu0 %v1157
  %1183 = vmatprep.subr.mxu0 0.0
  %1184 = vmatpush1.msra.mxu0 %v1156
  %1185 = vmatprep.subr.mxu0 0.0
  %1186 = vmatpush1.msra.mxu0 %v1155
  %1187 = vmatprep.subr.mxu0 0.0
  %1188 = vmatpush1.msra.mxu0 %v1154
  %1189 = vmatprep.subr.mxu0 0.0
  %1190 = vmatpush1.msra.mxu0 %v1153
  %1191 = vmatprep.subr.mxu0 0.0
  %1192 = vmatpush1.msra.mxu0 %v1152
  %1193 = vmatprep.subr.mxu0 0.0
  %1194 = vmatpush1.msra.mxu0 %v1151
  %1195 = vmatprep.subr.mxu0 0.0
  %1196 = vmatpush1.msra.mxu0 %v1150
  %1197 = vmatprep.subr.mxu0 0.0
  %1198 = vmatpush1.msra.mxu0 %v1149
  %1199 = vmatprep.subr.mxu0 0.0
  %1200 = vmatpush2.msra.mxu0 0.0
  %1201 = vmatprep.subr.mxu0 0.0
  %1202 = vmatpush2.msra.mxu0 0.0
  %1203 = vmatprep.subr.mxu0 0.0
  %1204 = vmatpush2.msra.mxu0 0.0
  %1205 = vmatprep.subr.mxu0 0.0
  %1206 = vmatpush2.msra.mxu0 0.0
  %1207 = vmatprep.subr.mxu0 0.0
  %1208 = vmatpush2.msra.mxu0 0.0
  %1209 = vmatprep.subr.mxu0 0.0
  %1210 = vmatpush2.msra.mxu0 0.0
  %1211 = vmatprep.subr.mxu0 0.0
  %1212 = vmatpush2.msra.mxu0 0.0
  %1213 = vmatprep.subr.mxu0 0.0
  %1214 = vmatpush2.msra.mxu0 0.0
  %1215 = vmatprep.subr.mxu0 0.0
  %1216 = vmatpush2.msra.mxu0 0.0
  %1217 = vmatprep.subr.mxu0 0.0
  %1218 = vmatpush2.msra.mxu0 0.0
  %1219 = vmatprep.subr.mxu0 0.0
  %1220 = vmatpush2.msra.mxu0 0.0
  %1221 = vmatprep.subr.mxu0 0.0
  %1222 = vmatpush2.msra.mxu0 0.0
  %1223 = vmatprep.subr.mxu0 0.0
  %1224 = vmatpush2.msra.mxu0 0.0
  %1225 = vmatprep.subr.mxu0 0.0
  %1226 = vmatpush2.msra.mxu0 0.0
  %1227 = vmatprep.subr.mxu0 0.0
  %1228 = vmatpush2.msra.mxu0 %v1166
  %1229 = vmatprep.subr.mxu0 0.0
  %1230 = vmatpush2.msra.mxu0 %v1165
  %1231 = vmatprep.mubr.f32.mxu0 %v46
  %1232 = vmatmul.mubr.f32.gmra.mxu0 %v14
  %v1233 = vpop.f32.mrf.mxu0
  %v1234 = vadd.f32 0.0, %v1233
  %v1235 = vpop.f32.mrf.mxu0
  %1236 = vmatprep.mubr.f32.mxu0 %v49
  %1237 = vmatmul.mubr.f32.gmra.mxu0 %v16
  %v1238 = vpop.f32.mrf.mxu0
  %v1239 = vadd.f32 0.0, %v1238
  %v1240 = vpop.f32.mrf.mxu0
  %1241 = vmatprep.mubr.f32.mxu0 %v52
  %1242 = vmatmul.mubr.f32.gmra.mxu0 %v18
  %v1243 = vpop.f32.mrf.mxu0
  %v1244 = vadd.f32 0.0, %v1243
  %v1245 = vpop.f32.mrf.mxu0
  %1246 = vmatprep.mubr.f32.mxu0 %v55
  %1247 = vmatmul.mubr.f32.gmra.mxu0 %v20
  %v1248 = vpop.f32.mrf.mxu0
  %v1249 = vadd.f32 0.0, %v1248
  %v1250 = vpop.f32.mrf.mxu0
  %1251 = vdwg.mxu0
  %s1252 = scalar_lea.vmem %s0, 1584
  %v1253 = vld [vmem:[%s1252] sm:$0xff]
  %v1254 = vld [vmem:[%s1252 + $0x8] sm:$0xff]
  %v1255 = vld [vmem:[%s1252 + $0x10] sm:$0xff]
  %v1256 = vld [vmem:[%s1252 + $0x18] sm:$0xff]
  %v1257 = vld [vmem:[%s1252 + $0x20] sm:$0xff]
  %v1258 = vld [vmem:[%s1252 + $0x28] sm:$0xff]
  %v1259 = vld [vmem:[%s1252 + $0x30] sm:$0xff]
  %v1260 = vld [vmem:[%s1252 + $0x38] sm:$0xff]
  %v1261 = vld [vmem:[%s1252 + $0x40] sm:$0xff]
  %v1262 = vld [vmem:[%s1252 + $0x48] sm:$0xff]
  %v1263 = vld [vmem:[%s1252 + $0x50] sm:$0xff]
  %v1264 = vld [vmem:[%s1252 + $0x58] sm:$0xff]
  %v1265 = vld [vmem:[%s1252 + $0x60] sm:$0xff]
  %v1266 = vld [vmem:[%s1252 + $0x68] sm:$0xff]
  %v1267 = vld [vmem:[%s1252 + $0x70] sm:$0xff]
  %v1268 = vld [vmem:[%s1252 + $0x78] sm:$0xff]
  %v1269 = vld [vmem:[%s1252 + $0x80] sm:$0xff]
  %v1270 = vld [vmem:[%s1252 + $0x88] sm:$0xff]
  %1271 = vmatprep.subr.mxu0 0.0
  %1272 = vmatpush1.msra.mxu0 %v1268
  %1273 = vmatprep.subr.mxu0 0.0
  %1274 = vmatpush1.msra.mxu0 %v1267
  %1275 = vmatprep.subr.mxu0 0.0
  %1276 = vmatpush1.msra.mxu0 %v1266
  %1277 = vmatprep.subr.mxu0 0.0
  %1278 = vmatpush1.msra.mxu0 %v1265
  %1279 = vmatprep.subr.mxu0 0.0
  %1280 = vmatpush1.msra.mxu0 %v1264
  %1281 = vmatprep.subr.mxu0 0.0
  %1282 = vmatpush1.msra.mxu0 %v1263
  %1283 = vmatprep.subr.mxu0 0.0
  %1284 = vmatpush1.msra.mxu0 %v1262
  %1285 = vmatprep.subr.mxu0 0.0
  %1286 = vmatpush1.msra.mxu0 %v1261
  %1287 = vmatprep.subr.mxu0 0.0
  %1288 = vmatpush1.msra.mxu0 %v1260
  %1289 = vmatprep.subr.mxu0 0.0
  %1290 = vmatpush1.msra.mxu0 %v1259
  %1291 = vmatprep.subr.mxu0 0.0
  %1292 = vmatpush1.msra.mxu0 %v1258
  %1293 = vmatprep.subr.mxu0 0.0
  %1294 = vmatpush1.msra.mxu0 %v1257
  %1295 = vmatprep.subr.mxu0 0.0
  %1296 = vmatpush1.msra.mxu0 %v1256
  %1297 = vmatprep.subr.mxu0 0.0
  %1298 = vmatpush1.msra.mxu0 %v1255
  %1299 = vmatprep.subr.mxu0 0.0
  %1300 = vmatpush1.msra.mxu0 %v1254
  %1301 = vmatprep.subr.mxu0 0.0
  %1302 = vmatpush1.msra.mxu0 %v1253
  %1303 = vmatprep.subr.mxu0 0.0
  %1304 = vmatpush2.msra.mxu0 0.0
  %1305 = vmatprep.subr.mxu0 0.0
  %1306 = vmatpush2.msra.mxu0 0.0
  %1307 = vmatprep.subr.mxu0 0.0
  %1308 = vmatpush2.msra.mxu0 0.0
  %1309 = vmatprep.subr.mxu0 0.0
  %1310 = vmatpush2.msra.mxu0 0.0
  %1311 = vmatprep.subr.mxu0 0.0
  %1312 = vmatpush2.msra.mxu0 0.0
  %1313 = vmatprep.subr.mxu0 0.0
  %1314 = vmatpush2.msra.mxu0 0.0
  %1315 = vmatprep.subr.mxu0 0.0
  %1316 = vmatpush2.msra.mxu0 0.0
  %1317 = vmatprep.subr.mxu0 0.0
  %1318 = vmatpush2.msra.mxu0 0.0
  %1319 = vmatprep.subr.mxu0 0.0
  %1320 = vmatpush2.msra.mxu0 0.0
  %1321 = vmatprep.subr.mxu0 0.0
  %1322 = vmatpush2.msra.mxu0 0.0
  %1323 = vmatprep.subr.mxu0 0.0
  %1324 = vmatpush2.msra.mxu0 0.0
  %1325 = vmatprep.subr.mxu0 0.0
  %1326 = vmatpush2.msra.mxu0 0.0
  %1327 = vmatprep.subr.mxu0 0.0
  %1328 = vmatpush2.msra.mxu0 0.0
  %1329 = vmatprep.subr.mxu0 0.0
  %1330 = vmatpush2.msra.mxu0 0.0
  %1331 = vmatprep.subr.mxu0 0.0
  %1332 = vmatpush2.msra.mxu0 %v1270
  %1333 = vmatprep.subr.mxu0 0.0
  %1334 = vmatpush2.msra.mxu0 %v1269
  %1335 = vmatprep.mubr.f32.mxu0 %v46
  %1336 = vmatmul.mubr.f32.gmra.mxu0 %v14
  %v1337 = vpop.f32.mrf.mxu0
  %v1338 = vadd.f32 0.0, %v1337
  %v1339 = vpop.f32.mrf.mxu0
  %1340 = vmatprep.mubr.f32.mxu0 %v49
  %1341 = vmatmul.mubr.f32.gmra.mxu0 %v16
  %v1342 = vpop.f32.mrf.mxu0
  %v1343 = vadd.f32 0.0, %v1342
  %v1344 = vpop.f32.mrf.mxu0
  %1345 = vmatprep.mubr.f32.mxu0 %v52
  %1346 = vmatmul.mubr.f32.gmra.mxu0 %v18
  %v1347 = vpop.f32.mrf.mxu0
  %v1348 = vadd.f32 0.0, %v1347
  %v1349 = vpop.f32.mrf.mxu0
  %1350 = vmatprep.mubr.f32.mxu0 %v55
  %1351 = vmatmul.mubr.f32.gmra.mxu0 %v20
  %v1352 = vpop.f32.mrf.mxu0
  %v1353 = vadd.f32 0.0, %v1352
  %v1354 = vpop.f32.mrf.mxu0
  %1355 = vdwg.mxu0
  %v1356 = vmax.f32 %v1026, %v1130
  %v1357 = vmax.f32 %v1031, %v1135
  %v1358 = vmax.f32 %v1036, %v1140
  %v1359 = vmax.f32 %v1041, %v1145
  %v1360 = vmax.f32 %v1234, %v1338
  %v1361 = vmax.f32 %v1239, %v1343
  %v1362 = vmax.f32 %v1244, %v1348
  %v1363 = vmax.f32 %v1249, %v1353
  %v1364 = vmax.f32 %v1356, %v1360
  %v1365 = vmax.f32 %v1357, %v1361
  %v1366 = vmax.f32 %v1358, %v1362
  %v1367 = vmax.f32 %v1359, %v1363
  %v1368 = vadd.f32 %v1364, %v469
  %v1369 = vadd.f32 %v1365, %v474
  %v1370 = vadd.f32 %v1366, %v479
  %v1371 = vadd.f32 %v1367, %v484
  %v1372 = vmax.f32 %v1368, 0.0
  %v1373 = vmax.f32 %v1369, 0.0
  %v1374 = vmax.f32 %v1370, 0.0
  %v1375 = vmax.f32 %v1371, 0.0
  %s1376 = scalar_lea.vmem %s3, 64
  %1377 = vst.msk [vmem:[%s1376] sm:$0xff] %vm494, %v1372
  %1378 = vst.msk [vmem:[%s1376 + $0x8] sm:$0xff] %vm494, %v1373
  %1379 = vst.msk [vmem:[%s1376 + $0x10] sm:$0xff] %vm494, %v1374
  %1380 = vst.msk [vmem:[%s1376 + $0x18] sm:$0xff] %vm494, %v1375
  %s1381 = scalar_lea.vmem %s0, 1728
  %v1382 = vld [vmem:[%s1381] sm:$0xff]
  %v1383 = vld [vmem:[%s1381 + $0x8] sm:$0xff]
  %v1384 = vld [vmem:[%s1381 + $0x10] sm:$0xff]
  %v1385 = vld [vmem:[%s1381 + $0x18] sm:$0xff]
  %v1386 = vld [vmem:[%s1381 + $0x20] sm:$0xff]
  %v1387 = vld [vmem:[%s1381 + $0x28] sm:$0xff]
  %v1388 = vld [vmem:[%s1381 + $0x30] sm:$0xff]
  %v1389 = vld [vmem:[%s1381 + $0x38] sm:$0xff]
  %v1390 = vld [vmem:[%s1381 + $0x40] sm:$0xff]
  %v1391 = vld [vmem:[%s1381 + $0x48] sm:$0xff]
  %v1392 = vld [vmem:[%s1381 + $0x50] sm:$0xff]
  %v1393 = vld [vmem:[%s1381 + $0x58] sm:$0xff]
  %v1394 = vld [vmem:[%s1381 + $0x60] sm:$0xff]
  %v1395 = vld [vmem:[%s1381 + $0x68] sm:$0xff]
  %v1396 = vld [vmem:[%s1381 + $0x70] sm:$0xff]
  %v1397 = vld [vmem:[%s1381 + $0x78] sm:$0xff]
  %v1398 = vld [vmem:[%s1381 + $0x80] sm:$0xff]
  %v1399 = vld [vmem:[%s1381 + $0x88] sm:$0xff]
  %1400 = vmatprep.subr.mxu0 0.0
  %1401 = vmatpush1.msra.mxu0 %v1397
  %1402 = vmatprep.subr.mxu0 0.0
  %1403 = vmatpush1.msra.mxu0 %v1396
  %1404 = vmatprep.subr.mxu0 0.0
  %1405 = vmatpush1.msra.mxu0 %v1395
  %1406 = vmatprep.subr.mxu0 0.0
  %1407 = vmatpush1.msra.mxu0 %v1394
  %1408 = vmatprep.subr.mxu0 0.0
  %1409 = vmatpush1.msra.mxu0 %v1393
  %1410 = vmatprep.subr.mxu0 0.0
  %1411 = vmatpush1.msra.mxu0 %v1392
  %1412 = vmatprep.subr.mxu0 0.0
  %1413 = vmatpush1.msra.mxu0 %v1391
  %1414 = vmatprep.subr.mxu0 0.0
  %1415 = vmatpush1.msra.mxu0 %v1390
  %1416 = vmatprep.subr.mxu0 0.0
  %1417 = vmatpush1.msra.mxu0 %v1389
  %1418 = vmatprep.subr.mxu0 0.0
  %1419 = vmatpush1.msra.mxu0 %v1388
  %1420 = vmatprep.subr.mxu0 0.0
  %1421 = vmatpush1.msra.mxu0 %v1387
  %1422 = vmatprep.subr.mxu0 0.0
  %1423 = vmatpush1.msra.mxu0 %v1386
  %1424 = vmatprep.subr.mxu0 0.0
  %1425 = vmatpush1.msra.mxu0 %v1385
  %1426 = vmatprep.subr.mxu0 0.0
  %1427 = vmatpush1.msra.mxu0 %v1384
  %1428 = vmatprep.subr.mxu0 0.0
  %1429 = vmatpush1.msra.mxu0 %v1383
  %1430 = vmatprep.subr.mxu0 0.0
  %1431 = vmatpush1.msra.mxu0 %v1382
  %1432 = vmatprep.subr.mxu0 0.0
  %1433 = vmatpush2.msra.mxu0 0.0
  %1434 = vmatprep.subr.mxu0 0.0
  %1435 = vmatpush2.msra.mxu0 0.0
  %1436 = vmatprep.subr.mxu0 0.0
  %1437 = vmatpush2.msra.mxu0 0.0
  %1438 = vmatprep.subr.mxu0 0.0
  %1439 = vmatpush2.msra.mxu0 0.0
  %1440 = vmatprep.subr.mxu0 0.0
  %1441 = vmatpush2.msra.mxu0 0.0
  %1442 = vmatprep.subr.mxu0 0.0
  %1443 = vmatpush2.msra.mxu0 0.0
  %1444 = vmatprep.subr.mxu0 0.0
  %1445 = vmatpush2.msra.mxu0 0.0
  %1446 = vmatprep.subr.mxu0 0.0
  %1447 = vmatpush2.msra.mxu0 0.0
  %1448 = vmatprep.subr.mxu0 0.0
  %1449 = vmatpush2.msra.mxu0 0.0
  %1450 = vmatprep.subr.mxu0 0.0
  %1451 = vmatpush2.msra.mxu0 0.0
  %1452 = vmatprep.subr.mxu0 0.0
  %1453 = vmatpush2.msra.mxu0 0.0
  %1454 = vmatprep.subr.mxu0 0.0
  %1455 = vmatpush2.msra.mxu0 0.0
  %1456 = vmatprep.subr.mxu0 0.0
  %1457 = vmatpush2.msra.mxu0 0.0
  %1458 = vmatprep.subr.mxu0 0.0
  %1459 = vmatpush2.msra.mxu0 0.0
  %1460 = vmatprep.subr.mxu0 0.0
  %1461 = vmatpush2.msra.mxu0 %v1399
  %1462 = vmatprep.subr.mxu0 0.0
  %1463 = vmatpush2.msra.mxu0 %v1398
  %1464 = vmatprep.mubr.f32.mxu0 %v46
  %1465 = vmatmul.mubr.f32.gmra.mxu0 %v14
  %v1466 = vpop.f32.mrf.mxu0
  %v1467 = vadd.f32 0.0, %v1466
  %v1468 = vpop.f32.mrf.mxu0
  %1469 = vmatprep.mubr.f32.mxu0 %v49
  %1470 = vmatmul.mubr.f32.gmra.mxu0 %v16
  %v1471 = vpop.f32.mrf.mxu0
  %v1472 = vadd.f32 0.0, %v1471
  %v1473 = vpop.f32.mrf.mxu0
  %1474 = vmatprep.mubr.f32.mxu0 %v52
  %1475 = vmatmul.mubr.f32.gmra.mxu0 %v18
  %v1476 = vpop.f32.mrf.mxu0
  %v1477 = vadd.f32 0.0, %v1476
  %v1478 = vpop.f32.mrf.mxu0
  %1479 = vmatprep.mubr.f32.mxu0 %v55
  %1480 = vmatmul.mubr.f32.gmra.mxu0 %v20
  %v1481 = vpop.f32.mrf.mxu0
  %v1482 = vadd.f32 0.0, %v1481
  %v1483 = vpop.f32.mrf.mxu0
  %1484 = vdwg.mxu0
  %s1485 = scalar_lea.vmem %s0, 1872
  %v1486 = vld [vmem:[%s1485] sm:$0xff]
  %v1487 = vld [vmem:[%s1485 + $0x8] sm:$0xff]
  %v1488 = vld [vmem:[%s1485 + $0x10] sm:$0xff]
  %v1489 = vld [vmem:[%s1485 + $0x18] sm:$0xff]
  %v1490 = vld [vmem:[%s1485 + $0x20] sm:$0xff]
  %v1491 = vld [vmem:[%s1485 + $0x28] sm:$0xff]
  %v1492 = vld [vmem:[%s1485 + $0x30] sm:$0xff]
  %v1493 = vld [vmem:[%s1485 + $0x38] sm:$0xff]
  %v1494 = vld [vmem:[%s1485 + $0x40] sm:$0xff]
  %v1495 = vld [vmem:[%s1485 + $0x48] sm:$0xff]
  %v1496 = vld [vmem:[%s1485 + $0x50] sm:$0xff]
  %v1497 = vld [vmem:[%s1485 + $0x58] sm:$0xff]
  %v1498 = vld [vmem:[%s1485 + $0x60] sm:$0xff]
  %v1499 = vld [vmem:[%s1485 + $0x68] sm:$0xff]
  %v1500 = vld [vmem:[%s1485 + $0x70] sm:$0xff]
  %v1501 = vld [vmem:[%s1485 + $0x78] sm:$0xff]
  %v1502 = vld [vmem:[%s1485 + $0x80] sm:$0xff]
  %v1503 = vld [vmem:[%s1485 + $0x88] sm:$0xff]
  %1504 = vmatprep.subr.mxu0 0.0
  %1505 = vmatpush1.msra.mxu0 %v1501
  %1506 = vmatprep.subr.mxu0 0.0
  %1507 = vmatpush1.msra.mxu0 %v1500
  %1508 = vmatprep.subr.mxu0 0.0
  %1509 = vmatpush1.msra.mxu0 %v1499
  %1510 = vmatprep.subr.mxu0 0.0
  %1511 = vmatpush1.msra.mxu0 %v1498
  %1512 = vmatprep.subr.mxu0 0.0
  %1513 = vmatpush1.msra.mxu0 %v1497
  %1514 = vmatprep.subr.mxu0 0.0
  %1515 = vmatpush1.msra.mxu0 %v1496
  %1516 = vmatprep.subr.mxu0 0.0
  %1517 = vmatpush1.msra.mxu0 %v1495
  %1518 = vmatprep.subr.mxu0 0.0
  %1519 = vmatpush1.msra.mxu0 %v1494
  %1520 = vmatprep.subr.mxu0 0.0
  %1521 = vmatpush1.msra.mxu0 %v1493
  %1522 = vmatprep.subr.mxu0 0.0
  %1523 = vmatpush1.msra.mxu0 %v1492
  %1524 = vmatprep.subr.mxu0 0.0
  %1525 = vmatpush1.msra.mxu0 %v1491
  %1526 = vmatprep.subr.mxu0 0.0
  %1527 = vmatpush1.msra.mxu0 %v1490
  %1528 = vmatprep.subr.mxu0 0.0
  %1529 = vmatpush1.msra.mxu0 %v1489
  %1530 = vmatprep.subr.mxu0 0.0
  %1531 = vmatpush1.msra.mxu0 %v1488
  %1532 = vmatprep.subr.mxu0 0.0
  %1533 = vmatpush1.msra.mxu0 %v1487
  %1534 = vmatprep.subr.mxu0 0.0
  %1535 = vmatpush1.msra.mxu0 %v1486
  %1536 = vmatprep.subr.mxu0 0.0
  %1537 = vmatpush2.msra.mxu0 0.0
  %1538 = vmatprep.subr.mxu0 0.0
  %1539 = vmatpush2.msra.mxu0 0.0
  %1540 = vmatprep.subr.mxu0 0.0
  %1541 = vmatpush2.msra.mxu0 0.0
  %1542 = vmatprep.subr.mxu0 0.0
  %1543 = vmatpush2.msra.mxu0 0.0
  %1544 = vmatprep.subr.mxu0 0.0
  %1545 = vmatpush2.msra.mxu0 0.0
  %1546 = vmatprep.subr.mxu0 0.0
  %1547 = vmatpush2.msra.mxu0 0.0
  %1548 = vmatprep.subr.mxu0 0.0
  %1549 = vmatpush2.msra.mxu0 0.0
  %1550 = vmatprep.subr.mxu0 0.0
  %1551 = vmatpush2.msra.mxu0 0.0
  %1552 = vmatprep.subr.mxu0 0.0
  %1553 = vmatpush2.msra.mxu0 0.0
  %1554 = vmatprep.subr.mxu0 0.0
  %1555 = vmatpush2.msra.mxu0 0.0
  %1556 = vmatprep.subr.mxu0 0.0
  %1557 = vmatpush2.msra.mxu0 0.0
  %1558 = vmatprep.subr.mxu0 0.0
  %1559 = vmatpush2.msra.mxu0 0.0
  %1560 = vmatprep.subr.mxu0 0.0
  %1561 = vmatpush2.msra.mxu0 0.0
  %1562 = vmatprep.subr.mxu0 0.0
  %1563 = vmatpush2.msra.mxu0 0.0
  %1564 = vmatprep.subr.mxu0 0.0
  %1565 = vmatpush2.msra.mxu0 %v1503
  %1566 = vmatprep.subr.mxu0 0.0
  %1567 = vmatpush2.msra.mxu0 %v1502
  %1568 = vmatprep.mubr.f32.mxu0 %v46
  %1569 = vmatmul.mubr.f32.gmra.mxu0 %v14
  %v1570 = vpop.f32.mrf.mxu0
  %v1571 = vadd.f32 0.0, %v1570
  %v1572 = vpop.f32.mrf.mxu0
  %1573 = vmatprep.mubr.f32.mxu0 %v49
  %1574 = vmatmul.mubr.f32.gmra.mxu0 %v16
  %v1575 = vpop.f32.mrf.mxu0
  %v1576 = vadd.f32 0.0, %v1575
  %v1577 = vpop.f32.mrf.mxu0
  %1578 = vmatprep.mubr.f32.mxu0 %v52
  %1579 = vmatmul.mubr.f32.gmra.mxu0 %v18
  %v1580 = vpop.f32.mrf.mxu0
  %v1581 = vadd.f32 0.0, %v1580
  %v1582 = vpop.f32.mrf.mxu0
  %1583 = vmatprep.mubr.f32.mxu0 %v55
  %1584 = vmatmul.mubr.f32.gmra.mxu0 %v20
  %v1585 = vpop.f32.mrf.mxu0
  %v1586 = vadd.f32 0.0, %v1585
  %v1587 = vpop.f32.mrf.mxu0
  %1588 = vdwg.mxu0
  %s1589 = scalar_lea.vmem %s0, 2016
  %v1590 = vld [vmem:[%s1589] sm:$0xff]
  %v1591 = vld [vmem:[%s1589 + $0x8] sm:$0xff]
  %v1592 = vld [vmem:[%s1589 + $0x10] sm:$0xff]
  %v1593 = vld [vmem:[%s1589 + $0x18] sm:$0xff]
  %v1594 = vld [vmem:[%s1589 + $0x20] sm:$0xff]
  %v1595 = vld [vmem:[%s1589 + $0x28] sm:$0xff]
  %v1596 = vld [vmem:[%s1589 + $0x30] sm:$0xff]
  %v1597 = vld [vmem:[%s1589 + $0x38] sm:$0xff]
  %v1598 = vld [vmem:[%s1589 + $0x40] sm:$0xff]
  %v1599 = vld [vmem:[%s1589 + $0x48] sm:$0xff]
  %v1600 = vld [vmem:[%s1589 + $0x50] sm:$0xff]
  %v1601 = vld [vmem:[%s1589 + $0x58] sm:$0xff]
  %v1602 = vld [vmem:[%s1589 + $0x60] sm:$0xff]
  %v1603 = vld [vmem:[%s1589 + $0x68] sm:$0xff]
  %v1604 = vld [vmem:[%s1589 + $0x70] sm:$0xff]
  %v1605 = vld [vmem:[%s1589 + $0x78] sm:$0xff]
  %v1606 = vld [vmem:[%s1589 + $0x80] sm:$0xff]
  %v1607 = vld [vmem:[%s1589 + $0x88] sm:$0xff]
  %1608 = vmatprep.subr.mxu0 0.0
  %1609 = vmatpush1.msra.mxu0 %v1605
  %1610 = vmatprep.subr.mxu0 0.0
  %1611 = vmatpush1.msra.mxu0 %v1604
  %1612 = vmatprep.subr.mxu0 0.0
  %1613 = vmatpush1.msra.mxu0 %v1603
  %1614 = vmatprep.subr.mxu0 0.0
  %1615 = vmatpush1.msra.mxu0 %v1602
  %1616 = vmatprep.subr.mxu0 0.0
  %1617 = vmatpush1.msra.mxu0 %v1601
  %1618 = vmatprep.subr.mxu0 0.0
  %1619 = vmatpush1.msra.mxu0 %v1600
  %1620 = vmatprep.subr.mxu0 0.0
  %1621 = vmatpush1.msra.mxu0 %v1599
  %1622 = vmatprep.subr.mxu0 0.0
  %1623 = vmatpush1.msra.mxu0 %v1598
  %1624 = vmatprep.subr.mxu0 0.0
  %1625 = vmatpush1.msra.mxu0 %v1597
  %1626 = vmatprep.subr.mxu0 0.0
  %1627 = vmatpush1.msra.mxu0 %v1596
  %1628 = vmatprep.subr.mxu0 0.0
  %1629 = vmatpush1.msra.mxu0 %v1595
  %1630 = vmatprep.subr.mxu0 0.0
  %1631 = vmatpush1.msra.mxu0 %v1594
  %1632 = vmatprep.subr.mxu0 0.0
  %1633 = vmatpush1.msra.mxu0 %v1593
  %1634 = vmatprep.subr.mxu0 0.0
  %1635 = vmatpush1.msra.mxu0 %v1592
  %1636 = vmatprep.subr.mxu0 0.0
  %1637 = vmatpush1.msra.mxu0 %v1591
  %1638 = vmatprep.subr.mxu0 0.0
  %1639 = vmatpush1.msra.mxu0 %v1590
  %1640 = vmatprep.subr.mxu0 0.0
  %1641 = vmatpush2.msra.mxu0 0.0
  %1642 = vmatprep.subr.mxu0 0.0
  %1643 = vmatpush2.msra.mxu0 0.0
  %1644 = vmatprep.subr.mxu0 0.0
  %1645 = vmatpush2.msra.mxu0 0.0
  %1646 = vmatprep.subr.mxu0 0.0
  %1647 = vmatpush2.msra.mxu0 0.0
  %1648 = vmatprep.subr.mxu0 0.0
  %1649 = vmatpush2.msra.mxu0 0.0
  %1650 = vmatprep.subr.mxu0 0.0
  %1651 = vmatpush2.msra.mxu0 0.0
  %1652 = vmatprep.subr.mxu0 0.0
  %1653 = vmatpush2.msra.mxu0 0.0
  %1654 = vmatprep.subr.mxu0 0.0
  %1655 = vmatpush2.msra.mxu0 0.0
  %1656 = vmatprep.subr.mxu0 0.0
  %1657 = vmatpush2.msra.mxu0 0.0
  %1658 = vmatprep.subr.mxu0 0.0
  %1659 = vmatpush2.msra.mxu0 0.0
  %1660 = vmatprep.subr.mxu0 0.0
  %1661 = vmatpush2.msra.mxu0 0.0
  %1662 = vmatprep.subr.mxu0 0.0
  %1663 = vmatpush2.msra.mxu0 0.0
  %1664 = vmatprep.subr.mxu0 0.0
  %1665 = vmatpush2.msra.mxu0 0.0
  %1666 = vmatprep.subr.mxu0 0.0
  %1667 = vmatpush2.msra.mxu0 0.0
  %1668 = vmatprep.subr.mxu0 0.0
  %1669 = vmatpush2.msra.mxu0 %v1607
  %1670 = vmatprep.subr.mxu0 0.0
  %1671 = vmatpush2.msra.mxu0 %v1606
  %1672 = vmatprep.mubr.f32.mxu0 %v46
  %1673 = vmatmul.mubr.f32.gmra.mxu0 %v14
  %v1674 = vpop.f32.mrf.mxu0
  %v1675 = vadd.f32 0.0, %v1674
  %v1676 = vpop.f32.mrf.mxu0
  %1677 = vmatprep.mubr.f32.mxu0 %v49
  %1678 = vmatmul.mubr.f32.gmra.mxu0 %v16
  %v1679 = vpop.f32.mrf.mxu0
  %v1680 = vadd.f32 0.0, %v1679
  %v1681 = vpop.f32.mrf.mxu0
  %1682 = vmatprep.mubr.f32.mxu0 %v52
  %1683 = vmatmul.mubr.f32.gmra.mxu0 %v18
  %v1684 = vpop.f32.mrf.mxu0
  %v1685 = vadd.f32 0.0, %v1684
  %v1686 = vpop.f32.mrf.mxu0
  %1687 = vmatprep.mubr.f32.mxu0 %v55
  %1688 = vmatmul.mubr.f32.gmra.mxu0 %v20
  %v1689 = vpop.f32.mrf.mxu0
  %v1690 = vadd.f32 0.0, %v1689
  %v1691 = vpop.f32.mrf.mxu0
  %1692 = vdwg.mxu0
  %s1693 = scalar_lea.vmem %s0, 2160
  %v1694 = vld [vmem:[%s1693] sm:$0xff]
  %v1695 = vld [vmem:[%s1693 + $0x8] sm:$0xff]
  %v1696 = vld [vmem:[%s1693 + $0x10] sm:$0xff]
  %v1697 = vld [vmem:[%s1693 + $0x18] sm:$0xff]
  %v1698 = vld [vmem:[%s1693 + $0x20] sm:$0xff]
  %v1699 = vld [vmem:[%s1693 + $0x28] sm:$0xff]
  %v1700 = vld [vmem:[%s1693 + $0x30] sm:$0xff]
  %v1701 = vld [vmem:[%s1693 + $0x38] sm:$0xff]
  %v1702 = vld [vmem:[%s1693 + $0x40] sm:$0xff]
  %v1703 = vld [vmem:[%s1693 + $0x48] sm:$0xff]
  %v1704 = vld [vmem:[%s1693 + $0x50] sm:$0xff]
  %v1705 = vld [vmem:[%s1693 + $0x58] sm:$0xff]
  %v1706 = vld [vmem:[%s1693 + $0x60] sm:$0xff]
  %v1707 = vld [vmem:[%s1693 + $0x68] sm:$0xff]
  %v1708 = vld [vmem:[%s1693 + $0x70] sm:$0xff]
  %v1709 = vld [vmem:[%s1693 + $0x78] sm:$0xff]
  %v1710 = vld [vmem:[%s1693 + $0x80] sm:$0xff]
  %v1711 = vld [vmem:[%s1693 + $0x88] sm:$0xff]
  %1712 = vmatprep.subr.mxu0 0.0
  %1713 = vmatpush1.msra.mxu0 %v1709
  %1714 = vmatprep.subr.mxu0 0.0
  %1715 = vmatpush1.msra.mxu0 %v1708
  %1716 = vmatprep.subr.mxu0 0.0
  %1717 = vmatpush1.msra.mxu0 %v1707
  %1718 = vmatprep.subr.mxu0 0.0
  %1719 = vmatpush1.msra.mxu0 %v1706
  %1720 = vmatprep.subr.mxu0 0.0
  %1721 = vmatpush1.msra.mxu0 %v1705
  %1722 = vmatprep.subr.mxu0 0.0
  %1723 = vmatpush1.msra.mxu0 %v1704
  %1724 = vmatprep.subr.mxu0 0.0
  %1725 = vmatpush1.msra.mxu0 %v1703
  %1726 = vmatprep.subr.mxu0 0.0
  %1727 = vmatpush1.msra.mxu0 %v1702
  %1728 = vmatprep.subr.mxu0 0.0
  %1729 = vmatpush1.msra.mxu0 %v1701
  %1730 = vmatprep.subr.mxu0 0.0
  %1731 = vmatpush1.msra.mxu0 %v1700
  %1732 = vmatprep.subr.mxu0 0.0
  %1733 = vmatpush1.msra.mxu0 %v1699
  %1734 = vmatprep.subr.mxu0 0.0
  %1735 = vmatpush1.msra.mxu0 %v1698
  %1736 = vmatprep.subr.mxu0 0.0
  %1737 = vmatpush1.msra.mxu0 %v1697
  %1738 = vmatprep.subr.mxu0 0.0
  %1739 = vmatpush1.msra.mxu0 %v1696
  %1740 = vmatprep.subr.mxu0 0.0
  %1741 = vmatpush1.msra.mxu0 %v1695
  %1742 = vmatprep.subr.mxu0 0.0
  %1743 = vmatpush1.msra.mxu0 %v1694
  %1744 = vmatprep.subr.mxu0 0.0
  %1745 = vmatpush2.msra.mxu0 0.0
  %1746 = vmatprep.subr.mxu0 0.0
  %1747 = vmatpush2.msra.mxu0 0.0
  %1748 = vmatprep.subr.mxu0 0.0
  %1749 = vmatpush2.msra.mxu0 0.0
  %1750 = vmatprep.subr.mxu0 0.0
  %1751 = vmatpush2.msra.mxu0 0.0
  %1752 = vmatprep.subr.mxu0 0.0
  %1753 = vmatpush2.msra.mxu0 0.0
  %1754 = vmatprep.subr.mxu0 0.0
  %1755 = vmatpush2.msra.mxu0 0.0
  %1756 = vmatprep.subr.mxu0 0.0
  %1757 = vmatpush2.msra.mxu0 0.0
  %1758 = vmatprep.subr.mxu0 0.0
  %1759 = vmatpush2.msra.mxu0 0.0
  %1760 = vmatprep.subr.mxu0 0.0
  %1761 = vmatpush2.msra.mxu0 0.0
  %1762 = vmatprep.subr.mxu0 0.0
  %1763 = vmatpush2.msra.mxu0 0.0
  %1764 = vmatprep.subr.mxu0 0.0
  %1765 = vmatpush2.msra.mxu0 0.0
  %1766 = vmatprep.subr.mxu0 0.0
  %1767 = vmatpush2.msra.mxu0 0.0
  %1768 = vmatprep.subr.mxu0 0.0
  %1769 = vmatpush2.msra.mxu0 0.0
  %1770 = vmatprep.subr.mxu0 0.0
  %1771 = vmatpush2.msra.mxu0 0.0
  %1772 = vmatprep.subr.mxu0 0.0
  %1773 = vmatpush2.msra.mxu0 %v1711
  %1774 = vmatprep.subr.mxu0 0.0
  %1775 = vmatpush2.msra.mxu0 %v1710
  %1776 = vmatprep.mubr.f32.mxu0 %v46
  %1777 = vmatmul.mubr.f32.gmra.mxu0 %v14
  %v1778 = vpop.f32.mrf.mxu0
  %v1779 = vadd.f32 0.0, %v1778
  %v1780 = vpop.f32.mrf.mxu0
  %1781 = vmatprep.mubr.f32.mxu0 %v49
  %1782 = vmatmul.mubr.f32.gmra.mxu0 %v16
  %v1783 = vpop.f32.mrf.mxu0
  %v1784 = vadd.f32 0.0, %v1783
  %v1785 = vpop.f32.mrf.mxu0
  %1786 = vmatprep.mubr.f32.mxu0 %v52
  %1787 = vmatmul.mubr.f32.gmra.mxu0 %v18
  %v1788 = vpop.f32.mrf.mxu0
  %v1789 = vadd.f32 0.0, %v1788
  %v1790 = vpop.f32.mrf.mxu0
  %1791 = vmatprep.mubr.f32.mxu0 %v55
  %1792 = vmatmul.mubr.f32.gmra.mxu0 %v20
  %v1793 = vpop.f32.mrf.mxu0
  %v1794 = vadd.f32 0.0, %v1793
  %v1795 = vpop.f32.mrf.mxu0
  %1796 = vdwg.mxu0
  %v1797 = vmax.f32 %v1467, %v1571
  %v1798 = vmax.f32 %v1472, %v1576
  %v1799 = vmax.f32 %v1477, %v1581
  %v1800 = vmax.f32 %v1482, %v1586
  %v1801 = vmax.f32 %v1675, %v1779
  %v1802 = vmax.f32 %v1680, %v1784
  %v1803 = vmax.f32 %v1685, %v1789
  %v1804 = vmax.f32 %v1690, %v1794
  %v1805 = vmax.f32 %v1797, %v1801
  %v1806 = vmax.f32 %v1798, %v1802
  %v1807 = vmax.f32 %v1799, %v1803
  %v1808 = vmax.f32 %v1800, %v1804
  %v1809 = vadd.f32 %v1805, %v469
  %v1810 = vadd.f32 %v1806, %v474
  %v1811 = vadd.f32 %v1807, %v479
  %v1812 = vadd.f32 %v1808, %v484
  %v1813 = vmax.f32 %v1809, 0.0
  %v1814 = vmax.f32 %v1810, 0.0
  %v1815 = vmax.f32 %v1811, 0.0
  %v1816 = vmax.f32 %v1812, 0.0
  %s1817 = scalar_lea.vmem %s3, 96
  %1818 = vst.msk [vmem:[%s1817] sm:$0xff] %vm494, %v1813
  %1819 = vst.msk [vmem:[%s1817 + $0x8] sm:$0xff] %vm494, %v1814
  %1820 = vst.msk [vmem:[%s1817 + $0x10] sm:$0xff] %vm494, %v1815
  %1821 = vst.msk [vmem:[%s1817 + $0x18] sm:$0xff] %vm494, %v1816
  %s1822 = scalar_lea.vmem %s0, 2304
  %v1823 = vld [vmem:[%s1822] sm:$0xff]
  %v1824 = vld [vmem:[%s1822 + $0x8] sm:$0xff]
  %v1825 = vld [vmem:[%s1822 + $0x10] sm:$0xff]
  %v1826 = vld [vmem:[%s1822 + $0x18] sm:$0xff]
  %v1827 = vld [vmem:[%s1822 + $0x20] sm:$0xff]
  %v1828 = vld [vmem:[%s1822 + $0x28] sm:$0xff]
  %v1829 = vld [vmem:[%s1822 + $0x30] sm:$0xff]
  %v1830 = vld [vmem:[%s1822 + $0x38] sm:$0xff]
  %v1831 = vld [vmem:[%s1822 + $0x40] sm:$0xff]
  %v1832 = vld [vmem:[%s1822 + $0x48] sm:$0xff]
  %v1833 = vld [vmem:[%s1822 + $0x50] sm:$0xff]
  %v1834 = vld [vmem:[%s1822 + $0x58] sm:$0xff]
  %v1835 = vld [vmem:[%s1822 + $0x60] sm:$0xff]
  %v1836 = vld [vmem:[%s1822 + $0x68] sm:$0xff]
  %v1837 = vld [vmem:[%s1822 + $0x70] sm:$0xff]
  %v1838 = vld [vmem:[%s1822 + $0x78] sm:$0xff]
  %v1839 = vld [vmem:[%s1822 + $0x80] sm:$0xff]
  %v1840 = vld [vmem:[%s1822 + $0x88] sm:$0xff]
  %1841 = vmatprep.subr.mxu0 0.0
  %1842 = vmatpush1.msra.mxu0 %v1838
  %1843 = vmatprep.subr.mxu0 0.0
  %1844 = vmatpush1.msra.mxu0 %v1837
  %1845 = vmatprep.subr.mxu0 0.0
  %1846 = vmatpush1.msra.mxu0 %v1836
  %1847 = vmatprep.subr.mxu0 0.0
  %1848 = vmatpush1.msra.mxu0 %v1835
  %1849 = vmatprep.subr.mxu0 0.0
  %1850 = vmatpush1.msra.mxu0 %v1834
  %1851 = vmatprep.subr.mxu0 0.0
  %1852 = vmatpush1.msra.mxu0 %v1833
  %1853 = vmatprep.subr.mxu0 0.0
  %1854 = vmatpush1.msra.mxu0 %v1832
  %1855 = vmatprep.subr.mxu0 0.0
  %1856 = vmatpush1.msra.mxu0 %v1831
  %1857 = vmatprep.subr.mxu0 0.0
  %1858 = vmatpush1.msra.mxu0 %v1830
  %1859 = vmatprep.subr.mxu0 0.0
  %1860 = vmatpush1.msra.mxu0 %v1829
  %1861 = vmatprep.subr.mxu0 0.0
  %1862 = vmatpush1.msra.mxu0 %v1828
  %1863 = vmatprep.subr.mxu0 0.0
  %1864 = vmatpush1.msra.mxu0 %v1827
  %1865 = vmatprep.subr.mxu0 0.0
  %1866 = vmatpush1.msra.mxu0 %v1826
  %1867 = vmatprep.subr.mxu0 0.0
  %1868 = vmatpush1.msra.mxu0 %v1825
  %1869 = vmatprep.subr.mxu0 0.0
  %1870 = vmatpush1.msra.mxu0 %v1824
  %1871 = vmatprep.subr.mxu0 0.0
  %1872 = vmatpush1.msra.mxu0 %v1823
  %1873 = vmatprep.subr.mxu0 0.0
  %1874 = vmatpush2.msra.mxu0 0.0
  %1875 = vmatprep.subr.mxu0 0.0
  %1876 = vmatpush2.msra.mxu0 0.0
  %1877 = vmatprep.subr.mxu0 0.0
  %1878 = vmatpush2.msra.mxu0 0.0
  %1879 = vmatprep.subr.mxu0 0.0
  %1880 = vmatpush2.msra.mxu0 0.0
  %1881 = vmatprep.subr.mxu0 0.0
  %1882 = vmatpush2.msra.mxu0 0.0
  %1883 = vmatprep.subr.mxu0 0.0
  %1884 = vmatpush2.msra.mxu0 0.0
  %1885 = vmatprep.subr.mxu0 0.0
  %1886 = vmatpush2.msra.mxu0 0.0
  %1887 = vmatprep.subr.mxu0 0.0
  %1888 = vmatpush2.msra.mxu0 0.0
  %1889 = vmatprep.subr.mxu0 0.0
  %1890 = vmatpush2.msra.mxu0 0.0
  %1891 = vmatprep.subr.mxu0 0.0
  %1892 = vmatpush2.msra.mxu0 0.0
  %1893 = vmatprep.subr.mxu0 0.0
  %1894 = vmatpush2.msra.mxu0 0.0
  %1895 = vmatprep.subr.mxu0 0.0
  %1896 = vmatpush2.msra.mxu0 0.0
  %1897 = vmatprep.subr.mxu0 0.0
  %1898 = vmatpush2.msra.mxu0 0.0
  %1899 = vmatprep.subr.mxu0 0.0
  %1900 = vmatpush2.msra.mxu0 0.0
  %1901 = vmatprep.subr.mxu0 0.0
  %1902 = vmatpush2.msra.mxu0 %v1840
  %1903 = vmatprep.subr.mxu0 0.0
  %1904 = vmatpush2.msra.mxu0 %v1839
  %1905 = vmatprep.mubr.f32.mxu0 %v46
  %1906 = vmatmul.mubr.f32.gmra.mxu0 %v14
  %v1907 = vpop.f32.mrf.mxu0
  %v1908 = vadd.f32 0.0, %v1907
  %v1909 = vpop.f32.mrf.mxu0
  %1910 = vmatprep.mubr.f32.mxu0 %v49
  %1911 = vmatmul.mubr.f32.gmra.mxu0 %v16
  %v1912 = vpop.f32.mrf.mxu0
  %v1913 = vadd.f32 0.0, %v1912
  %v1914 = vpop.f32.mrf.mxu0
  %1915 = vmatprep.mubr.f32.mxu0 %v52
  %1916 = vmatmul.mubr.f32.gmra.mxu0 %v18
  %v1917 = vpop.f32.mrf.mxu0
  %v1918 = vadd.f32 0.0, %v1917
  %v1919 = vpop.f32.mrf.mxu0
  %1920 = vmatprep.mubr.f32.mxu0 %v55
  %1921 = vmatmul.mubr.f32.gmra.mxu0 %v20
  %v1922 = vpop.f32.mrf.mxu0
  %v1923 = vadd.f32 0.0, %v1922
  %v1924 = vpop.f32.mrf.mxu0
  %1925 = vdwg.mxu0
  %s1926 = scalar_lea.vmem %s0, 2448
  %v1927 = vld [vmem:[%s1926] sm:$0xff]
  %v1928 = vld [vmem:[%s1926 + $0x8] sm:$0xff]
  %v1929 = vld [vmem:[%s1926 + $0x10] sm:$0xff]
  %v1930 = vld [vmem:[%s1926 + $0x18] sm:$0xff]
  %v1931 = vld [vmem:[%s1926 + $0x20] sm:$0xff]
  %v1932 = vld [vmem:[%s1926 + $0x28] sm:$0xff]
  %v1933 = vld [vmem:[%s1926 + $0x30] sm:$0xff]
  %v1934 = vld [vmem:[%s1926 + $0x38] sm:$0xff]
  %v1935 = vld [vmem:[%s1926 + $0x40] sm:$0xff]
  %v1936 = vld [vmem:[%s1926 + $0x48] sm:$0xff]
  %v1937 = vld [vmem:[%s1926 + $0x50] sm:$0xff]
  %v1938 = vld [vmem:[%s1926 + $0x58] sm:$0xff]
  %v1939 = vld [vmem:[%s1926 + $0x60] sm:$0xff]
  %v1940 = vld [vmem:[%s1926 + $0x68] sm:$0xff]
  %v1941 = vld [vmem:[%s1926 + $0x70] sm:$0xff]
  %v1942 = vld [vmem:[%s1926 + $0x78] sm:$0xff]
  %v1943 = vld [vmem:[%s1926 + $0x80] sm:$0xff]
  %v1944 = vld [vmem:[%s1926 + $0x88] sm:$0xff]
  %1945 = vmatprep.subr.mxu0 0.0
  %1946 = vmatpush1.msra.mxu0 %v1942
  %1947 = vmatprep.subr.mxu0 0.0
  %1948 = vmatpush1.msra.mxu0 %v1941
  %1949 = vmatprep.subr.mxu0 0.0
  %1950 = vmatpush1.msra.mxu0 %v1940
  %1951 = vmatprep.subr.mxu0 0.0
  %1952 = vmatpush1.msra.mxu0 %v1939
  %1953 = vmatprep.subr.mxu0 0.0
  %1954 = vmatpush1.msra.mxu0 %v1938
  %1955 = vmatprep.subr.mxu0 0.0
  %1956 = vmatpush1.msra.mxu0 %v1937
  %1957 = vmatprep.subr.mxu0 0.0
  %1958 = vmatpush1.msra.mxu0 %v1936
  %1959 = vmatprep.subr.mxu0 0.0
  %1960 = vmatpush1.msra.mxu0 %v1935
  %1961 = vmatprep.subr.mxu0 0.0
  %1962 = vmatpush1.msra.mxu0 %v1934
  %1963 = vmatprep.subr.mxu0 0.0
  %1964 = vmatpush1.msra.mxu0 %v1933
  %1965 = vmatprep.subr.mxu0 0.0
  %1966 = vmatpush1.msra.mxu0 %v1932
  %1967 = vmatprep.subr.mxu0 0.0
  %1968 = vmatpush1.msra.mxu0 %v1931
  %1969 = vmatprep.subr.mxu0 0.0
  %1970 = vmatpush1.msra.mxu0 %v1930
  %1971 = vmatprep.subr.mxu0 0.0
  %1972 = vmatpush1.msra.mxu0 %v1929
  %1973 = vmatprep.subr.mxu0 0.0
  %1974 = vmatpush1.msra.mxu0 %v1928
  %1975 = vmatprep.subr.mxu0 0.0
  %1976 = vmatpush1.msra.mxu0 %v1927
  %1977 = vmatprep.subr.mxu0 0.0
  %1978 = vmatpush2.msra.mxu0 0.0
  %1979 = vmatprep.subr.mxu0 0.0
  %1980 = vmatpush2.msra.mxu0 0.0
  %1981 = vmatprep.subr.mxu0 0.0
  %1982 = vmatpush2.msra.mxu0 0.0
  %1983 = vmatprep.subr.mxu0 0.0
  %1984 = vmatpush2.msra.mxu0 0.0
  %1985 = vmatprep.subr.mxu0 0.0
  %1986 = vmatpush2.msra.mxu0 0.0
  %1987 = vmatprep.subr.mxu0 0.0
  %1988 = vmatpush2.msra.mxu0 0.0
  %1989 = vmatprep.subr.mxu0 0.0
  %1990 = vmatpush2.msra.mxu0 0.0
  %1991 = vmatprep.subr.mxu0 0.0
  %1992 = vmatpush2.msra.mxu0 0.0
  %1993 = vmatprep.subr.mxu0 0.0
  %1994 = vmatpush2.msra.mxu0 0.0
  %1995 = vmatprep.subr.mxu0 0.0
  %1996 = vmatpush2.msra.mxu0 0.0
  %1997 = vmatprep.subr.mxu0 0.0
  %1998 = vmatpush2.msra.mxu0 0.0
  %1999 = vmatprep.subr.mxu0 0.0
  %2000 = vmatpush2.msra.mxu0 0.0
  %2001 = vmatprep.subr.mxu0 0.0
  %2002 = vmatpush2.msra.mxu0 0.0
  %2003 = vmatprep.subr.mxu0 0.0
  %2004 = vmatpush2.msra.mxu0 0.0
  %2005 = vmatprep.subr.mxu0 0.0
  %2006 = vmatpush2.msra.mxu0 %v1944
  %2007 = vmatprep.subr.mxu0 0.0
  %2008 = vmatpush2.msra.mxu0 %v1943
  %2009 = vmatprep.mubr.f32.mxu0 %v46
  %2010 = vmatmul.mubr.f32.gmra.mxu0 %v14
  %v2011 = vpop.f32.mrf.mxu0
  %v2012 = vadd.f32 0.0, %v2011
  %v2013 = vpop.f32.mrf.mxu0
  %2014 = vmatprep.mubr.f32.mxu0 %v49
  %2015 = vmatmul.mubr.f32.gmra.mxu0 %v16
  %v2016 = vpop.f32.mrf.mxu0
  %v2017 = vadd.f32 0.0, %v2016
  %v2018 = vpop.f32.mrf.mxu0
  %2019 = vmatprep.mubr.f32.mxu0 %v52
  %2020 = vmatmul.mubr.f32.gmra.mxu0 %v18
  %v2021 = vpop.f32.mrf.mxu0
  %v2022 = vadd.f32 0.0, %v2021
  %v2023 = vpop.f32.mrf.mxu0
  %2024 = vmatprep.mubr.f32.mxu0 %v55
  %2025 = vmatmul.mubr.f32.gmra.mxu0 %v20
  %v2026 = vpop.f32.mrf.mxu0
  %v2027 = vadd.f32 0.0, %v2026
  %v2028 = vpop.f32.mrf.mxu0
  %2029 = vdwg.mxu0
  %s2030 = scalar_lea.vmem %s0, 2592
  %v2031 = vld [vmem:[%s2030] sm:$0xff]
  %v2032 = vld [vmem:[%s2030 + $0x8] sm:$0xff]
  %v2033 = vld [vmem:[%s2030 + $0x10] sm:$0xff]
  %v2034 = vld [vmem:[%s2030 + $0x18] sm:$0xff]
  %v2035 = vld [vmem:[%s2030 + $0x20] sm:$0xff]
  %v2036 = vld [vmem:[%s2030 + $0x28] sm:$0xff]
  %v2037 = vld [vmem:[%s2030 + $0x30] sm:$0xff]
  %v2038 = vld [vmem:[%s2030 + $0x38] sm:$0xff]
  %v2039 = vld [vmem:[%s2030 + $0x40] sm:$0xff]
  %v2040 = vld [vmem:[%s2030 + $0x48] sm:$0xff]
  %v2041 = vld [vmem:[%s2030 + $0x50] sm:$0xff]
  %v2042 = vld [vmem:[%s2030 + $0x58] sm:$0xff]
  %v2043 = vld [vmem:[%s2030 + $0x60] sm:$0xff]
  %v2044 = vld [vmem:[%s2030 + $0x68] sm:$0xff]
  %v2045 = vld [vmem:[%s2030 + $0x70] sm:$0xff]
  %v2046 = vld [vmem:[%s2030 + $0x78] sm:$0xff]
  %v2047 = vld [vmem:[%s2030 + $0x80] sm:$0xff]
  %v2048 = vld [vmem:[%s2030 + $0x88] sm:$0xff]
  %2049 = vmatprep.subr.mxu0 0.0
  %2050 = vmatpush1.msra.mxu0 %v2046
  %2051 = vmatprep.subr.mxu0 0.0
  %2052 = vmatpush1.msra.mxu0 %v2045
  %2053 = vmatprep.subr.mxu0 0.0
  %2054 = vmatpush1.msra.mxu0 %v2044
  %2055 = vmatprep.subr.mxu0 0.0
  %2056 = vmatpush1.msra.mxu0 %v2043
  %2057 = vmatprep.subr.mxu0 0.0
  %2058 = vmatpush1.msra.mxu0 %v2042
  %2059 = vmatprep.subr.mxu0 0.0
  %2060 = vmatpush1.msra.mxu0 %v2041
  %2061 = vmatprep.subr.mxu0 0.0
  %2062 = vmatpush1.msra.mxu0 %v2040
  %2063 = vmatprep.subr.mxu0 0.0
  %2064 = vmatpush1.msra.mxu0 %v2039
  %2065 = vmatprep.subr.mxu0 0.0
  %2066 = vmatpush1.msra.mxu0 %v2038
  %2067 = vmatprep.subr.mxu0 0.0
  %2068 = vmatpush1.msra.mxu0 %v2037
  %2069 = vmatprep.subr.mxu0 0.0
  %2070 = vmatpush1.msra.mxu0 %v2036
  %2071 = vmatprep.subr.mxu0 0.0
  %2072 = vmatpush1.msra.mxu0 %v2035
  %2073 = vmatprep.subr.mxu0 0.0
  %2074 = vmatpush1.msra.mxu0 %v2034
  %2075 = vmatprep.subr.mxu0 0.0
  %2076 = vmatpush1.msra.mxu0 %v2033
  %2077 = vmatprep.subr.mxu0 0.0
  %2078 = vmatpush1.msra.mxu0 %v2032
  %2079 = vmatprep.subr.mxu0 0.0
  %2080 = vmatpush1.msra.mxu0 %v2031
  %2081 = vmatprep.subr.mxu0 0.0
  %2082 = vmatpush2.msra.mxu0 0.0
  %2083 = vmatprep.subr.mxu0 0.0
  %2084 = vmatpush2.msra.mxu0 0.0
  %2085 = vmatprep.subr.mxu0 0.0
  %2086 = vmatpush2.msra.mxu0 0.0
  %2087 = vmatprep.subr.mxu0 0.0
  %2088 = vmatpush2.msra.mxu0 0.0
  %2089 = vmatprep.subr.mxu0 0.0
  %2090 = vmatpush2.msra.mxu0 0.0
  %2091 = vmatprep.subr.mxu0 0.0
  %2092 = vmatpush2.msra.mxu0 0.0
  %2093 = vmatprep.subr.mxu0 0.0
  %2094 = vmatpush2.msra.mxu0 0.0
  %2095 = vmatprep.subr.mxu0 0.0
  %2096 = vmatpush2.msra.mxu0 0.0
  %2097 = vmatprep.subr.mxu0 0.0
  %2098 = vmatpush2.msra.mxu0 0.0
  %2099 = vmatprep.subr.mxu0 0.0
  %2100 = vmatpush2.msra.mxu0 0.0
  %2101 = vmatprep.subr.mxu0 0.0
  %2102 = vmatpush2.msra.mxu0 0.0
  %2103 = vmatprep.subr.mxu0 0.0
  %2104 = vmatpush2.msra.mxu0 0.0
  %2105 = vmatprep.subr.mxu0 0.0
  %2106 = vmatpush2.msra.mxu0 0.0
  %2107 = vmatprep.subr.mxu0 0.0
  %2108 = vmatpush2.msra.mxu0 0.0
  %2109 = vmatprep.subr.mxu0 0.0
  %2110 = vmatpush2.msra.mxu0 %v2048
  %2111 = vmatprep.subr.mxu0 0.0
  %2112 = vmatpush2.msra.mxu0 %v2047
  %2113 = vmatprep.mubr.f32.mxu0 %v46
  %2114 = vmatmul.mubr.f32.gmra.mxu0 %v14
  %v2115 = vpop.f32.mrf.mxu0
  %v2116 = vadd.f32 0.0, %v2115
  %v2117 = vpop.f32.mrf.mxu0
  %2118 = vmatprep.mubr.f32.mxu0 %v49
  %2119 = vmatmul.mubr.f32.gmra.mxu0 %v16
  %v2120 = vpop.f32.mrf.mxu0
  %v2121 = vadd.f32 0.0, %v2120
  %v2122 = vpop.f32.mrf.mxu0
  %2123 = vmatprep.mubr.f32.mxu0 %v52
  %2124 = vmatmul.mubr.f32.gmra.mxu0 %v18
  %v2125 = vpop.f32.mrf.mxu0
  %v2126 = vadd.f32 0.0, %v2125
  %v2127 = vpop.f32.mrf.mxu0
  %2128 = vmatprep.mubr.f32.mxu0 %v55
  %2129 = vmatmul.mubr.f32.gmra.mxu0 %v20
  %v2130 = vpop.f32.mrf.mxu0
  %v2131 = vadd.f32 0.0, %v2130
  %v2132 = vpop.f32.mrf.mxu0
  %2133 = vdwg.mxu0
  %s2134 = scalar_lea.vmem %s0, 2736
  %v2135 = vld [vmem:[%s2134] sm:$0xff]
  %v2136 = vld [vmem:[%s2134 + $0x8] sm:$0xff]
  %v2137 = vld [vmem:[%s2134 + $0x10] sm:$0xff]
  %v2138 = vld [vmem:[%s2134 + $0x18] sm:$0xff]
  %v2139 = vld [vmem:[%s2134 + $0x20] sm:$0xff]
  %v2140 = vld [vmem:[%s2134 + $0x28] sm:$0xff]
  %v2141 = vld [vmem:[%s2134 + $0x30] sm:$0xff]
  %v2142 = vld [vmem:[%s2134 + $0x38] sm:$0xff]
  %v2143 = vld [vmem:[%s2134 + $0x40] sm:$0xff]
  %v2144 = vld [vmem:[%s2134 + $0x48] sm:$0xff]
  %v2145 = vld [vmem:[%s2134 + $0x50] sm:$0xff]
  %v2146 = vld [vmem:[%s2134 + $0x58] sm:$0xff]
  %v2147 = vld [vmem:[%s2134 + $0x60] sm:$0xff]
  %v2148 = vld [vmem:[%s2134 + $0x68] sm:$0xff]
  %v2149 = vld [vmem:[%s2134 + $0x70] sm:$0xff]
  %v2150 = vld [vmem:[%s2134 + $0x78] sm:$0xff]
  %v2151 = vld [vmem:[%s2134 + $0x80] sm:$0xff]
  %v2152 = vld [vmem:[%s2134 + $0x88] sm:$0xff]
  %2153 = vmatprep.subr.mxu0 0.0
  %2154 = vmatpush1.msra.mxu0 %v2150
  %2155 = vmatprep.subr.mxu0 0.0
  %2156 = vmatpush1.msra.mxu0 %v2149
  %2157 = vmatprep.subr.mxu0 0.0
  %2158 = vmatpush1.msra.mxu0 %v2148
  %2159 = vmatprep.subr.mxu0 0.0
  %2160 = vmatpush1.msra.mxu0 %v2147
  %2161 = vmatprep.subr.mxu0 0.0
  %2162 = vmatpush1.msra.mxu0 %v2146
  %2163 = vmatprep.subr.mxu0 0.0
  %2164 = vmatpush1.msra.mxu0 %v2145
  %2165 = vmatprep.subr.mxu0 0.0
  %2166 = vmatpush1.msra.mxu0 %v2144
  %2167 = vmatprep.subr.mxu0 0.0
  %2168 = vmatpush1.msra.mxu0 %v2143
  %2169 = vmatprep.subr.mxu0 0.0
  %2170 = vmatpush1.msra.mxu0 %v2142
  %2171 = vmatprep.subr.mxu0 0.0
  %2172 = vmatpush1.msra.mxu0 %v2141
  %2173 = vmatprep.subr.mxu0 0.0
  %2174 = vmatpush1.msra.mxu0 %v2140
  %2175 = vmatprep.subr.mxu0 0.0
  %2176 = vmatpush1.msra.mxu0 %v2139
  %2177 = vmatprep.subr.mxu0 0.0
  %2178 = vmatpush1.msra.mxu0 %v2138
  %2179 = vmatprep.subr.mxu0 0.0
  %2180 = vmatpush1.msra.mxu0 %v2137
  %2181 = vmatprep.subr.mxu0 0.0
  %2182 = vmatpush1.msra.mxu0 %v2136
  %2183 = vmatprep.subr.mxu0 0.0
  %2184 = vmatpush1.msra.mxu0 %v2135
  %2185 = vmatprep.subr.mxu0 0.0
  %2186 = vmatpush2.msra.mxu0 0.0
  %2187 = vmatprep.subr.mxu0 0.0
  %2188 = vmatpush2.msra.mxu0 0.0
  %2189 = vmatprep.subr.mxu0 0.0
  %2190 = vmatpush2.msra.mxu0 0.0
  %2191 = vmatprep.subr.mxu0 0.0
  %2192 = vmatpush2.msra.mxu0 0.0
  %2193 = vmatprep.subr.mxu0 0.0
  %2194 = vmatpush2.msra.mxu0 0.0
  %2195 = vmatprep.subr.mxu0 0.0
  %2196 = vmatpush2.msra.mxu0 0.0
  %2197 = vmatprep.subr.mxu0 0.0
  %2198 = vmatpush2.msra.mxu0 0.0
  %2199 = vmatprep.subr.mxu0 0.0
  %2200 = vmatpush2.msra.mxu0 0.0
  %2201 = vmatprep.subr.mxu0 0.0
  %2202 = vmatpush2.msra.mxu0 0.0
  %2203 = vmatprep.subr.mxu0 0.0
  %2204 = vmatpush2.msra.mxu0 0.0
  %2205 = vmatprep.subr.mxu0 0.0
  %2206 = vmatpush2.msra.mxu0 0.0
  %2207 = vmatprep.subr.mxu0 0.0
  %2208 = vmatpush2.msra.mxu0 0.0
  %2209 = vmatprep.subr.mxu0 0.0
  %2210 = vmatpush2.msra.mxu0 0.0
  %2211 = vmatprep.subr.mxu0 0.0
  %2212 = vmatpush2.msra.mxu0 0.0
  %2213 = vmatprep.subr.mxu0 0.0
  %2214 = vmatpush2.msra.mxu0 %v2152
  %2215 = vmatprep.subr.mxu0 0.0
  %2216 = vmatpush2.msra.mxu0 %v2151
  %2217 = vmatprep.mubr.f32.mxu0 %v46
  %2218 = vmatmul.mubr.f32.gmra.mxu0 %v14
  %v2219 = vpop.f32.mrf.mxu0
  %v2220 = vadd.f32 0.0, %v2219
  %v2221 = vpop.f32.mrf.mxu0
  %2222 = vmatprep.mubr.f32.mxu0 %v49
  %2223 = vmatmul.mubr.f32.gmra.mxu0 %v16
  %v2224 = vpop.f32.mrf.mxu0
  %v2225 = vadd.f32 0.0, %v2224
  %v2226 = vpop.f32.mrf.mxu0
  %2227 = vmatprep.mubr.f32.mxu0 %v52
  %2228 = vmatmul.mubr.f32.gmra.mxu0 %v18
  %v2229 = vpop.f32.mrf.mxu0
  %v2230 = vadd.f32 0.0, %v2229
  %v2231 = vpop.f32.mrf.mxu0
  %2232 = vmatprep.mubr.f32.mxu0 %v55
  %2233 = vmatmul.mubr.f32.gmra.mxu0 %v20
  %v2234 = vpop.f32.mrf.mxu0
  %v2235 = vadd.f32 0.0, %v2234
  %v2236 = vpop.f32.mrf.mxu0
  %2237 = vdwg.mxu0
  %v2238 = vmax.f32 %v1908, %v2012
  %v2239 = vmax.f32 %v1913, %v2017
  %v2240 = vmax.f32 %v1918, %v2022
  %v2241 = vmax.f32 %v1923, %v2027
  %v2242 = vmax.f32 %v2116, %v2220
  %v2243 = vmax.f32 %v2121, %v2225
  %v2244 = vmax.f32 %v2126, %v2230
  %v2245 = vmax.f32 %v2131, %v2235
  %v2246 = vmax.f32 %v2238, %v2242
  %v2247 = vmax.f32 %v2239, %v2243
  %v2248 = vmax.f32 %v2240, %v2244
  %v2249 = vmax.f32 %v2241, %v2245
  %v2250 = vadd.f32 %v2246, %v469
  %v2251 = vadd.f32 %v2247, %v474
  %v2252 = vadd.f32 %v2248, %v479
  %v2253 = vadd.f32 %v2249, %v484
  %v2254 = vmax.f32 %v2250, 0.0
  %v2255 = vmax.f32 %v2251, 0.0
  %v2256 = vmax.f32 %v2252, 0.0
  %v2257 = vmax.f32 %v2253, 0.0
  %s2258 = scalar_lea.vmem %s3, 128
  %2259 = vst.msk [vmem:[%s2258] sm:$0xff] %vm494, %v2254
  %2260 = vst.msk [vmem:[%s2258 + $0x8] sm:$0xff] %vm494, %v2255
  %2261 = vst.msk [vmem:[%s2258 + $0x10] sm:$0xff] %vm494, %v2256
  %2262 = vst.msk [vmem:[%s2258 + $0x18] sm:$0xff] %vm494, %v2257
  %s2263 = scalar_lea.vmem %s0, 2880
  %v2264 = vld [vmem:[%s2263] sm:$0xff]
  %v2265 = vld [vmem:[%s2263 + $0x8] sm:$0xff]
  %v2266 = vld [vmem:[%s2263 + $0x10] sm:$0xff]
  %v2267 = vld [vmem:[%s2263 + $0x18] sm:$0xff]
  %v2268 = vld [vmem:[%s2263 + $0x20] sm:$0xff]
  %v2269 = vld [vmem:[%s2263 + $0x28] sm:$0xff]
  %v2270 = vld [vmem:[%s2263 + $0x30] sm:$0xff]
  %v2271 = vld [vmem:[%s2263 + $0x38] sm:$0xff]
  %v2272 = vld [vmem:[%s2263 + $0x40] sm:$0xff]
  %v2273 = vld [vmem:[%s2263 + $0x48] sm:$0xff]
  %v2274 = vld [vmem:[%s2263 + $0x50] sm:$0xff]
  %v2275 = vld [vmem:[%s2263 + $0x58] sm:$0xff]
  %v2276 = vld [vmem:[%s2263 + $0x60] sm:$0xff]
  %v2277 = vld [vmem:[%s2263 + $0x68] sm:$0xff]
  %v2278 = vld [vmem:[%s2263 + $0x70] sm:$0xff]
  %v2279 = vld [vmem:[%s2263 + $0x78] sm:$0xff]
  %v2280 = vld [vmem:[%s2263 + $0x80] sm:$0xff]
  %v2281 = vld [vmem:[%s2263 + $0x88] sm:$0xff]
  %2282 = vmatprep.subr.mxu0 0.0
  %2283 = vmatpush1.msra.mxu0 %v2279
  %2284 = vmatprep.subr.mxu0 0.0
  %2285 = vmatpush1.msra.mxu0 %v2278
  %2286 = vmatprep.subr.mxu0 0.0
  %2287 = vmatpush1.msra.mxu0 %v2277
  %2288 = vmatprep.subr.mxu0 0.0
  %2289 = vmatpush1.msra.mxu0 %v2276
  %2290 = vmatprep.subr.mxu0 0.0
  %2291 = vmatpush1.msra.mxu0 %v2275
  %2292 = vmatprep.subr.mxu0 0.0
  %2293 = vmatpush1.msra.mxu0 %v2274
  %2294 = vmatprep.subr.mxu0 0.0
  %2295 = vmatpush1.msra.mxu0 %v2273
  %2296 = vmatprep.subr.mxu0 0.0
  %2297 = vmatpush1.msra.mxu0 %v2272
  %2298 = vmatprep.subr.mxu0 0.0
  %2299 = vmatpush1.msra.mxu0 %v2271
  %2300 = vmatprep.subr.mxu0 0.0
  %2301 = vmatpush1.msra.mxu0 %v2270
  %2302 = vmatprep.subr.mxu0 0.0
  %2303 = vmatpush1.msra.mxu0 %v2269
  %2304 = vmatprep.subr.mxu0 0.0
  %2305 = vmatpush1.msra.mxu0 %v2268
  %2306 = vmatprep.subr.mxu0 0.0
  %2307 = vmatpush1.msra.mxu0 %v2267
  %2308 = vmatprep.subr.mxu0 0.0
  %2309 = vmatpush1.msra.mxu0 %v2266
  %2310 = vmatprep.subr.mxu0 0.0
  %2311 = vmatpush1.msra.mxu0 %v2265
  %2312 = vmatprep.subr.mxu0 0.0
  %2313 = vmatpush1.msra.mxu0 %v2264
  %2314 = vmatprep.subr.mxu0 0.0
  %2315 = vmatpush2.msra.mxu0 0.0
  %2316 = vmatprep.subr.mxu0 0.0
  %2317 = vmatpush2.msra.mxu0 0.0
  %2318 = vmatprep.subr.mxu0 0.0
  %2319 = vmatpush2.msra.mxu0 0.0
  %2320 = vmatprep.subr.mxu0 0.0
  %2321 = vmatpush2.msra.mxu0 0.0
  %2322 = vmatprep.subr.mxu0 0.0
  %2323 = vmatpush2.msra.mxu0 0.0
  %2324 = vmatprep.subr.mxu0 0.0
  %2325 = vmatpush2.msra.mxu0 0.0
  %2326 = vmatprep.subr.mxu0 0.0
  %2327 = vmatpush2.msra.mxu0 0.0
  %2328 = vmatprep.subr.mxu0 0.0
  %2329 = vmatpush2.msra.mxu0 0.0
  %2330 = vmatprep.subr.mxu0 0.0
  %2331 = vmatpush2.msra.mxu0 0.0
  %2332 = vmatprep.subr.mxu0 0.0
  %2333 = vmatpush2.msra.mxu0 0.0
  %2334 = vmatprep.subr.mxu0 0.0
  %2335 = vmatpush2.msra.mxu0 0.0
  %2336 = vmatprep.subr.mxu0 0.0
  %2337 = vmatpush2.msra.mxu0 0.0
  %2338 = vmatprep.subr.mxu0 0.0
  %2339 = vmatpush2.msra.mxu0 0.0
  %2340 = vmatprep.subr.mxu0 0.0
  %2341 = vmatpush2.msra.mxu0 0.0
  %2342 = vmatprep.subr.mxu0 0.0
  %2343 = vmatpush2.msra.mxu0 %v2281
  %2344 = vmatprep.subr.mxu0 0.0
  %2345 = vmatpush2.msra.mxu0 %v2280
  %2346 = vmatprep.mubr.f32.mxu0 %v46
  %2347 = vmatmul.mubr.f32.gmra.mxu0 %v14
  %v2348 = vpop.f32.mrf.mxu0
  %v2349 = vadd.f32 0.0, %v2348
  %v2350 = vpop.f32.mrf.mxu0
  %2351 = vmatprep.mubr.f32.mxu0 %v49
  %2352 = vmatmul.mubr.f32.gmra.mxu0 %v16
  %v2353 = vpop.f32.mrf.mxu0
  %v2354 = vadd.f32 0.0, %v2353
  %v2355 = vpop.f32.mrf.mxu0
  %2356 = vmatprep.mubr.f32.mxu0 %v52
  %2357 = vmatmul.mubr.f32.gmra.mxu0 %v18
  %v2358 = vpop.f32.mrf.mxu0
  %v2359 = vadd.f32 0.0, %v2358
  %v2360 = vpop.f32.mrf.mxu0
  %2361 = vmatprep.mubr.f32.mxu0 %v55
  %2362 = vmatmul.mubr.f32.gmra.mxu0 %v20
  %v2363 = vpop.f32.mrf.mxu0
  %v2364 = vadd.f32 0.0, %v2363
  %v2365 = vpop.f32.mrf.mxu0
  %2366 = vdwg.mxu0
  %s2367 = scalar_lea.vmem %s0, 3024
  %v2368 = vld [vmem:[%s2367] sm:$0xff]
  %v2369 = vld [vmem:[%s2367 + $0x8] sm:$0xff]
  %v2370 = vld [vmem:[%s2367 + $0x10] sm:$0xff]
  %v2371 = vld [vmem:[%s2367 + $0x18] sm:$0xff]
  %v2372 = vld [vmem:[%s2367 + $0x20] sm:$0xff]
  %v2373 = vld [vmem:[%s2367 + $0x28] sm:$0xff]
  %v2374 = vld [vmem:[%s2367 + $0x30] sm:$0xff]
  %v2375 = vld [vmem:[%s2367 + $0x38] sm:$0xff]
  %v2376 = vld [vmem:[%s2367 + $0x40] sm:$0xff]
  %v2377 = vld [vmem:[%s2367 + $0x48] sm:$0xff]
  %v2378 = vld [vmem:[%s2367 + $0x50] sm:$0xff]
  %v2379 = vld [vmem:[%s2367 + $0x58] sm:$0xff]
  %v2380 = vld [vmem:[%s2367 + $0x60] sm:$0xff]
  %v2381 = vld [vmem:[%s2367 + $0x68] sm:$0xff]
  %v2382 = vld [vmem:[%s2367 + $0x70] sm:$0xff]
  %v2383 = vld [vmem:[%s2367 + $0x78] sm:$0xff]
  %v2384 = vld [vmem:[%s2367 + $0x80] sm:$0xff]
  %v2385 = vld [vmem:[%s2367 + $0x88] sm:$0xff]
  %2386 = vmatprep.subr.mxu0 0.0
  %2387 = vmatpush1.msra.mxu0 %v2383
  %2388 = vmatprep.subr.mxu0 0.0
  %2389 = vmatpush1.msra.mxu0 %v2382
  %2390 = vmatprep.subr.mxu0 0.0
  %2391 = vmatpush1.msra.mxu0 %v2381
  %2392 = vmatprep.subr.mxu0 0.0
  %2393 = vmatpush1.msra.mxu0 %v2380
  %2394 = vmatprep.subr.mxu0 0.0
  %2395 = vmatpush1.msra.mxu0 %v2379
  %2396 = vmatprep.subr.mxu0 0.0
  %2397 = vmatpush1.msra.mxu0 %v2378
  %2398 = vmatprep.subr.mxu0 0.0
  %2399 = vmatpush1.msra.mxu0 %v2377
  %2400 = vmatprep.subr.mxu0 0.0
  %2401 = vmatpush1.msra.mxu0 %v2376
  %2402 = vmatprep.subr.mxu0 0.0
  %2403 = vmatpush1.msra.mxu0 %v2375
  %2404 = vmatprep.subr.mxu0 0.0
  %2405 = vmatpush1.msra.mxu0 %v2374
  %2406 = vmatprep.subr.mxu0 0.0
  %2407 = vmatpush1.msra.mxu0 %v2373
  %2408 = vmatprep.subr.mxu0 0.0
  %2409 = vmatpush1.msra.mxu0 %v2372
  %2410 = vmatprep.subr.mxu0 0.0
  %2411 = vmatpush1.msra.mxu0 %v2371
  %2412 = vmatprep.subr.mxu0 0.0
  %2413 = vmatpush1.msra.mxu0 %v2370
  %2414 = vmatprep.subr.mxu0 0.0
  %2415 = vmatpush1.msra.mxu0 %v2369
  %2416 = vmatprep.subr.mxu0 0.0
  %2417 = vmatpush1.msra.mxu0 %v2368
  %2418 = vmatprep.subr.mxu0 0.0
  %2419 = vmatpush2.msra.mxu0 0.0
  %2420 = vmatprep.subr.mxu0 0.0
  %2421 = vmatpush2.msra.mxu0 0.0
  %2422 = vmatprep.subr.mxu0 0.0
  %2423 = vmatpush2.msra.mxu0 0.0
  %2424 = vmatprep.subr.mxu0 0.0
  %2425 = vmatpush2.msra.mxu0 0.0
  %2426 = vmatprep.subr.mxu0 0.0
  %2427 = vmatpush2.msra.mxu0 0.0
  %2428 = vmatprep.subr.mxu0 0.0
  %2429 = vmatpush2.msra.mxu0 0.0
  %2430 = vmatprep.subr.mxu0 0.0
  %2431 = vmatpush2.msra.mxu0 0.0
  %2432 = vmatprep.subr.mxu0 0.0
  %2433 = vmatpush2.msra.mxu0 0.0
  %2434 = vmatprep.subr.mxu0 0.0
  %2435 = vmatpush2.msra.mxu0 0.0
  %2436 = vmatprep.subr.mxu0 0.0
  %2437 = vmatpush2.msra.mxu0 0.0
  %2438 = vmatprep.subr.mxu0 0.0
  %2439 = vmatpush2.msra.mxu0 0.0
  %2440 = vmatprep.subr.mxu0 0.0
  %2441 = vmatpush2.msra.mxu0 0.0
  %2442 = vmatprep.subr.mxu0 0.0
  %2443 = vmatpush2.msra.mxu0 0.0
  %2444 = vmatprep.subr.mxu0 0.0
  %2445 = vmatpush2.msra.mxu0 0.0
  %2446 = vmatprep.subr.mxu0 0.0
  %2447 = vmatpush2.msra.mxu0 %v2385
  %2448 = vmatprep.subr.mxu0 0.0
  %2449 = vmatpush2.msra.mxu0 %v2384
  %2450 = vmatprep.mubr.f32.mxu0 %v46
  %2451 = vmatmul.mubr.f32.gmra.mxu0 %v14
  %v2452 = vpop.f32.mrf.mxu0
  %v2453 = vadd.f32 0.0, %v2452
  %v2454 = vpop.f32.mrf.mxu0
  %2455 = vmatprep.mubr.f32.mxu0 %v49
  %2456 = vmatmul.mubr.f32.gmra.mxu0 %v16
  %v2457 = vpop.f32.mrf.mxu0
  %v2458 = vadd.f32 0.0, %v2457
  %v2459 = vpop.f32.mrf.mxu0
  %2460 = vmatprep.mubr.f32.mxu0 %v52
  %2461 = vmatmul.mubr.f32.gmra.mxu0 %v18
  %v2462 = vpop.f32.mrf.mxu0
  %v2463 = vadd.f32 0.0, %v2462
  %v2464 = vpop.f32.mrf.mxu0
  %2465 = vmatprep.mubr.f32.mxu0 %v55
  %2466 = vmatmul.mubr.f32.gmra.mxu0 %v20
  %v2467 = vpop.f32.mrf.mxu0
  %v2468 = vadd.f32 0.0, %v2467
  %v2469 = vpop.f32.mrf.mxu0
  %2470 = vdwg.mxu0
  %s2471 = scalar_lea.vmem %s0, 3168
  %v2472 = vld [vmem:[%s2471] sm:$0xff]
  %v2473 = vld [vmem:[%s2471 + $0x8] sm:$0xff]
  %v2474 = vld [vmem:[%s2471 + $0x10] sm:$0xff]
  %v2475 = vld [vmem:[%s2471 + $0x18] sm:$0xff]
  %v2476 = vld [vmem:[%s2471 + $0x20] sm:$0xff]
  %v2477 = vld [vmem:[%s2471 + $0x28] sm:$0xff]
  %v2478 = vld [vmem:[%s2471 + $0x30] sm:$0xff]
  %v2479 = vld [vmem:[%s2471 + $0x38] sm:$0xff]
  %v2480 = vld [vmem:[%s2471 + $0x40] sm:$0xff]
  %v2481 = vld [vmem:[%s2471 + $0x48] sm:$0xff]
  %v2482 = vld [vmem:[%s2471 + $0x50] sm:$0xff]
  %v2483 = vld [vmem:[%s2471 + $0x58] sm:$0xff]
  %v2484 = vld [vmem:[%s2471 + $0x60] sm:$0xff]
  %v2485 = vld [vmem:[%s2471 + $0x68] sm:$0xff]
  %v2486 = vld [vmem:[%s2471 + $0x70] sm:$0xff]
  %v2487 = vld [vmem:[%s2471 + $0x78] sm:$0xff]
  %v2488 = vld [vmem:[%s2471 + $0x80] sm:$0xff]
  %v2489 = vld [vmem:[%s2471 + $0x88] sm:$0xff]
  %2490 = vmatprep.subr.mxu0 0.0
  %2491 = vmatpush1.msra.mxu0 %v2487
  %2492 = vmatprep.subr.mxu0 0.0
  %2493 = vmatpush1.msra.mxu0 %v2486
  %2494 = vmatprep.subr.mxu0 0.0
  %2495 = vmatpush1.msra.mxu0 %v2485
  %2496 = vmatprep.subr.mxu0 0.0
  %2497 = vmatpush1.msra.mxu0 %v2484
  %2498 = vmatprep.subr.mxu0 0.0
  %2499 = vmatpush1.msra.mxu0 %v2483
  %2500 = vmatprep.subr.mxu0 0.0
  %2501 = vmatpush1.msra.mxu0 %v2482
  %2502 = vmatprep.subr.mxu0 0.0
  %2503 = vmatpush1.msra.mxu0 %v2481
  %2504 = vmatprep.subr.mxu0 0.0
  %2505 = vmatpush1.msra.mxu0 %v2480
  %2506 = vmatprep.subr.mxu0 0.0
  %2507 = vmatpush1.msra.mxu0 %v2479
  %2508 = vmatprep.subr.mxu0 0.0
  %2509 = vmatpush1.msra.mxu0 %v2478
  %2510 = vmatprep.subr.mxu0 0.0
  %2511 = vmatpush1.msra.mxu0 %v2477
  %2512 = vmatprep.subr.mxu0 0.0
  %2513 = vmatpush1.msra.mxu0 %v2476
  %2514 = vmatprep.subr.mxu0 0.0
  %2515 = vmatpush1.msra.mxu0 %v2475
  %2516 = vmatprep.subr.mxu0 0.0
  %2517 = vmatpush1.msra.mxu0 %v2474
  %2518 = vmatprep.subr.mxu0 0.0
  %2519 = vmatpush1.msra.mxu0 %v2473
  %2520 = vmatprep.subr.mxu0 0.0
  %2521 = vmatpush1.msra.mxu0 %v2472
  %2522 = vmatprep.subr.mxu0 0.0
  %2523 = vmatpush2.msra.mxu0 0.0
  %2524 = vmatprep.subr.mxu0 0.0
  %2525 = vmatpush2.msra.mxu0 0.0
  %2526 = vmatprep.subr.mxu0 0.0
  %2527 = vmatpush2.msra.mxu0 0.0
  %2528 = vmatprep.subr.mxu0 0.0
  %2529 = vmatpush2.msra.mxu0 0.0
  %2530 = vmatprep.subr.mxu0 0.0
  %2531 = vmatpush2.msra.mxu0 0.0
  %2532 = vmatprep.subr.mxu0 0.0
  %2533 = vmatpush2.msra.mxu0 0.0
  %2534 = vmatprep.subr.mxu0 0.0
  %2535 = vmatpush2.msra.mxu0 0.0
  %2536 = vmatprep.subr.mxu0 0.0
  %2537 = vmatpush2.msra.mxu0 0.0
  %2538 = vmatprep.subr.mxu0 0.0
  %2539 = vmatpush2.msra.mxu0 0.0
  %2540 = vmatprep.subr.mxu0 0.0
  %2541 = vmatpush2.msra.mxu0 0.0
  %2542 = vmatprep.subr.mxu0 0.0
  %2543 = vmatpush2.msra.mxu0 0.0
  %2544 = vmatprep.subr.mxu0 0.0
  %2545 = vmatpush2.msra.mxu0 0.0
  %2546 = vmatprep.subr.mxu0 0.0
  %2547 = vmatpush2.msra.mxu0 0.0
  %2548 = vmatprep.subr.mxu0 0.0
  %2549 = vmatpush2.msra.mxu0 0.0
  %2550 = vmatprep.subr.mxu0 0.0
  %2551 = vmatpush2.msra.mxu0 %v2489
  %2552 = vmatprep.subr.mxu0 0.0
  %2553 = vmatpush2.msra.mxu0 %v2488
  %2554 = vmatprep.mubr.f32.mxu0 %v46
  %2555 = vmatmul.mubr.f32.gmra.mxu0 %v14
  %v2556 = vpop.f32.mrf.mxu0
  %v2557 = vadd.f32 0.0, %v2556
  %v2558 = vpop.f32.mrf.mxu0
  %2559 = vmatprep.mubr.f32.mxu0 %v49
  %2560 = vmatmul.mubr.f32.gmra.mxu0 %v16
  %v2561 = vpop.f32.mrf.mxu0
  %v2562 = vadd.f32 0.0, %v2561
  %v2563 = vpop.f32.mrf.mxu0
  %2564 = vmatprep.mubr.f32.mxu0 %v52
  %2565 = vmatmul.mubr.f32.gmra.mxu0 %v18
  %v2566 = vpop.f32.mrf.mxu0
  %v2567 = vadd.f32 0.0, %v2566
  %v2568 = vpop.f32.mrf.mxu0
  %2569 = vmatprep.mubr.f32.mxu0 %v55
  %2570 = vmatmul.mubr.f32.gmra.mxu0 %v20
  %v2571 = vpop.f32.mrf.mxu0
  %v2572 = vadd.f32 0.0, %v2571
  %v2573 = vpop.f32.mrf.mxu0
  %2574 = vdwg.mxu0
  %s2575 = scalar_lea.vmem %s0, 3312
  %v2576 = vld [vmem:[%s2575] sm:$0xff]
  %v2577 = vld [vmem:[%s2575 + $0x8] sm:$0xff]
  %v2578 = vld [vmem:[%s2575 + $0x10] sm:$0xff]
  %v2579 = vld [vmem:[%s2575 + $0x18] sm:$0xff]
  %v2580 = vld [vmem:[%s2575 + $0x20] sm:$0xff]
  %v2581 = vld [vmem:[%s2575 + $0x28] sm:$0xff]
  %v2582 = vld [vmem:[%s2575 + $0x30] sm:$0xff]
  %v2583 = vld [vmem:[%s2575 + $0x38] sm:$0xff]
  %v2584 = vld [vmem:[%s2575 + $0x40] sm:$0xff]
  %v2585 = vld [vmem:[%s2575 + $0x48] sm:$0xff]
  %v2586 = vld [vmem:[%s2575 + $0x50] sm:$0xff]
  %v2587 = vld [vmem:[%s2575 + $0x58] sm:$0xff]
  %v2588 = vld [vmem:[%s2575 + $0x60] sm:$0xff]
  %v2589 = vld [vmem:[%s2575 + $0x68] sm:$0xff]
  %v2590 = vld [vmem:[%s2575 + $0x70] sm:$0xff]
  %v2591 = vld [vmem:[%s2575 + $0x78] sm:$0xff]
  %v2592 = vld [vmem:[%s2575 + $0x80] sm:$0xff]
  %v2593 = vld [vmem:[%s2575 + $0x88] sm:$0xff]
  %2594 = vmatprep.subr.mxu0 0.0
  %2595 = vmatpush1.msra.mxu0 %v2591
  %2596 = vmatprep.subr.mxu0 0.0
  %2597 = vmatpush1.msra.mxu0 %v2590
  %2598 = vmatprep.subr.mxu0 0.0
  %2599 = vmatpush1.msra.mxu0 %v2589
  %2600 = vmatprep.subr.mxu0 0.0
  %2601 = vmatpush1.msra.mxu0 %v2588
  %2602 = vmatprep.subr.mxu0 0.0
  %2603 = vmatpush1.msra.mxu0 %v2587
  %2604 = vmatprep.subr.mxu0 0.0
  %2605 = vmatpush1.msra.mxu0 %v2586
  %2606 = vmatprep.subr.mxu0 0.0
  %2607 = vmatpush1.msra.mxu0 %v2585
  %2608 = vmatprep.subr.mxu0 0.0
  %2609 = vmatpush1.msra.mxu0 %v2584
  %2610 = vmatprep.subr.mxu0 0.0
  %2611 = vmatpush1.msra.mxu0 %v2583
  %2612 = vmatprep.subr.mxu0 0.0
  %2613 = vmatpush1.msra.mxu0 %v2582
  %2614 = vmatprep.subr.mxu0 0.0
  %2615 = vmatpush1.msra.mxu0 %v2581
  %2616 = vmatprep.subr.mxu0 0.0
  %2617 = vmatpush1.msra.mxu0 %v2580
  %2618 = vmatprep.subr.mxu0 0.0
  %2619 = vmatpush1.msra.mxu0 %v2579
  %2620 = vmatprep.subr.mxu0 0.0
  %2621 = vmatpush1.msra.mxu0 %v2578
  %2622 = vmatprep.subr.mxu0 0.0
  %2623 = vmatpush1.msra.mxu0 %v2577
  %2624 = vmatprep.subr.mxu0 0.0
  %2625 = vmatpush1.msra.mxu0 %v2576
  %2626 = vmatprep.subr.mxu0 0.0
  %2627 = vmatpush2.msra.mxu0 0.0
  %2628 = vmatprep.subr.mxu0 0.0
  %2629 = vmatpush2.msra.mxu0 0.0
  %2630 = vmatprep.subr.mxu0 0.0
  %2631 = vmatpush2.msra.mxu0 0.0
  %2632 = vmatprep.subr.mxu0 0.0
  %2633 = vmatpush2.msra.mxu0 0.0
  %2634 = vmatprep.subr.mxu0 0.0
  %2635 = vmatpush2.msra.mxu0 0.0
  %2636 = vmatprep.subr.mxu0 0.0
  %2637 = vmatpush2.msra.mxu0 0.0
  %2638 = vmatprep.subr.mxu0 0.0
  %2639 = vmatpush2.msra.mxu0 0.0
  %2640 = vmatprep.subr.mxu0 0.0
  %2641 = vmatpush2.msra.mxu0 0.0
  %2642 = vmatprep.subr.mxu0 0.0
  %2643 = vmatpush2.msra.mxu0 0.0
  %2644 = vmatprep.subr.mxu0 0.0
  %2645 = vmatpush2.msra.mxu0 0.0
  %2646 = vmatprep.subr.mxu0 0.0
  %2647 = vmatpush2.msra.mxu0 0.0
  %2648 = vmatprep.subr.mxu0 0.0
  %2649 = vmatpush2.msra.mxu0 0.0
  %2650 = vmatprep.subr.mxu0 0.0
  %2651 = vmatpush2.msra.mxu0 0.0
  %2652 = vmatprep.subr.mxu0 0.0
  %2653 = vmatpush2.msra.mxu0 0.0
  %2654 = vmatprep.subr.mxu0 0.0
  %2655 = vmatpush2.msra.mxu0 %v2593
  %2656 = vmatprep.subr.mxu0 0.0
  %2657 = vmatpush2.msra.mxu0 %v2592
  %2658 = vmatprep.mubr.f32.mxu0 %v46
  %2659 = vmatmul.mubr.f32.gmra.mxu0 %v14
  %v2660 = vpop.f32.mrf.mxu0
  %v2661 = vadd.f32 0.0, %v2660
  %v2662 = vpop.f32.mrf.mxu0
  %2663 = vmatprep.mubr.f32.mxu0 %v49
  %2664 = vmatmul.mubr.f32.gmra.mxu0 %v16
  %v2665 = vpop.f32.mrf.mxu0
  %v2666 = vadd.f32 0.0, %v2665
  %v2667 = vpop.f32.mrf.mxu0
  %2668 = vmatprep.mubr.f32.mxu0 %v52
  %2669 = vmatmul.mubr.f32.gmra.mxu0 %v18
  %v2670 = vpop.f32.mrf.mxu0
  %v2671 = vadd.f32 0.0, %v2670
  %v2672 = vpop.f32.mrf.mxu0
  %2673 = vmatprep.mubr.f32.mxu0 %v55
  %2674 = vmatmul.mubr.f32.gmra.mxu0 %v20
  %v2675 = vpop.f32.mrf.mxu0
  %v2676 = vadd.f32 0.0, %v2675
  %v2677 = vpop.f32.mrf.mxu0
  %2678 = vdwg.mxu0
  %v2679 = vmax.f32 %v2349, %v2453
  %v2680 = vmax.f32 %v2354, %v2458
  %v2681 = vmax.f32 %v2359, %v2463
  %v2682 = vmax.f32 %v2364, %v2468
  %v2683 = vmax.f32 %v2557, %v2661
  %v2684 = vmax.f32 %v2562, %v2666
  %v2685 = vmax.f32 %v2567, %v2671
  %v2686 = vmax.f32 %v2572, %v2676
  %v2687 = vmax.f32 %v2679, %v2683
  %v2688 = vmax.f32 %v2680, %v2684
  %v2689 = vmax.f32 %v2681, %v2685
  %v2690 = vmax.f32 %v2682, %v2686
  %v2691 = vadd.f32 %v2687, %v469
  %v2692 = vadd.f32 %v2688, %v474
  %v2693 = vadd.f32 %v2689, %v479
  %v2694 = vadd.f32 %v2690, %v484
  %v2695 = vmax.f32 %v2691, 0.0
  %v2696 = vmax.f32 %v2692, 0.0
  %v2697 = vmax.f32 %v2693, 0.0
  %v2698 = vmax.f32 %v2694, 0.0
  %s2699 = scalar_lea.vmem %s3, 160
  %2700 = vst.msk [vmem:[%s2699] sm:$0xff] %vm494, %v2695
  %2701 = vst.msk [vmem:[%s2699 + $0x8] sm:$0xff] %vm494, %v2696
  %2702 = vst.msk [vmem:[%s2699 + $0x10] sm:$0xff] %vm494, %v2697
  %2703 = vst.msk [vmem:[%s2699 + $0x18] sm:$0xff] %vm494, %v2698
  %s2704 = scalar_lea.vmem %s0, 3456
  %v2705 = vld [vmem:[%s2704] sm:$0xff]
  %v2706 = vld [vmem:[%s2704 + $0x8] sm:$0xff]
  %v2707 = vld [vmem:[%s2704 + $0x10] sm:$0xff]
  %v2708 = vld [vmem:[%s2704 + $0x18] sm:$0xff]
  %v2709 = vld [vmem:[%s2704 + $0x20] sm:$0xff]
  %v2710 = vld [vmem:[%s2704 + $0x28] sm:$0xff]
  %v2711 = vld [vmem:[%s2704 + $0x30] sm:$0xff]
  %v2712 = vld [vmem:[%s2704 + $0x38] sm:$0xff]
  %v2713 = vld [vmem:[%s2704 + $0x40] sm:$0xff]
  %v2714 = vld [vmem:[%s2704 + $0x48] sm:$0xff]
  %v2715 = vld [vmem:[%s2704 + $0x50] sm:$0xff]
  %v2716 = vld [vmem:[%s2704 + $0x58] sm:$0xff]
  %v2717 = vld [vmem:[%s2704 + $0x60] sm:$0xff]
  %v2718 = vld [vmem:[%s2704 + $0x68] sm:$0xff]
  %v2719 = vld [vmem:[%s2704 + $0x70] sm:$0xff]
  %v2720 = vld [vmem:[%s2704 + $0x78] sm:$0xff]
  %v2721 = vld [vmem:[%s2704 + $0x80] sm:$0xff]
  %v2722 = vld [vmem:[%s2704 + $0x88] sm:$0xff]
  %2723 = vmatprep.subr.mxu0 0.0
  %2724 = vmatpush1.msra.mxu0 %v2720
  %2725 = vmatprep.subr.mxu0 0.0
  %2726 = vmatpush1.msra.mxu0 %v2719
  %2727 = vmatprep.subr.mxu0 0.0
  %2728 = vmatpush1.msra.mxu0 %v2718
  %2729 = vmatprep.subr.mxu0 0.0
  %2730 = vmatpush1.msra.mxu0 %v2717
  %2731 = vmatprep.subr.mxu0 0.0
  %2732 = vmatpush1.msra.mxu0 %v2716
  %2733 = vmatprep.subr.mxu0 0.0
  %2734 = vmatpush1.msra.mxu0 %v2715
  %2735 = vmatprep.subr.mxu0 0.0
  %2736 = vmatpush1.msra.mxu0 %v2714
  %2737 = vmatprep.subr.mxu0 0.0
  %2738 = vmatpush1.msra.mxu0 %v2713
  %2739 = vmatprep.subr.mxu0 0.0
  %2740 = vmatpush1.msra.mxu0 %v2712
  %2741 = vmatprep.subr.mxu0 0.0
  %2742 = vmatpush1.msra.mxu0 %v2711
  %2743 = vmatprep.subr.mxu0 0.0
  %2744 = vmatpush1.msra.mxu0 %v2710
  %2745 = vmatprep.subr.mxu0 0.0
  %2746 = vmatpush1.msra.mxu0 %v2709
  %2747 = vmatprep.subr.mxu0 0.0
  %2748 = vmatpush1.msra.mxu0 %v2708
  %2749 = vmatprep.subr.mxu0 0.0
  %2750 = vmatpush1.msra.mxu0 %v2707
  %2751 = vmatprep.subr.mxu0 0.0
  %2752 = vmatpush1.msra.mxu0 %v2706
  %2753 = vmatprep.subr.mxu0 0.0
  %2754 = vmatpush1.msra.mxu0 %v2705
  %2755 = vmatprep.subr.mxu0 0.0
  %2756 = vmatpush2.msra.mxu0 0.0
  %2757 = vmatprep.subr.mxu0 0.0
  %2758 = vmatpush2.msra.mxu0 0.0
  %2759 = vmatprep.subr.mxu0 0.0
  %2760 = vmatpush2.msra.mxu0 0.0
  %2761 = vmatprep.subr.mxu0 0.0
  %2762 = vmatpush2.msra.mxu0 0.0
  %2763 = vmatprep.subr.mxu0 0.0
  %2764 = vmatpush2.msra.mxu0 0.0
  %2765 = vmatprep.subr.mxu0 0.0
  %2766 = vmatpush2.msra.mxu0 0.0
  %2767 = vmatprep.subr.mxu0 0.0
  %2768 = vmatpush2.msra.mxu0 0.0
  %2769 = vmatprep.subr.mxu0 0.0
  %2770 = vmatpush2.msra.mxu0 0.0
  %2771 = vmatprep.subr.mxu0 0.0
  %2772 = vmatpush2.msra.mxu0 0.0
  %2773 = vmatprep.subr.mxu0 0.0
  %2774 = vmatpush2.msra.mxu0 0.0
  %2775 = vmatprep.subr.mxu0 0.0
  %2776 = vmatpush2.msra.mxu0 0.0
  %2777 = vmatprep.subr.mxu0 0.0
  %2778 = vmatpush2.msra.mxu0 0.0
  %2779 = vmatprep.subr.mxu0 0.0
  %2780 = vmatpush2.msra.mxu0 0.0
  %2781 = vmatprep.subr.mxu0 0.0
  %2782 = vmatpush2.msra.mxu0 0.0
  %2783 = vmatprep.subr.mxu0 0.0
  %2784 = vmatpush2.msra.mxu0 %v2722
  %2785 = vmatprep.subr.mxu0 0.0
  %2786 = vmatpush2.msra.mxu0 %v2721
  %2787 = vmatprep.mubr.f32.mxu0 %v46
  %2788 = vmatmul.mubr.f32.gmra.mxu0 %v14
  %v2789 = vpop.f32.mrf.mxu0
  %v2790 = vadd.f32 0.0, %v2789
  %v2791 = vpop.f32.mrf.mxu0
  %2792 = vmatprep.mubr.f32.mxu0 %v49
  %2793 = vmatmul.mubr.f32.gmra.mxu0 %v16
  %v2794 = vpop.f32.mrf.mxu0
  %v2795 = vadd.f32 0.0, %v2794
  %v2796 = vpop.f32.mrf.mxu0
  %2797 = vmatprep.mubr.f32.mxu0 %v52
  %2798 = vmatmul.mubr.f32.gmra.mxu0 %v18
  %v2799 = vpop.f32.mrf.mxu0
  %v2800 = vadd.f32 0.0, %v2799
  %v2801 = vpop.f32.mrf.mxu0
  %2802 = vmatprep.mubr.f32.mxu0 %v55
  %2803 = vmatmul.mubr.f32.gmra.mxu0 %v20
  %v2804 = vpop.f32.mrf.mxu0
  %v2805 = vadd.f32 0.0, %v2804
  %v2806 = vpop.f32.mrf.mxu0
  %2807 = vdwg.mxu0
  %s2808 = scalar_lea.vmem %s0, 3600
  %v2809 = vld [vmem:[%s2808] sm:$0xff]
  %v2810 = vld [vmem:[%s2808 + $0x8] sm:$0xff]
  %v2811 = vld [vmem:[%s2808 + $0x10] sm:$0xff]
  %v2812 = vld [vmem:[%s2808 + $0x18] sm:$0xff]
  %v2813 = vld [vmem:[%s2808 + $0x20] sm:$0xff]
  %v2814 = vld [vmem:[%s2808 + $0x28] sm:$0xff]
  %v2815 = vld [vmem:[%s2808 + $0x30] sm:$0xff]
  %v2816 = vld [vmem:[%s2808 + $0x38] sm:$0xff]
  %v2817 = vld [vmem:[%s2808 + $0x40] sm:$0xff]
  %v2818 = vld [vmem:[%s2808 + $0x48] sm:$0xff]
  %v2819 = vld [vmem:[%s2808 + $0x50] sm:$0xff]
  %v2820 = vld [vmem:[%s2808 + $0x58] sm:$0xff]
  %v2821 = vld [vmem:[%s2808 + $0x60] sm:$0xff]
  %v2822 = vld [vmem:[%s2808 + $0x68] sm:$0xff]
  %v2823 = vld [vmem:[%s2808 + $0x70] sm:$0xff]
  %v2824 = vld [vmem:[%s2808 + $0x78] sm:$0xff]
  %v2825 = vld [vmem:[%s2808 + $0x80] sm:$0xff]
  %v2826 = vld [vmem:[%s2808 + $0x88] sm:$0xff]
  %2827 = vmatprep.subr.mxu0 0.0
  %2828 = vmatpush1.msra.mxu0 %v2824
  %2829 = vmatprep.subr.mxu0 0.0
  %2830 = vmatpush1.msra.mxu0 %v2823
  %2831 = vmatprep.subr.mxu0 0.0
  %2832 = vmatpush1.msra.mxu0 %v2822
  %2833 = vmatprep.subr.mxu0 0.0
  %2834 = vmatpush1.msra.mxu0 %v2821
  %2835 = vmatprep.subr.mxu0 0.0
  %2836 = vmatpush1.msra.mxu0 %v2820
  %2837 = vmatprep.subr.mxu0 0.0
  %2838 = vmatpush1.msra.mxu0 %v2819
  %2839 = vmatprep.subr.mxu0 0.0
  %2840 = vmatpush1.msra.mxu0 %v2818
  %2841 = vmatprep.subr.mxu0 0.0
  %2842 = vmatpush1.msra.mxu0 %v2817
  %2843 = vmatprep.subr.mxu0 0.0
  %2844 = vmatpush1.msra.mxu0 %v2816
  %2845 = vmatprep.subr.mxu0 0.0
  %2846 = vmatpush1.msra.mxu0 %v2815
  %2847 = vmatprep.subr.mxu0 0.0
  %2848 = vmatpush1.msra.mxu0 %v2814
  %2849 = vmatprep.subr.mxu0 0.0
  %2850 = vmatpush1.msra.mxu0 %v2813
  %2851 = vmatprep.subr.mxu0 0.0
  %2852 = vmatpush1.msra.mxu0 %v2812
  %2853 = vmatprep.subr.mxu0 0.0
  %2854 = vmatpush1.msra.mxu0 %v2811
  %2855 = vmatprep.subr.mxu0 0.0
  %2856 = vmatpush1.msra.mxu0 %v2810
  %2857 = vmatprep.subr.mxu0 0.0
  %2858 = vmatpush1.msra.mxu0 %v2809
  %2859 = vmatprep.subr.mxu0 0.0
  %2860 = vmatpush2.msra.mxu0 0.0
  %2861 = vmatprep.subr.mxu0 0.0
  %2862 = vmatpush2.msra.mxu0 0.0
  %2863 = vmatprep.subr.mxu0 0.0
  %2864 = vmatpush2.msra.mxu0 0.0
  %2865 = vmatprep.subr.mxu0 0.0
  %2866 = vmatpush2.msra.mxu0 0.0
  %2867 = vmatprep.subr.mxu0 0.0
  %2868 = vmatpush2.msra.mxu0 0.0
  %2869 = vmatprep.subr.mxu0 0.0
  %2870 = vmatpush2.msra.mxu0 0.0
  %2871 = vmatprep.subr.mxu0 0.0
  %2872 = vmatpush2.msra.mxu0 0.0
  %2873 = vmatprep.subr.mxu0 0.0
  %2874 = vmatpush2.msra.mxu0 0.0
  %2875 = vmatprep.subr.mxu0 0.0
  %2876 = vmatpush2.msra.mxu0 0.0
  %2877 = vmatprep.subr.mxu0 0.0
  %2878 = vmatpush2.msra.mxu0 0.0
  %2879 = vmatprep.subr.mxu0 0.0
  %2880 = vmatpush2.msra.mxu0 0.0
  %2881 = vmatprep.subr.mxu0 0.0
  %2882 = vmatpush2.msra.mxu0 0.0
  %2883 = vmatprep.subr.mxu0 0.0
  %2884 = vmatpush2.msra.mxu0 0.0
  %2885 = vmatprep.subr.mxu0 0.0
  %2886 = vmatpush2.msra.mxu0 0.0
  %2887 = vmatprep.subr.mxu0 0.0
  %2888 = vmatpush2.msra.mxu0 %v2826
  %2889 = vmatprep.subr.mxu0 0.0
  %2890 = vmatpush2.msra.mxu0 %v2825
  %2891 = vmatprep.mubr.f32.mxu0 %v46
  %2892 = vmatmul.mubr.f32.gmra.mxu0 %v14
  %v2893 = vpop.f32.mrf.mxu0
  %v2894 = vadd.f32 0.0, %v2893
  %v2895 = vpop.f32.mrf.mxu0
  %2896 = vmatprep.mubr.f32.mxu0 %v49
  %2897 = vmatmul.mubr.f32.gmra.mxu0 %v16
  %v2898 = vpop.f32.mrf.mxu0
  %v2899 = vadd.f32 0.0, %v2898
  %v2900 = vpop.f32.mrf.mxu0
  %2901 = vmatprep.mubr.f32.mxu0 %v52
  %2902 = vmatmul.mubr.f32.gmra.mxu0 %v18
  %v2903 = vpop.f32.mrf.mxu0
  %v2904 = vadd.f32 0.0, %v2903
  %v2905 = vpop.f32.mrf.mxu0
  %2906 = vmatprep.mubr.f32.mxu0 %v55
  %2907 = vmatmul.mubr.f32.gmra.mxu0 %v20
  %v2908 = vpop.f32.mrf.mxu0
  %v2909 = vadd.f32 0.0, %v2908
  %v2910 = vpop.f32.mrf.mxu0
  %2911 = vdwg.mxu0
  %s2912 = scalar_lea.vmem %s0, 3744
  %v2913 = vld [vmem:[%s2912] sm:$0xff]
  %v2914 = vld [vmem:[%s2912 + $0x8] sm:$0xff]
  %v2915 = vld [vmem:[%s2912 + $0x10] sm:$0xff]
  %v2916 = vld [vmem:[%s2912 + $0x18] sm:$0xff]
  %v2917 = vld [vmem:[%s2912 + $0x20] sm:$0xff]
  %v2918 = vld [vmem:[%s2912 + $0x28] sm:$0xff]
  %v2919 = vld [vmem:[%s2912 + $0x30] sm:$0xff]
  %v2920 = vld [vmem:[%s2912 + $0x38] sm:$0xff]
  %v2921 = vld [vmem:[%s2912 + $0x40] sm:$0xff]
  %v2922 = vld [vmem:[%s2912 + $0x48] sm:$0xff]
  %v2923 = vld [vmem:[%s2912 + $0x50] sm:$0xff]
  %v2924 = vld [vmem:[%s2912 + $0x58] sm:$0xff]
  %v2925 = vld [vmem:[%s2912 + $0x60] sm:$0xff]
  %v2926 = vld [vmem:[%s2912 + $0x68] sm:$0xff]
  %v2927 = vld [vmem:[%s2912 + $0x70] sm:$0xff]
  %v2928 = vld [vmem:[%s2912 + $0x78] sm:$0xff]
  %v2929 = vld [vmem:[%s2912 + $0x80] sm:$0xff]
  %v2930 = vld [vmem:[%s2912 + $0x88] sm:$0xff]
  %2931 = vmatprep.subr.mxu0 0.0
  %2932 = vmatpush1.msra.mxu0 %v2928
  %2933 = vmatprep.subr.mxu0 0.0
  %2934 = vmatpush1.msra.mxu0 %v2927
  %2935 = vmatprep.subr.mxu0 0.0
  %2936 = vmatpush1.msra.mxu0 %v2926
  %2937 = vmatprep.subr.mxu0 0.0
  %2938 = vmatpush1.msra.mxu0 %v2925
  %2939 = vmatprep.subr.mxu0 0.0
  %2940 = vmatpush1.msra.mxu0 %v2924
  %2941 = vmatprep.subr.mxu0 0.0
  %2942 = vmatpush1.msra.mxu0 %v2923
  %2943 = vmatprep.subr.mxu0 0.0
  %2944 = vmatpush1.msra.mxu0 %v2922
  %2945 = vmatprep.subr.mxu0 0.0
  %2946 = vmatpush1.msra.mxu0 %v2921
  %2947 = vmatprep.subr.mxu0 0.0
  %2948 = vmatpush1.msra.mxu0 %v2920
  %2949 = vmatprep.subr.mxu0 0.0
  %2950 = vmatpush1.msra.mxu0 %v2919
  %2951 = vmatprep.subr.mxu0 0.0
  %2952 = vmatpush1.msra.mxu0 %v2918
  %2953 = vmatprep.subr.mxu0 0.0
  %2954 = vmatpush1.msra.mxu0 %v2917
  %2955 = vmatprep.subr.mxu0 0.0
  %2956 = vmatpush1.msra.mxu0 %v2916
  %2957 = vmatprep.subr.mxu0 0.0
  %2958 = vmatpush1.msra.mxu0 %v2915
  %2959 = vmatprep.subr.mxu0 0.0
  %2960 = vmatpush1.msra.mxu0 %v2914
  %2961 = vmatprep.subr.mxu0 0.0
  %2962 = vmatpush1.msra.mxu0 %v2913
  %2963 = vmatprep.subr.mxu0 0.0
  %2964 = vmatpush2.msra.mxu0 0.0
  %2965 = vmatprep.subr.mxu0 0.0
  %2966 = vmatpush2.msra.mxu0 0.0
  %2967 = vmatprep.subr.mxu0 0.0
  %2968 = vmatpush2.msra.mxu0 0.0
  %2969 = vmatprep.subr.mxu0 0.0
  %2970 = vmatpush2.msra.mxu0 0.0
  %2971 = vmatprep.subr.mxu0 0.0
  %2972 = vmatpush2.msra.mxu0 0.0
  %2973 = vmatprep.subr.mxu0 0.0
  %2974 = vmatpush2.msra.mxu0 0.0
  %2975 = vmatprep.subr.mxu0 0.0
  %2976 = vmatpush2.msra.mxu0 0.0
  %2977 = vmatprep.subr.mxu0 0.0
  %2978 = vmatpush2.msra.mxu0 0.0
  %2979 = vmatprep.subr.mxu0 0.0
  %2980 = vmatpush2.msra.mxu0 0.0
  %2981 = vmatprep.subr.mxu0 0.0
  %2982 = vmatpush2.msra.mxu0 0.0
  %2983 = vmatprep.subr.mxu0 0.0
  %2984 = vmatpush2.msra.mxu0 0.0
  %2985 = vmatprep.subr.mxu0 0.0
  %2986 = vmatpush2.msra.mxu0 0.0
  %2987 = vmatprep.subr.mxu0 0.0
  %2988 = vmatpush2.msra.mxu0 0.0
  %2989 = vmatprep.subr.mxu0 0.0
  %2990 = vmatpush2.msra.mxu0 0.0
  %2991 = vmatprep.subr.mxu0 0.0
  %2992 = vmatpush2.msra.mxu0 %v2930
  %2993 = vmatprep.subr.mxu0 0.0
  %2994 = vmatpush2.msra.mxu0 %v2929
  %2995 = vmatprep.mubr.f32.mxu0 %v46
  %2996 = vmatmul.mubr.f32.gmra.mxu0 %v14
  %v2997 = vpop.f32.mrf.mxu0
  %v2998 = vadd.f32 0.0, %v2997
  %v2999 = vpop.f32.mrf.mxu0
  %3000 = vmatprep.mubr.f32.mxu0 %v49
  %3001 = vmatmul.mubr.f32.gmra.mxu0 %v16
  %v3002 = vpop.f32.mrf.mxu0
  %v3003 = vadd.f32 0.0, %v3002
  %v3004 = vpop.f32.mrf.mxu0
  %3005 = vmatprep.mubr.f32.mxu0 %v52
  %3006 = vmatmul.mubr.f32.gmra.mxu0 %v18
  %v3007 = vpop.f32.mrf.mxu0
  %v3008 = vadd.f32 0.0, %v3007
  %v3009 = vpop.f32.mrf.mxu0
  %3010 = vmatprep.mubr.f32.mxu0 %v55
  %3011 = vmatmul.mubr.f32.gmra.mxu0 %v20
  %v3012 = vpop.f32.mrf.mxu0
  %v3013 = vadd.f32 0.0, %v3012
  %v3014 = vpop.f32.mrf.mxu0
  %3015 = vdwg.mxu0
  %s3016 = scalar_lea.vmem %s0, 3888
  %v3017 = vld [vmem:[%s3016] sm:$0xff]
  %v3018 = vld [vmem:[%s3016 + $0x8] sm:$0xff]
  %v3019 = vld [vmem:[%s3016 + $0x10] sm:$0xff]
  %v3020 = vld [vmem:[%s3016 + $0x18] sm:$0xff]
  %v3021 = vld [vmem:[%s3016 + $0x20] sm:$0xff]
  %v3022 = vld [vmem:[%s3016 + $0x28] sm:$0xff]
  %v3023 = vld [vmem:[%s3016 + $0x30] sm:$0xff]
  %v3024 = vld [vmem:[%s3016 + $0x38] sm:$0xff]
  %v3025 = vld [vmem:[%s3016 + $0x40] sm:$0xff]
  %v3026 = vld [vmem:[%s3016 + $0x48] sm:$0xff]
  %v3027 = vld [vmem:[%s3016 + $0x50] sm:$0xff]
  %v3028 = vld [vmem:[%s3016 + $0x58] sm:$0xff]
  %v3029 = vld [vmem:[%s3016 + $0x60] sm:$0xff]
  %v3030 = vld [vmem:[%s3016 + $0x68] sm:$0xff]
  %v3031 = vld [vmem:[%s3016 + $0x70] sm:$0xff]
  %v3032 = vld [vmem:[%s3016 + $0x78] sm:$0xff]
  %v3033 = vld [vmem:[%s3016 + $0x80] sm:$0xff]
  %v3034 = vld [vmem:[%s3016 + $0x88] sm:$0xff]
  %3035 = vmatprep.subr.mxu0 0.0
  %3036 = vmatpush1.msra.mxu0 %v3032
  %3037 = vmatprep.subr.mxu0 0.0
  %3038 = vmatpush1.msra.mxu0 %v3031
  %3039 = vmatprep.subr.mxu0 0.0
  %3040 = vmatpush1.msra.mxu0 %v3030
  %3041 = vmatprep.subr.mxu0 0.0
  %3042 = vmatpush1.msra.mxu0 %v3029
  %3043 = vmatprep.subr.mxu0 0.0
  %3044 = vmatpush1.msra.mxu0 %v3028
  %3045 = vmatprep.subr.mxu0 0.0
  %3046 = vmatpush1.msra.mxu0 %v3027
  %3047 = vmatprep.subr.mxu0 0.0
  %3048 = vmatpush1.msra.mxu0 %v3026
  %3049 = vmatprep.subr.mxu0 0.0
  %3050 = vmatpush1.msra.mxu0 %v3025
  %3051 = vmatprep.subr.mxu0 0.0
  %3052 = vmatpush1.msra.mxu0 %v3024
  %3053 = vmatprep.subr.mxu0 0.0
  %3054 = vmatpush1.msra.mxu0 %v3023
  %3055 = vmatprep.subr.mxu0 0.0
  %3056 = vmatpush1.msra.mxu0 %v3022
  %3057 = vmatprep.subr.mxu0 0.0
  %3058 = vmatpush1.msra.mxu0 %v3021
  %3059 = vmatprep.subr.mxu0 0.0
  %3060 = vmatpush1.msra.mxu0 %v3020
  %3061 = vmatprep.subr.mxu0 0.0
  %3062 = vmatpush1.msra.mxu0 %v3019
  %3063 = vmatprep.subr.mxu0 0.0
  %3064 = vmatpush1.msra.mxu0 %v3018
  %3065 = vmatprep.subr.mxu0 0.0
  %3066 = vmatpush1.msra.mxu0 %v3017
  %3067 = vmatprep.subr.mxu0 0.0
  %3068 = vmatpush2.msra.mxu0 0.0
  %3069 = vmatprep.subr.mxu0 0.0
  %3070 = vmatpush2.msra.mxu0 0.0
  %3071 = vmatprep.subr.mxu0 0.0
  %3072 = vmatpush2.msra.mxu0 0.0
  %3073 = vmatprep.subr.mxu0 0.0
  %3074 = vmatpush2.msra.mxu0 0.0
  %3075 = vmatprep.subr.mxu0 0.0
  %3076 = vmatpush2.msra.mxu0 0.0
  %3077 = vmatprep.subr.mxu0 0.0
  %3078 = vmatpush2.msra.mxu0 0.0
  %3079 = vmatprep.subr.mxu0 0.0
  %3080 = vmatpush2.msra.mxu0 0.0
  %3081 = vmatprep.subr.mxu0 0.0
  %3082 = vmatpush2.msra.mxu0 0.0
  %3083 = vmatprep.subr.mxu0 0.0
  %3084 = vmatpush2.msra.mxu0 0.0
  %3085 = vmatprep.subr.mxu0 0.0
  %3086 = vmatpush2.msra.mxu0 0.0
  %3087 = vmatprep.subr.mxu0 0.0
  %3088 = vmatpush2.msra.mxu0 0.0
  %3089 = vmatprep.subr.mxu0 0.0
  %3090 = vmatpush2.msra.mxu0 0.0
  %3091 = vmatprep.subr.mxu0 0.0
  %3092 = vmatpush2.msra.mxu0 0.0
  %3093 = vmatprep.subr.mxu0 0.0
  %3094 = vmatpush2.msra.mxu0 0.0
  %3095 = vmatprep.subr.mxu0 0.0
  %3096 = vmatpush2.msra.mxu0 %v3034
  %3097 = vmatprep.subr.mxu0 0.0
  %3098 = vmatpush2.msra.mxu0 %v3033
  %3099 = vmatprep.mubr.f32.mxu0 %v46
  %3100 = vmatmul.mubr.f32.gmra.mxu0 %v14
  %v3101 = vpop.f32.mrf.mxu0
  %v3102 = vadd.f32 0.0, %v3101
  %v3103 = vpop.f32.mrf.mxu0
  %3104 = vmatprep.mubr.f32.mxu0 %v49
  %3105 = vmatmul.mubr.f32.gmra.mxu0 %v16
  %v3106 = vpop.f32.mrf.mxu0
  %v3107 = vadd.f32 0.0, %v3106
  %v3108 = vpop.f32.mrf.mxu0
  %3109 = vmatprep.mubr.f32.mxu0 %v52
  %3110 = vmatmul.mubr.f32.gmra.mxu0 %v18
  %v3111 = vpop.f32.mrf.mxu0
  %v3112 = vadd.f32 0.0, %v3111
  %v3113 = vpop.f32.mrf.mxu0
  %3114 = vmatprep.mubr.f32.mxu0 %v55
  %3115 = vmatmul.mubr.f32.gmra.mxu0 %v20
  %v3116 = vpop.f32.mrf.mxu0
  %v3117 = vadd.f32 0.0, %v3116
  %v3118 = vpop.f32.mrf.mxu0
  %3119 = vdwg.mxu0
  %v3120 = vmax.f32 %v2790, %v2894
  %v3121 = vmax.f32 %v2795, %v2899
  %v3122 = vmax.f32 %v2800, %v2904
  %v3123 = vmax.f32 %v2805, %v2909
  %v3124 = vmax.f32 %v2998, %v3102
  %v3125 = vmax.f32 %v3003, %v3107
  %v3126 = vmax.f32 %v3008, %v3112
  %v3127 = vmax.f32 %v3013, %v3117
  %v3128 = vmax.f32 %v3120, %v3124
  %v3129 = vmax.f32 %v3121, %v3125
  %v3130 = vmax.f32 %v3122, %v3126
  %v3131 = vmax.f32 %v3123, %v3127
  %v3132 = vadd.f32 %v3128, %v469
  %v3133 = vadd.f32 %v3129, %v474
  %v3134 = vadd.f32 %v3130, %v479
  %v3135 = vadd.f32 %v3131, %v484
  %v3136 = vmax.f32 %v3132, 0.0
  %v3137 = vmax.f32 %v3133, 0.0
  %v3138 = vmax.f32 %v3134, 0.0
  %v3139 = vmax.f32 %v3135, 0.0
  %s3140 = scalar_lea.vmem %s3, 192
  %3141 = vst.msk [vmem:[%s3140] sm:$0xff] %vm494, %v3136
  %3142 = vst.msk [vmem:[%s3140 + $0x8] sm:$0xff] %vm494, %v3137
  %3143 = vst.msk [vmem:[%s3140 + $0x10] sm:$0xff] %vm494, %v3138
  %3144 = vst.msk [vmem:[%s3140 + $0x18] sm:$0xff] %vm494, %v3139
  %s3145 = scalar_lea.vmem %s0, 4032
  %v3146 = vld [vmem:[%s3145] sm:$0xff]
  %v3147 = vld [vmem:[%s3145 + $0x8] sm:$0xff]
  %v3148 = vld [vmem:[%s3145 + $0x10] sm:$0xff]
  %v3149 = vld [vmem:[%s3145 + $0x18] sm:$0xff]
  %v3150 = vld [vmem:[%s3145 + $0x20] sm:$0xff]
  %v3151 = vld [vmem:[%s3145 + $0x28] sm:$0xff]
  %v3152 = vld [vmem:[%s3145 + $0x30] sm:$0xff]
  %v3153 = vld [vmem:[%s3145 + $0x38] sm:$0xff]
  %v3154 = vld [vmem:[%s3145 + $0x40] sm:$0xff]
  %v3155 = vld [vmem:[%s3145 + $0x48] sm:$0xff]
  %v3156 = vld [vmem:[%s3145 + $0x50] sm:$0xff]
  %v3157 = vld [vmem:[%s3145 + $0x58] sm:$0xff]
  %v3158 = vld [vmem:[%s3145 + $0x60] sm:$0xff]
  %v3159 = vld [vmem:[%s3145 + $0x68] sm:$0xff]
  %v3160 = vld [vmem:[%s3145 + $0x70] sm:$0xff]
  %v3161 = vld [vmem:[%s3145 + $0x78] sm:$0xff]
  %v3162 = vld [vmem:[%s3145 + $0x80] sm:$0xff]
  %v3163 = vld [vmem:[%s3145 + $0x88] sm:$0xff]
  %3164 = vmatprep.subr.mxu0 0.0
  %3165 = vmatpush1.msra.mxu0 %v3161
  %3166 = vmatprep.subr.mxu0 0.0
  %3167 = vmatpush1.msra.mxu0 %v3160
  %3168 = vmatprep.subr.mxu0 0.0
  %3169 = vmatpush1.msra.mxu0 %v3159
  %3170 = vmatprep.subr.mxu0 0.0
  %3171 = vmatpush1.msra.mxu0 %v3158
  %3172 = vmatprep.subr.mxu0 0.0
  %3173 = vmatpush1.msra.mxu0 %v3157
  %3174 = vmatprep.subr.mxu0 0.0
  %3175 = vmatpush1.msra.mxu0 %v3156
  %3176 = vmatprep.subr.mxu0 0.0
  %3177 = vmatpush1.msra.mxu0 %v3155
  %3178 = vmatprep.subr.mxu0 0.0
  %3179 = vmatpush1.msra.mxu0 %v3154
  %3180 = vmatprep.subr.mxu0 0.0
  %3181 = vmatpush1.msra.mxu0 %v3153
  %3182 = vmatprep.subr.mxu0 0.0
  %3183 = vmatpush1.msra.mxu0 %v3152
  %3184 = vmatprep.subr.mxu0 0.0
  %3185 = vmatpush1.msra.mxu0 %v3151
  %3186 = vmatprep.subr.mxu0 0.0
  %3187 = vmatpush1.msra.mxu0 %v3150
  %3188 = vmatprep.subr.mxu0 0.0
  %3189 = vmatpush1.msra.mxu0 %v3149
  %3190 = vmatprep.subr.mxu0 0.0
  %3191 = vmatpush1.msra.mxu0 %v3148
  %3192 = vmatprep.subr.mxu0 0.0
  %3193 = vmatpush1.msra.mxu0 %v3147
  %3194 = vmatprep.subr.mxu0 0.0
  %3195 = vmatpush1.msra.mxu0 %v3146
  %3196 = vmatprep.subr.mxu0 0.0
  %3197 = vmatpush2.msra.mxu0 0.0
  %3198 = vmatprep.subr.mxu0 0.0
  %3199 = vmatpush2.msra.mxu0 0.0
  %3200 = vmatprep.subr.mxu0 0.0
  %3201 = vmatpush2.msra.mxu0 0.0
  %3202 = vmatprep.subr.mxu0 0.0
  %3203 = vmatpush2.msra.mxu0 0.0
  %3204 = vmatprep.subr.mxu0 0.0
  %3205 = vmatpush2.msra.mxu0 0.0
  %3206 = vmatprep.subr.mxu0 0.0
  %3207 = vmatpush2.msra.mxu0 0.0
  %3208 = vmatprep.subr.mxu0 0.0
  %3209 = vmatpush2.msra.mxu0 0.0
  %3210 = vmatprep.subr.mxu0 0.0
  %3211 = vmatpush2.msra.mxu0 0.0
  %3212 = vmatprep.subr.mxu0 0.0
  %3213 = vmatpush2.msra.mxu0 0.0
  %3214 = vmatprep.subr.mxu0 0.0
  %3215 = vmatpush2.msra.mxu0 0.0
  %3216 = vmatprep.subr.mxu0 0.0
  %3217 = vmatpush2.msra.mxu0 0.0
  %3218 = vmatprep.subr.mxu0 0.0
  %3219 = vmatpush2.msra.mxu0 0.0
  %3220 = vmatprep.subr.mxu0 0.0
  %3221 = vmatpush2.msra.mxu0 0.0
  %3222 = vmatprep.subr.mxu0 0.0
  %3223 = vmatpush2.msra.mxu0 0.0
  %3224 = vmatprep.subr.mxu0 0.0
  %3225 = vmatpush2.msra.mxu0 %v3163
  %3226 = vmatprep.subr.mxu0 0.0
  %3227 = vmatpush2.msra.mxu0 %v3162
  %3228 = vmatprep.mubr.f32.mxu0 %v46
  %3229 = vmatmul.mubr.f32.gmra.mxu0 %v14
  %v3230 = vpop.f32.mrf.mxu0
  %v3231 = vadd.f32 0.0, %v3230
  %v3232 = vpop.f32.mrf.mxu0
  %3233 = vmatprep.mubr.f32.mxu0 %v49
  %3234 = vmatmul.mubr.f32.gmra.mxu0 %v16
  %v3235 = vpop.f32.mrf.mxu0
  %v3236 = vadd.f32 0.0, %v3235
  %v3237 = vpop.f32.mrf.mxu0
  %3238 = vmatprep.mubr.f32.mxu0 %v52
  %3239 = vmatmul.mubr.f32.gmra.mxu0 %v18
  %v3240 = vpop.f32.mrf.mxu0
  %v3241 = vadd.f32 0.0, %v3240
  %v3242 = vpop.f32.mrf.mxu0
  %3243 = vmatprep.mubr.f32.mxu0 %v55
  %3244 = vmatmul.mubr.f32.gmra.mxu0 %v20
  %v3245 = vpop.f32.mrf.mxu0
  %v3246 = vadd.f32 0.0, %v3245
  %v3247 = vpop.f32.mrf.mxu0
  %3248 = vdwg.mxu0
  %s3249 = scalar_lea.vmem %s0, 4176
  %v3250 = vld [vmem:[%s3249] sm:$0xff]
  %v3251 = vld [vmem:[%s3249 + $0x8] sm:$0xff]
  %v3252 = vld [vmem:[%s3249 + $0x10] sm:$0xff]
  %v3253 = vld [vmem:[%s3249 + $0x18] sm:$0xff]
  %v3254 = vld [vmem:[%s3249 + $0x20] sm:$0xff]
  %v3255 = vld [vmem:[%s3249 + $0x28] sm:$0xff]
  %v3256 = vld [vmem:[%s3249 + $0x30] sm:$0xff]
  %v3257 = vld [vmem:[%s3249 + $0x38] sm:$0xff]
  %v3258 = vld [vmem:[%s3249 + $0x40] sm:$0xff]
  %v3259 = vld [vmem:[%s3249 + $0x48] sm:$0xff]
  %v3260 = vld [vmem:[%s3249 + $0x50] sm:$0xff]
  %v3261 = vld [vmem:[%s3249 + $0x58] sm:$0xff]
  %v3262 = vld [vmem:[%s3249 + $0x60] sm:$0xff]
  %v3263 = vld [vmem:[%s3249 + $0x68] sm:$0xff]
  %v3264 = vld [vmem:[%s3249 + $0x70] sm:$0xff]
  %v3265 = vld [vmem:[%s3249 + $0x78] sm:$0xff]
  %v3266 = vld [vmem:[%s3249 + $0x80] sm:$0xff]
  %v3267 = vld [vmem:[%s3249 + $0x88] sm:$0xff]
  %3268 = vmatprep.subr.mxu0 0.0
  %3269 = vmatpush1.msra.mxu0 %v3265
  %3270 = vmatprep.subr.mxu0 0.0
  %3271 = vmatpush1.msra.mxu0 %v3264
  %3272 = vmatprep.subr.mxu0 0.0
  %3273 = vmatpush1.msra.mxu0 %v3263
  %3274 = vmatprep.subr.mxu0 0.0
  %3275 = vmatpush1.msra.mxu0 %v3262
  %3276 = vmatprep.subr.mxu0 0.0
  %3277 = vmatpush1.msra.mxu0 %v3261
  %3278 = vmatprep.subr.mxu0 0.0
  %3279 = vmatpush1.msra.mxu0 %v3260
  %3280 = vmatprep.subr.mxu0 0.0
  %3281 = vmatpush1.msra.mxu0 %v3259
  %3282 = vmatprep.subr.mxu0 0.0
  %3283 = vmatpush1.msra.mxu0 %v3258
  %3284 = vmatprep.subr.mxu0 0.0
  %3285 = vmatpush1.msra.mxu0 %v3257
  %3286 = vmatprep.subr.mxu0 0.0
  %3287 = vmatpush1.msra.mxu0 %v3256
  %3288 = vmatprep.subr.mxu0 0.0
  %3289 = vmatpush1.msra.mxu0 %v3255
  %3290 = vmatprep.subr.mxu0 0.0
  %3291 = vmatpush1.msra.mxu0 %v3254
  %3292 = vmatprep.subr.mxu0 0.0
  %3293 = vmatpush1.msra.mxu0 %v3253
  %3294 = vmatprep.subr.mxu0 0.0
  %3295 = vmatpush1.msra.mxu0 %v3252
  %3296 = vmatprep.subr.mxu0 0.0
  %3297 = vmatpush1.msra.mxu0 %v3251
  %3298 = vmatprep.subr.mxu0 0.0
  %3299 = vmatpush1.msra.mxu0 %v3250
  %3300 = vmatprep.subr.mxu0 0.0
  %3301 = vmatpush2.msra.mxu0 0.0
  %3302 = vmatprep.subr.mxu0 0.0
  %3303 = vmatpush2.msra.mxu0 0.0
  %3304 = vmatprep.subr.mxu0 0.0
  %3305 = vmatpush2.msra.mxu0 0.0
  %3306 = vmatprep.subr.mxu0 0.0
  %3307 = vmatpush2.msra.mxu0 0.0
  %3308 = vmatprep.subr.mxu0 0.0
  %3309 = vmatpush2.msra.mxu0 0.0
  %3310 = vmatprep.subr.mxu0 0.0
  %3311 = vmatpush2.msra.mxu0 0.0
  %3312 = vmatprep.subr.mxu0 0.0
  %3313 = vmatpush2.msra.mxu0 0.0
  %3314 = vmatprep.subr.mxu0 0.0
  %3315 = vmatpush2.msra.mxu0 0.0
  %3316 = vmatprep.subr.mxu0 0.0
  %3317 = vmatpush2.msra.mxu0 0.0
  %3318 = vmatprep.subr.mxu0 0.0
  %3319 = vmatpush2.msra.mxu0 0.0
  %3320 = vmatprep.subr.mxu0 0.0
  %3321 = vmatpush2.msra.mxu0 0.0
  %3322 = vmatprep.subr.mxu0 0.0
  %3323 = vmatpush2.msra.mxu0 0.0
  %3324 = vmatprep.subr.mxu0 0.0
  %3325 = vmatpush2.msra.mxu0 0.0
  %3326 = vmatprep.subr.mxu0 0.0
  %3327 = vmatpush2.msra.mxu0 0.0
  %3328 = vmatprep.subr.mxu0 0.0
  %3329 = vmatpush2.msra.mxu0 %v3267
  %3330 = vmatprep.subr.mxu0 0.0
  %3331 = vmatpush2.msra.mxu0 %v3266
  %3332 = vmatprep.mubr.f32.mxu0 %v46
  %3333 = vmatmul.mubr.f32.gmra.mxu0 %v14
  %v3334 = vpop.f32.mrf.mxu0
  %v3335 = vadd.f32 0.0, %v3334
  %v3336 = vpop.f32.mrf.mxu0
  %3337 = vmatprep.mubr.f32.mxu0 %v49
  %3338 = vmatmul.mubr.f32.gmra.mxu0 %v16
  %v3339 = vpop.f32.mrf.mxu0
  %v3340 = vadd.f32 0.0, %v3339
  %v3341 = vpop.f32.mrf.mxu0
  %3342 = vmatprep.mubr.f32.mxu0 %v52
  %3343 = vmatmul.mubr.f32.gmra.mxu0 %v18
  %v3344 = vpop.f32.mrf.mxu0
  %v3345 = vadd.f32 0.0, %v3344
  %v3346 = vpop.f32.mrf.mxu0
  %3347 = vmatprep.mubr.f32.mxu0 %v55
  %3348 = vmatmul.mubr.f32.gmra.mxu0 %v20
  %v3349 = vpop.f32.mrf.mxu0
  %v3350 = vadd.f32 0.0, %v3349
  %v3351 = vpop.f32.mrf.mxu0
  %3352 = vdwg.mxu0
  %s3353 = scalar_lea.vmem %s0, 4320
  %v3354 = vld [vmem:[%s3353] sm:$0xff]
  %v3355 = vld [vmem:[%s3353 + $0x8] sm:$0xff]
  %v3356 = vld [vmem:[%s3353 + $0x10] sm:$0xff]
  %v3357 = vld [vmem:[%s3353 + $0x18] sm:$0xff]
  %v3358 = vld [vmem:[%s3353 + $0x20] sm:$0xff]
  %v3359 = vld [vmem:[%s3353 + $0x28] sm:$0xff]
  %v3360 = vld [vmem:[%s3353 + $0x30] sm:$0xff]
  %v3361 = vld [vmem:[%s3353 + $0x38] sm:$0xff]
  %v3362 = vld [vmem:[%s3353 + $0x40] sm:$0xff]
  %v3363 = vld [vmem:[%s3353 + $0x48] sm:$0xff]
  %v3364 = vld [vmem:[%s3353 + $0x50] sm:$0xff]
  %v3365 = vld [vmem:[%s3353 + $0x58] sm:$0xff]
  %v3366 = vld [vmem:[%s3353 + $0x60] sm:$0xff]
  %v3367 = vld [vmem:[%s3353 + $0x68] sm:$0xff]
  %v3368 = vld [vmem:[%s3353 + $0x70] sm:$0xff]
  %v3369 = vld [vmem:[%s3353 + $0x78] sm:$0xff]
  %v3370 = vld [vmem:[%s3353 + $0x80] sm:$0xff]
  %v3371 = vld [vmem:[%s3353 + $0x88] sm:$0xff]
  %3372 = vmatprep.subr.mxu0 0.0
  %3373 = vmatpush1.msra.mxu0 %v3369
  %3374 = vmatprep.subr.mxu0 0.0
  %3375 = vmatpush1.msra.mxu0 %v3368
  %3376 = vmatprep.subr.mxu0 0.0
  %3377 = vmatpush1.msra.mxu0 %v3367
  %3378 = vmatprep.subr.mxu0 0.0
  %3379 = vmatpush1.msra.mxu0 %v3366
  %3380 = vmatprep.subr.mxu0 0.0
  %3381 = vmatpush1.msra.mxu0 %v3365
  %3382 = vmatprep.subr.mxu0 0.0
  %3383 = vmatpush1.msra.mxu0 %v3364
  %3384 = vmatprep.subr.mxu0 0.0
  %3385 = vmatpush1.msra.mxu0 %v3363
  %3386 = vmatprep.subr.mxu0 0.0
  %3387 = vmatpush1.msra.mxu0 %v3362
  %3388 = vmatprep.subr.mxu0 0.0
  %3389 = vmatpush1.msra.mxu0 %v3361
  %3390 = vmatprep.subr.mxu0 0.0
  %3391 = vmatpush1.msra.mxu0 %v3360
  %3392 = vmatprep.subr.mxu0 0.0
  %3393 = vmatpush1.msra.mxu0 %v3359
  %3394 = vmatprep.subr.mxu0 0.0
  %3395 = vmatpush1.msra.mxu0 %v3358
  %3396 = vmatprep.subr.mxu0 0.0
  %3397 = vmatpush1.msra.mxu0 %v3357
  %3398 = vmatprep.subr.mxu0 0.0
  %3399 = vmatpush1.msra.mxu0 %v3356
  %3400 = vmatprep.subr.mxu0 0.0
  %3401 = vmatpush1.msra.mxu0 %v3355
  %3402 = vmatprep.subr.mxu0 0.0
  %3403 = vmatpush1.msra.mxu0 %v3354
  %3404 = vmatprep.subr.mxu0 0.0
  %3405 = vmatpush2.msra.mxu0 0.0
  %3406 = vmatprep.subr.mxu0 0.0
  %3407 = vmatpush2.msra.mxu0 0.0
  %3408 = vmatprep.subr.mxu0 0.0
  %3409 = vmatpush2.msra.mxu0 0.0
  %3410 = vmatprep.subr.mxu0 0.0
  %3411 = vmatpush2.msra.mxu0 0.0
  %3412 = vmatprep.subr.mxu0 0.0
  %3413 = vmatpush2.msra.mxu0 0.0
  %3414 = vmatprep.subr.mxu0 0.0
  %3415 = vmatpush2.msra.mxu0 0.0
  %3416 = vmatprep.subr.mxu0 0.0
  %3417 = vmatpush2.msra.mxu0 0.0
  %3418 = vmatprep.subr.mxu0 0.0
  %3419 = vmatpush2.msra.mxu0 0.0
  %3420 = vmatprep.subr.mxu0 0.0
  %3421 = vmatpush2.msra.mxu0 0.0
  %3422 = vmatprep.subr.mxu0 0.0
  %3423 = vmatpush2.msra.mxu0 0.0
  %3424 = vmatprep.subr.mxu0 0.0
  %3425 = vmatpush2.msra.mxu0 0.0
  %3426 = vmatprep.subr.mxu0 0.0
  %3427 = vmatpush2.msra.mxu0 0.0
  %3428 = vmatprep.subr.mxu0 0.0
  %3429 = vmatpush2.msra.mxu0 0.0
  %3430 = vmatprep.subr.mxu0 0.0
  %3431 = vmatpush2.msra.mxu0 0.0
  %3432 = vmatprep.subr.mxu0 0.0
  %3433 = vmatpush2.msra.mxu0 %v3371
  %3434 = vmatprep.subr.mxu0 0.0
  %3435 = vmatpush2.msra.mxu0 %v3370
  %3436 = vmatprep.mubr.f32.mxu0 %v46
  %3437 = vmatmul.mubr.f32.gmra.mxu0 %v14
  %v3438 = vpop.f32.mrf.mxu0
  %v3439 = vadd.f32 0.0, %v3438
  %v3440 = vpop.f32.mrf.mxu0
  %3441 = vmatprep.mubr.f32.mxu0 %v49
  %3442 = vmatmul.mubr.f32.gmra.mxu0 %v16
  %v3443 = vpop.f32.mrf.mxu0
  %v3444 = vadd.f32 0.0, %v3443
  %v3445 = vpop.f32.mrf.mxu0
  %3446 = vmatprep.mubr.f32.mxu0 %v52
  %3447 = vmatmul.mubr.f32.gmra.mxu0 %v18
  %v3448 = vpop.f32.mrf.mxu0
  %v3449 = vadd.f32 0.0, %v3448
  %v3450 = vpop.f32.mrf.mxu0
  %3451 = vmatprep.mubr.f32.mxu0 %v55
  %3452 = vmatmul.mubr.f32.gmra.mxu0 %v20
  %v3453 = vpop.f32.mrf.mxu0
  %v3454 = vadd.f32 0.0, %v3453
  %v3455 = vpop.f32.mrf.mxu0
  %3456 = vdwg.mxu0
  %s3457 = scalar_lea.vmem %s0, 4464
  %v3458 = vld [vmem:[%s3457] sm:$0xff]
  %v3459 = vld [vmem:[%s3457 + $0x8] sm:$0xff]
  %v3460 = vld [vmem:[%s3457 + $0x10] sm:$0xff]
  %v3461 = vld [vmem:[%s3457 + $0x18] sm:$0xff]
  %v3462 = vld [vmem:[%s3457 + $0x20] sm:$0xff]
  %v3463 = vld [vmem:[%s3457 + $0x28] sm:$0xff]
  %v3464 = vld [vmem:[%s3457 + $0x30] sm:$0xff]
  %v3465 = vld [vmem:[%s3457 + $0x38] sm:$0xff]
  %v3466 = vld [vmem:[%s3457 + $0x40] sm:$0xff]
  %v3467 = vld [vmem:[%s3457 + $0x48] sm:$0xff]
  %v3468 = vld [vmem:[%s3457 + $0x50] sm:$0xff]
  %v3469 = vld [vmem:[%s3457 + $0x58] sm:$0xff]
  %v3470 = vld [vmem:[%s3457 + $0x60] sm:$0xff]
  %v3471 = vld [vmem:[%s3457 + $0x68] sm:$0xff]
  %v3472 = vld [vmem:[%s3457 + $0x70] sm:$0xff]
  %v3473 = vld [vmem:[%s3457 + $0x78] sm:$0xff]
  %v3474 = vld [vmem:[%s3457 + $0x80] sm:$0xff]
  %v3475 = vld [vmem:[%s3457 + $0x88] sm:$0xff]
  %3476 = vmatprep.subr.mxu0 0.0
  %3477 = vmatpush1.msra.mxu0 %v3473
  %3478 = vmatprep.subr.mxu0 0.0
  %3479 = vmatpush1.msra.mxu0 %v3472
  %3480 = vmatprep.subr.mxu0 0.0
  %3481 = vmatpush1.msra.mxu0 %v3471
  %3482 = vmatprep.subr.mxu0 0.0
  %3483 = vmatpush1.msra.mxu0 %v3470
  %3484 = vmatprep.subr.mxu0 0.0
  %3485 = vmatpush1.msra.mxu0 %v3469
  %3486 = vmatprep.subr.mxu0 0.0
  %3487 = vmatpush1.msra.mxu0 %v3468
  %3488 = vmatprep.subr.mxu0 0.0
  %3489 = vmatpush1.msra.mxu0 %v3467
  %3490 = vmatprep.subr.mxu0 0.0
  %3491 = vmatpush1.msra.mxu0 %v3466
  %3492 = vmatprep.subr.mxu0 0.0
  %3493 = vmatpush1.msra.mxu0 %v3465
  %3494 = vmatprep.subr.mxu0 0.0
  %3495 = vmatpush1.msra.mxu0 %v3464
  %3496 = vmatprep.subr.mxu0 0.0
  %3497 = vmatpush1.msra.mxu0 %v3463
  %3498 = vmatprep.subr.mxu0 0.0
  %3499 = vmatpush1.msra.mxu0 %v3462
  %3500 = vmatprep.subr.mxu0 0.0
  %3501 = vmatpush1.msra.mxu0 %v3461
  %3502 = vmatprep.subr.mxu0 0.0
  %3503 = vmatpush1.msra.mxu0 %v3460
  %3504 = vmatprep.subr.mxu0 0.0
  %3505 = vmatpush1.msra.mxu0 %v3459
  %3506 = vmatprep.subr.mxu0 0.0
  %3507 = vmatpush1.msra.mxu0 %v3458
  %3508 = vmatprep.subr.mxu0 0.0
  %3509 = vmatpush2.msra.mxu0 0.0
  %3510 = vmatprep.subr.mxu0 0.0
  %3511 = vmatpush2.msra.mxu0 0.0
  %3512 = vmatprep.subr.mxu0 0.0
  %3513 = vmatpush2.msra.mxu0 0.0
  %3514 = vmatprep.subr.mxu0 0.0
  %3515 = vmatpush2.msra.mxu0 0.0
  %3516 = vmatprep.subr.mxu0 0.0
  %3517 = vmatpush2.msra.mxu0 0.0
  %3518 = vmatprep.subr.mxu0 0.0
  %3519 = vmatpush2.msra.mxu0 0.0
  %3520 = vmatprep.subr.mxu0 0.0
  %3521 = vmatpush2.msra.mxu0 0.0
  %3522 = vmatprep.subr.mxu0 0.0
  %3523 = vmatpush2.msra.mxu0 0.0
  %3524 = vmatprep.subr.mxu0 0.0
  %3525 = vmatpush2.msra.mxu0 0.0
  %3526 = vmatprep.subr.mxu0 0.0
  %3527 = vmatpush2.msra.mxu0 0.0
  %3528 = vmatprep.subr.mxu0 0.0
  %3529 = vmatpush2.msra.mxu0 0.0
  %3530 = vmatprep.subr.mxu0 0.0
  %3531 = vmatpush2.msra.mxu0 0.0
  %3532 = vmatprep.subr.mxu0 0.0
  %3533 = vmatpush2.msra.mxu0 0.0
  %3534 = vmatprep.subr.mxu0 0.0
  %3535 = vmatpush2.msra.mxu0 0.0
  %3536 = vmatprep.subr.mxu0 0.0
  %3537 = vmatpush2.msra.mxu0 %v3475
  %3538 = vmatprep.subr.mxu0 0.0
  %3539 = vmatpush2.msra.mxu0 %v3474
  %3540 = vmatprep.mubr.f32.mxu0 %v46
  %3541 = vmatmul.mubr.f32.gmra.mxu0 %v14
  %v3542 = vpop.f32.mrf.mxu0
  %v3543 = vadd.f32 0.0, %v3542
  %v3544 = vpop.f32.mrf.mxu0
  %3545 = vmatprep.mubr.f32.mxu0 %v49
  %3546 = vmatmul.mubr.f32.gmra.mxu0 %v16
  %v3547 = vpop.f32.mrf.mxu0
  %v3548 = vadd.f32 0.0, %v3547
  %v3549 = vpop.f32.mrf.mxu0
  %3550 = vmatprep.mubr.f32.mxu0 %v52
  %3551 = vmatmul.mubr.f32.gmra.mxu0 %v18
  %v3552 = vpop.f32.mrf.mxu0
  %v3553 = vadd.f32 0.0, %v3552
  %v3554 = vpop.f32.mrf.mxu0
  %3555 = vmatprep.mubr.f32.mxu0 %v55
  %3556 = vmatmul.mubr.f32.gmra.mxu0 %v20
  %v3557 = vpop.f32.mrf.mxu0
  %v3558 = vadd.f32 0.0, %v3557
  %v3559 = vpop.f32.mrf.mxu0
  %3560 = vdwg.mxu0
  %v3561 = vmax.f32 %v3231, %v3335
  %v3562 = vmax.f32 %v3236, %v3340
  %v3563 = vmax.f32 %v3241, %v3345
  %v3564 = vmax.f32 %v3246, %v3350
  %v3565 = vmax.f32 %v3439, %v3543
  %v3566 = vmax.f32 %v3444, %v3548
  %v3567 = vmax.f32 %v3449, %v3553
  %v3568 = vmax.f32 %v3454, %v3558
  %v3569 = vmax.f32 %v3561, %v3565
  %v3570 = vmax.f32 %v3562, %v3566
  %v3571 = vmax.f32 %v3563, %v3567
  %v3572 = vmax.f32 %v3564, %v3568
  %v3573 = vadd.f32 %v3569, %v469
  %v3574 = vadd.f32 %v3570, %v474
  %v3575 = vadd.f32 %v3571, %v479
  %v3576 = vadd.f32 %v3572, %v484
  %v3577 = vmax.f32 %v3573, 0.0
  %v3578 = vmax.f32 %v3574, 0.0
  %v3579 = vmax.f32 %v3575, 0.0
  %v3580 = vmax.f32 %v3576, 0.0
  %s3581 = scalar_lea.vmem %s3, 224
  %3582 = vst.msk [vmem:[%s3581] sm:$0xff] %vm494, %v3577
  %3583 = vst.msk [vmem:[%s3581 + $0x8] sm:$0xff] %vm494, %v3578
  %3584 = vst.msk [vmem:[%s3581 + $0x10] sm:$0xff] %vm494, %v3579
  %3585 = vst.msk [vmem:[%s3581 + $0x18] sm:$0xff] %vm494, %v3580
  // Predicated region
  $region14: #{net_forward.4} parent=0 // pred_check
    _
  $region15: #{net_forward.4} parent=0 // pred_check_branch
    %3587 = sbr.rel (0) target = $region17
  $region16: #{net_forward.4} parent=0 // pred_region
    _
  $region17: #{net_forward.4} parent=0 // pred_fallthru
    _
  // Predicated region
  $region18: #{net_forward.4} parent=0 // pred_check
    _
  $region19: #{net_forward.4} parent=0 // pred_check_branch
    %3589 = sbr.rel (0) target = $region21
  $region20: #{net_forward.4} parent=0 // pred_region
    _
  $region21: #{net_forward.4} parent=0 // pred_fallthru
    _

</llo_original>
